<compile_context>
chip_gen: v7x
topology: tpu7x:2x2x1
jax: 0.10.0
libtpu: 0.0.40
codegen_flags: <defaults>
</compile_context>

<pallas_src>
import functools

import numpy as np

import jax
import jax.numpy as jnp
from jax.experimental import pallas as pl
from jax.experimental.pallas import tpu as pltpu


_CHANNELS = (32, 64, 128, 256)   # fixed channel progression of the module


# ------------------------------- fused kernel -------------------------------

def _encoder_kernel(x_ref,
                    w1, b1, m1, w2, b2, m2, w3, b3, m3, w4, b4, m4,
                    s1, s2, s3,
                    fcw, fcb, gamma, beta,
                    out_ref,
                    xb1, xb2, xb3, xb4,
                    *, H, W, cin):
    """One grid step = one image, end to end, entirely in VMEM."""

    def conv_relu(buf, data, w_ref, b_ref, m_ref, Hs, Ws, Ci, Co):
        S = Hs * Ws
        # Zero halo rows, then place the activation at rows [Ws+1, Ws+1+S).
        buf[...] = jnp.zeros(buf.shape, buf.dtype)
        buf[pl.ds(Ws + 1, S), :] = data
        mask_l = m_ref[0]          # (S, 1): 0 where column w-1 is out of range
        mask_r = m_ref[1]          # (S, 1): 0 where column w+1 is out of range
        acc = jnp.zeros((S, Co), jnp.float32)
        for kh in range(3):
            for kw in range(3):
                tap = buf[pl.ds(kh * Ws + kw, S), :]           # shifted (S, Ci)
                if kw == 0:
                    tap = tap * mask_l
                elif kw == 2:
                    tap = tap * mask_r
                wt = w_ref[pl.ds((3 * kh + kw) * Ci, Ci), :]   # (Ci, Co)
                if Ci == 1:
                    acc = acc + tap * wt                       # VPU outer product
                else:
                    acc = acc + jnp.dot(tap, wt,
                                        preferred_element_type=jnp.float32)
        return jnp.maximum(acc + b_ref[...], 0.0)

    def maxpool2(y, sel_ref):
        # sel_ref: (4, So, S) one-hot gather matrices; exact row picks via MXU.
        out = None
        for k in range(4):
            pick = jnp.dot(sel_ref[k], y, preferred_element_type=jnp.float32)
            out = pick if out is None else jnp.maximum(out, pick)
        return out

    a = x_ref[...]                                                   # (H*W, cin)
    a = maxpool2(conv_relu(xb1, a, w1, b1, m1, H, W, cin, 32), s1)
    a = maxpool2(conv_relu(xb2, a, w2, b2, m2, H // 2, W // 2, 32, 64), s2)
    a = maxpool2(conv_relu(xb3, a, w3, b3, m3, H // 4, W // 4, 64, 128), s3)
    a = conv_relu(xb4, a, w4, b4, m4, H // 8, W // 8, 128, 256)      # (S/64, 256)

    # Head: AdaptiveAvgPool2d((1,1)) + Linear + LayerNorm (fused epilogue).
    pooled = jnp.mean(a, axis=0, keepdims=True)                      # (1, 256)
    h = jnp.dot(pooled, fcw[...], preferred_element_type=jnp.float32) + fcb[...]
    mu = jnp.mean(h, axis=-1, keepdims=True)
    var = jnp.mean(jnp.square(h - mu), axis=-1, keepdims=True)
    h = (h - mu) * jax.lax.rsqrt(var + 1e-5)
    out_ref[...] = (h * gamma[...] + beta[...]).astype(out_ref.dtype)


# --------------------------- host-side constants -----------------------------

def _conv_col_masks(Hs, Ws):
    w = np.arange(Hs * Ws, dtype=np.int32) % Ws
    ml = (w > 0).astype(np.float32)
    mr = (w < Ws - 1).astype(np.float32)
    return np.stack([ml, mr], axis=0).reshape(2, Hs * Ws, 1)


def _pool_gather(Hs, Ws):
    Ho, Wo = Hs // 2, Ws // 2
    S, So = Hs * Ws, Ho * Wo
    sel = np.zeros((4, So, S), np.float32)
    for j in range(So):
        ho, wo = divmod(j, Wo)
        base = 2 * ho * Ws + 2 * wo
        for k, off in enumerate((0, 1, Ws, Ws + 1)):
            sel[k, j, base + off] = 1.0
    return sel


def _conv_weight_matrix(w_oihw):
    # OIHW -> rows ordered (kh, kw, ci), columns = co  (matches kernel slicing).
    return jnp.transpose(w_oihw, (2, 3, 1, 0)).reshape(-1, w_oihw.shape[0])


# --------------------------------- wrapper -----------------------------------

@jax.jit
def encoder_forward(x_nchw, params):
    N, Cin, H, W = x_nchw.shape
    if H % 8 or W % 8:
        raise ValueError("H and W must be divisible by 8 (three 2x2 max-pools).")
    D = params["fc_w"].shape[0]
    S = H * W
    chans = (Cin,) + _CHANNELS
    spatial = [(H >> i, W >> i) for i in range(4)]

    x_flat = jnp.transpose(x_nchw, (0, 2, 3, 1)).reshape(N, S, Cin)

    inputs = [x_flat]
    for i in range(4):
        inputs += [_conv_weight_matrix(params[f"w{i + 1}"]),
                   params[f"b{i + 1}"].reshape(1, chans[i + 1]),
                   jnp.asarray(_conv_col_masks(*spatial[i]))]
    inputs += [jnp.asarray(_pool_gather(*spatial[i])) for i in range(3)]
    inputs += [params["fc_w"].T, params["fc_b"].reshape(1, D),
               params["ln_g"].reshape(1, D), params["ln_b"].reshape(1, D)]

    def full_block(a):
        zeros = (0,) * a.ndim
        return pl.BlockSpec(a.shape, lambda n: zeros)

    in_specs = [pl.BlockSpec((None, S, Cin), lambda n: (n, 0, 0))]
    in_specs += [full_block(a) for a in inputs[1:]]

    scratch_shapes = [
        pltpu.VMEM((h * w + 2 * w + 2, c), jnp.float32)
        for (h, w), c in zip(spatial, chans[:4])
    ]

    conv_flops = sum(2 * (h * w) * 9 * ci * co
                     for (h, w), ci, co in zip(spatial, chans[:4], chans[1:]))
    flops = int(N * (conv_flops + 2 * 256 * D))
    bytes_accessed = int(4 * (x_flat.size
                              + sum(int(np.prod(a.shape)) for a in inputs[1:])
                              + N * D))

    out = pl.pallas_call(
        functools.partial(_encoder_kernel, H=H, W=W, cin=Cin),
        out_shape=jax.ShapeDtypeStruct((N, 1, D), jnp.float32),
        grid=(N,),
        in_specs=in_specs,
        out_specs=pl.BlockSpec((None, 1, D), lambda n: (n, 0, 0)),
        scratch_shapes=scratch_shapes,
        compiler_params=pltpu.CompilerParams(
            dimension_semantics=("parallel",)),
        cost_estimate=pl.CostEstimate(flops=flops, transcendentals=2 * N,
                                      bytes_accessed=bytes_accessed),
    )(*inputs)
    return out.reshape(N, D)


# ----------------------- params + pure-JAX reference -------------------------

def init_params(key, input_channels=1, embedding_dim=128):
    dims = [(32, input_channels), (64, 32), (128, 64), (256, 128)]
    params = {}
    keys = jax.random.split(key, 6)
    for i, (cout, cin) in enumerate(dims, start=1):
        std = 1.0 / jnp.sqrt(cin * 9.0)
        params[f"w{i}"] = std * jax.random.normal(keys[i - 1], (cout, cin, 3, 3),
                                                  jnp.float32)
        params[f"b{i}"] = jnp.zeros((cout,), jnp.float32)
    params["fc_w"] = (1.0 / jnp.sqrt(256.0)) * jax.random.normal(
        keys[4], (embedding_dim, 256), jnp.float32)
    params["fc_b"] = 0.01 * jax.random.normal(keys[5], (embedding_dim,),
                                              jnp.float32)
    params["ln_g"] = jnp.ones((embedding_dim,), jnp.float32)
    params["ln_b"] = jnp.zeros((embedding_dim,), jnp.float32)
    return params


def reference_forward(x_nchw, params):
    def conv(x, w, b):
        y = jax.lax.conv_general_dilated(
            x, w, (1, 1), "SAME", dimension_numbers=("NCHW", "OIHW", "NCHW"))
        return jax.nn.relu(y + b[None, :, None, None])

    def pool(x):
        return jax.lax.reduce_window(x, -jnp.inf, jax.lax.max,
                                     (1, 1, 2, 2), (1, 1, 2, 2), "VALID")

    x = pool(conv(x_nchw, params["w1"], params["b1"]))
    x = pool(conv(x, params["w2"], params["b2"]))
    x = pool(conv(x, params["w3"], params["b3"]))
    x = conv(x, params["w4"], params["b4"])
    x = jnp.mean(x, axis=(2, 3))
    y = x @ params["fc_w"].T + params["fc_b"]
    mu = jnp.mean(y, axis=-1, keepdims=True)
    var = jnp.mean(jnp.square(y - mu), axis=-1, keepdims=True)
    return (y - mu) / jnp.sqrt(var + 1e-5) * params["ln_g"] + params["ln_b"]


if __name__ == "__main__":
    kx, kp = jax.random.split(jax.random.PRNGKey(0))
    x = jax.random.normal(kx, (2, 1, 16, 16), jnp.float32)   # NCHW, like PyTorch
    params = init_params(kp)

    out = jax.block_until_ready(encoder_forward(x, params))
    assert out.shape == (2, 128), out.shape

    ref = reference_forward(x, params)
    err = float(jnp.max(jnp.abs(out - ref)))
    assert err < 2e-3, f"max abs err {err}"

    print("KERNEL_OK")
</pallas_src>

<mosaic_0001>
module attributes {stable_mosaic.version = 11 : i64} {
  func.func @_encoder_kernel(%arg0: i32, %arg1: memref<1x256x1xf32, #tpu.memory_space<vmem>>, %arg2: memref<9x32xf32, #tpu.memory_space<vmem>>, %arg3: memref<1x32xf32, #tpu.memory_space<vmem>>, %arg4: memref<2x256x1xf32, #tpu.memory_space<vmem>>, %arg5: memref<288x64xf32, #tpu.memory_space<vmem>>, %arg6: memref<1x64xf32, #tpu.memory_space<vmem>>, %arg7: memref<2x64x1xf32, #tpu.memory_space<vmem>>, %arg8: memref<576x128xf32, #tpu.memory_space<vmem>>, %arg9: memref<1x128xf32, #tpu.memory_space<vmem>>, %arg10: memref<2x16x1xf32, #tpu.memory_space<vmem>>, %arg11: memref<1152x256xf32, #tpu.memory_space<vmem>>, %arg12: memref<1x256xf32, #tpu.memory_space<vmem>>, %arg13: memref<2x4x1xf32, #tpu.memory_space<vmem>>, %arg14: memref<4x64x256xf32, #tpu.memory_space<vmem>>, %arg15: memref<4x16x64xf32, #tpu.memory_space<vmem>>, %arg16: memref<4x4x16xf32, #tpu.memory_space<vmem>>, %arg17: memref<256x128xf32, #tpu.memory_space<vmem>>, %arg18: memref<1x128xf32, #tpu.memory_space<vmem>>, %arg19: memref<1x128xf32, #tpu.memory_space<vmem>>, %arg20: memref<1x128xf32, #tpu.memory_space<vmem>>, %arg21: memref<1x1x128xf32, #tpu.memory_space<vmem>>, %arg22: memref<290x1xf32, #tpu.memory_space<vmem>>, %arg23: memref<82x32xf32, #tpu.memory_space<vmem>>, %arg24: memref<26x64xf32, #tpu.memory_space<vmem>>, %arg25: memref<10x128xf32, #tpu.memory_space<vmem>>) attributes {dimension_semantics = [#tpu.dimension_semantics<parallel>], iteration_bounds = array<i64: 2>, scalar_prefetch = 0 : i64, scratch_operands = 4 : i64, tpu.core_type = #tpu.core_type<tc>, window_params = [{transform_indices = @transform_0, window_bounds = array<i64: 1, 256, 1>}, {pipeline_mode = #tpu.pipeline_mode<synchronous>, transform_indices = @transform_1, window_bounds = array<i64: 9, 32>}, {pipeline_mode = #tpu.pipeline_mode<synchronous>, transform_indices = @transform_2, window_bounds = array<i64: 1, 32>}, {pipeline_mode = #tpu.pipeline_mode<synchronous>, transform_indices = @transform_3, window_bounds = array<i64: 2, 256, 1>}, {pipeline_mode = #tpu.pipeline_mode<synchronous>, transform_indices = @transform_4, window_bounds = array<i64: 288, 64>}, {pipeline_mode = #tpu.pipeline_mode<synchronous>, transform_indices = @transform_5, window_bounds = array<i64: 1, 64>}, {pipeline_mode = #tpu.pipeline_mode<synchronous>, transform_indices = @transform_6, window_bounds = array<i64: 2, 64, 1>}, {pipeline_mode = #tpu.pipeline_mode<synchronous>, transform_indices = @transform_7, window_bounds = array<i64: 576, 128>}, {pipeline_mode = #tpu.pipeline_mode<synchronous>, transform_indices = @transform_8, window_bounds = array<i64: 1, 128>}, {pipeline_mode = #tpu.pipeline_mode<synchronous>, transform_indices = @transform_9, window_bounds = array<i64: 2, 16, 1>}, {pipeline_mode = #tpu.pipeline_mode<synchronous>, transform_indices = @transform_10, window_bounds = array<i64: 1152, 256>}, {pipeline_mode = #tpu.pipeline_mode<synchronous>, transform_indices = @transform_11, window_bounds = array<i64: 1, 256>}, {pipeline_mode = #tpu.pipeline_mode<synchronous>, transform_indices = @transform_12, window_bounds = array<i64: 2, 4, 1>}, {pipeline_mode = #tpu.pipeline_mode<synchronous>, transform_indices = @transform_13, window_bounds = array<i64: 4, 64, 256>}, {pipeline_mode = #tpu.pipeline_mode<synchronous>, transform_indices = @transform_14, window_bounds = array<i64: 4, 16, 64>}, {pipeline_mode = #tpu.pipeline_mode<synchronous>, transform_indices = @transform_15, window_bounds = array<i64: 4, 4, 16>}, {pipeline_mode = #tpu.pipeline_mode<synchronous>, transform_indices = @transform_16, window_bounds = array<i64: 256, 128>}, {pipeline_mode = #tpu.pipeline_mode<synchronous>, transform_indices = @transform_17, window_bounds = array<i64: 1, 128>}, {pipeline_mode = #tpu.pipeline_mode<synchronous>, transform_indices = @transform_18, window_bounds = array<i64: 1, 128>}, {pipeline_mode = #tpu.pipeline_mode<synchronous>, transform_indices = @transform_19, window_bounds = array<i64: 1, 128>}, {transform_indices = @transform_20, window_bounds = array<i64: 1, 1, 128>}]} {
    %c0 = arith.constant 0 : index
    %c0_0 = arith.constant 0 : index
    %c0_1 = arith.constant 0 : index
    %0 = vector.load %arg1[%c0, %c0_0, %c0_1] : memref<1x256x1xf32, #tpu.memory_space<vmem>>, vector<1x256x1xf32>
    %1 = vector.shape_cast %0 : vector<1x256x1xf32> to vector<256x1xf32>
    %cst = arith.constant 0.000000e+00 : f32
    %2 = vector.broadcast %cst : f32 to vector<290x1xf32>
    %c0_2 = arith.constant 0 : index
    %c0_3 = arith.constant 0 : index
    %3 = vector.load %arg22[%c0_2, %c0_3] : memref<290x1xf32, #tpu.memory_space<vmem>>, vector<290x1xf32>
    tpu.vector_store %arg22[%c0_2, %c0_3], %2 {strides = array<i32>} : memref<290x1xf32, #tpu.memory_space<vmem>>, vector<290x1xf32>,
    %c17 = arith.constant 17 : index
    %c0_4 = arith.constant 0 : index
    %4 = vector.load %arg22[%c17, %c0_4] : memref<290x1xf32, #tpu.memory_space<vmem>>, vector<256x1xf32>
    tpu.vector_store %arg22[%c17, %c0_4], %1 {strides = array<i32>} : memref<290x1xf32, #tpu.memory_space<vmem>>, vector<256x1xf32>,
    %c0_5 = arith.constant 0 : index
    %c0_6 = arith.constant 0 : index
    %c0_7 = arith.constant 0 : index
    %5 = vector.load %arg4[%c0_5, %c0_6, %c0_7] : memref<2x256x1xf32, #tpu.memory_space<vmem>>, vector<1x256x1xf32>
    %6 = vector.shape_cast %5 : vector<1x256x1xf32> to vector<256x1xf32>
    %c1 = arith.constant 1 : index
    %c0_8 = arith.constant 0 : index
    %c0_9 = arith.constant 0 : index
    %7 = vector.load %arg4[%c1, %c0_8, %c0_9] : memref<2x256x1xf32, #tpu.memory_space<vmem>>, vector<1x256x1xf32>
    %8 = vector.shape_cast %7 : vector<1x256x1xf32> to vector<256x1xf32>
    %cst_10 = arith.constant 0.000000e+00 : f32
    %9 = vector.broadcast %cst_10 : f32 to vector<256x32xf32>
    %c0_11 = arith.constant 0 : index
    %c0_12 = arith.constant 0 : index
    %10 = vector.load %arg22[%c0_11, %c0_12] : memref<290x1xf32, #tpu.memory_space<vmem>>, vector<256x1xf32>
    %11 = arith.mulf %10, %6 : vector<256x1xf32>
    %c0_13 = arith.constant 0 : index
    %c0_14 = arith.constant 0 : index
    %12 = vector.load %arg2[%c0_13, %c0_14] : memref<9x32xf32, #tpu.memory_space<vmem>>, vector<1x32xf32>
    %13 = vector.broadcast %11 : vector<256x1xf32> to vector<256x32xf32>
    %14 = vector.broadcast %12 : vector<1x32xf32> to vector<256x32xf32>
    %15 = arith.mulf %13, %14 : vector<256x32xf32>
    %16 = arith.addf %9, %15 : vector<256x32xf32>
    %c1_15 = arith.constant 1 : index
    %c0_16 = arith.constant 0 : index
    %17 = vector.load %arg22[%c1_15, %c0_16] : memref<290x1xf32, #tpu.memory_space<vmem>>, vector<256x1xf32>
    %c1_17 = arith.constant 1 : index
    %c0_18 = arith.constant 0 : index
    %18 = vector.load %arg2[%c1_17, %c0_18] : memref<9x32xf32, #tpu.memory_space<vmem>>, vector<1x32xf32>
    %19 = vector.broadcast %17 : vector<256x1xf32> to vector<256x32xf32>
    %20 = vector.broadcast %18 : vector<1x32xf32> to vector<256x32xf32>
    %21 = arith.mulf %19, %20 : vector<256x32xf32>
    %22 = arith.addf %16, %21 : vector<256x32xf32>
    %c2 = arith.constant 2 : index
    %c0_19 = arith.constant 0 : index
    %23 = vector.load %arg22[%c2, %c0_19] : memref<290x1xf32, #tpu.memory_space<vmem>>, vector<256x1xf32>
    %24 = arith.mulf %23, %8 : vector<256x1xf32>
    %c2_20 = arith.constant 2 : index
    %c0_21 = arith.constant 0 : index
    %25 = vector.load %arg2[%c2_20, %c0_21] : memref<9x32xf32, #tpu.memory_space<vmem>>, vector<1x32xf32>
    %26 = vector.broadcast %24 : vector<256x1xf32> to vector<256x32xf32>
    %27 = vector.broadcast %25 : vector<1x32xf32> to vector<256x32xf32>
    %28 = arith.mulf %26, %27 : vector<256x32xf32>
    %29 = arith.addf %22, %28 : vector<256x32xf32>
    %c16 = arith.constant 16 : index
    %c0_22 = arith.constant 0 : index
    %30 = vector.load %arg22[%c16, %c0_22] : memref<290x1xf32, #tpu.memory_space<vmem>>, vector<256x1xf32>
    %31 = arith.mulf %30, %6 : vector<256x1xf32>
    %c3 = arith.constant 3 : index
    %c0_23 = arith.constant 0 : index
    %32 = vector.load %arg2[%c3, %c0_23] : memref<9x32xf32, #tpu.memory_space<vmem>>, vector<1x32xf32>
    %33 = vector.broadcast %31 : vector<256x1xf32> to vector<256x32xf32>
    %34 = vector.broadcast %32 : vector<1x32xf32> to vector<256x32xf32>
    %35 = arith.mulf %33, %34 : vector<256x32xf32>
    %36 = arith.addf %29, %35 : vector<256x32xf32>
    %c17_24 = arith.constant 17 : index
    %c0_25 = arith.constant 0 : index
    %37 = vector.load %arg22[%c17_24, %c0_25] : memref<290x1xf32, #tpu.memory_space<vmem>>, vector<256x1xf32>
    %c4 = arith.constant 4 : index
    %c0_26 = arith.constant 0 : index
    %38 = vector.load %arg2[%c4, %c0_26] : memref<9x32xf32, #tpu.memory_space<vmem>>, vector<1x32xf32>
    %39 = vector.broadcast %37 : vector<256x1xf32> to vector<256x32xf32>
    %40 = vector.broadcast %38 : vector<1x32xf32> to vector<256x32xf32>
    %41 = arith.mulf %39, %40 : vector<256x32xf32>
    %42 = arith.addf %36, %41 : vector<256x32xf32>
    %c18 = arith.constant 18 : index
    %c0_27 = arith.constant 0 : index
    %43 = vector.load %arg22[%c18, %c0_27] : memref<290x1xf32, #tpu.memory_space<vmem>>, vector<256x1xf32>
    %44 = arith.mulf %43, %8 : vector<256x1xf32>
    %c5 = arith.constant 5 : index
    %c0_28 = arith.constant 0 : index
    %45 = vector.load %arg2[%c5, %c0_28] : memref<9x32xf32, #tpu.memory_space<vmem>>, vector<1x32xf32>
    %46 = vector.broadcast %44 : vector<256x1xf32> to vector<256x32xf32>
    %47 = vector.broadcast %45 : vector<1x32xf32> to vector<256x32xf32>
    %48 = arith.mulf %46, %47 : vector<256x32xf32>
    %49 = arith.addf %42, %48 : vector<256x32xf32>
    %c32 = arith.constant 32 : index
    %c0_29 = arith.constant 0 : index
    %50 = vector.load %arg22[%c32, %c0_29] : memref<290x1xf32, #tpu.memory_space<vmem>>, vector<256x1xf32>
    %51 = arith.mulf %50, %6 : vector<256x1xf32>
    %c6 = arith.constant 6 : index
    %c0_30 = arith.constant 0 : index
    %52 = vector.load %arg2[%c6, %c0_30] : memref<9x32xf32, #tpu.memory_space<vmem>>, vector<1x32xf32>
    %53 = vector.broadcast %51 : vector<256x1xf32> to vector<256x32xf32>
    %54 = vector.broadcast %52 : vector<1x32xf32> to vector<256x32xf32>
    %55 = arith.mulf %53, %54 : vector<256x32xf32>
    %56 = arith.addf %49, %55 : vector<256x32xf32>
    %c33 = arith.constant 33 : index
    %c0_31 = arith.constant 0 : index
    %57 = vector.load %arg22[%c33, %c0_31] : memref<290x1xf32, #tpu.memory_space<vmem>>, vector<256x1xf32>
    %c7 = arith.constant 7 : index
    %c0_32 = arith.constant 0 : index
    %58 = vector.load %arg2[%c7, %c0_32] : memref<9x32xf32, #tpu.memory_space<vmem>>, vector<1x32xf32>
    %59 = vector.broadcast %57 : vector<256x1xf32> to vector<256x32xf32>
    %60 = vector.broadcast %58 : vector<1x32xf32> to vector<256x32xf32>
    %61 = arith.mulf %59, %60 : vector<256x32xf32>
    %62 = arith.addf %56, %61 : vector<256x32xf32>
    %c34 = arith.constant 34 : index
    %c0_33 = arith.constant 0 : index
    %63 = vector.load %arg22[%c34, %c0_33] : memref<290x1xf32, #tpu.memory_space<vmem>>, vector<256x1xf32>
    %64 = arith.mulf %63, %8 : vector<256x1xf32>
    %c8 = arith.constant 8 : index
    %c0_34 = arith.constant 0 : index
    %65 = vector.load %arg2[%c8, %c0_34] : memref<9x32xf32, #tpu.memory_space<vmem>>, vector<1x32xf32>
    %66 = vector.broadcast %64 : vector<256x1xf32> to vector<256x32xf32>
    %67 = vector.broadcast %65 : vector<1x32xf32> to vector<256x32xf32>
    %68 = arith.mulf %66, %67 : vector<256x32xf32>
    %69 = arith.addf %62, %68 : vector<256x32xf32>
    %c0_35 = arith.constant 0 : index
    %c0_36 = arith.constant 0 : index
    %70 = vector.load %arg3[%c0_35, %c0_36] : memref<1x32xf32, #tpu.memory_space<vmem>>, vector<1x32xf32>
    %71 = vector.broadcast %70 : vector<1x32xf32> to vector<256x32xf32>
    %72 = arith.addf %69, %71 : vector<256x32xf32>
    %cst_37 = arith.constant 0.000000e+00 : f32
    %73 = vector.broadcast %cst_37 : f32 to vector<256x32xf32>
    %74 = arith.maximumf %72, %73 : vector<256x32xf32>
    %c0_38 = arith.constant 0 : index
    %c0_39 = arith.constant 0 : index
    %c0_40 = arith.constant 0 : index
    %75 = vector.load %arg14[%c0_38, %c0_39, %c0_40] : memref<4x64x256xf32, #tpu.memory_space<vmem>>, vector<1x64x256xf32>
    %76 = vector.shape_cast %75 : vector<1x64x256xf32> to vector<64x256xf32>
    %cst_41 = arith.constant dense<0.000000e+00> : vector<64x32xf32>
    %77 = tpu.matmul %76, %74, %cst_41 {dimension_numbers = #tpu.dot_dimension_numbers<[1], [0], [0], [1], [0, 0, 1, 1], [], []>} : vector<64x256xf32>, vector<256x32xf32>, vector<64x32xf32> -> vector<64x32xf32>
    %c1_42 = arith.constant 1 : index
    %c0_43 = arith.constant 0 : index
    %c0_44 = arith.constant 0 : index
    %78 = vector.load %arg14[%c1_42, %c0_43, %c0_44] : memref<4x64x256xf32, #tpu.memory_space<vmem>>, vector<1x64x256xf32>
    %79 = vector.shape_cast %78 : vector<1x64x256xf32> to vector<64x256xf32>
    %cst_45 = arith.constant dense<0.000000e+00> : vector<64x32xf32>
    %80 = tpu.matmul %79, %74, %cst_45 {dimension_numbers = #tpu.dot_dimension_numbers<[1], [0], [0], [1], [0, 0, 1, 1], [], []>} : vector<64x256xf32>, vector<256x32xf32>, vector<64x32xf32> -> vector<64x32xf32>
    %81 = arith.maximumf %77, %80 : vector<64x32xf32>
    %c2_46 = arith.constant 2 : index
    %c0_47 = arith.constant 0 : index
    %c0_48 = arith.constant 0 : index
    %82 = vector.load %arg14[%c2_46, %c0_47, %c0_48] : memref<4x64x256xf32, #tpu.memory_space<vmem>>, vector<1x64x256xf32>
    %83 = vector.shape_cast %82 : vector<1x64x256xf32> to vector<64x256xf32>
    %cst_49 = arith.constant dense<0.000000e+00> : vector<64x32xf32>
    %84 = tpu.matmul %83, %74, %cst_49 {dimension_numbers = #tpu.dot_dimension_numbers<[1], [0], [0], [1], [0, 0, 1, 1], [], []>} : vector<64x256xf32>, vector<256x32xf32>, vector<64x32xf32> -> vector<64x32xf32>
    %85 = arith.maximumf %81, %84 : vector<64x32xf32>
    %c3_50 = arith.constant 3 : index
    %c0_51 = arith.constant 0 : index
    %c0_52 = arith.constant 0 : index
    %86 = vector.load %arg14[%c3_50, %c0_51, %c0_52] : memref<4x64x256xf32, #tpu.memory_space<vmem>>, vector<1x64x256xf32>
    %87 = vector.shape_cast %86 : vector<1x64x256xf32> to vector<64x256xf32>
    %cst_53 = arith.constant dense<0.000000e+00> : vector<64x32xf32>
    %88 = tpu.matmul %87, %74, %cst_53 {dimension_numbers = #tpu.dot_dimension_numbers<[1], [0], [0], [1], [0, 0, 1, 1], [], []>} : vector<64x256xf32>, vector<256x32xf32>, vector<64x32xf32> -> vector<64x32xf32>
    %89 = arith.maximumf %85, %88 : vector<64x32xf32>
    %cst_54 = arith.constant 0.000000e+00 : f32
    %90 = vector.broadcast %cst_54 : f32 to vector<82x32xf32>
    %c0_55 = arith.constant 0 : index
    %c0_56 = arith.constant 0 : index
    %91 = vector.load %arg23[%c0_55, %c0_56] : memref<82x32xf32, #tpu.memory_space<vmem>>, vector<82x32xf32>
    tpu.vector_store %arg23[%c0_55, %c0_56], %90 {strides = array<i32>} : memref<82x32xf32, #tpu.memory_space<vmem>>, vector<82x32xf32>,
    %c9 = arith.constant 9 : index
    %c0_57 = arith.constant 0 : index
    %92 = vector.load %arg23[%c9, %c0_57] : memref<82x32xf32, #tpu.memory_space<vmem>>, vector<64x32xf32>
    tpu.vector_store %arg23[%c9, %c0_57], %89 {strides = array<i32>} : memref<82x32xf32, #tpu.memory_space<vmem>>, vector<64x32xf32>,
    %c0_58 = arith.constant 0 : index
    %c0_59 = arith.constant 0 : index
    %c0_60 = arith.constant 0 : index
    %93 = vector.load %arg7[%c0_58, %c0_59, %c0_60] : memref<2x64x1xf32, #tpu.memory_space<vmem>>, vector<1x64x1xf32>
    %94 = vector.shape_cast %93 : vector<1x64x1xf32> to vector<64x1xf32>
    %c1_61 = arith.constant 1 : index
    %c0_62 = arith.constant 0 : index
    %c0_63 = arith.constant 0 : index
    %95 = vector.load %arg7[%c1_61, %c0_62, %c0_63] : memref<2x64x1xf32, #tpu.memory_space<vmem>>, vector<1x64x1xf32>
    %96 = vector.shape_cast %95 : vector<1x64x1xf32> to vector<64x1xf32>
    %cst_64 = arith.constant 0.000000e+00 : f32
    %97 = vector.broadcast %cst_64 : f32 to vector<64x64xf32>
    %c0_65 = arith.constant 0 : index
    %c0_66 = arith.constant 0 : index
    %98 = vector.load %arg23[%c0_65, %c0_66] : memref<82x32xf32, #tpu.memory_space<vmem>>, vector<64x32xf32>
    %99 = vector.broadcast %94 : vector<64x1xf32> to vector<64x32xf32>
    %100 = arith.mulf %98, %99 : vector<64x32xf32>
    %c0_67 = arith.constant 0 : index
    %c0_68 = arith.constant 0 : index
    %101 = vector.load %arg5[%c0_67, %c0_68] : memref<288x64xf32, #tpu.memory_space<vmem>>, vector<32x64xf32>
    %cst_69 = arith.constant dense<0.000000e+00> : vector<64x64xf32>
    %102 = tpu.matmul %100, %101, %cst_69 {dimension_numbers = #tpu.dot_dimension_numbers<[1], [0], [0], [1], [0, 0, 1, 1], [], []>} : vector<64x32xf32>, vector<32x64xf32>, vector<64x64xf32> -> vector<64x64xf32>
    %103 = arith.addf %97, %102 : vector<64x64xf32>
    %c1_70 = arith.constant 1 : index
    %c0_71 = arith.constant 0 : index
    %104 = vector.load %arg23[%c1_70, %c0_71] : memref<82x32xf32, #tpu.memory_space<vmem>>, vector<64x32xf32>
    %c32_72 = arith.constant 32 : index
    %c0_73 = arith.constant 0 : index
    %105 = vector.load %arg5[%c32_72, %c0_73] : memref<288x64xf32, #tpu.memory_space<vmem>>, vector<32x64xf32>
    %cst_74 = arith.constant dense<0.000000e+00> : vector<64x64xf32>
    %106 = tpu.matmul %104, %105, %cst_74 {dimension_numbers = #tpu.dot_dimension_numbers<[1], [0], [0], [1], [0, 0, 1, 1], [], []>} : vector<64x32xf32>, vector<32x64xf32>, vector<64x64xf32> -> vector<64x64xf32>
    %107 = arith.addf %103, %106 : vector<64x64xf32>
    %c2_75 = arith.constant 2 : index
    %c0_76 = arith.constant 0 : index
    %108 = vector.load %arg23[%c2_75, %c0_76] : memref<82x32xf32, #tpu.memory_space<vmem>>, vector<64x32xf32>
    %109 = vector.broadcast %96 : vector<64x1xf32> to vector<64x32xf32>
    %110 = arith.mulf %108, %109 : vector<64x32xf32>
    %c64 = arith.constant 64 : index
    %c0_77 = arith.constant 0 : index
    %111 = vector.load %arg5[%c64, %c0_77] : memref<288x64xf32, #tpu.memory_space<vmem>>, vector<32x64xf32>
    %cst_78 = arith.constant dense<0.000000e+00> : vector<64x64xf32>
    %112 = tpu.matmul %110, %111, %cst_78 {dimension_numbers = #tpu.dot_dimension_numbers<[1], [0], [0], [1], [0, 0, 1, 1], [], []>} : vector<64x32xf32>, vector<32x64xf32>, vector<64x64xf32> -> vector<64x64xf32>
    %113 = arith.addf %107, %112 : vector<64x64xf32>
    %c8_79 = arith.constant 8 : index
    %c0_80 = arith.constant 0 : index
    %114 = vector.load %arg23[%c8_79, %c0_80] : memref<82x32xf32, #tpu.memory_space<vmem>>, vector<64x32xf32>
    %115 = vector.broadcast %94 : vector<64x1xf32> to vector<64x32xf32>
    %116 = arith.mulf %114, %115 : vector<64x32xf32>
    %c96 = arith.constant 96 : index
    %c0_81 = arith.constant 0 : index
    %117 = vector.load %arg5[%c96, %c0_81] : memref<288x64xf32, #tpu.memory_space<vmem>>, vector<32x64xf32>
    %cst_82 = arith.constant dense<0.000000e+00> : vector<64x64xf32>
    %118 = tpu.matmul %116, %117, %cst_82 {dimension_numbers = #tpu.dot_dimension_numbers<[1], [0], [0], [1], [0, 0, 1, 1], [], []>} : vector<64x32xf32>, vector<32x64xf32>, vector<64x64xf32> -> vector<64x64xf32>
    %119 = arith.addf %113, %118 : vector<64x64xf32>
    %c9_83 = arith.constant 9 : index
    %c0_84 = arith.constant 0 : index
    %120 = vector.load %arg23[%c9_83, %c0_84] : memref<82x32xf32, #tpu.memory_space<vmem>>, vector<64x32xf32>
    %c128 = arith.constant 128 : index
    %c0_85 = arith.constant 0 : index
    %121 = vector.load %arg5[%c128, %c0_85] : memref<288x64xf32, #tpu.memory_space<vmem>>, vector<32x64xf32>
    %cst_86 = arith.constant dense<0.000000e+00> : vector<64x64xf32>
    %122 = tpu.matmul %120, %121, %cst_86 {dimension_numbers = #tpu.dot_dimension_numbers<[1], [0], [0], [1], [0, 0, 1, 1], [], []>} : vector<64x32xf32>, vector<32x64xf32>, vector<64x64xf32> -> vector<64x64xf32>
    %123 = arith.addf %119, %122 : vector<64x64xf32>
    %c10 = arith.constant 10 : index
    %c0_87 = arith.constant 0 : index
    %124 = vector.load %arg23[%c10, %c0_87] : memref<82x32xf32, #tpu.memory_space<vmem>>, vector<64x32xf32>
    %125 = vector.broadcast %96 : vector<64x1xf32> to vector<64x32xf32>
    %126 = arith.mulf %124, %125 : vector<64x32xf32>
    %c160 = arith.constant 160 : index
    %c0_88 = arith.constant 0 : index
    %127 = vector.load %arg5[%c160, %c0_88] : memref<288x64xf32, #tpu.memory_space<vmem>>, vector<32x64xf32>
    %cst_89 = arith.constant dense<0.000000e+00> : vector<64x64xf32>
    %128 = tpu.matmul %126, %127, %cst_89 {dimension_numbers = #tpu.dot_dimension_numbers<[1], [0], [0], [1], [0, 0, 1, 1], [], []>} : vector<64x32xf32>, vector<32x64xf32>, vector<64x64xf32> -> vector<64x64xf32>
    %129 = arith.addf %123, %128 : vector<64x64xf32>
    %c16_90 = arith.constant 16 : index
    %c0_91 = arith.constant 0 : index
    %130 = vector.load %arg23[%c16_90, %c0_91] : memref<82x32xf32, #tpu.memory_space<vmem>>, vector<64x32xf32>
    %131 = vector.broadcast %94 : vector<64x1xf32> to vector<64x32xf32>
    %132 = arith.mulf %130, %131 : vector<64x32xf32>
    %c192 = arith.constant 192 : index
    %c0_92 = arith.constant 0 : index
    %133 = vector.load %arg5[%c192, %c0_92] : memref<288x64xf32, #tpu.memory_space<vmem>>, vector<32x64xf32>
    %cst_93 = arith.constant dense<0.000000e+00> : vector<64x64xf32>
    %134 = tpu.matmul %132, %133, %cst_93 {dimension_numbers = #tpu.dot_dimension_numbers<[1], [0], [0], [1], [0, 0, 1, 1], [], []>} : vector<64x32xf32>, vector<32x64xf32>, vector<64x64xf32> -> vector<64x64xf32>
    %135 = arith.addf %129, %134 : vector<64x64xf32>
    %c17_94 = arith.constant 17 : index
    %c0_95 = arith.constant 0 : index
    %136 = vector.load %arg23[%c17_94, %c0_95] : memref<82x32xf32, #tpu.memory_space<vmem>>, vector<64x32xf32>
    %c224 = arith.constant 224 : index
    %c0_96 = arith.constant 0 : index
    %137 = vector.load %arg5[%c224, %c0_96] : memref<288x64xf32, #tpu.memory_space<vmem>>, vector<32x64xf32>
    %cst_97 = arith.constant dense<0.000000e+00> : vector<64x64xf32>
    %138 = tpu.matmul %136, %137, %cst_97 {dimension_numbers = #tpu.dot_dimension_numbers<[1], [0], [0], [1], [0, 0, 1, 1], [], []>} : vector<64x32xf32>, vector<32x64xf32>, vector<64x64xf32> -> vector<64x64xf32>
    %139 = arith.addf %135, %138 : vector<64x64xf32>
    %c18_98 = arith.constant 18 : index
    %c0_99 = arith.constant 0 : index
    %140 = vector.load %arg23[%c18_98, %c0_99] : memref<82x32xf32, #tpu.memory_space<vmem>>, vector<64x32xf32>
    %141 = vector.broadcast %96 : vector<64x1xf32> to vector<64x32xf32>
    %142 = arith.mulf %140, %141 : vector<64x32xf32>
    %c256 = arith.constant 256 : index
    %c0_100 = arith.constant 0 : index
    %143 = vector.load %arg5[%c256, %c0_100] : memref<288x64xf32, #tpu.memory_space<vmem>>, vector<32x64xf32>
    %cst_101 = arith.constant dense<0.000000e+00> : vector<64x64xf32>
    %144 = tpu.matmul %142, %143, %cst_101 {dimension_numbers = #tpu.dot_dimension_numbers<[1], [0], [0], [1], [0, 0, 1, 1], [], []>} : vector<64x32xf32>, vector<32x64xf32>, vector<64x64xf32> -> vector<64x64xf32>
    %145 = arith.addf %139, %144 : vector<64x64xf32>
    %c0_102 = arith.constant 0 : index
    %c0_103 = arith.constant 0 : index
    %146 = vector.load %arg6[%c0_102, %c0_103] : memref<1x64xf32, #tpu.memory_space<vmem>>, vector<1x64xf32>
    %147 = vector.broadcast %146 : vector<1x64xf32> to vector<64x64xf32>
    %148 = arith.addf %145, %147 : vector<64x64xf32>
    %cst_104 = arith.constant 0.000000e+00 : f32
    %149 = vector.broadcast %cst_104 : f32 to vector<64x64xf32>
    %150 = arith.maximumf %148, %149 : vector<64x64xf32>
    %c0_105 = arith.constant 0 : index
    %c0_106 = arith.constant 0 : index
    %c0_107 = arith.constant 0 : index
    %151 = vector.load %arg15[%c0_105, %c0_106, %c0_107] : memref<4x16x64xf32, #tpu.memory_space<vmem>>, vector<1x16x64xf32>
    %152 = vector.shape_cast %151 : vector<1x16x64xf32> to vector<16x64xf32>
    %cst_108 = arith.constant dense<0.000000e+00> : vector<16x64xf32>
    %153 = tpu.matmul %152, %150, %cst_108 {dimension_numbers = #tpu.dot_dimension_numbers<[1], [0], [0], [1], [0, 0, 1, 1], [], []>} : vector<16x64xf32>, vector<64x64xf32>, vector<16x64xf32> -> vector<16x64xf32>
    %c1_109 = arith.constant 1 : index
    %c0_110 = arith.constant 0 : index
    %c0_111 = arith.constant 0 : index
    %154 = vector.load %arg15[%c1_109, %c0_110, %c0_111] : memref<4x16x64xf32, #tpu.memory_space<vmem>>, vector<1x16x64xf32>
    %155 = vector.shape_cast %154 : vector<1x16x64xf32> to vector<16x64xf32>
    %cst_112 = arith.constant dense<0.000000e+00> : vector<16x64xf32>
    %156 = tpu.matmul %155, %150, %cst_112 {dimension_numbers = #tpu.dot_dimension_numbers<[1], [0], [0], [1], [0, 0, 1, 1], [], []>} : vector<16x64xf32>, vector<64x64xf32>, vector<16x64xf32> -> vector<16x64xf32>
    %157 = arith.maximumf %153, %156 : vector<16x64xf32>
    %c2_113 = arith.constant 2 : index
    %c0_114 = arith.constant 0 : index
    %c0_115 = arith.constant 0 : index
    %158 = vector.load %arg15[%c2_113, %c0_114, %c0_115] : memref<4x16x64xf32, #tpu.memory_space<vmem>>, vector<1x16x64xf32>
    %159 = vector.shape_cast %158 : vector<1x16x64xf32> to vector<16x64xf32>
    %cst_116 = arith.constant dense<0.000000e+00> : vector<16x64xf32>
    %160 = tpu.matmul %159, %150, %cst_116 {dimension_numbers = #tpu.dot_dimension_numbers<[1], [0], [0], [1], [0, 0, 1, 1], [], []>} : vector<16x64xf32>, vector<64x64xf32>, vector<16x64xf32> -> vector<16x64xf32>
    %161 = arith.maximumf %157, %160 : vector<16x64xf32>
    %c3_117 = arith.constant 3 : index
    %c0_118 = arith.constant 0 : index
    %c0_119 = arith.constant 0 : index
    %162 = vector.load %arg15[%c3_117, %c0_118, %c0_119] : memref<4x16x64xf32, #tpu.memory_space<vmem>>, vector<1x16x64xf32>
    %163 = vector.shape_cast %162 : vector<1x16x64xf32> to vector<16x64xf32>
    %cst_120 = arith.constant dense<0.000000e+00> : vector<16x64xf32>
    %164 = tpu.matmul %163, %150, %cst_120 {dimension_numbers = #tpu.dot_dimension_numbers<[1], [0], [0], [1], [0, 0, 1, 1], [], []>} : vector<16x64xf32>, vector<64x64xf32>, vector<16x64xf32> -> vector<16x64xf32>
    %165 = arith.maximumf %161, %164 : vector<16x64xf32>
    %cst_121 = arith.constant 0.000000e+00 : f32
    %166 = vector.broadcast %cst_121 : f32 to vector<26x64xf32>
    %c0_122 = arith.constant 0 : index
    %c0_123 = arith.constant 0 : index
    %167 = vector.load %arg24[%c0_122, %c0_123] : memref<26x64xf32, #tpu.memory_space<vmem>>, vector<26x64xf32>
    tpu.vector_store %arg24[%c0_122, %c0_123], %166 {strides = array<i32>} : memref<26x64xf32, #tpu.memory_space<vmem>>, vector<26x64xf32>,
    %c5_124 = arith.constant 5 : index
    %c0_125 = arith.constant 0 : index
    %168 = vector.load %arg24[%c5_124, %c0_125] : memref<26x64xf32, #tpu.memory_space<vmem>>, vector<16x64xf32>
    tpu.vector_store %arg24[%c5_124, %c0_125], %165 {strides = array<i32>} : memref<26x64xf32, #tpu.memory_space<vmem>>, vector<16x64xf32>,
    %c0_126 = arith.constant 0 : index
    %c0_127 = arith.constant 0 : index
    %c0_128 = arith.constant 0 : index
    %169 = vector.load %arg10[%c0_126, %c0_127, %c0_128] : memref<2x16x1xf32, #tpu.memory_space<vmem>>, vector<1x16x1xf32>
    %170 = vector.shape_cast %169 : vector<1x16x1xf32> to vector<16x1xf32>
    %c1_129 = arith.constant 1 : index
    %c0_130 = arith.constant 0 : index
    %c0_131 = arith.constant 0 : index
    %171 = vector.load %arg10[%c1_129, %c0_130, %c0_131] : memref<2x16x1xf32, #tpu.memory_space<vmem>>, vector<1x16x1xf32>
    %172 = vector.shape_cast %171 : vector<1x16x1xf32> to vector<16x1xf32>
    %cst_132 = arith.constant 0.000000e+00 : f32
    %173 = vector.broadcast %cst_132 : f32 to vector<16x128xf32>
    %c0_133 = arith.constant 0 : index
    %c0_134 = arith.constant 0 : index
    %174 = vector.load %arg24[%c0_133, %c0_134] : memref<26x64xf32, #tpu.memory_space<vmem>>, vector<16x64xf32>
    %175 = vector.broadcast %170 : vector<16x1xf32> to vector<16x64xf32>
    %176 = arith.mulf %174, %175 : vector<16x64xf32>
    %c0_135 = arith.constant 0 : index
    %c0_136 = arith.constant 0 : index
    %177 = vector.load %arg8[%c0_135, %c0_136] : memref<576x128xf32, #tpu.memory_space<vmem>>, vector<64x128xf32>
    %cst_137 = arith.constant dense<0.000000e+00> : vector<16x128xf32>
    %178 = tpu.matmul %176, %177, %cst_137 {dimension_numbers = #tpu.dot_dimension_numbers<[1], [0], [0], [1], [0, 0, 1, 1], [], []>} : vector<16x64xf32>, vector<64x128xf32>, vector<16x128xf32> -> vector<16x128xf32>
    %179 = arith.addf %173, %178 : vector<16x128xf32>
    %c1_138 = arith.constant 1 : index
    %c0_139 = arith.constant 0 : index
    %180 = vector.load %arg24[%c1_138, %c0_139] : memref<26x64xf32, #tpu.memory_space<vmem>>, vector<16x64xf32>
    %c64_140 = arith.constant 64 : index
    %c0_141 = arith.constant 0 : index
    %181 = vector.load %arg8[%c64_140, %c0_141] : memref<576x128xf32, #tpu.memory_space<vmem>>, vector<64x128xf32>
    %cst_142 = arith.constant dense<0.000000e+00> : vector<16x128xf32>
    %182 = tpu.matmul %180, %181, %cst_142 {dimension_numbers = #tpu.dot_dimension_numbers<[1], [0], [0], [1], [0, 0, 1, 1], [], []>} : vector<16x64xf32>, vector<64x128xf32>, vector<16x128xf32> -> vector<16x128xf32>
    %183 = arith.addf %179, %182 : vector<16x128xf32>
    %c2_143 = arith.constant 2 : index
    %c0_144 = arith.constant 0 : index
    %184 = vector.load %arg24[%c2_143, %c0_144] : memref<26x64xf32, #tpu.memory_space<vmem>>, vector<16x64xf32>
    %185 = vector.broadcast %172 : vector<16x1xf32> to vector<16x64xf32>
    %186 = arith.mulf %184, %185 : vector<16x64xf32>
    %c128_145 = arith.constant 128 : index
    %c0_146 = arith.constant 0 : index
    %187 = vector.load %arg8[%c128_145, %c0_146] : memref<576x128xf32, #tpu.memory_space<vmem>>, vector<64x128xf32>
    %cst_147 = arith.constant dense<0.000000e+00> : vector<16x128xf32>
    %188 = tpu.matmul %186, %187, %cst_147 {dimension_numbers = #tpu.dot_dimension_numbers<[1], [0], [0], [1], [0, 0, 1, 1], [], []>} : vector<16x64xf32>, vector<64x128xf32>, vector<16x128xf32> -> vector<16x128xf32>
    %189 = arith.addf %183, %188 : vector<16x128xf32>
    %c4_148 = arith.constant 4 : index
    %c0_149 = arith.constant 0 : index
    %190 = vector.load %arg24[%c4_148, %c0_149] : memref<26x64xf32, #tpu.memory_space<vmem>>, vector<16x64xf32>
    %191 = vector.broadcast %170 : vector<16x1xf32> to vector<16x64xf32>
    %192 = arith.mulf %190, %191 : vector<16x64xf32>
    %c192_150 = arith.constant 192 : index
    %c0_151 = arith.constant 0 : index
    %193 = vector.load %arg8[%c192_150, %c0_151] : memref<576x128xf32, #tpu.memory_space<vmem>>, vector<64x128xf32>
    %cst_152 = arith.constant dense<0.000000e+00> : vector<16x128xf32>
    %194 = tpu.matmul %192, %193, %cst_152 {dimension_numbers = #tpu.dot_dimension_numbers<[1], [0], [0], [1], [0, 0, 1, 1], [], []>} : vector<16x64xf32>, vector<64x128xf32>, vector<16x128xf32> -> vector<16x128xf32>
    %195 = arith.addf %189, %194 : vector<16x128xf32>
    %c5_153 = arith.constant 5 : index
    %c0_154 = arith.constant 0 : index
    %196 = vector.load %arg24[%c5_153, %c0_154] : memref<26x64xf32, #tpu.memory_space<vmem>>, vector<16x64xf32>
    %c256_155 = arith.constant 256 : index
    %c0_156 = arith.constant 0 : index
    %197 = vector.load %arg8[%c256_155, %c0_156] : memref<576x128xf32, #tpu.memory_space<vmem>>, vector<64x128xf32>
    %cst_157 = arith.constant dense<0.000000e+00> : vector<16x128xf32>
    %198 = tpu.matmul %196, %197, %cst_157 {dimension_numbers = #tpu.dot_dimension_numbers<[1], [0], [0], [1], [0, 0, 1, 1], [], []>} : vector<16x64xf32>, vector<64x128xf32>, vector<16x128xf32> -> vector<16x128xf32>
    %199 = arith.addf %195, %198 : vector<16x128xf32>
    %c6_158 = arith.constant 6 : index
    %c0_159 = arith.constant 0 : index
    %200 = vector.load %arg24[%c6_158, %c0_159] : memref<26x64xf32, #tpu.memory_space<vmem>>, vector<16x64xf32>
    %201 = vector.broadcast %172 : vector<16x1xf32> to vector<16x64xf32>
    %202 = arith.mulf %200, %201 : vector<16x64xf32>
    %c320 = arith.constant 320 : index
    %c0_160 = arith.constant 0 : index
    %203 = vector.load %arg8[%c320, %c0_160] : memref<576x128xf32, #tpu.memory_space<vmem>>, vector<64x128xf32>
    %cst_161 = arith.constant dense<0.000000e+00> : vector<16x128xf32>
    %204 = tpu.matmul %202, %203, %cst_161 {dimension_numbers = #tpu.dot_dimension_numbers<[1], [0], [0], [1], [0, 0, 1, 1], [], []>} : vector<16x64xf32>, vector<64x128xf32>, vector<16x128xf32> -> vector<16x128xf32>
    %205 = arith.addf %199, %204 : vector<16x128xf32>
    %c8_162 = arith.constant 8 : index
    %c0_163 = arith.constant 0 : index
    %206 = vector.load %arg24[%c8_162, %c0_163] : memref<26x64xf32, #tpu.memory_space<vmem>>, vector<16x64xf32>
    %207 = vector.broadcast %170 : vector<16x1xf32> to vector<16x64xf32>
    %208 = arith.mulf %206, %207 : vector<16x64xf32>
    %c384 = arith.constant 384 : index
    %c0_164 = arith.constant 0 : index
    %209 = vector.load %arg8[%c384, %c0_164] : memref<576x128xf32, #tpu.memory_space<vmem>>, vector<64x128xf32>
    %cst_165 = arith.constant dense<0.000000e+00> : vector<16x128xf32>
    %210 = tpu.matmul %208, %209, %cst_165 {dimension_numbers = #tpu.dot_dimension_numbers<[1], [0], [0], [1], [0, 0, 1, 1], [], []>} : vector<16x64xf32>, vector<64x128xf32>, vector<16x128xf32> -> vector<16x128xf32>
    %211 = arith.addf %205, %210 : vector<16x128xf32>
    %c9_166 = arith.constant 9 : index
    %c0_167 = arith.constant 0 : index
    %212 = vector.load %arg24[%c9_166, %c0_167] : memref<26x64xf32, #tpu.memory_space<vmem>>, vector<16x64xf32>
    %c448 = arith.constant 448 : index
    %c0_168 = arith.constant 0 : index
    %213 = vector.load %arg8[%c448, %c0_168] : memref<576x128xf32, #tpu.memory_space<vmem>>, vector<64x128xf32>
    %cst_169 = arith.constant dense<0.000000e+00> : vector<16x128xf32>
    %214 = tpu.matmul %212, %213, %cst_169 {dimension_numbers = #tpu.dot_dimension_numbers<[1], [0], [0], [1], [0, 0, 1, 1], [], []>} : vector<16x64xf32>, vector<64x128xf32>, vector<16x128xf32> -> vector<16x128xf32>
    %215 = arith.addf %211, %214 : vector<16x128xf32>
    %c10_170 = arith.constant 10 : index
    %c0_171 = arith.constant 0 : index
    %216 = vector.load %arg24[%c10_170, %c0_171] : memref<26x64xf32, #tpu.memory_space<vmem>>, vector<16x64xf32>
    %217 = vector.broadcast %172 : vector<16x1xf32> to vector<16x64xf32>
    %218 = arith.mulf %216, %217 : vector<16x64xf32>
    %c512 = arith.constant 512 : index
    %c0_172 = arith.constant 0 : index
    %219 = vector.load %arg8[%c512, %c0_172] : memref<576x128xf32, #tpu.memory_space<vmem>>, vector<64x128xf32>
    %cst_173 = arith.constant dense<0.000000e+00> : vector<16x128xf32>
    %220 = tpu.matmul %218, %219, %cst_173 {dimension_numbers = #tpu.dot_dimension_numbers<[1], [0], [0], [1], [0, 0, 1, 1], [], []>} : vector<16x64xf32>, vector<64x128xf32>, vector<16x128xf32> -> vector<16x128xf32>
    %221 = arith.addf %215, %220 : vector<16x128xf32>
    %c0_174 = arith.constant 0 : index
    %c0_175 = arith.constant 0 : index
    %222 = vector.load %arg9[%c0_174, %c0_175] : memref<1x128xf32, #tpu.memory_space<vmem>>, vector<1x128xf32>
    %223 = vector.broadcast %222 : vector<1x128xf32> to vector<16x128xf32>
    %224 = arith.addf %221, %223 : vector<16x128xf32>
    %cst_176 = arith.constant 0.000000e+00 : f32
    %225 = vector.broadcast %cst_176 : f32 to vector<16x128xf32>
    %226 = arith.maximumf %224, %225 : vector<16x128xf32>
    %c0_177 = arith.constant 0 : index
    %c0_178 = arith.constant 0 : index
    %c0_179 = arith.constant 0 : index
    %227 = vector.load %arg16[%c0_177, %c0_178, %c0_179] : memref<4x4x16xf32, #tpu.memory_space<vmem>>, vector<1x4x16xf32>
    %228 = vector.shape_cast %227 : vector<1x4x16xf32> to vector<4x16xf32>
    %cst_180 = arith.constant dense<0.000000e+00> : vector<4x128xf32>
    %229 = tpu.matmul %228, %226, %cst_180 {dimension_numbers = #tpu.dot_dimension_numbers<[1], [0], [0], [1], [0, 0, 1, 1], [], []>} : vector<4x16xf32>, vector<16x128xf32>, vector<4x128xf32> -> vector<4x128xf32>
    %c1_181 = arith.constant 1 : index
    %c0_182 = arith.constant 0 : index
    %c0_183 = arith.constant 0 : index
    %230 = vector.load %arg16[%c1_181, %c0_182, %c0_183] : memref<4x4x16xf32, #tpu.memory_space<vmem>>, vector<1x4x16xf32>
    %231 = vector.shape_cast %230 : vector<1x4x16xf32> to vector<4x16xf32>
    %cst_184 = arith.constant dense<0.000000e+00> : vector<4x128xf32>
    %232 = tpu.matmul %231, %226, %cst_184 {dimension_numbers = #tpu.dot_dimension_numbers<[1], [0], [0], [1], [0, 0, 1, 1], [], []>} : vector<4x16xf32>, vector<16x128xf32>, vector<4x128xf32> -> vector<4x128xf32>
    %233 = arith.maximumf %229, %232 : vector<4x128xf32>
    %c2_185 = arith.constant 2 : index
    %c0_186 = arith.constant 0 : index
    %c0_187 = arith.constant 0 : index
    %234 = vector.load %arg16[%c2_185, %c0_186, %c0_187] : memref<4x4x16xf32, #tpu.memory_space<vmem>>, vector<1x4x16xf32>
    %235 = vector.shape_cast %234 : vector<1x4x16xf32> to vector<4x16xf32>
    %cst_188 = arith.constant dense<0.000000e+00> : vector<4x128xf32>
    %236 = tpu.matmul %235, %226, %cst_188 {dimension_numbers = #tpu.dot_dimension_numbers<[1], [0], [0], [1], [0, 0, 1, 1], [], []>} : vector<4x16xf32>, vector<16x128xf32>, vector<4x128xf32> -> vector<4x128xf32>
    %237 = arith.maximumf %233, %236 : vector<4x128xf32>
    %c3_189 = arith.constant 3 : index
    %c0_190 = arith.constant 0 : index
    %c0_191 = arith.constant 0 : index
    %238 = vector.load %arg16[%c3_189, %c0_190, %c0_191] : memref<4x4x16xf32, #tpu.memory_space<vmem>>, vector<1x4x16xf32>
    %239 = vector.shape_cast %238 : vector<1x4x16xf32> to vector<4x16xf32>
    %cst_192 = arith.constant dense<0.000000e+00> : vector<4x128xf32>
    %240 = tpu.matmul %239, %226, %cst_192 {dimension_numbers = #tpu.dot_dimension_numbers<[1], [0], [0], [1], [0, 0, 1, 1], [], []>} : vector<4x16xf32>, vector<16x128xf32>, vector<4x128xf32> -> vector<4x128xf32>
    %241 = arith.maximumf %237, %240 : vector<4x128xf32>
    %cst_193 = arith.constant 0.000000e+00 : f32
    %242 = vector.broadcast %cst_193 : f32 to vector<10x128xf32>
    %c0_194 = arith.constant 0 : index
    %c0_195 = arith.constant 0 : index
    %243 = vector.load %arg25[%c0_194, %c0_195] : memref<10x128xf32, #tpu.memory_space<vmem>>, vector<10x128xf32>
    tpu.vector_store %arg25[%c0_194, %c0_195], %242 {strides = array<i32>} : memref<10x128xf32, #tpu.memory_space<vmem>>, vector<10x128xf32>,
    %c3_196 = arith.constant 3 : index
    %c0_197 = arith.constant 0 : index
    %244 = vector.load %arg25[%c3_196, %c0_197] : memref<10x128xf32, #tpu.memory_space<vmem>>, vector<4x128xf32>
    tpu.vector_store %arg25[%c3_196, %c0_197], %241 {strides = array<i32>} : memref<10x128xf32, #tpu.memory_space<vmem>>, vector<4x128xf32>,
    %c0_198 = arith.constant 0 : index
    %c0_199 = arith.constant 0 : index
    %c0_200 = arith.constant 0 : index
    %245 = vector.load %arg13[%c0_198, %c0_199, %c0_200] : memref<2x4x1xf32, #tpu.memory_space<vmem>>, vector<1x4x1xf32>
    %246 = vector.shape_cast %245 : vector<1x4x1xf32> to vector<4x1xf32>
    %c1_201 = arith.constant 1 : index
    %c0_202 = arith.constant 0 : index
    %c0_203 = arith.constant 0 : index
    %247 = vector.load %arg13[%c1_201, %c0_202, %c0_203] : memref<2x4x1xf32, #tpu.memory_space<vmem>>, vector<1x4x1xf32>
    %248 = vector.shape_cast %247 : vector<1x4x1xf32> to vector<4x1xf32>
    %cst_204 = arith.constant 0.000000e+00 : f32
    %249 = vector.broadcast %cst_204 : f32 to vector<4x256xf32>
    %c0_205 = arith.constant 0 : index
    %c0_206 = arith.constant 0 : index
    %250 = vector.load %arg25[%c0_205, %c0_206] : memref<10x128xf32, #tpu.memory_space<vmem>>, vector<4x128xf32>
    %251 = vector.broadcast %246 : vector<4x1xf32> to vector<4x128xf32>
    %252 = arith.mulf %250, %251 : vector<4x128xf32>
    %c0_207 = arith.constant 0 : index
    %c0_208 = arith.constant 0 : index
    %253 = vector.load %arg11[%c0_207, %c0_208] : memref<1152x256xf32, #tpu.memory_space<vmem>>, vector<128x256xf32>
    %cst_209 = arith.constant dense<0.000000e+00> : vector<4x256xf32>
    %254 = tpu.matmul %252, %253, %cst_209 {dimension_numbers = #tpu.dot_dimension_numbers<[1], [0], [0], [1], [0, 0, 1, 1], [], []>} : vector<4x128xf32>, vector<128x256xf32>, vector<4x256xf32> -> vector<4x256xf32>
    %255 = arith.addf %249, %254 : vector<4x256xf32>
    %c1_210 = arith.constant 1 : index
    %c0_211 = arith.constant 0 : index
    %256 = vector.load %arg25[%c1_210, %c0_211] : memref<10x128xf32, #tpu.memory_space<vmem>>, vector<4x128xf32>
    %c128_212 = arith.constant 128 : index
    %c0_213 = arith.constant 0 : index
    %257 = vector.load %arg11[%c128_212, %c0_213] : memref<1152x256xf32, #tpu.memory_space<vmem>>, vector<128x256xf32>
    %cst_214 = arith.constant dense<0.000000e+00> : vector<4x256xf32>
    %258 = tpu.matmul %256, %257, %cst_214 {dimension_numbers = #tpu.dot_dimension_numbers<[1], [0], [0], [1], [0, 0, 1, 1], [], []>} : vector<4x128xf32>, vector<128x256xf32>, vector<4x256xf32> -> vector<4x256xf32>
    %259 = arith.addf %255, %258 : vector<4x256xf32>
    %c2_215 = arith.constant 2 : index
    %c0_216 = arith.constant 0 : index
    %260 = vector.load %arg25[%c2_215, %c0_216] : memref<10x128xf32, #tpu.memory_space<vmem>>, vector<4x128xf32>
    %261 = vector.broadcast %248 : vector<4x1xf32> to vector<4x128xf32>
    %262 = arith.mulf %260, %261 : vector<4x128xf32>
    %c256_217 = arith.constant 256 : index
    %c0_218 = arith.constant 0 : index
    %263 = vector.load %arg11[%c256_217, %c0_218] : memref<1152x256xf32, #tpu.memory_space<vmem>>, vector<128x256xf32>
    %cst_219 = arith.constant dense<0.000000e+00> : vector<4x256xf32>
    %264 = tpu.matmul %262, %263, %cst_219 {dimension_numbers = #tpu.dot_dimension_numbers<[1], [0], [0], [1], [0, 0, 1, 1], [], []>} : vector<4x128xf32>, vector<128x256xf32>, vector<4x256xf32> -> vector<4x256xf32>
    %265 = arith.addf %259, %264 : vector<4x256xf32>
    %c2_220 = arith.constant 2 : index
    %c0_221 = arith.constant 0 : index
    %266 = vector.load %arg25[%c2_220, %c0_221] : memref<10x128xf32, #tpu.memory_space<vmem>>, vector<4x128xf32>
    %267 = vector.broadcast %246 : vector<4x1xf32> to vector<4x128xf32>
    %268 = arith.mulf %266, %267 : vector<4x128xf32>
    %c384_222 = arith.constant 384 : index
    %c0_223 = arith.constant 0 : index
    %269 = vector.load %arg11[%c384_222, %c0_223] : memref<1152x256xf32, #tpu.memory_space<vmem>>, vector<128x256xf32>
    %cst_224 = arith.constant dense<0.000000e+00> : vector<4x256xf32>
    %270 = tpu.matmul %268, %269, %cst_224 {dimension_numbers = #tpu.dot_dimension_numbers<[1], [0], [0], [1], [0, 0, 1, 1], [], []>} : vector<4x128xf32>, vector<128x256xf32>, vector<4x256xf32> -> vector<4x256xf32>
    %271 = arith.addf %265, %270 : vector<4x256xf32>
    %c3_225 = arith.constant 3 : index
    %c0_226 = arith.constant 0 : index
    %272 = vector.load %arg25[%c3_225, %c0_226] : memref<10x128xf32, #tpu.memory_space<vmem>>, vector<4x128xf32>
    %c512_227 = arith.constant 512 : index
    %c0_228 = arith.constant 0 : index
    %273 = vector.load %arg11[%c512_227, %c0_228] : memref<1152x256xf32, #tpu.memory_space<vmem>>, vector<128x256xf32>
    %cst_229 = arith.constant dense<0.000000e+00> : vector<4x256xf32>
    %274 = tpu.matmul %272, %273, %cst_229 {dimension_numbers = #tpu.dot_dimension_numbers<[1], [0], [0], [1], [0, 0, 1, 1], [], []>} : vector<4x128xf32>, vector<128x256xf32>, vector<4x256xf32> -> vector<4x256xf32>
    %275 = arith.addf %271, %274 : vector<4x256xf32>
    %c4_230 = arith.constant 4 : index
    %c0_231 = arith.constant 0 : index
    %276 = vector.load %arg25[%c4_230, %c0_231] : memref<10x128xf32, #tpu.memory_space<vmem>>, vector<4x128xf32>
    %277 = vector.broadcast %248 : vector<4x1xf32> to vector<4x128xf32>
    %278 = arith.mulf %276, %277 : vector<4x128xf32>
    %c640 = arith.constant 640 : index
    %c0_232 = arith.constant 0 : index
    %279 = vector.load %arg11[%c640, %c0_232] : memref<1152x256xf32, #tpu.memory_space<vmem>>, vector<128x256xf32>
    %cst_233 = arith.constant dense<0.000000e+00> : vector<4x256xf32>
    %280 = tpu.matmul %278, %279, %cst_233 {dimension_numbers = #tpu.dot_dimension_numbers<[1], [0], [0], [1], [0, 0, 1, 1], [], []>} : vector<4x128xf32>, vector<128x256xf32>, vector<4x256xf32> -> vector<4x256xf32>
    %281 = arith.addf %275, %280 : vector<4x256xf32>
    %c4_234 = arith.constant 4 : index
    %c0_235 = arith.constant 0 : index
    %282 = vector.load %arg25[%c4_234, %c0_235] : memref<10x128xf32, #tpu.memory_space<vmem>>, vector<4x128xf32>
    %283 = vector.broadcast %246 : vector<4x1xf32> to vector<4x128xf32>
    %284 = arith.mulf %282, %283 : vector<4x128xf32>
    %c768 = arith.constant 768 : index
    %c0_236 = arith.constant 0 : index
    %285 = vector.load %arg11[%c768, %c0_236] : memref<1152x256xf32, #tpu.memory_space<vmem>>, vector<128x256xf32>
    %cst_237 = arith.constant dense<0.000000e+00> : vector<4x256xf32>
    %286 = tpu.matmul %284, %285, %cst_237 {dimension_numbers = #tpu.dot_dimension_numbers<[1], [0], [0], [1], [0, 0, 1, 1], [], []>} : vector<4x128xf32>, vector<128x256xf32>, vector<4x256xf32> -> vector<4x256xf32>
    %287 = arith.addf %281, %286 : vector<4x256xf32>
    %c5_238 = arith.constant 5 : index
    %c0_239 = arith.constant 0 : index
    %288 = vector.load %arg25[%c5_238, %c0_239] : memref<10x128xf32, #tpu.memory_space<vmem>>, vector<4x128xf32>
    %c896 = arith.constant 896 : index
    %c0_240 = arith.constant 0 : index
    %289 = vector.load %arg11[%c896, %c0_240] : memref<1152x256xf32, #tpu.memory_space<vmem>>, vector<128x256xf32>
    %cst_241 = arith.constant dense<0.000000e+00> : vector<4x256xf32>
    %290 = tpu.matmul %288, %289, %cst_241 {dimension_numbers = #tpu.dot_dimension_numbers<[1], [0], [0], [1], [0, 0, 1, 1], [], []>} : vector<4x128xf32>, vector<128x256xf32>, vector<4x256xf32> -> vector<4x256xf32>
    %291 = arith.addf %287, %290 : vector<4x256xf32>
    %c6_242 = arith.constant 6 : index
    %c0_243 = arith.constant 0 : index
    %292 = vector.load %arg25[%c6_242, %c0_243] : memref<10x128xf32, #tpu.memory_space<vmem>>, vector<4x128xf32>
    %293 = vector.broadcast %248 : vector<4x1xf32> to vector<4x128xf32>
    %294 = arith.mulf %292, %293 : vector<4x128xf32>
    %c1024 = arith.constant 1024 : index
    %c0_244 = arith.constant 0 : index
    %295 = vector.load %arg11[%c1024, %c0_244] : memref<1152x256xf32, #tpu.memory_space<vmem>>, vector<128x256xf32>
    %cst_245 = arith.constant dense<0.000000e+00> : vector<4x256xf32>
    %296 = tpu.matmul %294, %295, %cst_245 {dimension_numbers = #tpu.dot_dimension_numbers<[1], [0], [0], [1], [0, 0, 1, 1], [], []>} : vector<4x128xf32>, vector<128x256xf32>, vector<4x256xf32> -> vector<4x256xf32>
    %297 = arith.addf %291, %296 : vector<4x256xf32>
    %c0_246 = arith.constant 0 : index
    %c0_247 = arith.constant 0 : index
    %298 = vector.load %arg12[%c0_246, %c0_247] : memref<1x256xf32, #tpu.memory_space<vmem>>, vector<1x256xf32>
    %299 = vector.broadcast %298 : vector<1x256xf32> to vector<4x256xf32>
    %300 = arith.addf %297, %299 : vector<4x256xf32>
    %cst_248 = arith.constant 0.000000e+00 : f32
    %301 = vector.broadcast %cst_248 : f32 to vector<4x256xf32>
    %302 = arith.maximumf %300, %301 : vector<4x256xf32>
    %cst_249 = arith.constant dense<0.000000e+00> : vector<256xf32>
    %303 = vector.multi_reduction <add>, %302, %cst_249 [0] : vector<4x256xf32> to vector<256xf32>
    %304 = vector.shape_cast %303 : vector<256xf32> to vector<1x256xf32>
    %cst_250 = arith.constant 4.000000e+00 : f32
    %305 = vector.broadcast %cst_250 : f32 to vector<1x256xf32>
    %306 = arith.divf %304, %305 : vector<1x256xf32>
    %c0_251 = arith.constant 0 : index
    %c0_252 = arith.constant 0 : index
    %307 = vector.load %arg17[%c0_251, %c0_252] : memref<256x128xf32, #tpu.memory_space<vmem>>, vector<256x128xf32>
    %cst_253 = arith.constant dense<0.000000e+00> : vector<1x128xf32>
    %308 = tpu.matmul %306, %307, %cst_253 {dimension_numbers = #tpu.dot_dimension_numbers<[1], [0], [0], [1], [0, 0, 1, 1], [], []>} : vector<1x256xf32>, vector<256x128xf32>, vector<1x128xf32> -> vector<1x128xf32>
    %c0_254 = arith.constant 0 : index
    %c0_255 = arith.constant 0 : index
    %309 = vector.load %arg18[%c0_254, %c0_255] : memref<1x128xf32, #tpu.memory_space<vmem>>, vector<1x128xf32>
    %310 = arith.addf %308, %309 : vector<1x128xf32>
    %cst_256 = arith.constant dense<0.000000e+00> : vector<1xf32>
    %311 = vector.multi_reduction <add>, %310, %cst_256 [1] : vector<1x128xf32> to vector<1xf32>
    %312 = vector.shape_cast %311 : vector<1xf32> to vector<1x1xf32>
    %cst_257 = arith.constant 1.280000e+02 : f32
    %313 = vector.broadcast %cst_257 : f32 to vector<1x1xf32>
    %314 = arith.divf %312, %313 : vector<1x1xf32>
    %315 = vector.broadcast %314 : vector<1x1xf32> to vector<1x128xf32>
    %316 = arith.subf %310, %315 : vector<1x128xf32>
    %317 = arith.mulf %316, %316 : vector<1x128xf32>
    %cst_258 = arith.constant dense<0.000000e+00> : vector<1xf32>
    %318 = vector.multi_reduction <add>, %317, %cst_258 [1] : vector<1x128xf32> to vector<1xf32>
    %319 = vector.shape_cast %318 : vector<1xf32> to vector<1x1xf32>
    %cst_259 = arith.constant 1.280000e+02 : f32
    %320 = vector.broadcast %cst_259 : f32 to vector<1x1xf32>
    %321 = arith.divf %319, %320 : vector<1x1xf32>
    %322 = vector.broadcast %314 : vector<1x1xf32> to vector<1x128xf32>
    %323 = arith.subf %310, %322 : vector<1x128xf32>
    %cst_260 = arith.constant 9.99999974E-6 : f32
    %324 = vector.broadcast %cst_260 : f32 to vector<1x1xf32>
    %325 = arith.addf %321, %324 : vector<1x1xf32>
    %326 = math.rsqrt %325 : vector<1x1xf32>
    %327 = vector.broadcast %326 : vector<1x1xf32> to vector<1x128xf32>
    %328 = arith.mulf %323, %327 : vector<1x128xf32>
    %c0_261 = arith.constant 0 : index
    %c0_262 = arith.constant 0 : index
    %329 = vector.load %arg19[%c0_261, %c0_262] : memref<1x128xf32, #tpu.memory_space<vmem>>, vector<1x128xf32>
    %330 = arith.mulf %328, %329 : vector<1x128xf32>
    %c0_263 = arith.constant 0 : index
    %c0_264 = arith.constant 0 : index
    %331 = vector.load %arg20[%c0_263, %c0_264] : memref<1x128xf32, #tpu.memory_space<vmem>>, vector<1x128xf32>
    %332 = arith.addf %330, %331 : vector<1x128xf32>
    %c0_265 = arith.constant 0 : index
    %c0_266 = arith.constant 0 : index
    %c0_267 = arith.constant 0 : index
    %333 = vector.load %arg21[%c0_265, %c0_266, %c0_267] : memref<1x1x128xf32, #tpu.memory_space<vmem>>, vector<1x1x128xf32>
    %334 = vector.shape_cast %333 : vector<1x1x128xf32> to vector<1x128xf32>
    %335 = vector.shape_cast %332 : vector<1x128xf32> to vector<1x1x128xf32>
    tpu.vector_store %arg21[%c0_265, %c0_266, %c0_267], %335 {strides = array<i32>} : memref<1x1x128xf32, #tpu.memory_space<vmem>>, vector<1x1x128xf32>,
    return
  }
  func.func @transform_0(%arg0: i32) -> (i32, i32, i32) {
    %c0_i32 = arith.constant 0 : i32
    %c0_i32_0 = arith.constant 0 : i32
    %c0_i32_1 = arith.constant 0 : i32
    return %arg0, %c0_i32, %c0_i32_0 : i32, i32, i32
  }
  func.func @transform_1(%arg0: i32) -> (i32, i32) {
    %c0_i32 = arith.constant 0 : i32
    %c0_i32_0 = arith.constant 0 : i32
    %c0_i32_1 = arith.constant 0 : i32
    return %c0_i32, %c0_i32_0 : i32, i32
  }
  func.func @transform_2(%arg0: i32) -> (i32, i32) {
    %c0_i32 = arith.constant 0 : i32
    %c0_i32_0 = arith.constant 0 : i32
    %c0_i32_1 = arith.constant 0 : i32
    return %c0_i32, %c0_i32_0 : i32, i32
  }
  func.func @transform_3(%arg0: i32) -> (i32, i32, i32) {
    %c0_i32 = arith.constant 0 : i32
    %c0_i32_0 = arith.constant 0 : i32
    %c0_i32_1 = arith.constant 0 : i32
    %c0_i32_2 = arith.constant 0 : i32
    return %c0_i32, %c0_i32_0, %c0_i32_1 : i32, i32, i32
  }
  func.func @transform_4(%arg0: i32) -> (i32, i32) {
    %c0_i32 = arith.constant 0 : i32
    %c0_i32_0 = arith.constant 0 : i32
    %c0_i32_1 = arith.constant 0 : i32
    return %c0_i32, %c0_i32_0 : i32, i32
  }
  func.func @transform_5(%arg0: i32) -> (i32, i32) {
    %c0_i32 = arith.constant 0 : i32
    %c0_i32_0 = arith.constant 0 : i32
    %c0_i32_1 = arith.constant 0 : i32
    return %c0_i32, %c0_i32_0 : i32, i32
  }
  func.func @transform_6(%arg0: i32) -> (i32, i32, i32) {
    %c0_i32 = arith.constant 0 : i32
    %c0_i32_0 = arith.constant 0 : i32
    %c0_i32_1 = arith.constant 0 : i32
    %c0_i32_2 = arith.constant 0 : i32
    return %c0_i32, %c0_i32_0, %c0_i32_1 : i32, i32, i32
  }
  func.func @transform_7(%arg0: i32) -> (i32, i32) {
    %c0_i32 = arith.constant 0 : i32
    %c0_i32_0 = arith.constant 0 : i32
    %c0_i32_1 = arith.constant 0 : i32
    return %c0_i32, %c0_i32_0 : i32, i32
  }
  func.func @transform_8(%arg0: i32) -> (i32, i32) {
    %c0_i32 = arith.constant 0 : i32
    %c0_i32_0 = arith.constant 0 : i32
    %c0_i32_1 = arith.constant 0 : i32
    return %c0_i32, %c0_i32_0 : i32, i32
  }
  func.func @transform_9(%arg0: i32) -> (i32, i32, i32) {
    %c0_i32 = arith.constant 0 : i32
    %c0_i32_0 = arith.constant 0 : i32
    %c0_i32_1 = arith.constant 0 : i32
    %c0_i32_2 = arith.constant 0 : i32
    return %c0_i32, %c0_i32_0, %c0_i32_1 : i32, i32, i32
  }
  func.func @transform_10(%arg0: i32) -> (i32, i32) {
    %c0_i32 = arith.constant 0 : i32
    %c0_i32_0 = arith.constant 0 : i32
    %c0_i32_1 = arith.constant 0 : i32
    return %c0_i32, %c0_i32_0 : i32, i32
  }
  func.func @transform_11(%arg0: i32) -> (i32, i32) {
    %c0_i32 = arith.constant 0 : i32
    %c0_i32_0 = arith.constant 0 : i32
    %c0_i32_1 = arith.constant 0 : i32
    return %c0_i32, %c0_i32_0 : i32, i32
  }
  func.func @transform_12(%arg0: i32) -> (i32, i32, i32) {
    %c0_i32 = arith.constant 0 : i32
    %c0_i32_0 = arith.constant 0 : i32
    %c0_i32_1 = arith.constant 0 : i32
    %c0_i32_2 = arith.constant 0 : i32
    return %c0_i32, %c0_i32_0, %c0_i32_1 : i32, i32, i32
  }
  func.func @transform_13(%arg0: i32) -> (i32, i32, i32) {
    %c0_i32 = arith.constant 0 : i32
    %c0_i32_0 = arith.constant 0 : i32
    %c0_i32_1 = arith.constant 0 : i32
    %c0_i32_2 = arith.constant 0 : i32
    return %c0_i32, %c0_i32_0, %c0_i32_1 : i32, i32, i32
  }
  func.func @transform_14(%arg0: i32) -> (i32, i32, i32) {
    %c0_i32 = arith.constant 0 : i32
    %c0_i32_0 = arith.constant 0 : i32
    %c0_i32_1 = arith.constant 0 : i32
    %c0_i32_2 = arith.constant 0 : i32
    return %c0_i32, %c0_i32_0, %c0_i32_1 : i32, i32, i32
  }
  func.func @transform_15(%arg0: i32) -> (i32, i32, i32) {
    %c0_i32 = arith.constant 0 : i32
    %c0_i32_0 = arith.constant 0 : i32
    %c0_i32_1 = arith.constant 0 : i32
    %c0_i32_2 = arith.constant 0 : i32
    return %c0_i32, %c0_i32_0, %c0_i32_1 : i32, i32, i32
  }
  func.func @transform_16(%arg0: i32) -> (i32, i32) {
    %c0_i32 = arith.constant 0 : i32
    %c0_i32_0 = arith.constant 0 : i32
    %c0_i32_1 = arith.constant 0 : i32
    return %c0_i32, %c0_i32_0 : i32, i32
  }
  func.func @transform_17(%arg0: i32) -> (i32, i32) {
    %c0_i32 = arith.constant 0 : i32
    %c0_i32_0 = arith.constant 0 : i32
    %c0_i32_1 = arith.constant 0 : i32
    return %c0_i32, %c0_i32_0 : i32, i32
  }
  func.func @transform_18(%arg0: i32) -> (i32, i32) {
    %c0_i32 = arith.constant 0 : i32
    %c0_i32_0 = arith.constant 0 : i32
    %c0_i32_1 = arith.constant 0 : i32
    return %c0_i32, %c0_i32_0 : i32, i32
  }
  func.func @transform_19(%arg0: i32) -> (i32, i32) {
    %c0_i32 = arith.constant 0 : i32
    %c0_i32_0 = arith.constant 0 : i32
    %c0_i32_1 = arith.constant 0 : i32
    return %c0_i32, %c0_i32_0 : i32, i32
  }
  func.func @transform_20(%arg0: i32) -> (i32, i32, i32) {
    %c0_i32 = arith.constant 0 : i32
    %c0_i32_0 = arith.constant 0 : i32
    %c0_i32_1 = arith.constant 0 : i32
    return %arg0, %c0_i32, %c0_i32_0 : i32, i32, i32
  }
}

</mosaic_0001>

<llo_original>
// kernel: encoder_forward.1
$region0: #{encoder_forward.1}
  #allocation0 [shape = 'u32[]', space=smem, size = 0x4, offset = 0x4, fixed_abs, tag = 'smem constant byte address 0x4 - core index']
  #allocation1 [shape = 'u32[144,128]{1,0:T(1,128)}', space=vmem, size = 0x12000, scoped, tag = 'internal scratch']
  #allocation2 [shape = 'f32[290,1]{1,0:T(8,128)}', space=vmem, size = 0x25000, scoped, tag = 'scratch operand']
  #allocation3 [shape = 'f32[82,32]{1,0:T(8,128)}', space=vmem, size = 0xb000, scoped, tag = 'scratch operand']
  #allocation4 [shape = 'f32[26,64]{1,0:T(8,128)}', space=vmem, size = 0x4000, scoped, tag = 'scratch operand']
  #allocation5 [shape = 'f32[10,128]{1,0:T(8,128)}', space=vmem, size = 0x2000, scoped, tag = 'scratch operand']
  %s0 = inlined_call_operand.vmem [shape: f32[2,256,1], index: 0, kind: input, shape index: {}]
  %s1 = inlined_call_operand.vmem [shape: f32[9,32], index: 1, kind: input, shape index: {}]
  %s2 = inlined_call_operand.vmem [shape: f32[1,32], index: 2, kind: input, shape index: {}]
  %s3 = inlined_call_operand.vmem [shape: f32[2,256,1], index: 3, kind: input, shape index: {}]
  %s4 = inlined_call_operand.vmem [shape: f32[288,64], index: 4, kind: input, shape index: {}]
  %s5 = inlined_call_operand.vmem [shape: f32[1,64], index: 5, kind: input, shape index: {}]
  %s6 = inlined_call_operand.vmem [shape: f32[2,64,1], index: 6, kind: input, shape index: {}]
  %s7 = inlined_call_operand.vmem [shape: f32[576,128], index: 7, kind: input, shape index: {}]
  %s8 = inlined_call_operand.vmem [shape: f32[1,128], index: 8, kind: input, shape index: {}]
  %s9 = inlined_call_operand.vmem [shape: f32[2,16,1], index: 9, kind: input, shape index: {}]
  %s10 = inlined_call_operand.vmem [shape: f32[1152,256], index: 10, kind: input, shape index: {}]
  %s11 = inlined_call_operand.vmem [shape: f32[1,256], index: 11, kind: input, shape index: {}]
  %s12 = inlined_call_operand.vmem [shape: f32[2,4,1], index: 12, kind: input, shape index: {}]
  %s13 = inlined_call_operand.vmem [shape: f32[4,64,256], index: 13, kind: input, shape index: {}]
  %s14 = inlined_call_operand.vmem [shape: f32[4,16,64], index: 14, kind: input, shape index: {}]
  %s15 = inlined_call_operand.vmem [shape: f32[4,4,16], index: 15, kind: input, shape index: {}]
  %s16 = inlined_call_operand.vmem [shape: f32[256,128], index: 16, kind: input, shape index: {}]
  %s17 = inlined_call_operand.vmem [shape: f32[1,128], index: 17, kind: input, shape index: {}]
  %s18 = inlined_call_operand.vmem [shape: f32[1,128], index: 18, kind: input, shape index: {}]
  %s19 = inlined_call_operand.vmem [shape: f32[1,128], index: 19, kind: input, shape index: {}]
  %s20 = inlined_call_operand.hbm [shape: f32[2,1,128], index: 20, kind: output, shape index: {}]
  %s21 = sld [smem:[#allocation0]]
  $region113: #{encoder_forward.1} parent=0
    _
  %s23 = ssub.s32 1, %s21
  %s24 = scalar_select 0, %s23, %s21
  $region1: #{encoder_forward.1} parent=0
    #allocation6 [shape = 'u8[1024]{0}', space=vmem, size = 0x400, scoped, tag = 'output window, operand 0']
    #allocation7 [shape = 's32[2]{0}', space=sflag, size = 0x8, scoped, tag = 'scoped memory for encoder_forward.1']
    %25 = vsyncpa [#allocation7], 0
    %s26 = scalar_lea.sflag [#allocation7], 1
    %27 = vsyncpa %s26, 0
    loop: start=0, step=1, limit=4
    $region2: #{encoder_forward.1} parent=1 // loop_pre_header
      _
    $region3: #{encoder_forward.1} parent=1 // loop_header
      %s29 = sphi 0, %s33
      %p30 = scmp.ge.s32.totalorder %s29, 4
      %s39 = sphi 0, %s41
      %s42 = sphi 0, %s39
      %s43 = sphi 0, %s42
      %s59 = sphi 0, %s43
      %s63 = sphi 0, %s63
      %s65 = sphi 0, %s63
      %s66 = sphi 0, %s65
      %s80 = sphi 0, %s66
      %s84 = sphi 0, %s84
      %s86 = sphi 0, %s84
      %s87 = sphi 0, %s86
      %s101 = sphi 0, %s87
      %s105 = sphi 0, %s105
      %s107 = sphi 0, %s105
      %s108 = sphi 0, %s107
      %s122 = sphi 0, %s108
      %s126 = sphi 0, %s126
      %s128 = sphi 0, %s126
      %s129 = sphi 0, %s128
      %s143 = sphi 0, %s129
      %s147 = sphi 0, %s147
      %s149 = sphi 0, %s147
      %s150 = sphi 0, %s149
      %s164 = sphi 0, %s150
      %s168 = sphi 0, %s168
      %s170 = sphi 0, %s168
      %s171 = sphi 0, %s170
      %s185 = sphi 0, %s171
      %s189 = sphi 0, %s189
      %s191 = sphi 0, %s189
      %s192 = sphi 0, %s191
      %s206 = sphi 0, %s192
      %s210 = sphi 0, %s210
      %s212 = sphi 0, %s210
      %s213 = sphi 0, %s212
      %s227 = sphi 0, %s213
      %s231 = sphi 0, %s231
      %s233 = sphi 0, %s231
      %s234 = sphi 0, %s233
      %s248 = sphi 0, %s234
      %s252 = sphi 0, %s252
      %s254 = sphi 0, %s252
      %s255 = sphi 0, %s254
      %s269 = sphi 0, %s255
      %s273 = sphi 0, %s273
      %s275 = sphi 0, %s273
      %s276 = sphi 0, %s275
      %s290 = sphi 0, %s276
      %s294 = sphi 0, %s294
      %s296 = sphi 0, %s294
      %s297 = sphi 0, %s296
      %s311 = sphi 0, %s297
      %s315 = sphi 0, %s315
      %s317 = sphi 0, %s315
      %s318 = sphi 0, %s317
      %s332 = sphi 0, %s318
      %s336 = sphi 0, %s336
      %s338 = sphi 0, %s336
      %s339 = sphi 0, %s338
      %s353 = sphi 0, %s339
      %s357 = sphi 0, %s357
      %s359 = sphi 0, %s357
      %s360 = sphi 0, %s359
      %s374 = sphi 0, %s360
      %s378 = sphi 0, %s378
      %s380 = sphi 0, %s378
      %s381 = sphi 0, %s380
      %s395 = sphi 0, %s381
      %s399 = sphi 0, %s399
      %s401 = sphi 0, %s399
      %s402 = sphi 0, %s401
      %s416 = sphi 0, %s402
      %s420 = sphi 0, %s420
      %s422 = sphi 0, %s420
      %s423 = sphi 0, %s422
      %s437 = sphi 0, %s423
      %s441 = sphi 0, %s441
      %s443 = sphi 0, %s441
      %s444 = sphi 0, %s443
      %s458 = sphi 0, %s444
      %s464 = sphi 0, %s466
      %s467 = sphi 0, %s464
      %s468 = sphi 0, %s467
      %s484 = sphi 0, %s468
    $region4: #{encoder_forward.1} parent=1 // loop_header_branch
      %32 = sbr.rel (%p30) target = $region8
    $region5: #{encoder_forward.1} parent=1 // loop_body
      %s34 = ssub.s32 %s29, 1
      %s35 = ssub.s32 %s29, 2
      %s36 = sadd.s32 %s29, 1
      %s37 = ssub.s32 %s29, %s36
      %p38 = scmp.eq.s32.totalorder %s37, 0
      %s40 = sadd.s32 %s39, 1
      %s41 = scalar_select %p38, %s39, %s40
      %p44 = pneg %p38
      %p45 = scmp.eq.s32.totalorder %s29, 1
      %p46 = por %p44, %p45
      %p47 = scmp.ne.s32.totalorder %s39, %s42
      %p48 = scmp.eq.s32.totalorder %s29, 0
      %p49 = por %p47, %p48
      %p50 = scmp.ne.s32.totalorder %s39, %s42
      %p51 = scmp.eq.s32.totalorder %s34, 1
      %p52 = por %p50, %p51
      %p53 = scmp.ne.s32.totalorder %s42, %s43
      %p54 = scmp.eq.s32.totalorder %s34, 0
      %p55 = por %p53, %p54
      %p56 = scmp.ne.s32.totalorder %s42, %s43
      %p57 = scmp.eq.s32.totalorder %s35, 1
      %p58 = por %p56, %p57
      %p60 = scmp.ne.s32.totalorder %s43, %s59
      %p61 = scmp.eq.s32.totalorder %s35, 0
      %p62 = por %p60, %p61
      %s64 = sadd.s32 %s63, 1
      %p67 = scmp.eq.s32.totalorder %s29, 1
      %p68 = scmp.ne.s32.totalorder %s63, %s65
      %p69 = scmp.eq.s32.totalorder %s29, 0
      %p70 = por %p68, %p69
      %p71 = scmp.ne.s32.totalorder %s63, %s65
      %p72 = scmp.eq.s32.totalorder %s34, 1
      %p73 = por %p71, %p72
      %p74 = scmp.ne.s32.totalorder %s65, %s66
      %p75 = scmp.eq.s32.totalorder %s34, 0
      %p76 = por %p74, %p75
      %p77 = scmp.ne.s32.totalorder %s65, %s66
      %p78 = scmp.eq.s32.totalorder %s35, 1
      %p79 = por %p77, %p78
      %p81 = scmp.ne.s32.totalorder %s66, %s80
      %p82 = scmp.eq.s32.totalorder %s35, 0
      %p83 = por %p81, %p82
      %s85 = sadd.s32 %s84, 1
      %p88 = scmp.eq.s32.totalorder %s29, 1
      %p89 = scmp.ne.s32.totalorder %s84, %s86
      %p90 = scmp.eq.s32.totalorder %s29, 0
      %p91 = por %p89, %p90
      %p92 = scmp.ne.s32.totalorder %s84, %s86
      %p93 = scmp.eq.s32.totalorder %s34, 1
      %p94 = por %p92, %p93
      %p95 = scmp.ne.s32.totalorder %s86, %s87
      %p96 = scmp.eq.s32.totalorder %s34, 0
      %p97 = por %p95, %p96
      %p98 = scmp.ne.s32.totalorder %s86, %s87
      %p99 = scmp.eq.s32.totalorder %s35, 1
      %p100 = por %p98, %p99
      %p102 = scmp.ne.s32.totalorder %s87, %s101
      %p103 = scmp.eq.s32.totalorder %s35, 0
      %p104 = por %p102, %p103
      %s106 = sadd.s32 %s105, 1
      %p109 = scmp.eq.s32.totalorder %s29, 1
      %p110 = scmp.ne.s32.totalorder %s105, %s107
      %p111 = scmp.eq.s32.totalorder %s29, 0
      %p112 = por %p110, %p111
      %p113 = scmp.ne.s32.totalorder %s105, %s107
      %p114 = scmp.eq.s32.totalorder %s34, 1
      %p115 = por %p113, %p114
      %p116 = scmp.ne.s32.totalorder %s107, %s108
      %p117 = scmp.eq.s32.totalorder %s34, 0
      %p118 = por %p116, %p117
      %p119 = scmp.ne.s32.totalorder %s107, %s108
      %p120 = scmp.eq.s32.totalorder %s35, 1
      %p121 = por %p119, %p120
      %p123 = scmp.ne.s32.totalorder %s108, %s122
      %p124 = scmp.eq.s32.totalorder %s35, 0
      %p125 = por %p123, %p124
      %s127 = sadd.s32 %s126, 1
      %p130 = scmp.eq.s32.totalorder %s29, 1
      %p131 = scmp.ne.s32.totalorder %s126, %s128
      %p132 = scmp.eq.s32.totalorder %s29, 0
      %p133 = por %p131, %p132
      %p134 = scmp.ne.s32.totalorder %s126, %s128
      %p135 = scmp.eq.s32.totalorder %s34, 1
      %p136 = por %p134, %p135
      %p137 = scmp.ne.s32.totalorder %s128, %s129
      %p138 = scmp.eq.s32.totalorder %s34, 0
      %p139 = por %p137, %p138
      %p140 = scmp.ne.s32.totalorder %s128, %s129
      %p141 = scmp.eq.s32.totalorder %s35, 1
      %p142 = por %p140, %p141
      %p144 = scmp.ne.s32.totalorder %s129, %s143
      %p145 = scmp.eq.s32.totalorder %s35, 0
      %p146 = por %p144, %p145
      %s148 = sadd.s32 %s147, 1
      %p151 = scmp.eq.s32.totalorder %s29, 1
      %p152 = scmp.ne.s32.totalorder %s147, %s149
      %p153 = scmp.eq.s32.totalorder %s29, 0
      %p154 = por %p152, %p153
      %p155 = scmp.ne.s32.totalorder %s147, %s149
      %p156 = scmp.eq.s32.totalorder %s34, 1
      %p157 = por %p155, %p156
      %p158 = scmp.ne.s32.totalorder %s149, %s150
      %p159 = scmp.eq.s32.totalorder %s34, 0
      %p160 = por %p158, %p159
      %p161 = scmp.ne.s32.totalorder %s149, %s150
      %p162 = scmp.eq.s32.totalorder %s35, 1
      %p163 = por %p161, %p162
      %p165 = scmp.ne.s32.totalorder %s150, %s164
      %p166 = scmp.eq.s32.totalorder %s35, 0
      %p167 = por %p165, %p166
      %s169 = sadd.s32 %s168, 1
      %p172 = scmp.eq.s32.totalorder %s29, 1
      %p173 = scmp.ne.s32.totalorder %s168, %s170
      %p174 = scmp.eq.s32.totalorder %s29, 0
      %p175 = por %p173, %p174
      %p176 = scmp.ne.s32.totalorder %s168, %s170
      %p177 = scmp.eq.s32.totalorder %s34, 1
      %p178 = por %p176, %p177
      %p179 = scmp.ne.s32.totalorder %s170, %s171
      %p180 = scmp.eq.s32.totalorder %s34, 0
      %p181 = por %p179, %p180
      %p182 = scmp.ne.s32.totalorder %s170, %s171
      %p183 = scmp.eq.s32.totalorder %s35, 1
      %p184 = por %p182, %p183
      %p186 = scmp.ne.s32.totalorder %s171, %s185
      %p187 = scmp.eq.s32.totalorder %s35, 0
      %p188 = por %p186, %p187
      %s190 = sadd.s32 %s189, 1
      %p193 = scmp.eq.s32.totalorder %s29, 1
      %p194 = scmp.ne.s32.totalorder %s189, %s191
      %p195 = scmp.eq.s32.totalorder %s29, 0
      %p196 = por %p194, %p195
      %p197 = scmp.ne.s32.totalorder %s189, %s191
      %p198 = scmp.eq.s32.totalorder %s34, 1
      %p199 = por %p197, %p198
      %p200 = scmp.ne.s32.totalorder %s191, %s192
      %p201 = scmp.eq.s32.totalorder %s34, 0
      %p202 = por %p200, %p201
      %p203 = scmp.ne.s32.totalorder %s191, %s192
      %p204 = scmp.eq.s32.totalorder %s35, 1
      %p205 = por %p203, %p204
      %p207 = scmp.ne.s32.totalorder %s192, %s206
      %p208 = scmp.eq.s32.totalorder %s35, 0
      %p209 = por %p207, %p208
      %s211 = sadd.s32 %s210, 1
      %p214 = scmp.eq.s32.totalorder %s29, 1
      %p215 = scmp.ne.s32.totalorder %s210, %s212
      %p216 = scmp.eq.s32.totalorder %s29, 0
      %p217 = por %p215, %p216
      %p218 = scmp.ne.s32.totalorder %s210, %s212
      %p219 = scmp.eq.s32.totalorder %s34, 1
      %p220 = por %p218, %p219
      %p221 = scmp.ne.s32.totalorder %s212, %s213
      %p222 = scmp.eq.s32.totalorder %s34, 0
      %p223 = por %p221, %p222
      %p224 = scmp.ne.s32.totalorder %s212, %s213
      %p225 = scmp.eq.s32.totalorder %s35, 1
      %p226 = por %p224, %p225
      %p228 = scmp.ne.s32.totalorder %s213, %s227
      %p229 = scmp.eq.s32.totalorder %s35, 0
      %p230 = por %p228, %p229
      %s232 = sadd.s32 %s231, 1
      %p235 = scmp.eq.s32.totalorder %s29, 1
      %p236 = scmp.ne.s32.totalorder %s231, %s233
      %p237 = scmp.eq.s32.totalorder %s29, 0
      %p238 = por %p236, %p237
      %p239 = scmp.ne.s32.totalorder %s231, %s233
      %p240 = scmp.eq.s32.totalorder %s34, 1
      %p241 = por %p239, %p240
      %p242 = scmp.ne.s32.totalorder %s233, %s234
      %p243 = scmp.eq.s32.totalorder %s34, 0
      %p244 = por %p242, %p243
      %p245 = scmp.ne.s32.totalorder %s233, %s234
      %p246 = scmp.eq.s32.totalorder %s35, 1
      %p247 = por %p245, %p246
      %p249 = scmp.ne.s32.totalorder %s234, %s248
      %p250 = scmp.eq.s32.totalorder %s35, 0
      %p251 = por %p249, %p250
      %s253 = sadd.s32 %s252, 1
      %p256 = scmp.eq.s32.totalorder %s29, 1
      %p257 = scmp.ne.s32.totalorder %s252, %s254
      %p258 = scmp.eq.s32.totalorder %s29, 0
      %p259 = por %p257, %p258
      %p260 = scmp.ne.s32.totalorder %s252, %s254
      %p261 = scmp.eq.s32.totalorder %s34, 1
      %p262 = por %p260, %p261
      %p263 = scmp.ne.s32.totalorder %s254, %s255
      %p264 = scmp.eq.s32.totalorder %s34, 0
      %p265 = por %p263, %p264
      %p266 = scmp.ne.s32.totalorder %s254, %s255
      %p267 = scmp.eq.s32.totalorder %s35, 1
      %p268 = por %p266, %p267
      %p270 = scmp.ne.s32.totalorder %s255, %s269
      %p271 = scmp.eq.s32.totalorder %s35, 0
      %p272 = por %p270, %p271
      %s274 = sadd.s32 %s273, 1
      %p277 = scmp.eq.s32.totalorder %s29, 1
      %p278 = scmp.ne.s32.totalorder %s273, %s275
      %p279 = scmp.eq.s32.totalorder %s29, 0
      %p280 = por %p278, %p279
      %p281 = scmp.ne.s32.totalorder %s273, %s275
      %p282 = scmp.eq.s32.totalorder %s34, 1
      %p283 = por %p281, %p282
      %p284 = scmp.ne.s32.totalorder %s275, %s276
      %p285 = scmp.eq.s32.totalorder %s34, 0
      %p286 = por %p284, %p285
      %p287 = scmp.ne.s32.totalorder %s275, %s276
      %p288 = scmp.eq.s32.totalorder %s35, 1
      %p289 = por %p287, %p288
      %p291 = scmp.ne.s32.totalorder %s276, %s290
      %p292 = scmp.eq.s32.totalorder %s35, 0
      %p293 = por %p291, %p292
      %s295 = sadd.s32 %s294, 1
      %p298 = scmp.eq.s32.totalorder %s29, 1
      %p299 = scmp.ne.s32.totalorder %s294, %s296
      %p300 = scmp.eq.s32.totalorder %s29, 0
      %p301 = por %p299, %p300
      %p302 = scmp.ne.s32.totalorder %s294, %s296
      %p303 = scmp.eq.s32.totalorder %s34, 1
      %p304 = por %p302, %p303
      %p305 = scmp.ne.s32.totalorder %s296, %s297
      %p306 = scmp.eq.s32.totalorder %s34, 0
      %p307 = por %p305, %p306
      %p308 = scmp.ne.s32.totalorder %s296, %s297
      %p309 = scmp.eq.s32.totalorder %s35, 1
      %p310 = por %p308, %p309
      %p312 = scmp.ne.s32.totalorder %s297, %s311
      %p313 = scmp.eq.s32.totalorder %s35, 0
      %p314 = por %p312, %p313
      %s316 = sadd.s32 %s315, 1
      %p319 = scmp.eq.s32.totalorder %s29, 1
      %p320 = scmp.ne.s32.totalorder %s315, %s317
      %p321 = scmp.eq.s32.totalorder %s29, 0
      %p322 = por %p320, %p321
      %p323 = scmp.ne.s32.totalorder %s315, %s317
      %p324 = scmp.eq.s32.totalorder %s34, 1
      %p325 = por %p323, %p324
      %p326 = scmp.ne.s32.totalorder %s317, %s318
      %p327 = scmp.eq.s32.totalorder %s34, 0
      %p328 = por %p326, %p327
      %p329 = scmp.ne.s32.totalorder %s317, %s318
      %p330 = scmp.eq.s32.totalorder %s35, 1
      %p331 = por %p329, %p330
      %p333 = scmp.ne.s32.totalorder %s318, %s332
      %p334 = scmp.eq.s32.totalorder %s35, 0
      %p335 = por %p333, %p334
      %s337 = sadd.s32 %s336, 1
      %p340 = scmp.eq.s32.totalorder %s29, 1
      %p341 = scmp.ne.s32.totalorder %s336, %s338
      %p342 = scmp.eq.s32.totalorder %s29, 0
      %p343 = por %p341, %p342
      %p344 = scmp.ne.s32.totalorder %s336, %s338
      %p345 = scmp.eq.s32.totalorder %s34, 1
      %p346 = por %p344, %p345
      %p347 = scmp.ne.s32.totalorder %s338, %s339
      %p348 = scmp.eq.s32.totalorder %s34, 0
      %p349 = por %p347, %p348
      %p350 = scmp.ne.s32.totalorder %s338, %s339
      %p351 = scmp.eq.s32.totalorder %s35, 1
      %p352 = por %p350, %p351
      %p354 = scmp.ne.s32.totalorder %s339, %s353
      %p355 = scmp.eq.s32.totalorder %s35, 0
      %p356 = por %p354, %p355
      %s358 = sadd.s32 %s357, 1
      %p361 = scmp.eq.s32.totalorder %s29, 1
      %p362 = scmp.ne.s32.totalorder %s357, %s359
      %p363 = scmp.eq.s32.totalorder %s29, 0
      %p364 = por %p362, %p363
      %p365 = scmp.ne.s32.totalorder %s357, %s359
      %p366 = scmp.eq.s32.totalorder %s34, 1
      %p367 = por %p365, %p366
      %p368 = scmp.ne.s32.totalorder %s359, %s360
      %p369 = scmp.eq.s32.totalorder %s34, 0
      %p370 = por %p368, %p369
      %p371 = scmp.ne.s32.totalorder %s359, %s360
      %p372 = scmp.eq.s32.totalorder %s35, 1
      %p373 = por %p371, %p372
      %p375 = scmp.ne.s32.totalorder %s360, %s374
      %p376 = scmp.eq.s32.totalorder %s35, 0
      %p377 = por %p375, %p376
      %s379 = sadd.s32 %s378, 1
      %p382 = scmp.eq.s32.totalorder %s29, 1
      %p383 = scmp.ne.s32.totalorder %s378, %s380
      %p384 = scmp.eq.s32.totalorder %s29, 0
      %p385 = por %p383, %p384
      %p386 = scmp.ne.s32.totalorder %s378, %s380
      %p387 = scmp.eq.s32.totalorder %s34, 1
      %p388 = por %p386, %p387
      %p389 = scmp.ne.s32.totalorder %s380, %s381
      %p390 = scmp.eq.s32.totalorder %s34, 0
      %p391 = por %p389, %p390
      %p392 = scmp.ne.s32.totalorder %s380, %s381
      %p393 = scmp.eq.s32.totalorder %s35, 1
      %p394 = por %p392, %p393
      %p396 = scmp.ne.s32.totalorder %s381, %s395
      %p397 = scmp.eq.s32.totalorder %s35, 0
      %p398 = por %p396, %p397
      %s400 = sadd.s32 %s399, 1
      %p403 = scmp.eq.s32.totalorder %s29, 1
      %p404 = scmp.ne.s32.totalorder %s399, %s401
      %p405 = scmp.eq.s32.totalorder %s29, 0
      %p406 = por %p404, %p405
      %p407 = scmp.ne.s32.totalorder %s399, %s401
      %p408 = scmp.eq.s32.totalorder %s34, 1
      %p409 = por %p407, %p408
      %p410 = scmp.ne.s32.totalorder %s401, %s402
      %p411 = scmp.eq.s32.totalorder %s34, 0
      %p412 = por %p410, %p411
      %p413 = scmp.ne.s32.totalorder %s401, %s402
      %p414 = scmp.eq.s32.totalorder %s35, 1
      %p415 = por %p413, %p414
      %p417 = scmp.ne.s32.totalorder %s402, %s416
      %p418 = scmp.eq.s32.totalorder %s35, 0
      %p419 = por %p417, %p418
      %s421 = sadd.s32 %s420, 1
      %p424 = scmp.eq.s32.totalorder %s29, 1
      %p425 = scmp.ne.s32.totalorder %s420, %s422
      %p426 = scmp.eq.s32.totalorder %s29, 0
      %p427 = por %p425, %p426
      %p428 = scmp.ne.s32.totalorder %s420, %s422
      %p429 = scmp.eq.s32.totalorder %s34, 1
      %p430 = por %p428, %p429
      %p431 = scmp.ne.s32.totalorder %s422, %s423
      %p432 = scmp.eq.s32.totalorder %s34, 0
      %p433 = por %p431, %p432
      %p434 = scmp.ne.s32.totalorder %s422, %s423
      %p435 = scmp.eq.s32.totalorder %s35, 1
      %p436 = por %p434, %p435
      %p438 = scmp.ne.s32.totalorder %s423, %s437
      %p439 = scmp.eq.s32.totalorder %s35, 0
      %p440 = por %p438, %p439
      %s442 = sadd.s32 %s441, 1
      %p445 = scmp.eq.s32.totalorder %s29, 1
      %p446 = scmp.ne.s32.totalorder %s441, %s443
      %p447 = scmp.eq.s32.totalorder %s29, 0
      %p448 = por %p446, %p447
      %p449 = scmp.ne.s32.totalorder %s441, %s443
      %p450 = scmp.eq.s32.totalorder %s34, 1
      %p451 = por %p449, %p450
      %p452 = scmp.ne.s32.totalorder %s443, %s444
      %p453 = scmp.eq.s32.totalorder %s34, 0
      %p454 = por %p452, %p453
      %p455 = scmp.ne.s32.totalorder %s443, %s444
      %p456 = scmp.eq.s32.totalorder %s35, 1
      %p457 = por %p455, %p456
      %p459 = scmp.ne.s32.totalorder %s444, %s458
      %p460 = scmp.eq.s32.totalorder %s35, 0
      %p461 = por %p459, %p460
      %s462 = ssub.s32 %s29, %s36
      %p463 = scmp.eq.s32.totalorder %s462, 0
      %s465 = sadd.s32 %s464, 1
      %s466 = scalar_select %p463, %s464, %s465
      %p469 = pneg %p463
      %p470 = scmp.eq.s32.totalorder %s29, 1
      %p471 = por %p469, %p470
      %p472 = scmp.ne.s32.totalorder %s464, %s467
      %p473 = scmp.eq.s32.totalorder %s29, 0
      %p474 = por %p472, %p473
      %p475 = scmp.ne.s32.totalorder %s464, %s467
      %p476 = scmp.eq.s32.totalorder %s34, 1
      %p477 = por %p475, %p476
      %p478 = scmp.ne.s32.totalorder %s467, %s468
      %p479 = scmp.eq.s32.totalorder %s34, 0
      %p480 = por %p478, %p479
      %p481 = scmp.ne.s32.totalorder %s467, %s468
      %p482 = scmp.eq.s32.totalorder %s35, 1
      %p483 = por %p481, %p482
      %p485 = scmp.ne.s32.totalorder %s468, %s484
      %p486 = scmp.eq.s32.totalorder %s35, 0
      %p487 = por %p485, %p486
      %p488 = scmp.le.s32.totalorder 1, %s29
      %p489 = scmp.lt.s32.totalorder %s29, 3
      %p490 = pnand %p488, %p489
      %p491 = pneg %p490
      // Predicated region
      $region9: #{encoder_forward.1} parent=5 // pred_check
        _
      $region10: #{encoder_forward.1} parent=5 // pred_check_branch
        %493 = sbr.rel (%p490) target = $region12
      $region11: #{encoder_forward.1} parent=5 // pred_region
        %s494 = ssub.s32 %s29, 1
        // Predicated region
        $region13: #{encoder_forward.1} parent=11 // pred_check
          %p495 = pneg %p76
        $region14: #{encoder_forward.1} parent=11 // pred_check_branch
          %497 = sbr.rel (%p495) target = $region16
        $region15: #{encoder_forward.1} parent=11 // pred_region
          _
        $region16: #{encoder_forward.1} parent=11 // pred_fallthru
          _
        // Predicated region
        $region17: #{encoder_forward.1} parent=11 // pred_check
          %p498 = pneg %p97
        $region18: #{encoder_forward.1} parent=11 // pred_check_branch
          %500 = sbr.rel (%p498) target = $region20
        $region19: #{encoder_forward.1} parent=11 // pred_region
          _
        $region20: #{encoder_forward.1} parent=11 // pred_fallthru
          _
        // Predicated region
        $region21: #{encoder_forward.1} parent=11 // pred_check
          %p501 = pneg %p118
        $region22: #{encoder_forward.1} parent=11 // pred_check_branch
          %503 = sbr.rel (%p501) target = $region24
        $region23: #{encoder_forward.1} parent=11 // pred_region
          _
        $region24: #{encoder_forward.1} parent=11 // pred_fallthru
          _
        // Predicated region
        $region25: #{encoder_forward.1} parent=11 // pred_check
          %p504 = pneg %p139
        $region26: #{encoder_forward.1} parent=11 // pred_check_branch
          %506 = sbr.rel (%p504) target = $region28
        $region27: #{encoder_forward.1} parent=11 // pred_region
          _
        $region28: #{encoder_forward.1} parent=11 // pred_fallthru
          _
        // Predicated region
        $region29: #{encoder_forward.1} parent=11 // pred_check
          %p507 = pneg %p160
        $region30: #{encoder_forward.1} parent=11 // pred_check_branch
          %509 = sbr.rel (%p507) target = $region32
        $region31: #{encoder_forward.1} parent=11 // pred_region
          _
        $region32: #{encoder_forward.1} parent=11 // pred_fallthru
          _
        // Predicated region
        $region33: #{encoder_forward.1} parent=11 // pred_check
          %p510 = pneg %p181
        $region34: #{encoder_forward.1} parent=11 // pred_check_branch
          %512 = sbr.rel (%p510) target = $region36
        $region35: #{encoder_forward.1} parent=11 // pred_region
          _
        $region36: #{encoder_forward.1} parent=11 // pred_fallthru
          _
        // Predicated region
        $region37: #{encoder_forward.1} parent=11 // pred_check
          %p513 = pneg %p202
        $region38: #{encoder_forward.1} parent=11 // pred_check_branch
          %515 = sbr.rel (%p513) target = $region40
        $region39: #{encoder_forward.1} parent=11 // pred_region
          _
        $region40: #{encoder_forward.1} parent=11 // pred_fallthru
          _
        // Predicated region
        $region41: #{encoder_forward.1} parent=11 // pred_check
          %p516 = pneg %p223
        $region42: #{encoder_forward.1} parent=11 // pred_check_branch
          %518 = sbr.rel (%p516) target = $region44
        $region43: #{encoder_forward.1} parent=11 // pred_region
          _
        $region44: #{encoder_forward.1} parent=11 // pred_fallthru
          _
        // Predicated region
        $region45: #{encoder_forward.1} parent=11 // pred_check
          %p519 = pneg %p244
        $region46: #{encoder_forward.1} parent=11 // pred_check_branch
          %521 = sbr.rel (%p519) target = $region48
        $region47: #{encoder_forward.1} parent=11 // pred_region
          _
        $region48: #{encoder_forward.1} parent=11 // pred_fallthru
          _
        // Predicated region
        $region49: #{encoder_forward.1} parent=11 // pred_check
          %p522 = pneg %p265
        $region50: #{encoder_forward.1} parent=11 // pred_check_branch
          %524 = sbr.rel (%p522) target = $region52
        $region51: #{encoder_forward.1} parent=11 // pred_region
          _
        $region52: #{encoder_forward.1} parent=11 // pred_fallthru
          _
        // Predicated region
        $region53: #{encoder_forward.1} parent=11 // pred_check
          %p525 = pneg %p286
        $region54: #{encoder_forward.1} parent=11 // pred_check_branch
          %527 = sbr.rel (%p525) target = $region56
        $region55: #{encoder_forward.1} parent=11 // pred_region
          _
        $region56: #{encoder_forward.1} parent=11 // pred_fallthru
          _
        // Predicated region
        $region57: #{encoder_forward.1} parent=11 // pred_check
          %p528 = pneg %p307
        $region58: #{encoder_forward.1} parent=11 // pred_check_branch
          %530 = sbr.rel (%p528) target = $region60
        $region59: #{encoder_forward.1} parent=11 // pred_region
          _
        $region60: #{encoder_forward.1} parent=11 // pred_fallthru
          _
        // Predicated region
        $region61: #{encoder_forward.1} parent=11 // pred_check
          %p531 = pneg %p328
        $region62: #{encoder_forward.1} parent=11 // pred_check_branch
          %533 = sbr.rel (%p531) target = $region64
        $region63: #{encoder_forward.1} parent=11 // pred_region
          _
        $region64: #{encoder_forward.1} parent=11 // pred_fallthru
          _
        // Predicated region
        $region65: #{encoder_forward.1} parent=11 // pred_check
          %p534 = pneg %p349
        $region66: #{encoder_forward.1} parent=11 // pred_check_branch
          %536 = sbr.rel (%p534) target = $region68
        $region67: #{encoder_forward.1} parent=11 // pred_region
          _
        $region68: #{encoder_forward.1} parent=11 // pred_fallthru
          _
        // Predicated region
        $region69: #{encoder_forward.1} parent=11 // pred_check
          %p537 = pneg %p370
        $region70: #{encoder_forward.1} parent=11 // pred_check_branch
          %539 = sbr.rel (%p537) target = $region72
        $region71: #{encoder_forward.1} parent=11 // pred_region
          _
        $region72: #{encoder_forward.1} parent=11 // pred_fallthru
          _
        // Predicated region
        $region73: #{encoder_forward.1} parent=11 // pred_check
          %p540 = pneg %p391
        $region74: #{encoder_forward.1} parent=11 // pred_check_branch
          %542 = sbr.rel (%p540) target = $region76
        $region75: #{encoder_forward.1} parent=11 // pred_region
          _
        $region76: #{encoder_forward.1} parent=11 // pred_fallthru
          _
        // Predicated region
        $region77: #{encoder_forward.1} parent=11 // pred_check
          %p543 = pneg %p412
        $region78: #{encoder_forward.1} parent=11 // pred_check_branch
          %545 = sbr.rel (%p543) target = $region80
        $region79: #{encoder_forward.1} parent=11 // pred_region
          _
        $region80: #{encoder_forward.1} parent=11 // pred_fallthru
          _
        // Predicated region
        $region81: #{encoder_forward.1} parent=11 // pred_check
          %p546 = pneg %p433
        $region82: #{encoder_forward.1} parent=11 // pred_check_branch
          %548 = sbr.rel (%p546) target = $region84
        $region83: #{encoder_forward.1} parent=11 // pred_region
          _
        $region84: #{encoder_forward.1} parent=11 // pred_fallthru
          _
        // Predicated region
        $region85: #{encoder_forward.1} parent=11 // pred_check
          %p549 = pneg %p454
        $region86: #{encoder_forward.1} parent=11 // pred_check_branch
          %551 = sbr.rel (%p549) target = $region88
        $region87: #{encoder_forward.1} parent=11 // pred_region
          _
        $region88: #{encoder_forward.1} parent=11 // pred_fallthru
          _
      $region12: #{encoder_forward.1} parent=5 // pred_fallthru
        _
      %p552 = scmp.lt.s32.totalorder %s29, 2
      // Predicated region
      $region89: #{encoder_forward.1} parent=5 // pred_check
        %p553 = pneg %p552
      $region90: #{encoder_forward.1} parent=5 // pred_check_branch
        %555 = sbr.rel (%p553) target = $region92
      $region91: #{encoder_forward.1} parent=5 // pred_region
        // Predicated region
        $region93: #{encoder_forward.1} parent=91 // pred_check
          %p556 = pneg %p49
        $region94: #{encoder_forward.1} parent=91 // pred_check_branch
          %558 = sbr.rel (%p556) target = $region96
        $region95: #{encoder_forward.1} parent=91 // pred_region
          %p559 = scmp.lt.s32.totalorder %s29, 1
          %s560 = scalar_select %p559, %s29, 1
          %s561 = smul.addr %s560, 32
          %s562 = smul.addr %s561, 8
          %s563 = scalar_lea.vmem %s0, %s562
        $region96: #{encoder_forward.1} parent=91 // pred_fallthru
          _
      $region92: #{encoder_forward.1} parent=5 // pred_fallthru
        _
      %p564 = scmp.le.s32.totalorder 1, %s29
      %p565 = scmp.lt.s32.totalorder %s29, 3
      %p566 = pnand %p564, %p565
      %p567 = pneg %p566
      // Predicated region
      $region97: #{encoder_forward.1} parent=5 // pred_check
        _
      $region98: #{encoder_forward.1} parent=5 // pred_check_branch
        %569 = sbr.rel (%p566) target = $region100
      $region99: #{encoder_forward.1} parent=5 // pred_region
        %s570 = ssub.s32 %s29, 1
        %p571 = scmp.lt.s32.totalorder %s34, 1
        %s572 = scalar_select %p571, %s34, 1
        %s573 = smul.addr %s572, 32
        %s574 = smul.addr %s573, 8
        %s575 = scalar_lea.vmem %s0, %s574
        %p576 = pneg %p55
        %p577 = pneg %p52
        %p578 = pneg %p76
        %p579 = pneg %p73
        %p580 = pneg %p97
        %p581 = pneg %p94
        %p582 = pneg %p118
        %p583 = pneg %p115
        %p584 = pneg %p139
        %p585 = pneg %p136
        %p586 = pneg %p160
        %p587 = pneg %p157
        %p588 = pneg %p181
        %p589 = pneg %p178
        %p590 = pneg %p202
        %p591 = pneg %p199
        %p592 = pneg %p223
        %p593 = pneg %p220
        %p594 = pneg %p244
        %p595 = pneg %p241
        %p596 = pneg %p265
        %p597 = pneg %p262
        %p598 = pneg %p286
        %p599 = pneg %p283
        %p600 = pneg %p307
        %p601 = pneg %p304
        %p602 = pneg %p328
        %p603 = pneg %p325
        %p604 = pneg %p349
        %p605 = pneg %p346
        %p606 = pneg %p370
        %p607 = pneg %p367
        %p608 = pneg %p391
        %p609 = pneg %p388
        %p610 = pneg %p412
        %p611 = pneg %p409
        %p612 = pneg %p433
        %p613 = pneg %p430
        %p614 = pneg %p454
        %p615 = pneg %p451
        %p616 = pneg %p480
        %p617 = pneg %p477
        %s618 = sand.u32 %s467, 1
        %s619 = scalar_lea.sflag [#allocation7], %s618
        %s620 = sand.u32 %s467, 1
        %s621 = scalar_lea.vmem [#allocation6], %s620
        %p622 = scmp.lt.s32.totalorder %s34, 1
        %s623 = scalar_select %p622, %s34, 1
        %s624 = smul.addr %s623, 32
        %s625 = smul.addr %s624, 8
        %s626 = scalar_lea.vmem %s0, %s625
        %v627 = vld [vmem:[%s626] sm:$0xff]
        %v628 = vld [vmem:[%s626 + $0x8] sm:$0xff]
        %v629 = vld [vmem:[%s626 + $0x10] sm:$0xff]
        %v630 = vld [vmem:[%s626 + $0x18] sm:$0xff]
        %v631 = vld [vmem:[%s626 + $0x20] sm:$0xff]
        %v632 = vld [vmem:[%s626 + $0x28] sm:$0xff]
        %v633 = vld [vmem:[%s626 + $0x30] sm:$0xff]
        %v634 = vld [vmem:[%s626 + $0x38] sm:$0xff]
        %v635 = vld [vmem:[%s626 + $0x40] sm:$0xff]
        %v636 = vld [vmem:[%s626 + $0x48] sm:$0xff]
        %v637 = vld [vmem:[%s626 + $0x50] sm:$0xff]
        %v638 = vld [vmem:[%s626 + $0x58] sm:$0xff]
        %v639 = vld [vmem:[%s626 + $0x60] sm:$0xff]
        %v640 = vld [vmem:[%s626 + $0x68] sm:$0xff]
        %v641 = vld [vmem:[%s626 + $0x70] sm:$0xff]
        %v642 = vld [vmem:[%s626 + $0x78] sm:$0xff]
        %v643 = vld [vmem:[%s626 + $0x80] sm:$0xff]
        %v644 = vld [vmem:[%s626 + $0x88] sm:$0xff]
        %v645 = vld [vmem:[%s626 + $0x90] sm:$0xff]
        %v646 = vld [vmem:[%s626 + $0x98] sm:$0xff]
        %v647 = vld [vmem:[%s626 + $0xa0] sm:$0xff]
        %v648 = vld [vmem:[%s626 + $0xa8] sm:$0xff]
        %v649 = vld [vmem:[%s626 + $0xb0] sm:$0xff]
        %v650 = vld [vmem:[%s626 + $0xb8] sm:$0xff]
        %v651 = vld [vmem:[%s626 + $0xc0] sm:$0xff]
        %v652 = vld [vmem:[%s626 + $0xc8] sm:$0xff]
        %v653 = vld [vmem:[%s626 + $0xd0] sm:$0xff]
        %v654 = vld [vmem:[%s626 + $0xd8] sm:$0xff]
        %v655 = vld [vmem:[%s626 + $0xe0] sm:$0xff]
        %v656 = vld [vmem:[%s626 + $0xe8] sm:$0xff]
        %v657 = vld [vmem:[%s626 + $0xf0] sm:$0xff]
        %v658 = vld [vmem:[%s626 + $0xf8] sm:$0xff]
        %vm659 = vcmask 7168
        %660 = vst.msk [vmem:[#allocation2] sm:$0xff] %vm659, 0.0
        %661 = vst.msk [vmem:[#allocation2 + $0x8] sm:$0xff] %vm659, 0.0
        %662 = vst.msk [vmem:[#allocation2 + $0x10] sm:$0xff] %vm659, 0.0
        %663 = vst.msk [vmem:[#allocation2 + $0x18] sm:$0xff] %vm659, 0.0
        %664 = vst.msk [vmem:[#allocation2 + $0x20] sm:$0xff] %vm659, 0.0
        %665 = vst.msk [vmem:[#allocation2 + $0x28] sm:$0xff] %vm659, 0.0
        %666 = vst.msk [vmem:[#allocation2 + $0x30] sm:$0xff] %vm659, 0.0
        %667 = vst.msk [vmem:[#allocation2 + $0x38] sm:$0xff] %vm659, 0.0
        %668 = vst.msk [vmem:[#allocation2 + $0x40] sm:$0xff] %vm659, 0.0
        %669 = vst.msk [vmem:[#allocation2 + $0x48] sm:$0xff] %vm659, 0.0
        %670 = vst.msk [vmem:[#allocation2 + $0x50] sm:$0xff] %vm659, 0.0
        %671 = vst.msk [vmem:[#allocation2 + $0x58] sm:$0xff] %vm659, 0.0
        %672 = vst.msk [vmem:[#allocation2 + $0x60] sm:$0xff] %vm659, 0.0
        %673 = vst.msk [vmem:[#allocation2 + $0x68] sm:$0xff] %vm659, 0.0
        %674 = vst.msk [vmem:[#allocation2 + $0x70] sm:$0xff] %vm659, 0.0
        %675 = vst.msk [vmem:[#allocation2 + $0x78] sm:$0xff] %vm659, 0.0
        %676 = vst.msk [vmem:[#allocation2 + $0x80] sm:$0xff] %vm659, 0.0
        %677 = vst.msk [vmem:[#allocation2 + $0x88] sm:$0xff] %vm659, 0.0
        %678 = vst.msk [vmem:[#allocation2 + $0x90] sm:$0xff] %vm659, 0.0
        %679 = vst.msk [vmem:[#allocation2 + $0x98] sm:$0xff] %vm659, 0.0
        %680 = vst.msk [vmem:[#allocation2 + $0xa0] sm:$0xff] %vm659, 0.0
        %681 = vst.msk [vmem:[#allocation2 + $0xa8] sm:$0xff] %vm659, 0.0
        %682 = vst.msk [vmem:[#allocation2 + $0xb0] sm:$0xff] %vm659, 0.0
        %683 = vst.msk [vmem:[#allocation2 + $0xb8] sm:$0xff] %vm659, 0.0
        %684 = vst.msk [vmem:[#allocation2 + $0xc0] sm:$0xff] %vm659, 0.0
        %685 = vst.msk [vmem:[#allocation2 + $0xc8] sm:$0xff] %vm659, 0.0
        %686 = vst.msk [vmem:[#allocation2 + $0xd0] sm:$0xff] %vm659, 0.0
        %687 = vst.msk [vmem:[#allocation2 + $0xd8] sm:$0xff] %vm659, 0.0
        %688 = vst.msk [vmem:[#allocation2 + $0xe0] sm:$0xff] %vm659, 0.0
        %689 = vst.msk [vmem:[#allocation2 + $0xe8] sm:$0xff] %vm659, 0.0
        %690 = vst.msk [vmem:[#allocation2 + $0xf0] sm:$0xff] %vm659, 0.0
        %691 = vst.msk [vmem:[#allocation2 + $0xf8] sm:$0xff] %vm659, 0.0
        %692 = vst.msk [vmem:[#allocation2 + $0x100] sm:$0xff] %vm659, 0.0
        %693 = vst.msk [vmem:[#allocation2 + $0x108] sm:$0xff] %vm659, 0.0
        %694 = vst.msk [vmem:[#allocation2 + $0x110] sm:$0xff] %vm659, 0.0
        %695 = vst.msk [vmem:[#allocation2 + $0x118] sm:$0xff] %vm659, 0.0
        %vm696 = vcmask 1024
        %697 = vst.msk [vmem:[#allocation2 + $0x120] sm:$0x3] %vm696, 0.0
        %698 = vst.msk [vmem:[#allocation2 + $0x11] sm:$0xff] %vm659, %v627
        %699 = vst.msk [vmem:[#allocation2 + $0x19] sm:$0xff] %vm659, %v628
        %700 = vst.msk [vmem:[#allocation2 + $0x21] sm:$0xff] %vm659, %v629
        %701 = vst.msk [vmem:[#allocation2 + $0x29] sm:$0xff] %vm659, %v630
        %702 = vst.msk [vmem:[#allocation2 + $0x31] sm:$0xff] %vm659, %v631
        %703 = vst.msk [vmem:[#allocation2 + $0x39] sm:$0xff] %vm659, %v632
        %704 = vst.msk [vmem:[#allocation2 + $0x41] sm:$0xff] %vm659, %v633
        %705 = vst.msk [vmem:[#allocation2 + $0x49] sm:$0xff] %vm659, %v634
        %706 = vst.msk [vmem:[#allocation2 + $0x51] sm:$0xff] %vm659, %v635
        %707 = vst.msk [vmem:[#allocation2 + $0x59] sm:$0xff] %vm659, %v636
        %708 = vst.msk [vmem:[#allocation2 + $0x61] sm:$0xff] %vm659, %v637
        %709 = vst.msk [vmem:[#allocation2 + $0x69] sm:$0xff] %vm659, %v638
        %710 = vst.msk [vmem:[#allocation2 + $0x71] sm:$0xff] %vm659, %v639
        %711 = vst.msk [vmem:[#allocation2 + $0x79] sm:$0xff] %vm659, %v640
        %712 = vst.msk [vmem:[#allocation2 + $0x81] sm:$0xff] %vm659, %v641
        %713 = vst.msk [vmem:[#allocation2 + $0x89] sm:$0xff] %vm659, %v642
        %714 = vst.msk [vmem:[#allocation2 + $0x91] sm:$0xff] %vm659, %v643
        %715 = vst.msk [vmem:[#allocation2 + $0x99] sm:$0xff] %vm659, %v644
        %716 = vst.msk [vmem:[#allocation2 + $0xa1] sm:$0xff] %vm659, %v645
        %717 = vst.msk [vmem:[#allocation2 + $0xa9] sm:$0xff] %vm659, %v646
        %718 = vst.msk [vmem:[#allocation2 + $0xb1] sm:$0xff] %vm659, %v647
        %719 = vst.msk [vmem:[#allocation2 + $0xb9] sm:$0xff] %vm659, %v648
        %720 = vst.msk [vmem:[#allocation2 + $0xc1] sm:$0xff] %vm659, %v649
        %721 = vst.msk [vmem:[#allocation2 + $0xc9] sm:$0xff] %vm659, %v650
        %722 = vst.msk [vmem:[#allocation2 + $0xd1] sm:$0xff] %vm659, %v651
        %723 = vst.msk [vmem:[#allocation2 + $0xd9] sm:$0xff] %vm659, %v652
        %724 = vst.msk [vmem:[#allocation2 + $0xe1] sm:$0xff] %vm659, %v653
        %725 = vst.msk [vmem:[#allocation2 + $0xe9] sm:$0xff] %vm659, %v654
        %726 = vst.msk [vmem:[#allocation2 + $0xf1] sm:$0xff] %vm659, %v655
        %727 = vst.msk [vmem:[#allocation2 + $0xf9] sm:$0xff] %vm659, %v656
        %728 = vst.msk [vmem:[#allocation2 + $0x101] sm:$0xff] %vm659, %v657
        %729 = vst.msk [vmem:[#allocation2 + $0x109] sm:$0xff] %vm659, %v658
        %v730 = vld [vmem:[%s3] sm:$0xff]
        %v731 = vld [vmem:[%s3 + $0x8] sm:$0xff]
        %v732 = vld [vmem:[%s3 + $0x10] sm:$0xff]
        %v733 = vld [vmem:[%s3 + $0x18] sm:$0xff]
        %v734 = vld [vmem:[%s3 + $0x20] sm:$0xff]
        %v735 = vld [vmem:[%s3 + $0x28] sm:$0xff]
        %v736 = vld [vmem:[%s3 + $0x30] sm:$0xff]
        %v737 = vld [vmem:[%s3 + $0x38] sm:$0xff]
        %v738 = vld [vmem:[%s3 + $0x40] sm:$0xff]
        %v739 = vld [vmem:[%s3 + $0x48] sm:$0xff]
        %v740 = vld [vmem:[%s3 + $0x50] sm:$0xff]
        %v741 = vld [vmem:[%s3 + $0x58] sm:$0xff]
        %v742 = vld [vmem:[%s3 + $0x60] sm:$0xff]
        %v743 = vld [vmem:[%s3 + $0x68] sm:$0xff]
        %v744 = vld [vmem:[%s3 + $0x70] sm:$0xff]
        %v745 = vld [vmem:[%s3 + $0x78] sm:$0xff]
        %v746 = vld [vmem:[%s3 + $0x80] sm:$0xff]
        %v747 = vld [vmem:[%s3 + $0x88] sm:$0xff]
        %v748 = vld [vmem:[%s3 + $0x90] sm:$0xff]
        %v749 = vld [vmem:[%s3 + $0x98] sm:$0xff]
        %v750 = vld [vmem:[%s3 + $0xa0] sm:$0xff]
        %v751 = vld [vmem:[%s3 + $0xa8] sm:$0xff]
        %v752 = vld [vmem:[%s3 + $0xb0] sm:$0xff]
        %v753 = vld [vmem:[%s3 + $0xb8] sm:$0xff]
        %v754 = vld [vmem:[%s3 + $0xc0] sm:$0xff]
        %v755 = vld [vmem:[%s3 + $0xc8] sm:$0xff]
        %v756 = vld [vmem:[%s3 + $0xd0] sm:$0xff]
        %v757 = vld [vmem:[%s3 + $0xd8] sm:$0xff]
        %v758 = vld [vmem:[%s3 + $0xe0] sm:$0xff]
        %v759 = vld [vmem:[%s3 + $0xe8] sm:$0xff]
        %v760 = vld [vmem:[%s3 + $0xf0] sm:$0xff]
        %v761 = vld [vmem:[%s3 + $0xf8] sm:$0xff]
        %s762 = scalar_lea.vmem %s3, 256
        %v763 = vld [vmem:[%s762] sm:$0xff]
        %v764 = vld [vmem:[%s762 + $0x8] sm:$0xff]
        %v765 = vld [vmem:[%s762 + $0x10] sm:$0xff]
        %v766 = vld [vmem:[%s762 + $0x18] sm:$0xff]
        %v767 = vld [vmem:[%s762 + $0x20] sm:$0xff]
        %v768 = vld [vmem:[%s762 + $0x28] sm:$0xff]
        %v769 = vld [vmem:[%s762 + $0x30] sm:$0xff]
        %v770 = vld [vmem:[%s762 + $0x38] sm:$0xff]
        %v771 = vld [vmem:[%s762 + $0x40] sm:$0xff]
        %v772 = vld [vmem:[%s762 + $0x48] sm:$0xff]
        %v773 = vld [vmem:[%s762 + $0x50] sm:$0xff]
        %v774 = vld [vmem:[%s762 + $0x58] sm:$0xff]
        %v775 = vld [vmem:[%s762 + $0x60] sm:$0xff]
        %v776 = vld [vmem:[%s762 + $0x68] sm:$0xff]
        %v777 = vld [vmem:[%s762 + $0x70] sm:$0xff]
        %v778 = vld [vmem:[%s762 + $0x78] sm:$0xff]
        %v779 = vld [vmem:[%s762 + $0x80] sm:$0xff]
        %v780 = vld [vmem:[%s762 + $0x88] sm:$0xff]
        %v781 = vld [vmem:[%s762 + $0x90] sm:$0xff]
        %v782 = vld [vmem:[%s762 + $0x98] sm:$0xff]
        %v783 = vld [vmem:[%s762 + $0xa0] sm:$0xff]
        %v784 = vld [vmem:[%s762 + $0xa8] sm:$0xff]
        %v785 = vld [vmem:[%s762 + $0xb0] sm:$0xff]
        %v786 = vld [vmem:[%s762 + $0xb8] sm:$0xff]
        %v787 = vld [vmem:[%s762 + $0xc0] sm:$0xff]
        %v788 = vld [vmem:[%s762 + $0xc8] sm:$0xff]
        %v789 = vld [vmem:[%s762 + $0xd0] sm:$0xff]
        %v790 = vld [vmem:[%s762 + $0xd8] sm:$0xff]
        %v791 = vld [vmem:[%s762 + $0xe0] sm:$0xff]
        %v792 = vld [vmem:[%s762 + $0xe8] sm:$0xff]
        %v793 = vld [vmem:[%s762 + $0xf0] sm:$0xff]
        %v794 = vld [vmem:[%s762 + $0xf8] sm:$0xff]
        %v795 = vld [vmem:[#allocation2] sm:$0xff]
        %v796 = vld [vmem:[#allocation2 + $0x8] sm:$0xff]
        %v797 = vld [vmem:[#allocation2 + $0x10] sm:$0xff]
        %v798 = vld [vmem:[#allocation2 + $0x18] sm:$0xff]
        %v799 = vld [vmem:[#allocation2 + $0x20] sm:$0xff]
        %v800 = vld [vmem:[#allocation2 + $0x28] sm:$0xff]
        %v801 = vld [vmem:[#allocation2 + $0x30] sm:$0xff]
        %v802 = vld [vmem:[#allocation2 + $0x38] sm:$0xff]
        %v803 = vld [vmem:[#allocation2 + $0x40] sm:$0xff]
        %v804 = vld [vmem:[#allocation2 + $0x48] sm:$0xff]
        %v805 = vld [vmem:[#allocation2 + $0x50] sm:$0xff]
        %v806 = vld [vmem:[#allocation2 + $0x58] sm:$0xff]
        %v807 = vld [vmem:[#allocation2 + $0x60] sm:$0xff]
        %v808 = vld [vmem:[#allocation2 + $0x68] sm:$0xff]
        %v809 = vld [vmem:[#allocation2 + $0x70] sm:$0xff]
        %v810 = vld [vmem:[#allocation2 + $0x78] sm:$0xff]
        %v811 = vld [vmem:[#allocation2 + $0x80] sm:$0xff]
        %v812 = vld [vmem:[#allocation2 + $0x88] sm:$0xff]
        %v813 = vld [vmem:[#allocation2 + $0x90] sm:$0xff]
        %v814 = vld [vmem:[#allocation2 + $0x98] sm:$0xff]
        %v815 = vld [vmem:[#allocation2 + $0xa0] sm:$0xff]
        %v816 = vld [vmem:[#allocation2 + $0xa8] sm:$0xff]
        %v817 = vld [vmem:[#allocation2 + $0xb0] sm:$0xff]
        %v818 = vld [vmem:[#allocation2 + $0xb8] sm:$0xff]
        %v819 = vld [vmem:[#allocation2 + $0xc0] sm:$0xff]
        %v820 = vld [vmem:[#allocation2 + $0xc8] sm:$0xff]
        %v821 = vld [vmem:[#allocation2 + $0xd0] sm:$0xff]
        %v822 = vld [vmem:[#allocation2 + $0xd8] sm:$0xff]
        %v823 = vld [vmem:[#allocation2 + $0xe0] sm:$0xff]
        %v824 = vld [vmem:[#allocation2 + $0xe8] sm:$0xff]
        %v825 = vld [vmem:[#allocation2 + $0xf0] sm:$0xff]
        %v826 = vld [vmem:[#allocation2 + $0xf8] sm:$0xff]
        %v827 = vmul.f32 %v795, %v730
        %v828 = vmul.f32 %v796, %v731
        %v829 = vmul.f32 %v797, %v732
        %v830 = vmul.f32 %v798, %v733
        %v831 = vmul.f32 %v799, %v734
        %v832 = vmul.f32 %v800, %v735
        %v833 = vmul.f32 %v801, %v736
        %v834 = vmul.f32 %v802, %v737
        %v835 = vmul.f32 %v803, %v738
        %v836 = vmul.f32 %v804, %v739
        %v837 = vmul.f32 %v805, %v740
        %v838 = vmul.f32 %v806, %v741
        %v839 = vmul.f32 %v807, %v742
        %v840 = vmul.f32 %v808, %v743
        %v841 = vmul.f32 %v809, %v744
        %v842 = vmul.f32 %v810, %v745
        %v843 = vmul.f32 %v811, %v746
        %v844 = vmul.f32 %v812, %v747
        %v845 = vmul.f32 %v813, %v748
        %v846 = vmul.f32 %v814, %v749
        %v847 = vmul.f32 %v815, %v750
        %v848 = vmul.f32 %v816, %v751
        %v849 = vmul.f32 %v817, %v752
        %v850 = vmul.f32 %v818, %v753
        %v851 = vmul.f32 %v819, %v754
        %v852 = vmul.f32 %v820, %v755
        %v853 = vmul.f32 %v821, %v756
        %v854 = vmul.f32 %v822, %v757
        %v855 = vmul.f32 %v823, %v758
        %v856 = vmul.f32 %v824, %v759
        %v857 = vmul.f32 %v825, %v760
        %v858 = vmul.f32 %v826, %v761
        %v859 = vld [vmem:[%s1] sm:$0x1]
        %861 = vset.pattern.permute.xlu0 0
        %862 = vperm.xlu0 %861, %v827
        %v863 = vpop.permute.xlu0 %862
        %866 = vset.pattern.permute.xlu0 0
        %867 = vperm.xlu0 %866, %v828
        %v868 = vpop.permute.xlu0 %867
        %871 = vset.pattern.permute.xlu0 0
        %872 = vperm.xlu0 %871, %v829
        %v873 = vpop.permute.xlu0 %872
        %876 = vset.pattern.permute.xlu0 0
        %877 = vperm.xlu0 %876, %v830
        %v878 = vpop.permute.xlu0 %877
        %881 = vset.pattern.permute.xlu0 0
        %882 = vperm.xlu0 %881, %v831
        %v883 = vpop.permute.xlu0 %882
        %886 = vset.pattern.permute.xlu0 0
        %887 = vperm.xlu0 %886, %v832
        %v888 = vpop.permute.xlu0 %887
        %891 = vset.pattern.permute.xlu0 0
        %892 = vperm.xlu0 %891, %v833
        %v893 = vpop.permute.xlu0 %892
        %896 = vset.pattern.permute.xlu0 0
        %897 = vperm.xlu0 %896, %v834
        %v898 = vpop.permute.xlu0 %897
        %901 = vset.pattern.permute.xlu0 0
        %902 = vperm.xlu0 %901, %v835
        %v903 = vpop.permute.xlu0 %902
        %906 = vset.pattern.permute.xlu0 0
        %907 = vperm.xlu0 %906, %v836
        %v908 = vpop.permute.xlu0 %907
        %911 = vset.pattern.permute.xlu0 0
        %912 = vperm.xlu0 %911, %v837
        %v913 = vpop.permute.xlu0 %912
        %916 = vset.pattern.permute.xlu0 0
        %917 = vperm.xlu0 %916, %v838
        %v918 = vpop.permute.xlu0 %917
        %921 = vset.pattern.permute.xlu0 0
        %922 = vperm.xlu0 %921, %v839
        %v923 = vpop.permute.xlu0 %922
        %926 = vset.pattern.permute.xlu0 0
        %927 = vperm.xlu0 %926, %v840
        %v928 = vpop.permute.xlu0 %927
        %931 = vset.pattern.permute.xlu0 0
        %932 = vperm.xlu0 %931, %v841
        %v933 = vpop.permute.xlu0 %932
        %936 = vset.pattern.permute.xlu0 0
        %937 = vperm.xlu0 %936, %v842
        %v938 = vpop.permute.xlu0 %937
        %941 = vset.pattern.permute.xlu0 0
        %942 = vperm.xlu0 %941, %v843
        %v943 = vpop.permute.xlu0 %942
        %946 = vset.pattern.permute.xlu0 0
        %947 = vperm.xlu0 %946, %v844
        %v948 = vpop.permute.xlu0 %947
        %951 = vset.pattern.permute.xlu0 0
        %952 = vperm.xlu0 %951, %v845
        %v953 = vpop.permute.xlu0 %952
        %956 = vset.pattern.permute.xlu0 0
        %957 = vperm.xlu0 %956, %v846
        %v958 = vpop.permute.xlu0 %957
        %961 = vset.pattern.permute.xlu0 0
        %962 = vperm.xlu0 %961, %v847
        %v963 = vpop.permute.xlu0 %962
        %966 = vset.pattern.permute.xlu0 0
        %967 = vperm.xlu0 %966, %v848
        %v968 = vpop.permute.xlu0 %967
        %971 = vset.pattern.permute.xlu0 0
        %972 = vperm.xlu0 %971, %v849
        %v973 = vpop.permute.xlu0 %972
        %976 = vset.pattern.permute.xlu0 0
        %977 = vperm.xlu0 %976, %v850
        %v978 = vpop.permute.xlu0 %977
        %981 = vset.pattern.permute.xlu0 0
        %982 = vperm.xlu0 %981, %v851
        %v983 = vpop.permute.xlu0 %982
        %986 = vset.pattern.permute.xlu0 0
        %987 = vperm.xlu0 %986, %v852
        %v988 = vpop.permute.xlu0 %987
        %991 = vset.pattern.permute.xlu0 0
        %992 = vperm.xlu0 %991, %v853
        %v993 = vpop.permute.xlu0 %992
        %996 = vset.pattern.permute.xlu0 0
        %997 = vperm.xlu0 %996, %v854
        %v998 = vpop.permute.xlu0 %997
        %1001 = vset.pattern.permute.xlu0 0
        %1002 = vperm.xlu0 %1001, %v855
        %v1003 = vpop.permute.xlu0 %1002
        %1006 = vset.pattern.permute.xlu0 0
        %1007 = vperm.xlu0 %1006, %v856
        %v1008 = vpop.permute.xlu0 %1007
        %1011 = vset.pattern.permute.xlu0 0
        %1012 = vperm.xlu0 %1011, %v857
        %v1013 = vpop.permute.xlu0 %1012
        %1016 = vset.pattern.permute.xlu0 0
        %1017 = vperm.xlu0 %1016, %v858
        %v1018 = vpop.permute.xlu0 %1017
        %v1020 = vlaneseq
        %v1021 = vshrl.u32 %v1020, 7
        %v1022 = vsub.s32 0, %v1021
        %v1023 = vrot.slane %v859, %v1022
        %v1024 = vmul.f32 %v863, %v1023
        %v1025 = vmul.f32 %v868, %v1023
        %v1026 = vmul.f32 %v873, %v1023
        %v1027 = vmul.f32 %v878, %v1023
        %v1028 = vmul.f32 %v883, %v1023
        %v1029 = vmul.f32 %v888, %v1023
        %v1030 = vmul.f32 %v893, %v1023
        %v1031 = vmul.f32 %v898, %v1023
        %v1032 = vmul.f32 %v903, %v1023
        %v1033 = vmul.f32 %v908, %v1023
        %v1034 = vmul.f32 %v913, %v1023
        %v1035 = vmul.f32 %v918, %v1023
        %v1036 = vmul.f32 %v923, %v1023
        %v1037 = vmul.f32 %v928, %v1023
        %v1038 = vmul.f32 %v933, %v1023
        %v1039 = vmul.f32 %v938, %v1023
        %v1040 = vmul.f32 %v943, %v1023
        %v1041 = vmul.f32 %v948, %v1023
        %v1042 = vmul.f32 %v953, %v1023
        %v1043 = vmul.f32 %v958, %v1023
        %v1044 = vmul.f32 %v963, %v1023
        %v1045 = vmul.f32 %v968, %v1023
        %v1046 = vmul.f32 %v973, %v1023
        %v1047 = vmul.f32 %v978, %v1023
        %v1048 = vmul.f32 %v983, %v1023
        %v1049 = vmul.f32 %v988, %v1023
        %v1050 = vmul.f32 %v993, %v1023
        %v1051 = vmul.f32 %v998, %v1023
        %v1052 = vmul.f32 %v1003, %v1023
        %v1053 = vmul.f32 %v1008, %v1023
        %v1054 = vmul.f32 %v1013, %v1023
        %v1055 = vmul.f32 %v1018, %v1023
        %v1056 = vadd.f32 %v1024, 0.0
        %v1057 = vadd.f32 %v1025, 0.0
        %v1058 = vadd.f32 %v1026, 0.0
        %v1059 = vadd.f32 %v1027, 0.0
        %v1060 = vadd.f32 %v1028, 0.0
        %v1061 = vadd.f32 %v1029, 0.0
        %v1062 = vadd.f32 %v1030, 0.0
        %v1063 = vadd.f32 %v1031, 0.0
        %v1064 = vadd.f32 %v1032, 0.0
        %v1065 = vadd.f32 %v1033, 0.0
        %v1066 = vadd.f32 %v1034, 0.0
        %v1067 = vadd.f32 %v1035, 0.0
        %v1068 = vadd.f32 %v1036, 0.0
        %v1069 = vadd.f32 %v1037, 0.0
        %v1070 = vadd.f32 %v1038, 0.0
        %v1071 = vadd.f32 %v1039, 0.0
        %v1072 = vadd.f32 %v1040, 0.0
        %v1073 = vadd.f32 %v1041, 0.0
        %v1074 = vadd.f32 %v1042, 0.0
        %v1075 = vadd.f32 %v1043, 0.0
        %v1076 = vadd.f32 %v1044, 0.0
        %v1077 = vadd.f32 %v1045, 0.0
        %v1078 = vadd.f32 %v1046, 0.0
        %v1079 = vadd.f32 %v1047, 0.0
        %v1080 = vadd.f32 %v1048, 0.0
        %v1081 = vadd.f32 %v1049, 0.0
        %v1082 = vadd.f32 %v1050, 0.0
        %v1083 = vadd.f32 %v1051, 0.0
        %v1084 = vadd.f32 %v1052, 0.0
        %v1085 = vadd.f32 %v1053, 0.0
        %v1086 = vadd.f32 %v1054, 0.0
        %v1087 = vadd.f32 %v1055, 0.0
        %v1088 = vld [vmem:[#allocation2 + $0x1] sm:$0xff]
        %v1089 = vld [vmem:[#allocation2 + $0x9] sm:$0xff]
        %v1090 = vld [vmem:[#allocation2 + $0x11] sm:$0xff]
        %v1091 = vld [vmem:[#allocation2 + $0x19] sm:$0xff]
        %v1092 = vld [vmem:[#allocation2 + $0x21] sm:$0xff]
        %v1093 = vld [vmem:[#allocation2 + $0x29] sm:$0xff]
        %v1094 = vld [vmem:[#allocation2 + $0x31] sm:$0xff]
        %v1095 = vld [vmem:[#allocation2 + $0x39] sm:$0xff]
        %v1096 = vld [vmem:[#allocation2 + $0x41] sm:$0xff]
        %v1097 = vld [vmem:[#allocation2 + $0x49] sm:$0xff]
        %v1098 = vld [vmem:[#allocation2 + $0x51] sm:$0xff]
        %v1099 = vld [vmem:[#allocation2 + $0x59] sm:$0xff]
        %v1100 = vld [vmem:[#allocation2 + $0x61] sm:$0xff]
        %v1101 = vld [vmem:[#allocation2 + $0x69] sm:$0xff]
        %v1102 = vld [vmem:[#allocation2 + $0x71] sm:$0xff]
        %v1103 = vld [vmem:[#allocation2 + $0x79] sm:$0xff]
        %v1104 = vld [vmem:[#allocation2 + $0x81] sm:$0xff]
        %v1105 = vld [vmem:[#allocation2 + $0x89] sm:$0xff]
        %v1106 = vld [vmem:[#allocation2 + $0x91] sm:$0xff]
        %v1107 = vld [vmem:[#allocation2 + $0x99] sm:$0xff]
        %v1108 = vld [vmem:[#allocation2 + $0xa1] sm:$0xff]
        %v1109 = vld [vmem:[#allocation2 + $0xa9] sm:$0xff]
        %v1110 = vld [vmem:[#allocation2 + $0xb1] sm:$0xff]
        %v1111 = vld [vmem:[#allocation2 + $0xb9] sm:$0xff]
        %v1112 = vld [vmem:[#allocation2 + $0xc1] sm:$0xff]
        %v1113 = vld [vmem:[#allocation2 + $0xc9] sm:$0xff]
        %v1114 = vld [vmem:[#allocation2 + $0xd1] sm:$0xff]
        %v1115 = vld [vmem:[#allocation2 + $0xd9] sm:$0xff]
        %v1116 = vld [vmem:[#allocation2 + $0xe1] sm:$0xff]
        %v1117 = vld [vmem:[#allocation2 + $0xe9] sm:$0xff]
        %v1118 = vld [vmem:[#allocation2 + $0xf1] sm:$0xff]
        %v1119 = vld [vmem:[#allocation2 + $0xf9] sm:$0xff]
        %v1120 = vld [vmem:[%s1 + $0x1] sm:$0x1]
        %1122 = vset.pattern.permute.xlu0 0
        %1123 = vperm.xlu0 %1122, %v1088
        %v1124 = vpop.permute.xlu0 %1123
        %1127 = vset.pattern.permute.xlu0 0
        %1128 = vperm.xlu0 %1127, %v1089
        %v1129 = vpop.permute.xlu0 %1128
        %1132 = vset.pattern.permute.xlu0 0
        %1133 = vperm.xlu0 %1132, %v1090
        %v1134 = vpop.permute.xlu0 %1133
        %1137 = vset.pattern.permute.xlu0 0
        %1138 = vperm.xlu0 %1137, %v1091
        %v1139 = vpop.permute.xlu0 %1138
        %1142 = vset.pattern.permute.xlu0 0
        %1143 = vperm.xlu0 %1142, %v1092
        %v1144 = vpop.permute.xlu0 %1143
        %1147 = vset.pattern.permute.xlu0 0
        %1148 = vperm.xlu0 %1147, %v1093
        %v1149 = vpop.permute.xlu0 %1148
        %1152 = vset.pattern.permute.xlu0 0
        %1153 = vperm.xlu0 %1152, %v1094
        %v1154 = vpop.permute.xlu0 %1153
        %1157 = vset.pattern.permute.xlu0 0
        %1158 = vperm.xlu0 %1157, %v1095
        %v1159 = vpop.permute.xlu0 %1158
        %1162 = vset.pattern.permute.xlu0 0
        %1163 = vperm.xlu0 %1162, %v1096
        %v1164 = vpop.permute.xlu0 %1163
        %1167 = vset.pattern.permute.xlu0 0
        %1168 = vperm.xlu0 %1167, %v1097
        %v1169 = vpop.permute.xlu0 %1168
        %1172 = vset.pattern.permute.xlu0 0
        %1173 = vperm.xlu0 %1172, %v1098
        %v1174 = vpop.permute.xlu0 %1173
        %1177 = vset.pattern.permute.xlu0 0
        %1178 = vperm.xlu0 %1177, %v1099
        %v1179 = vpop.permute.xlu0 %1178
        %1182 = vset.pattern.permute.xlu0 0
        %1183 = vperm.xlu0 %1182, %v1100
        %v1184 = vpop.permute.xlu0 %1183
        %1187 = vset.pattern.permute.xlu0 0
        %1188 = vperm.xlu0 %1187, %v1101
        %v1189 = vpop.permute.xlu0 %1188
        %1192 = vset.pattern.permute.xlu0 0
        %1193 = vperm.xlu0 %1192, %v1102
        %v1194 = vpop.permute.xlu0 %1193
        %1197 = vset.pattern.permute.xlu0 0
        %1198 = vperm.xlu0 %1197, %v1103
        %v1199 = vpop.permute.xlu0 %1198
        %1202 = vset.pattern.permute.xlu0 0
        %1203 = vperm.xlu0 %1202, %v1104
        %v1204 = vpop.permute.xlu0 %1203
        %1207 = vset.pattern.permute.xlu0 0
        %1208 = vperm.xlu0 %1207, %v1105
        %v1209 = vpop.permute.xlu0 %1208
        %1212 = vset.pattern.permute.xlu0 0
        %1213 = vperm.xlu0 %1212, %v1106
        %v1214 = vpop.permute.xlu0 %1213
        %1217 = vset.pattern.permute.xlu0 0
        %1218 = vperm.xlu0 %1217, %v1107
        %v1219 = vpop.permute.xlu0 %1218
        %1222 = vset.pattern.permute.xlu0 0
        %1223 = vperm.xlu0 %1222, %v1108
        %v1224 = vpop.permute.xlu0 %1223
        %1227 = vset.pattern.permute.xlu0 0
        %1228 = vperm.xlu0 %1227, %v1109
        %v1229 = vpop.permute.xlu0 %1228
        %1232 = vset.pattern.permute.xlu0 0
        %1233 = vperm.xlu0 %1232, %v1110
        %v1234 = vpop.permute.xlu0 %1233
        %1237 = vset.pattern.permute.xlu0 0
        %1238 = vperm.xlu0 %1237, %v1111
        %v1239 = vpop.permute.xlu0 %1238
        %1242 = vset.pattern.permute.xlu0 0
        %1243 = vperm.xlu0 %1242, %v1112
        %v1244 = vpop.permute.xlu0 %1243
        %1247 = vset.pattern.permute.xlu0 0
        %1248 = vperm.xlu0 %1247, %v1113
        %v1249 = vpop.permute.xlu0 %1248
        %1252 = vset.pattern.permute.xlu0 0
        %1253 = vperm.xlu0 %1252, %v1114
        %v1254 = vpop.permute.xlu0 %1253
        %1257 = vset.pattern.permute.xlu0 0
        %1258 = vperm.xlu0 %1257, %v1115
        %v1259 = vpop.permute.xlu0 %1258
        %1262 = vset.pattern.permute.xlu0 0
        %1263 = vperm.xlu0 %1262, %v1116
        %v1264 = vpop.permute.xlu0 %1263
        %1267 = vset.pattern.permute.xlu0 0
        %1268 = vperm.xlu0 %1267, %v1117
        %v1269 = vpop.permute.xlu0 %1268
        %1272 = vset.pattern.permute.xlu0 0
        %1273 = vperm.xlu0 %1272, %v1118
        %v1274 = vpop.permute.xlu0 %1273
        %1277 = vset.pattern.permute.xlu0 0
        %1278 = vperm.xlu0 %1277, %v1119
        %v1279 = vpop.permute.xlu0 %1278
        %v1281 = vlaneseq
        %v1282 = vshrl.u32 %v1281, 7
        %v1283 = vsub.s32 0, %v1282
        %v1284 = vrot.slane %v1120, %v1283
        %v1285 = vmul.f32 %v1124, %v1284
        %v1286 = vmul.f32 %v1129, %v1284
        %v1287 = vmul.f32 %v1134, %v1284
        %v1288 = vmul.f32 %v1139, %v1284
        %v1289 = vmul.f32 %v1144, %v1284
        %v1290 = vmul.f32 %v1149, %v1284
        %v1291 = vmul.f32 %v1154, %v1284
        %v1292 = vmul.f32 %v1159, %v1284
        %v1293 = vmul.f32 %v1164, %v1284
        %v1294 = vmul.f32 %v1169, %v1284
        %v1295 = vmul.f32 %v1174, %v1284
        %v1296 = vmul.f32 %v1179, %v1284
        %v1297 = vmul.f32 %v1184, %v1284
        %v1298 = vmul.f32 %v1189, %v1284
        %v1299 = vmul.f32 %v1194, %v1284
        %v1300 = vmul.f32 %v1199, %v1284
        %v1301 = vmul.f32 %v1204, %v1284
        %v1302 = vmul.f32 %v1209, %v1284
        %v1303 = vmul.f32 %v1214, %v1284
        %v1304 = vmul.f32 %v1219, %v1284
        %v1305 = vmul.f32 %v1224, %v1284
        %v1306 = vmul.f32 %v1229, %v1284
        %v1307 = vmul.f32 %v1234, %v1284
        %v1308 = vmul.f32 %v1239, %v1284
        %v1309 = vmul.f32 %v1244, %v1284
        %v1310 = vmul.f32 %v1249, %v1284
        %v1311 = vmul.f32 %v1254, %v1284
        %v1312 = vmul.f32 %v1259, %v1284
        %v1313 = vmul.f32 %v1264, %v1284
        %v1314 = vmul.f32 %v1269, %v1284
        %v1315 = vmul.f32 %v1274, %v1284
        %v1316 = vmul.f32 %v1279, %v1284
        %v1317 = vadd.f32 %v1056, %v1285
        %v1318 = vadd.f32 %v1057, %v1286
        %v1319 = vadd.f32 %v1058, %v1287
        %v1320 = vadd.f32 %v1059, %v1288
        %v1321 = vadd.f32 %v1060, %v1289
        %v1322 = vadd.f32 %v1061, %v1290
        %v1323 = vadd.f32 %v1062, %v1291
        %v1324 = vadd.f32 %v1063, %v1292
        %v1325 = vadd.f32 %v1064, %v1293
        %v1326 = vadd.f32 %v1065, %v1294
        %v1327 = vadd.f32 %v1066, %v1295
        %v1328 = vadd.f32 %v1067, %v1296
        %v1329 = vadd.f32 %v1068, %v1297
        %v1330 = vadd.f32 %v1069, %v1298
        %v1331 = vadd.f32 %v1070, %v1299
        %v1332 = vadd.f32 %v1071, %v1300
        %v1333 = vadd.f32 %v1072, %v1301
        %v1334 = vadd.f32 %v1073, %v1302
        %v1335 = vadd.f32 %v1074, %v1303
        %v1336 = vadd.f32 %v1075, %v1304
        %v1337 = vadd.f32 %v1076, %v1305
        %v1338 = vadd.f32 %v1077, %v1306
        %v1339 = vadd.f32 %v1078, %v1307
        %v1340 = vadd.f32 %v1079, %v1308
        %v1341 = vadd.f32 %v1080, %v1309
        %v1342 = vadd.f32 %v1081, %v1310
        %v1343 = vadd.f32 %v1082, %v1311
        %v1344 = vadd.f32 %v1083, %v1312
        %v1345 = vadd.f32 %v1084, %v1313
        %v1346 = vadd.f32 %v1085, %v1314
        %v1347 = vadd.f32 %v1086, %v1315
        %v1348 = vadd.f32 %v1087, %v1316
        %v1349 = vld [vmem:[#allocation2 + $0x2] sm:$0xff]
        %v1350 = vld [vmem:[#allocation2 + $0xa] sm:$0xff]
        %v1351 = vld [vmem:[#allocation2 + $0x12] sm:$0xff]
        %v1352 = vld [vmem:[#allocation2 + $0x1a] sm:$0xff]
        %v1353 = vld [vmem:[#allocation2 + $0x22] sm:$0xff]
        %v1354 = vld [vmem:[#allocation2 + $0x2a] sm:$0xff]
        %v1355 = vld [vmem:[#allocation2 + $0x32] sm:$0xff]
        %v1356 = vld [vmem:[#allocation2 + $0x3a] sm:$0xff]
        %v1357 = vld [vmem:[#allocation2 + $0x42] sm:$0xff]
        %v1358 = vld [vmem:[#allocation2 + $0x4a] sm:$0xff]
        %v1359 = vld [vmem:[#allocation2 + $0x52] sm:$0xff]
        %v1360 = vld [vmem:[#allocation2 + $0x5a] sm:$0xff]
        %v1361 = vld [vmem:[#allocation2 + $0x62] sm:$0xff]
        %v1362 = vld [vmem:[#allocation2 + $0x6a] sm:$0xff]
        %v1363 = vld [vmem:[#allocation2 + $0x72] sm:$0xff]
        %v1364 = vld [vmem:[#allocation2 + $0x7a] sm:$0xff]
        %v1365 = vld [vmem:[#allocation2 + $0x82] sm:$0xff]
        %v1366 = vld [vmem:[#allocation2 + $0x8a] sm:$0xff]
        %v1367 = vld [vmem:[#allocation2 + $0x92] sm:$0xff]
        %v1368 = vld [vmem:[#allocation2 + $0x9a] sm:$0xff]
        %v1369 = vld [vmem:[#allocation2 + $0xa2] sm:$0xff]
        %v1370 = vld [vmem:[#allocation2 + $0xaa] sm:$0xff]
        %v1371 = vld [vmem:[#allocation2 + $0xb2] sm:$0xff]
        %v1372 = vld [vmem:[#allocation2 + $0xba] sm:$0xff]
        %v1373 = vld [vmem:[#allocation2 + $0xc2] sm:$0xff]
        %v1374 = vld [vmem:[#allocation2 + $0xca] sm:$0xff]
        %v1375 = vld [vmem:[#allocation2 + $0xd2] sm:$0xff]
        %v1376 = vld [vmem:[#allocation2 + $0xda] sm:$0xff]
        %v1377 = vld [vmem:[#allocation2 + $0xe2] sm:$0xff]
        %v1378 = vld [vmem:[#allocation2 + $0xea] sm:$0xff]
        %v1379 = vld [vmem:[#allocation2 + $0xf2] sm:$0xff]
        %v1380 = vld [vmem:[#allocation2 + $0xfa] sm:$0xff]
        %v1381 = vmul.f32 %v1349, %v763
        %v1382 = vmul.f32 %v1350, %v764
        %v1383 = vmul.f32 %v1351, %v765
        %v1384 = vmul.f32 %v1352, %v766
        %v1385 = vmul.f32 %v1353, %v767
        %v1386 = vmul.f32 %v1354, %v768
        %v1387 = vmul.f32 %v1355, %v769
        %v1388 = vmul.f32 %v1356, %v770
        %v1389 = vmul.f32 %v1357, %v771
        %v1390 = vmul.f32 %v1358, %v772
        %v1391 = vmul.f32 %v1359, %v773
        %v1392 = vmul.f32 %v1360, %v774
        %v1393 = vmul.f32 %v1361, %v775
        %v1394 = vmul.f32 %v1362, %v776
        %v1395 = vmul.f32 %v1363, %v777
        %v1396 = vmul.f32 %v1364, %v778
        %v1397 = vmul.f32 %v1365, %v779
        %v1398 = vmul.f32 %v1366, %v780
        %v1399 = vmul.f32 %v1367, %v781
        %v1400 = vmul.f32 %v1368, %v782
        %v1401 = vmul.f32 %v1369, %v783
        %v1402 = vmul.f32 %v1370, %v784
        %v1403 = vmul.f32 %v1371, %v785
        %v1404 = vmul.f32 %v1372, %v786
        %v1405 = vmul.f32 %v1373, %v787
        %v1406 = vmul.f32 %v1374, %v788
        %v1407 = vmul.f32 %v1375, %v789
        %v1408 = vmul.f32 %v1376, %v790
        %v1409 = vmul.f32 %v1377, %v791
        %v1410 = vmul.f32 %v1378, %v792
        %v1411 = vmul.f32 %v1379, %v793
        %v1412 = vmul.f32 %v1380, %v794
        %v1413 = vld [vmem:[%s1 + $0x2] sm:$0x1]
        %1415 = vset.pattern.permute.xlu0 0
        %1416 = vperm.xlu0 %1415, %v1381
        %v1417 = vpop.permute.xlu0 %1416
        %1420 = vset.pattern.permute.xlu0 0
        %1421 = vperm.xlu0 %1420, %v1382
        %v1422 = vpop.permute.xlu0 %1421
        %1425 = vset.pattern.permute.xlu0 0
        %1426 = vperm.xlu0 %1425, %v1383
        %v1427 = vpop.permute.xlu0 %1426
        %1430 = vset.pattern.permute.xlu0 0
        %1431 = vperm.xlu0 %1430, %v1384
        %v1432 = vpop.permute.xlu0 %1431
        %1435 = vset.pattern.permute.xlu0 0
        %1436 = vperm.xlu0 %1435, %v1385
        %v1437 = vpop.permute.xlu0 %1436
        %1440 = vset.pattern.permute.xlu0 0
        %1441 = vperm.xlu0 %1440, %v1386
        %v1442 = vpop.permute.xlu0 %1441
        %1445 = vset.pattern.permute.xlu0 0
        %1446 = vperm.xlu0 %1445, %v1387
        %v1447 = vpop.permute.xlu0 %1446
        %1450 = vset.pattern.permute.xlu0 0
        %1451 = vperm.xlu0 %1450, %v1388
        %v1452 = vpop.permute.xlu0 %1451
        %1455 = vset.pattern.permute.xlu0 0
        %1456 = vperm.xlu0 %1455, %v1389
        %v1457 = vpop.permute.xlu0 %1456
        %1460 = vset.pattern.permute.xlu0 0
        %1461 = vperm.xlu0 %1460, %v1390
        %v1462 = vpop.permute.xlu0 %1461
        %1465 = vset.pattern.permute.xlu0 0
        %1466 = vperm.xlu0 %1465, %v1391
        %v1467 = vpop.permute.xlu0 %1466
        %1470 = vset.pattern.permute.xlu0 0
        %1471 = vperm.xlu0 %1470, %v1392
        %v1472 = vpop.permute.xlu0 %1471
        %1475 = vset.pattern.permute.xlu0 0
        %1476 = vperm.xlu0 %1475, %v1393
        %v1477 = vpop.permute.xlu0 %1476
        %1480 = vset.pattern.permute.xlu0 0
        %1481 = vperm.xlu0 %1480, %v1394
        %v1482 = vpop.permute.xlu0 %1481
        %1485 = vset.pattern.permute.xlu0 0
        %1486 = vperm.xlu0 %1485, %v1395
        %v1487 = vpop.permute.xlu0 %1486
        %1490 = vset.pattern.permute.xlu0 0
        %1491 = vperm.xlu0 %1490, %v1396
        %v1492 = vpop.permute.xlu0 %1491
        %1495 = vset.pattern.permute.xlu0 0
        %1496 = vperm.xlu0 %1495, %v1397
        %v1497 = vpop.permute.xlu0 %1496
        %1500 = vset.pattern.permute.xlu0 0
        %1501 = vperm.xlu0 %1500, %v1398
        %v1502 = vpop.permute.xlu0 %1501
        %1505 = vset.pattern.permute.xlu0 0
        %1506 = vperm.xlu0 %1505, %v1399
        %v1507 = vpop.permute.xlu0 %1506
        %1510 = vset.pattern.permute.xlu0 0
        %1511 = vperm.xlu0 %1510, %v1400
        %v1512 = vpop.permute.xlu0 %1511
        %1515 = vset.pattern.permute.xlu0 0
        %1516 = vperm.xlu0 %1515, %v1401
        %v1517 = vpop.permute.xlu0 %1516
        %1520 = vset.pattern.permute.xlu0 0
        %1521 = vperm.xlu0 %1520, %v1402
        %v1522 = vpop.permute.xlu0 %1521
        %1525 = vset.pattern.permute.xlu0 0
        %1526 = vperm.xlu0 %1525, %v1403
        %v1527 = vpop.permute.xlu0 %1526
        %1530 = vset.pattern.permute.xlu0 0
        %1531 = vperm.xlu0 %1530, %v1404
        %v1532 = vpop.permute.xlu0 %1531
        %1535 = vset.pattern.permute.xlu0 0
        %1536 = vperm.xlu0 %1535, %v1405
        %v1537 = vpop.permute.xlu0 %1536
        %1540 = vset.pattern.permute.xlu0 0
        %1541 = vperm.xlu0 %1540, %v1406
        %v1542 = vpop.permute.xlu0 %1541
        %1545 = vset.pattern.permute.xlu0 0
        %1546 = vperm.xlu0 %1545, %v1407
        %v1547 = vpop.permute.xlu0 %1546
        %1550 = vset.pattern.permute.xlu0 0
        %1551 = vperm.xlu0 %1550, %v1408
        %v1552 = vpop.permute.xlu0 %1551
        %1555 = vset.pattern.permute.xlu0 0
        %1556 = vperm.xlu0 %1555, %v1409
        %v1557 = vpop.permute.xlu0 %1556
        %1560 = vset.pattern.permute.xlu0 0
        %1561 = vperm.xlu0 %1560, %v1410
        %v1562 = vpop.permute.xlu0 %1561
        %1565 = vset.pattern.permute.xlu0 0
        %1566 = vperm.xlu0 %1565, %v1411
        %v1567 = vpop.permute.xlu0 %1566
        %1570 = vset.pattern.permute.xlu0 0
        %1571 = vperm.xlu0 %1570, %v1412
        %v1572 = vpop.permute.xlu0 %1571
        %v1574 = vlaneseq
        %v1575 = vshrl.u32 %v1574, 7
        %v1576 = vsub.s32 0, %v1575
        %v1577 = vrot.slane %v1413, %v1576
        %v1578 = vmul.f32 %v1417, %v1577
        %v1579 = vmul.f32 %v1422, %v1577
        %v1580 = vmul.f32 %v1427, %v1577
        %v1581 = vmul.f32 %v1432, %v1577
        %v1582 = vmul.f32 %v1437, %v1577
        %v1583 = vmul.f32 %v1442, %v1577
        %v1584 = vmul.f32 %v1447, %v1577
        %v1585 = vmul.f32 %v1452, %v1577
        %v1586 = vmul.f32 %v1457, %v1577
        %v1587 = vmul.f32 %v1462, %v1577
        %v1588 = vmul.f32 %v1467, %v1577
        %v1589 = vmul.f32 %v1472, %v1577
        %v1590 = vmul.f32 %v1477, %v1577
        %v1591 = vmul.f32 %v1482, %v1577
        %v1592 = vmul.f32 %v1487, %v1577
        %v1593 = vmul.f32 %v1492, %v1577
        %v1594 = vmul.f32 %v1497, %v1577
        %v1595 = vmul.f32 %v1502, %v1577
        %v1596 = vmul.f32 %v1507, %v1577
        %v1597 = vmul.f32 %v1512, %v1577
        %v1598 = vmul.f32 %v1517, %v1577
        %v1599 = vmul.f32 %v1522, %v1577
        %v1600 = vmul.f32 %v1527, %v1577
        %v1601 = vmul.f32 %v1532, %v1577
        %v1602 = vmul.f32 %v1537, %v1577
        %v1603 = vmul.f32 %v1542, %v1577
        %v1604 = vmul.f32 %v1547, %v1577
        %v1605 = vmul.f32 %v1552, %v1577
        %v1606 = vmul.f32 %v1557, %v1577
        %v1607 = vmul.f32 %v1562, %v1577
        %v1608 = vmul.f32 %v1567, %v1577
        %v1609 = vmul.f32 %v1572, %v1577
        %v1610 = vadd.f32 %v1317, %v1578
        %v1611 = vadd.f32 %v1318, %v1579
        %v1612 = vadd.f32 %v1319, %v1580
        %v1613 = vadd.f32 %v1320, %v1581
        %v1614 = vadd.f32 %v1321, %v1582
        %v1615 = vadd.f32 %v1322, %v1583
        %v1616 = vadd.f32 %v1323, %v1584
        %v1617 = vadd.f32 %v1324, %v1585
        %v1618 = vadd.f32 %v1325, %v1586
        %v1619 = vadd.f32 %v1326, %v1587
        %v1620 = vadd.f32 %v1327, %v1588
        %v1621 = vadd.f32 %v1328, %v1589
        %v1622 = vadd.f32 %v1329, %v1590
        %v1623 = vadd.f32 %v1330, %v1591
        %v1624 = vadd.f32 %v1331, %v1592
        %v1625 = vadd.f32 %v1332, %v1593
        %v1626 = vadd.f32 %v1333, %v1594
        %v1627 = vadd.f32 %v1334, %v1595
        %v1628 = vadd.f32 %v1335, %v1596
        %v1629 = vadd.f32 %v1336, %v1597
        %v1630 = vadd.f32 %v1337, %v1598
        %v1631 = vadd.f32 %v1338, %v1599
        %v1632 = vadd.f32 %v1339, %v1600
        %v1633 = vadd.f32 %v1340, %v1601
        %v1634 = vadd.f32 %v1341, %v1602
        %v1635 = vadd.f32 %v1342, %v1603
        %v1636 = vadd.f32 %v1343, %v1604
        %v1637 = vadd.f32 %v1344, %v1605
        %v1638 = vadd.f32 %v1345, %v1606
        %v1639 = vadd.f32 %v1346, %v1607
        %v1640 = vadd.f32 %v1347, %v1608
        %v1641 = vadd.f32 %v1348, %v1609
        %v1642 = vld [vmem:[#allocation2 + $0x10] sm:$0xff]
        %v1643 = vld [vmem:[#allocation2 + $0x18] sm:$0xff]
        %v1644 = vld [vmem:[#allocation2 + $0x20] sm:$0xff]
        %v1645 = vld [vmem:[#allocation2 + $0x28] sm:$0xff]
        %v1646 = vld [vmem:[#allocation2 + $0x30] sm:$0xff]
        %v1647 = vld [vmem:[#allocation2 + $0x38] sm:$0xff]
        %v1648 = vld [vmem:[#allocation2 + $0x40] sm:$0xff]
        %v1649 = vld [vmem:[#allocation2 + $0x48] sm:$0xff]
        %v1650 = vld [vmem:[#allocation2 + $0x50] sm:$0xff]
        %v1651 = vld [vmem:[#allocation2 + $0x58] sm:$0xff]
        %v1652 = vld [vmem:[#allocation2 + $0x60] sm:$0xff]
        %v1653 = vld [vmem:[#allocation2 + $0x68] sm:$0xff]
        %v1654 = vld [vmem:[#allocation2 + $0x70] sm:$0xff]
        %v1655 = vld [vmem:[#allocation2 + $0x78] sm:$0xff]
        %v1656 = vld [vmem:[#allocation2 + $0x80] sm:$0xff]
        %v1657 = vld [vmem:[#allocation2 + $0x88] sm:$0xff]
        %v1658 = vld [vmem:[#allocation2 + $0x90] sm:$0xff]
        %v1659 = vld [vmem:[#allocation2 + $0x98] sm:$0xff]
        %v1660 = vld [vmem:[#allocation2 + $0xa0] sm:$0xff]
        %v1661 = vld [vmem:[#allocation2 + $0xa8] sm:$0xff]
        %v1662 = vld [vmem:[#allocation2 + $0xb0] sm:$0xff]
        %v1663 = vld [vmem:[#allocation2 + $0xb8] sm:$0xff]
        %v1664 = vld [vmem:[#allocation2 + $0xc0] sm:$0xff]
        %v1665 = vld [vmem:[#allocation2 + $0xc8] sm:$0xff]
        %v1666 = vld [vmem:[#allocation2 + $0xd0] sm:$0xff]
        %v1667 = vld [vmem:[#allocation2 + $0xd8] sm:$0xff]
        %v1668 = vld [vmem:[#allocation2 + $0xe0] sm:$0xff]
        %v1669 = vld [vmem:[#allocation2 + $0xe8] sm:$0xff]
        %v1670 = vld [vmem:[#allocation2 + $0xf0] sm:$0xff]
        %v1671 = vld [vmem:[#allocation2 + $0xf8] sm:$0xff]
        %v1672 = vld [vmem:[#allocation2 + $0x100] sm:$0xff]
        %v1673 = vld [vmem:[#allocation2 + $0x108] sm:$0xff]
        %v1674 = vmul.f32 %v1642, %v730
        %v1675 = vmul.f32 %v1643, %v731
        %v1676 = vmul.f32 %v1644, %v732
        %v1677 = vmul.f32 %v1645, %v733
        %v1678 = vmul.f32 %v1646, %v734
        %v1679 = vmul.f32 %v1647, %v735
        %v1680 = vmul.f32 %v1648, %v736
        %v1681 = vmul.f32 %v1649, %v737
        %v1682 = vmul.f32 %v1650, %v738
        %v1683 = vmul.f32 %v1651, %v739
        %v1684 = vmul.f32 %v1652, %v740
        %v1685 = vmul.f32 %v1653, %v741
        %v1686 = vmul.f32 %v1654, %v742
        %v1687 = vmul.f32 %v1655, %v743
        %v1688 = vmul.f32 %v1656, %v744
        %v1689 = vmul.f32 %v1657, %v745
        %v1690 = vmul.f32 %v1658, %v746
        %v1691 = vmul.f32 %v1659, %v747
        %v1692 = vmul.f32 %v1660, %v748
        %v1693 = vmul.f32 %v1661, %v749
        %v1694 = vmul.f32 %v1662, %v750
        %v1695 = vmul.f32 %v1663, %v751
        %v1696 = vmul.f32 %v1664, %v752
        %v1697 = vmul.f32 %v1665, %v753
        %v1698 = vmul.f32 %v1666, %v754
        %v1699 = vmul.f32 %v1667, %v755
        %v1700 = vmul.f32 %v1668, %v756
        %v1701 = vmul.f32 %v1669, %v757
        %v1702 = vmul.f32 %v1670, %v758
        %v1703 = vmul.f32 %v1671, %v759
        %v1704 = vmul.f32 %v1672, %v760
        %v1705 = vmul.f32 %v1673, %v761
        %v1706 = vld [vmem:[%s1 + $0x3] sm:$0x1]
        %1708 = vset.pattern.permute.xlu0 0
        %1709 = vperm.xlu0 %1708, %v1674
        %v1710 = vpop.permute.xlu0 %1709
        %1713 = vset.pattern.permute.xlu0 0
        %1714 = vperm.xlu0 %1713, %v1675
        %v1715 = vpop.permute.xlu0 %1714
        %1718 = vset.pattern.permute.xlu0 0
        %1719 = vperm.xlu0 %1718, %v1676
        %v1720 = vpop.permute.xlu0 %1719
        %1723 = vset.pattern.permute.xlu0 0
        %1724 = vperm.xlu0 %1723, %v1677
        %v1725 = vpop.permute.xlu0 %1724
        %1728 = vset.pattern.permute.xlu0 0
        %1729 = vperm.xlu0 %1728, %v1678
        %v1730 = vpop.permute.xlu0 %1729
        %1733 = vset.pattern.permute.xlu0 0
        %1734 = vperm.xlu0 %1733, %v1679
        %v1735 = vpop.permute.xlu0 %1734
        %1738 = vset.pattern.permute.xlu0 0
        %1739 = vperm.xlu0 %1738, %v1680
        %v1740 = vpop.permute.xlu0 %1739
        %1743 = vset.pattern.permute.xlu0 0
        %1744 = vperm.xlu0 %1743, %v1681
        %v1745 = vpop.permute.xlu0 %1744
        %1748 = vset.pattern.permute.xlu0 0
        %1749 = vperm.xlu0 %1748, %v1682
        %v1750 = vpop.permute.xlu0 %1749
        %1753 = vset.pattern.permute.xlu0 0
        %1754 = vperm.xlu0 %1753, %v1683
        %v1755 = vpop.permute.xlu0 %1754
        %1758 = vset.pattern.permute.xlu0 0
        %1759 = vperm.xlu0 %1758, %v1684
        %v1760 = vpop.permute.xlu0 %1759
        %1763 = vset.pattern.permute.xlu0 0
        %1764 = vperm.xlu0 %1763, %v1685
        %v1765 = vpop.permute.xlu0 %1764
        %1768 = vset.pattern.permute.xlu0 0
        %1769 = vperm.xlu0 %1768, %v1686
        %v1770 = vpop.permute.xlu0 %1769
        %1773 = vset.pattern.permute.xlu0 0
        %1774 = vperm.xlu0 %1773, %v1687
        %v1775 = vpop.permute.xlu0 %1774
        %1778 = vset.pattern.permute.xlu0 0
        %1779 = vperm.xlu0 %1778, %v1688
        %v1780 = vpop.permute.xlu0 %1779
        %1783 = vset.pattern.permute.xlu0 0
        %1784 = vperm.xlu0 %1783, %v1689
        %v1785 = vpop.permute.xlu0 %1784
        %1788 = vset.pattern.permute.xlu0 0
        %1789 = vperm.xlu0 %1788, %v1690
        %v1790 = vpop.permute.xlu0 %1789
        %1793 = vset.pattern.permute.xlu0 0
        %1794 = vperm.xlu0 %1793, %v1691
        %v1795 = vpop.permute.xlu0 %1794
        %1798 = vset.pattern.permute.xlu0 0
        %1799 = vperm.xlu0 %1798, %v1692
        %v1800 = vpop.permute.xlu0 %1799
        %1803 = vset.pattern.permute.xlu0 0
        %1804 = vperm.xlu0 %1803, %v1693
        %v1805 = vpop.permute.xlu0 %1804
        %1808 = vset.pattern.permute.xlu0 0
        %1809 = vperm.xlu0 %1808, %v1694
        %v1810 = vpop.permute.xlu0 %1809
        %1813 = vset.pattern.permute.xlu0 0
        %1814 = vperm.xlu0 %1813, %v1695
        %v1815 = vpop.permute.xlu0 %1814
        %1818 = vset.pattern.permute.xlu0 0
        %1819 = vperm.xlu0 %1818, %v1696
        %v1820 = vpop.permute.xlu0 %1819
        %1823 = vset.pattern.permute.xlu0 0
        %1824 = vperm.xlu0 %1823, %v1697
        %v1825 = vpop.permute.xlu0 %1824
        %1828 = vset.pattern.permute.xlu0 0
        %1829 = vperm.xlu0 %1828, %v1698
        %v1830 = vpop.permute.xlu0 %1829
        %1833 = vset.pattern.permute.xlu0 0
        %1834 = vperm.xlu0 %1833, %v1699
        %v1835 = vpop.permute.xlu0 %1834
        %1838 = vset.pattern.permute.xlu0 0
        %1839 = vperm.xlu0 %1838, %v1700
        %v1840 = vpop.permute.xlu0 %1839
        %1843 = vset.pattern.permute.xlu0 0
        %1844 = vperm.xlu0 %1843, %v1701
        %v1845 = vpop.permute.xlu0 %1844
        %1848 = vset.pattern.permute.xlu0 0
        %1849 = vperm.xlu0 %1848, %v1702
        %v1850 = vpop.permute.xlu0 %1849
        %1853 = vset.pattern.permute.xlu0 0
        %1854 = vperm.xlu0 %1853, %v1703
        %v1855 = vpop.permute.xlu0 %1854
        %1858 = vset.pattern.permute.xlu0 0
        %1859 = vperm.xlu0 %1858, %v1704
        %v1860 = vpop.permute.xlu0 %1859
        %1863 = vset.pattern.permute.xlu0 0
        %1864 = vperm.xlu0 %1863, %v1705
        %v1865 = vpop.permute.xlu0 %1864
        %v1867 = vlaneseq
        %v1868 = vshrl.u32 %v1867, 7
        %v1869 = vsub.s32 0, %v1868
        %v1870 = vrot.slane %v1706, %v1869
        %v1871 = vmul.f32 %v1710, %v1870
        %v1872 = vmul.f32 %v1715, %v1870
        %v1873 = vmul.f32 %v1720, %v1870
        %v1874 = vmul.f32 %v1725, %v1870
        %v1875 = vmul.f32 %v1730, %v1870
        %v1876 = vmul.f32 %v1735, %v1870
        %v1877 = vmul.f32 %v1740, %v1870
        %v1878 = vmul.f32 %v1745, %v1870
        %v1879 = vmul.f32 %v1750, %v1870
        %v1880 = vmul.f32 %v1755, %v1870
        %v1881 = vmul.f32 %v1760, %v1870
        %v1882 = vmul.f32 %v1765, %v1870
        %v1883 = vmul.f32 %v1770, %v1870
        %v1884 = vmul.f32 %v1775, %v1870
        %v1885 = vmul.f32 %v1780, %v1870
        %v1886 = vmul.f32 %v1785, %v1870
        %v1887 = vmul.f32 %v1790, %v1870
        %v1888 = vmul.f32 %v1795, %v1870
        %v1889 = vmul.f32 %v1800, %v1870
        %v1890 = vmul.f32 %v1805, %v1870
        %v1891 = vmul.f32 %v1810, %v1870
        %v1892 = vmul.f32 %v1815, %v1870
        %v1893 = vmul.f32 %v1820, %v1870
        %v1894 = vmul.f32 %v1825, %v1870
        %v1895 = vmul.f32 %v1830, %v1870
        %v1896 = vmul.f32 %v1835, %v1870
        %v1897 = vmul.f32 %v1840, %v1870
        %v1898 = vmul.f32 %v1845, %v1870
        %v1899 = vmul.f32 %v1850, %v1870
        %v1900 = vmul.f32 %v1855, %v1870
        %v1901 = vmul.f32 %v1860, %v1870
        %v1902 = vmul.f32 %v1865, %v1870
        %v1903 = vadd.f32 %v1610, %v1871
        %v1904 = vadd.f32 %v1611, %v1872
        %v1905 = vadd.f32 %v1612, %v1873
        %v1906 = vadd.f32 %v1613, %v1874
        %v1907 = vadd.f32 %v1614, %v1875
        %v1908 = vadd.f32 %v1615, %v1876
        %v1909 = vadd.f32 %v1616, %v1877
        %v1910 = vadd.f32 %v1617, %v1878
        %v1911 = vadd.f32 %v1618, %v1879
        %v1912 = vadd.f32 %v1619, %v1880
        %v1913 = vadd.f32 %v1620, %v1881
        %v1914 = vadd.f32 %v1621, %v1882
        %v1915 = vadd.f32 %v1622, %v1883
        %v1916 = vadd.f32 %v1623, %v1884
        %v1917 = vadd.f32 %v1624, %v1885
        %v1918 = vadd.f32 %v1625, %v1886
        %v1919 = vadd.f32 %v1626, %v1887
        %v1920 = vadd.f32 %v1627, %v1888
        %v1921 = vadd.f32 %v1628, %v1889
        %v1922 = vadd.f32 %v1629, %v1890
        %v1923 = vadd.f32 %v1630, %v1891
        %v1924 = vadd.f32 %v1631, %v1892
        %v1925 = vadd.f32 %v1632, %v1893
        %v1926 = vadd.f32 %v1633, %v1894
        %v1927 = vadd.f32 %v1634, %v1895
        %v1928 = vadd.f32 %v1635, %v1896
        %v1929 = vadd.f32 %v1636, %v1897
        %v1930 = vadd.f32 %v1637, %v1898
        %v1931 = vadd.f32 %v1638, %v1899
        %v1932 = vadd.f32 %v1639, %v1900
        %v1933 = vadd.f32 %v1640, %v1901
        %v1934 = vadd.f32 %v1641, %v1902
        %v1935 = vld [vmem:[#allocation2 + $0x11] sm:$0xff]
        %v1936 = vld [vmem:[#allocation2 + $0x19] sm:$0xff]
        %v1937 = vld [vmem:[#allocation2 + $0x21] sm:$0xff]
        %v1938 = vld [vmem:[#allocation2 + $0x29] sm:$0xff]
        %v1939 = vld [vmem:[#allocation2 + $0x31] sm:$0xff]
        %v1940 = vld [vmem:[#allocation2 + $0x39] sm:$0xff]
        %v1941 = vld [vmem:[#allocation2 + $0x41] sm:$0xff]
        %v1942 = vld [vmem:[#allocation2 + $0x49] sm:$0xff]
        %v1943 = vld [vmem:[#allocation2 + $0x51] sm:$0xff]
        %v1944 = vld [vmem:[#allocation2 + $0x59] sm:$0xff]
        %v1945 = vld [vmem:[#allocation2 + $0x61] sm:$0xff]
        %v1946 = vld [vmem:[#allocation2 + $0x69] sm:$0xff]
        %v1947 = vld [vmem:[#allocation2 + $0x71] sm:$0xff]
        %v1948 = vld [vmem:[#allocation2 + $0x79] sm:$0xff]
        %v1949 = vld [vmem:[#allocation2 + $0x81] sm:$0xff]
        %v1950 = vld [vmem:[#allocation2 + $0x89] sm:$0xff]
        %v1951 = vld [vmem:[#allocation2 + $0x91] sm:$0xff]
        %v1952 = vld [vmem:[#allocation2 + $0x99] sm:$0xff]
        %v1953 = vld [vmem:[#allocation2 + $0xa1] sm:$0xff]
        %v1954 = vld [vmem:[#allocation2 + $0xa9] sm:$0xff]
        %v1955 = vld [vmem:[#allocation2 + $0xb1] sm:$0xff]
        %v1956 = vld [vmem:[#allocation2 + $0xb9] sm:$0xff]
        %v1957 = vld [vmem:[#allocation2 + $0xc1] sm:$0xff]
        %v1958 = vld [vmem:[#allocation2 + $0xc9] sm:$0xff]
        %v1959 = vld [vmem:[#allocation2 + $0xd1] sm:$0xff]
        %v1960 = vld [vmem:[#allocation2 + $0xd9] sm:$0xff]
        %v1961 = vld [vmem:[#allocation2 + $0xe1] sm:$0xff]
        %v1962 = vld [vmem:[#allocation2 + $0xe9] sm:$0xff]
        %v1963 = vld [vmem:[#allocation2 + $0xf1] sm:$0xff]
        %v1964 = vld [vmem:[#allocation2 + $0xf9] sm:$0xff]
        %v1965 = vld [vmem:[#allocation2 + $0x101] sm:$0xff]
        %v1966 = vld [vmem:[#allocation2 + $0x109] sm:$0xff]
        %v1967 = vld [vmem:[%s1 + $0x4] sm:$0x1]
        %1969 = vset.pattern.permute.xlu0 0
        %1970 = vperm.xlu0 %1969, %v1935
        %v1971 = vpop.permute.xlu0 %1970
        %1974 = vset.pattern.permute.xlu0 0
        %1975 = vperm.xlu0 %1974, %v1936
        %v1976 = vpop.permute.xlu0 %1975
        %1979 = vset.pattern.permute.xlu0 0
        %1980 = vperm.xlu0 %1979, %v1937
        %v1981 = vpop.permute.xlu0 %1980
        %1984 = vset.pattern.permute.xlu0 0
        %1985 = vperm.xlu0 %1984, %v1938
        %v1986 = vpop.permute.xlu0 %1985
        %1989 = vset.pattern.permute.xlu0 0
        %1990 = vperm.xlu0 %1989, %v1939
        %v1991 = vpop.permute.xlu0 %1990
        %1994 = vset.pattern.permute.xlu0 0
        %1995 = vperm.xlu0 %1994, %v1940
        %v1996 = vpop.permute.xlu0 %1995
        %1999 = vset.pattern.permute.xlu0 0
        %2000 = vperm.xlu0 %1999, %v1941
        %v2001 = vpop.permute.xlu0 %2000
        %2004 = vset.pattern.permute.xlu0 0
        %2005 = vperm.xlu0 %2004, %v1942
        %v2006 = vpop.permute.xlu0 %2005
        %2009 = vset.pattern.permute.xlu0 0
        %2010 = vperm.xlu0 %2009, %v1943
        %v2011 = vpop.permute.xlu0 %2010
        %2014 = vset.pattern.permute.xlu0 0
        %2015 = vperm.xlu0 %2014, %v1944
        %v2016 = vpop.permute.xlu0 %2015
        %2019 = vset.pattern.permute.xlu0 0
        %2020 = vperm.xlu0 %2019, %v1945
        %v2021 = vpop.permute.xlu0 %2020
        %2024 = vset.pattern.permute.xlu0 0
        %2025 = vperm.xlu0 %2024, %v1946
        %v2026 = vpop.permute.xlu0 %2025
        %2029 = vset.pattern.permute.xlu0 0
        %2030 = vperm.xlu0 %2029, %v1947
        %v2031 = vpop.permute.xlu0 %2030
        %2034 = vset.pattern.permute.xlu0 0
        %2035 = vperm.xlu0 %2034, %v1948
        %v2036 = vpop.permute.xlu0 %2035
        %2039 = vset.pattern.permute.xlu0 0
        %2040 = vperm.xlu0 %2039, %v1949
        %v2041 = vpop.permute.xlu0 %2040
        %2044 = vset.pattern.permute.xlu0 0
        %2045 = vperm.xlu0 %2044, %v1950
        %v2046 = vpop.permute.xlu0 %2045
        %2049 = vset.pattern.permute.xlu0 0
        %2050 = vperm.xlu0 %2049, %v1951
        %v2051 = vpop.permute.xlu0 %2050
        %2054 = vset.pattern.permute.xlu0 0
        %2055 = vperm.xlu0 %2054, %v1952
        %v2056 = vpop.permute.xlu0 %2055
        %2059 = vset.pattern.permute.xlu0 0
        %2060 = vperm.xlu0 %2059, %v1953
        %v2061 = vpop.permute.xlu0 %2060
        %2064 = vset.pattern.permute.xlu0 0
        %2065 = vperm.xlu0 %2064, %v1954
        %v2066 = vpop.permute.xlu0 %2065
        %2069 = vset.pattern.permute.xlu0 0
        %2070 = vperm.xlu0 %2069, %v1955
        %v2071 = vpop.permute.xlu0 %2070
        %2074 = vset.pattern.permute.xlu0 0
        %2075 = vperm.xlu0 %2074, %v1956
        %v2076 = vpop.permute.xlu0 %2075
        %2079 = vset.pattern.permute.xlu0 0
        %2080 = vperm.xlu0 %2079, %v1957
        %v2081 = vpop.permute.xlu0 %2080
        %2084 = vset.pattern.permute.xlu0 0
        %2085 = vperm.xlu0 %2084, %v1958
        %v2086 = vpop.permute.xlu0 %2085
        %2089 = vset.pattern.permute.xlu0 0
        %2090 = vperm.xlu0 %2089, %v1959
        %v2091 = vpop.permute.xlu0 %2090
        %2094 = vset.pattern.permute.xlu0 0
        %2095 = vperm.xlu0 %2094, %v1960
        %v2096 = vpop.permute.xlu0 %2095
        %2099 = vset.pattern.permute.xlu0 0
        %2100 = vperm.xlu0 %2099, %v1961
        %v2101 = vpop.permute.xlu0 %2100
        %2104 = vset.pattern.permute.xlu0 0
        %2105 = vperm.xlu0 %2104, %v1962
        %v2106 = vpop.permute.xlu0 %2105
        %2109 = vset.pattern.permute.xlu0 0
        %2110 = vperm.xlu0 %2109, %v1963
        %v2111 = vpop.permute.xlu0 %2110
        %2114 = vset.pattern.permute.xlu0 0
        %2115 = vperm.xlu0 %2114, %v1964
        %v2116 = vpop.permute.xlu0 %2115
        %2119 = vset.pattern.permute.xlu0 0
        %2120 = vperm.xlu0 %2119, %v1965
        %v2121 = vpop.permute.xlu0 %2120
        %2124 = vset.pattern.permute.xlu0 0
        %2125 = vperm.xlu0 %2124, %v1966
        %v2126 = vpop.permute.xlu0 %2125
        %v2128 = vlaneseq
        %v2129 = vshrl.u32 %v2128, 7
        %v2130 = vsub.s32 0, %v2129
        %v2131 = vrot.slane %v1967, %v2130
        %v2132 = vmul.f32 %v1971, %v2131
        %v2133 = vmul.f32 %v1976, %v2131
        %v2134 = vmul.f32 %v1981, %v2131
        %v2135 = vmul.f32 %v1986, %v2131
        %v2136 = vmul.f32 %v1991, %v2131
        %v2137 = vmul.f32 %v1996, %v2131
        %v2138 = vmul.f32 %v2001, %v2131
        %v2139 = vmul.f32 %v2006, %v2131
        %v2140 = vmul.f32 %v2011, %v2131
        %v2141 = vmul.f32 %v2016, %v2131
        %v2142 = vmul.f32 %v2021, %v2131
        %v2143 = vmul.f32 %v2026, %v2131
        %v2144 = vmul.f32 %v2031, %v2131
        %v2145 = vmul.f32 %v2036, %v2131
        %v2146 = vmul.f32 %v2041, %v2131
        %v2147 = vmul.f32 %v2046, %v2131
        %v2148 = vmul.f32 %v2051, %v2131
        %v2149 = vmul.f32 %v2056, %v2131
        %v2150 = vmul.f32 %v2061, %v2131
        %v2151 = vmul.f32 %v2066, %v2131
        %v2152 = vmul.f32 %v2071, %v2131
        %v2153 = vmul.f32 %v2076, %v2131
        %v2154 = vmul.f32 %v2081, %v2131
        %v2155 = vmul.f32 %v2086, %v2131
        %v2156 = vmul.f32 %v2091, %v2131
        %v2157 = vmul.f32 %v2096, %v2131
        %v2158 = vmul.f32 %v2101, %v2131
        %v2159 = vmul.f32 %v2106, %v2131
        %v2160 = vmul.f32 %v2111, %v2131
        %v2161 = vmul.f32 %v2116, %v2131
        %v2162 = vmul.f32 %v2121, %v2131
        %v2163 = vmul.f32 %v2126, %v2131
        %v2164 = vadd.f32 %v1903, %v2132
        %v2165 = vadd.f32 %v1904, %v2133
        %v2166 = vadd.f32 %v1905, %v2134
        %v2167 = vadd.f32 %v1906, %v2135
        %v2168 = vadd.f32 %v1907, %v2136
        %v2169 = vadd.f32 %v1908, %v2137
        %v2170 = vadd.f32 %v1909, %v2138
        %v2171 = vadd.f32 %v1910, %v2139
        %v2172 = vadd.f32 %v1911, %v2140
        %v2173 = vadd.f32 %v1912, %v2141
        %v2174 = vadd.f32 %v1913, %v2142
        %v2175 = vadd.f32 %v1914, %v2143
        %v2176 = vadd.f32 %v1915, %v2144
        %v2177 = vadd.f32 %v1916, %v2145
        %v2178 = vadd.f32 %v1917, %v2146
        %v2179 = vadd.f32 %v1918, %v2147
        %v2180 = vadd.f32 %v1919, %v2148
        %v2181 = vadd.f32 %v1920, %v2149
        %v2182 = vadd.f32 %v1921, %v2150
        %v2183 = vadd.f32 %v1922, %v2151
        %v2184 = vadd.f32 %v1923, %v2152
        %v2185 = vadd.f32 %v1924, %v2153
        %v2186 = vadd.f32 %v1925, %v2154
        %v2187 = vadd.f32 %v1926, %v2155
        %v2188 = vadd.f32 %v1927, %v2156
        %v2189 = vadd.f32 %v1928, %v2157
        %v2190 = vadd.f32 %v1929, %v2158
        %v2191 = vadd.f32 %v1930, %v2159
        %v2192 = vadd.f32 %v1931, %v2160
        %v2193 = vadd.f32 %v1932, %v2161
        %v2194 = vadd.f32 %v1933, %v2162
        %v2195 = vadd.f32 %v1934, %v2163
        %v2196 = vld [vmem:[#allocation2 + $0x12] sm:$0xff]
        %v2197 = vld [vmem:[#allocation2 + $0x1a] sm:$0xff]
        %v2198 = vld [vmem:[#allocation2 + $0x22] sm:$0xff]
        %v2199 = vld [vmem:[#allocation2 + $0x2a] sm:$0xff]
        %v2200 = vld [vmem:[#allocation2 + $0x32] sm:$0xff]
        %v2201 = vld [vmem:[#allocation2 + $0x3a] sm:$0xff]
        %v2202 = vld [vmem:[#allocation2 + $0x42] sm:$0xff]
        %v2203 = vld [vmem:[#allocation2 + $0x4a] sm:$0xff]
        %v2204 = vld [vmem:[#allocation2 + $0x52] sm:$0xff]
        %v2205 = vld [vmem:[#allocation2 + $0x5a] sm:$0xff]
        %v2206 = vld [vmem:[#allocation2 + $0x62] sm:$0xff]
        %v2207 = vld [vmem:[#allocation2 + $0x6a] sm:$0xff]
        %v2208 = vld [vmem:[#allocation2 + $0x72] sm:$0xff]
        %v2209 = vld [vmem:[#allocation2 + $0x7a] sm:$0xff]
        %v2210 = vld [vmem:[#allocation2 + $0x82] sm:$0xff]
        %v2211 = vld [vmem:[#allocation2 + $0x8a] sm:$0xff]
        %v2212 = vld [vmem:[#allocation2 + $0x92] sm:$0xff]
        %v2213 = vld [vmem:[#allocation2 + $0x9a] sm:$0xff]
        %v2214 = vld [vmem:[#allocation2 + $0xa2] sm:$0xff]
        %v2215 = vld [vmem:[#allocation2 + $0xaa] sm:$0xff]
        %v2216 = vld [vmem:[#allocation2 + $0xb2] sm:$0xff]
        %v2217 = vld [vmem:[#allocation2 + $0xba] sm:$0xff]
        %v2218 = vld [vmem:[#allocation2 + $0xc2] sm:$0xff]
        %v2219 = vld [vmem:[#allocation2 + $0xca] sm:$0xff]
        %v2220 = vld [vmem:[#allocation2 + $0xd2] sm:$0xff]
        %v2221 = vld [vmem:[#allocation2 + $0xda] sm:$0xff]
        %v2222 = vld [vmem:[#allocation2 + $0xe2] sm:$0xff]
        %v2223 = vld [vmem:[#allocation2 + $0xea] sm:$0xff]
        %v2224 = vld [vmem:[#allocation2 + $0xf2] sm:$0xff]
        %v2225 = vld [vmem:[#allocation2 + $0xfa] sm:$0xff]
        %v2226 = vld [vmem:[#allocation2 + $0x102] sm:$0xff]
        %v2227 = vld [vmem:[#allocation2 + $0x10a] sm:$0xff]
        %v2228 = vmul.f32 %v2196, %v763
        %v2229 = vmul.f32 %v2197, %v764
        %v2230 = vmul.f32 %v2198, %v765
        %v2231 = vmul.f32 %v2199, %v766
        %v2232 = vmul.f32 %v2200, %v767
        %v2233 = vmul.f32 %v2201, %v768
        %v2234 = vmul.f32 %v2202, %v769
        %v2235 = vmul.f32 %v2203, %v770
        %v2236 = vmul.f32 %v2204, %v771
        %v2237 = vmul.f32 %v2205, %v772
        %v2238 = vmul.f32 %v2206, %v773
        %v2239 = vmul.f32 %v2207, %v774
        %v2240 = vmul.f32 %v2208, %v775
        %v2241 = vmul.f32 %v2209, %v776
        %v2242 = vmul.f32 %v2210, %v777
        %v2243 = vmul.f32 %v2211, %v778
        %v2244 = vmul.f32 %v2212, %v779
        %v2245 = vmul.f32 %v2213, %v780
        %v2246 = vmul.f32 %v2214, %v781
        %v2247 = vmul.f32 %v2215, %v782
        %v2248 = vmul.f32 %v2216, %v783
        %v2249 = vmul.f32 %v2217, %v784
        %v2250 = vmul.f32 %v2218, %v785
        %v2251 = vmul.f32 %v2219, %v786
        %v2252 = vmul.f32 %v2220, %v787
        %v2253 = vmul.f32 %v2221, %v788
        %v2254 = vmul.f32 %v2222, %v789
        %v2255 = vmul.f32 %v2223, %v790
        %v2256 = vmul.f32 %v2224, %v791
        %v2257 = vmul.f32 %v2225, %v792
        %v2258 = vmul.f32 %v2226, %v793
        %v2259 = vmul.f32 %v2227, %v794
        %v2260 = vld [vmem:[%s1 + $0x5] sm:$0x1]
        %2262 = vset.pattern.permute.xlu0 0
        %2263 = vperm.xlu0 %2262, %v2228
        %v2264 = vpop.permute.xlu0 %2263
        %2267 = vset.pattern.permute.xlu0 0
        %2268 = vperm.xlu0 %2267, %v2229
        %v2269 = vpop.permute.xlu0 %2268
        %2272 = vset.pattern.permute.xlu0 0
        %2273 = vperm.xlu0 %2272, %v2230
        %v2274 = vpop.permute.xlu0 %2273
        %2277 = vset.pattern.permute.xlu0 0
        %2278 = vperm.xlu0 %2277, %v2231
        %v2279 = vpop.permute.xlu0 %2278
        %2282 = vset.pattern.permute.xlu0 0
        %2283 = vperm.xlu0 %2282, %v2232
        %v2284 = vpop.permute.xlu0 %2283
        %2287 = vset.pattern.permute.xlu0 0
        %2288 = vperm.xlu0 %2287, %v2233
        %v2289 = vpop.permute.xlu0 %2288
        %2292 = vset.pattern.permute.xlu0 0
        %2293 = vperm.xlu0 %2292, %v2234
        %v2294 = vpop.permute.xlu0 %2293
        %2297 = vset.pattern.permute.xlu0 0
        %2298 = vperm.xlu0 %2297, %v2235
        %v2299 = vpop.permute.xlu0 %2298
        %2302 = vset.pattern.permute.xlu0 0
        %2303 = vperm.xlu0 %2302, %v2236
        %v2304 = vpop.permute.xlu0 %2303
        %2307 = vset.pattern.permute.xlu0 0
        %2308 = vperm.xlu0 %2307, %v2237
        %v2309 = vpop.permute.xlu0 %2308
        %2312 = vset.pattern.permute.xlu0 0
        %2313 = vperm.xlu0 %2312, %v2238
        %v2314 = vpop.permute.xlu0 %2313
        %2317 = vset.pattern.permute.xlu0 0
        %2318 = vperm.xlu0 %2317, %v2239
        %v2319 = vpop.permute.xlu0 %2318
        %2322 = vset.pattern.permute.xlu0 0
        %2323 = vperm.xlu0 %2322, %v2240
        %v2324 = vpop.permute.xlu0 %2323
        %2327 = vset.pattern.permute.xlu0 0
        %2328 = vperm.xlu0 %2327, %v2241
        %v2329 = vpop.permute.xlu0 %2328
        %2332 = vset.pattern.permute.xlu0 0
        %2333 = vperm.xlu0 %2332, %v2242
        %v2334 = vpop.permute.xlu0 %2333
        %2337 = vset.pattern.permute.xlu0 0
        %2338 = vperm.xlu0 %2337, %v2243
        %v2339 = vpop.permute.xlu0 %2338
        %2342 = vset.pattern.permute.xlu0 0
        %2343 = vperm.xlu0 %2342, %v2244
        %v2344 = vpop.permute.xlu0 %2343
        %2347 = vset.pattern.permute.xlu0 0
        %2348 = vperm.xlu0 %2347, %v2245
        %v2349 = vpop.permute.xlu0 %2348
        %2352 = vset.pattern.permute.xlu0 0
        %2353 = vperm.xlu0 %2352, %v2246
        %v2354 = vpop.permute.xlu0 %2353
        %2357 = vset.pattern.permute.xlu0 0
        %2358 = vperm.xlu0 %2357, %v2247
        %v2359 = vpop.permute.xlu0 %2358
        %2362 = vset.pattern.permute.xlu0 0
        %2363 = vperm.xlu0 %2362, %v2248
        %v2364 = vpop.permute.xlu0 %2363
        %2367 = vset.pattern.permute.xlu0 0
        %2368 = vperm.xlu0 %2367, %v2249
        %v2369 = vpop.permute.xlu0 %2368
        %2372 = vset.pattern.permute.xlu0 0
        %2373 = vperm.xlu0 %2372, %v2250
        %v2374 = vpop.permute.xlu0 %2373
        %2377 = vset.pattern.permute.xlu0 0
        %2378 = vperm.xlu0 %2377, %v2251
        %v2379 = vpop.permute.xlu0 %2378
        %2382 = vset.pattern.permute.xlu0 0
        %2383 = vperm.xlu0 %2382, %v2252
        %v2384 = vpop.permute.xlu0 %2383
        %2387 = vset.pattern.permute.xlu0 0
        %2388 = vperm.xlu0 %2387, %v2253
        %v2389 = vpop.permute.xlu0 %2388
        %2392 = vset.pattern.permute.xlu0 0
        %2393 = vperm.xlu0 %2392, %v2254
        %v2394 = vpop.permute.xlu0 %2393
        %2397 = vset.pattern.permute.xlu0 0
        %2398 = vperm.xlu0 %2397, %v2255
        %v2399 = vpop.permute.xlu0 %2398
        %2402 = vset.pattern.permute.xlu0 0
        %2403 = vperm.xlu0 %2402, %v2256
        %v2404 = vpop.permute.xlu0 %2403
        %2407 = vset.pattern.permute.xlu0 0
        %2408 = vperm.xlu0 %2407, %v2257
        %v2409 = vpop.permute.xlu0 %2408
        %2412 = vset.pattern.permute.xlu0 0
        %2413 = vperm.xlu0 %2412, %v2258
        %v2414 = vpop.permute.xlu0 %2413
        %2417 = vset.pattern.permute.xlu0 0
        %2418 = vperm.xlu0 %2417, %v2259
        %v2419 = vpop.permute.xlu0 %2418
        %v2421 = vlaneseq
        %v2422 = vshrl.u32 %v2421, 7
        %v2423 = vsub.s32 0, %v2422
        %v2424 = vrot.slane %v2260, %v2423
        %v2425 = vmul.f32 %v2264, %v2424
        %v2426 = vmul.f32 %v2269, %v2424
        %v2427 = vmul.f32 %v2274, %v2424
        %v2428 = vmul.f32 %v2279, %v2424
        %v2429 = vmul.f32 %v2284, %v2424
        %v2430 = vmul.f32 %v2289, %v2424
        %v2431 = vmul.f32 %v2294, %v2424
        %v2432 = vmul.f32 %v2299, %v2424
        %v2433 = vmul.f32 %v2304, %v2424
        %v2434 = vmul.f32 %v2309, %v2424
        %v2435 = vmul.f32 %v2314, %v2424
        %v2436 = vmul.f32 %v2319, %v2424
        %v2437 = vmul.f32 %v2324, %v2424
        %v2438 = vmul.f32 %v2329, %v2424
        %v2439 = vmul.f32 %v2334, %v2424
        %v2440 = vmul.f32 %v2339, %v2424
        %v2441 = vmul.f32 %v2344, %v2424
        %v2442 = vmul.f32 %v2349, %v2424
        %v2443 = vmul.f32 %v2354, %v2424
        %v2444 = vmul.f32 %v2359, %v2424
        %v2445 = vmul.f32 %v2364, %v2424
        %v2446 = vmul.f32 %v2369, %v2424
        %v2447 = vmul.f32 %v2374, %v2424
        %v2448 = vmul.f32 %v2379, %v2424
        %v2449 = vmul.f32 %v2384, %v2424
        %v2450 = vmul.f32 %v2389, %v2424
        %v2451 = vmul.f32 %v2394, %v2424
        %v2452 = vmul.f32 %v2399, %v2424
        %v2453 = vmul.f32 %v2404, %v2424
        %v2454 = vmul.f32 %v2409, %v2424
        %v2455 = vmul.f32 %v2414, %v2424
        %v2456 = vmul.f32 %v2419, %v2424
        %v2457 = vadd.f32 %v2164, %v2425
        %v2458 = vadd.f32 %v2165, %v2426
        %v2459 = vadd.f32 %v2166, %v2427
        %v2460 = vadd.f32 %v2167, %v2428
        %v2461 = vadd.f32 %v2168, %v2429
        %v2462 = vadd.f32 %v2169, %v2430
        %v2463 = vadd.f32 %v2170, %v2431
        %v2464 = vadd.f32 %v2171, %v2432
        %v2465 = vadd.f32 %v2172, %v2433
        %v2466 = vadd.f32 %v2173, %v2434
        %v2467 = vadd.f32 %v2174, %v2435
        %v2468 = vadd.f32 %v2175, %v2436
        %v2469 = vadd.f32 %v2176, %v2437
        %v2470 = vadd.f32 %v2177, %v2438
        %v2471 = vadd.f32 %v2178, %v2439
        %v2472 = vadd.f32 %v2179, %v2440
        %v2473 = vadd.f32 %v2180, %v2441
        %v2474 = vadd.f32 %v2181, %v2442
        %v2475 = vadd.f32 %v2182, %v2443
        %v2476 = vadd.f32 %v2183, %v2444
        %v2477 = vadd.f32 %v2184, %v2445
        %v2478 = vadd.f32 %v2185, %v2446
        %v2479 = vadd.f32 %v2186, %v2447
        %v2480 = vadd.f32 %v2187, %v2448
        %v2481 = vadd.f32 %v2188, %v2449
        %v2482 = vadd.f32 %v2189, %v2450
        %v2483 = vadd.f32 %v2190, %v2451
        %v2484 = vadd.f32 %v2191, %v2452
        %v2485 = vadd.f32 %v2192, %v2453
        %v2486 = vadd.f32 %v2193, %v2454
        %v2487 = vadd.f32 %v2194, %v2455
        %v2488 = vadd.f32 %v2195, %v2456
        %v2489 = vld [vmem:[#allocation2 + $0x20] sm:$0xff]
        %v2490 = vld [vmem:[#allocation2 + $0x28] sm:$0xff]
        %v2491 = vld [vmem:[#allocation2 + $0x30] sm:$0xff]
        %v2492 = vld [vmem:[#allocation2 + $0x38] sm:$0xff]
        %v2493 = vld [vmem:[#allocation2 + $0x40] sm:$0xff]
        %v2494 = vld [vmem:[#allocation2 + $0x48] sm:$0xff]
        %v2495 = vld [vmem:[#allocation2 + $0x50] sm:$0xff]
        %v2496 = vld [vmem:[#allocation2 + $0x58] sm:$0xff]
        %v2497 = vld [vmem:[#allocation2 + $0x60] sm:$0xff]
        %v2498 = vld [vmem:[#allocation2 + $0x68] sm:$0xff]
        %v2499 = vld [vmem:[#allocation2 + $0x70] sm:$0xff]
        %v2500 = vld [vmem:[#allocation2 + $0x78] sm:$0xff]
        %v2501 = vld [vmem:[#allocation2 + $0x80] sm:$0xff]
        %v2502 = vld [vmem:[#allocation2 + $0x88] sm:$0xff]
        %v2503 = vld [vmem:[#allocation2 + $0x90] sm:$0xff]
        %v2504 = vld [vmem:[#allocation2 + $0x98] sm:$0xff]
        %v2505 = vld [vmem:[#allocation2 + $0xa0] sm:$0xff]
        %v2506 = vld [vmem:[#allocation2 + $0xa8] sm:$0xff]
        %v2507 = vld [vmem:[#allocation2 + $0xb0] sm:$0xff]
        %v2508 = vld [vmem:[#allocation2 + $0xb8] sm:$0xff]
        %v2509 = vld [vmem:[#allocation2 + $0xc0] sm:$0xff]
        %v2510 = vld [vmem:[#allocation2 + $0xc8] sm:$0xff]
        %v2511 = vld [vmem:[#allocation2 + $0xd0] sm:$0xff]
        %v2512 = vld [vmem:[#allocation2 + $0xd8] sm:$0xff]
        %v2513 = vld [vmem:[#allocation2 + $0xe0] sm:$0xff]
        %v2514 = vld [vmem:[#allocation2 + $0xe8] sm:$0xff]
        %v2515 = vld [vmem:[#allocation2 + $0xf0] sm:$0xff]
        %v2516 = vld [vmem:[#allocation2 + $0xf8] sm:$0xff]
        %v2517 = vld [vmem:[#allocation2 + $0x100] sm:$0xff]
        %v2518 = vld [vmem:[#allocation2 + $0x108] sm:$0xff]
        %v2519 = vld [vmem:[#allocation2 + $0x110] sm:$0xff]
        %v2520 = vld [vmem:[#allocation2 + $0x118] sm:$0xff]
        %v2521 = vmul.f32 %v2489, %v730
        %v2522 = vmul.f32 %v2490, %v731
        %v2523 = vmul.f32 %v2491, %v732
        %v2524 = vmul.f32 %v2492, %v733
        %v2525 = vmul.f32 %v2493, %v734
        %v2526 = vmul.f32 %v2494, %v735
        %v2527 = vmul.f32 %v2495, %v736
        %v2528 = vmul.f32 %v2496, %v737
        %v2529 = vmul.f32 %v2497, %v738
        %v2530 = vmul.f32 %v2498, %v739
        %v2531 = vmul.f32 %v2499, %v740
        %v2532 = vmul.f32 %v2500, %v741
        %v2533 = vmul.f32 %v2501, %v742
        %v2534 = vmul.f32 %v2502, %v743
        %v2535 = vmul.f32 %v2503, %v744
        %v2536 = vmul.f32 %v2504, %v745
        %v2537 = vmul.f32 %v2505, %v746
        %v2538 = vmul.f32 %v2506, %v747
        %v2539 = vmul.f32 %v2507, %v748
        %v2540 = vmul.f32 %v2508, %v749
        %v2541 = vmul.f32 %v2509, %v750
        %v2542 = vmul.f32 %v2510, %v751
        %v2543 = vmul.f32 %v2511, %v752
        %v2544 = vmul.f32 %v2512, %v753
        %v2545 = vmul.f32 %v2513, %v754
        %v2546 = vmul.f32 %v2514, %v755
        %v2547 = vmul.f32 %v2515, %v756
        %v2548 = vmul.f32 %v2516, %v757
        %v2549 = vmul.f32 %v2517, %v758
        %v2550 = vmul.f32 %v2518, %v759
        %v2551 = vmul.f32 %v2519, %v760
        %v2552 = vmul.f32 %v2520, %v761
        %v2553 = vld [vmem:[%s1 + $0x6] sm:$0x1]
        %2555 = vset.pattern.permute.xlu0 0
        %2556 = vperm.xlu0 %2555, %v2521
        %v2557 = vpop.permute.xlu0 %2556
        %2560 = vset.pattern.permute.xlu0 0
        %2561 = vperm.xlu0 %2560, %v2522
        %v2562 = vpop.permute.xlu0 %2561
        %2565 = vset.pattern.permute.xlu0 0
        %2566 = vperm.xlu0 %2565, %v2523
        %v2567 = vpop.permute.xlu0 %2566
        %2570 = vset.pattern.permute.xlu0 0
        %2571 = vperm.xlu0 %2570, %v2524
        %v2572 = vpop.permute.xlu0 %2571
        %2575 = vset.pattern.permute.xlu0 0
        %2576 = vperm.xlu0 %2575, %v2525
        %v2577 = vpop.permute.xlu0 %2576
        %2580 = vset.pattern.permute.xlu0 0
        %2581 = vperm.xlu0 %2580, %v2526
        %v2582 = vpop.permute.xlu0 %2581
        %2585 = vset.pattern.permute.xlu0 0
        %2586 = vperm.xlu0 %2585, %v2527
        %v2587 = vpop.permute.xlu0 %2586
        %2590 = vset.pattern.permute.xlu0 0
        %2591 = vperm.xlu0 %2590, %v2528
        %v2592 = vpop.permute.xlu0 %2591
        %2595 = vset.pattern.permute.xlu0 0
        %2596 = vperm.xlu0 %2595, %v2529
        %v2597 = vpop.permute.xlu0 %2596
        %2600 = vset.pattern.permute.xlu0 0
        %2601 = vperm.xlu0 %2600, %v2530
        %v2602 = vpop.permute.xlu0 %2601
        %2605 = vset.pattern.permute.xlu0 0
        %2606 = vperm.xlu0 %2605, %v2531
        %v2607 = vpop.permute.xlu0 %2606
        %2610 = vset.pattern.permute.xlu0 0
        %2611 = vperm.xlu0 %2610, %v2532
        %v2612 = vpop.permute.xlu0 %2611
        %2615 = vset.pattern.permute.xlu0 0
        %2616 = vperm.xlu0 %2615, %v2533
        %v2617 = vpop.permute.xlu0 %2616
        %2620 = vset.pattern.permute.xlu0 0
        %2621 = vperm.xlu0 %2620, %v2534
        %v2622 = vpop.permute.xlu0 %2621
        %2625 = vset.pattern.permute.xlu0 0
        %2626 = vperm.xlu0 %2625, %v2535
        %v2627 = vpop.permute.xlu0 %2626
        %2630 = vset.pattern.permute.xlu0 0
        %2631 = vperm.xlu0 %2630, %v2536
        %v2632 = vpop.permute.xlu0 %2631
        %2635 = vset.pattern.permute.xlu0 0
        %2636 = vperm.xlu0 %2635, %v2537
        %v2637 = vpop.permute.xlu0 %2636
        %2640 = vset.pattern.permute.xlu0 0
        %2641 = vperm.xlu0 %2640, %v2538
        %v2642 = vpop.permute.xlu0 %2641
        %2645 = vset.pattern.permute.xlu0 0
        %2646 = vperm.xlu0 %2645, %v2539
        %v2647 = vpop.permute.xlu0 %2646
        %2650 = vset.pattern.permute.xlu0 0
        %2651 = vperm.xlu0 %2650, %v2540
        %v2652 = vpop.permute.xlu0 %2651
        %2655 = vset.pattern.permute.xlu0 0
        %2656 = vperm.xlu0 %2655, %v2541
        %v2657 = vpop.permute.xlu0 %2656
        %2660 = vset.pattern.permute.xlu0 0
        %2661 = vperm.xlu0 %2660, %v2542
        %v2662 = vpop.permute.xlu0 %2661
        %2665 = vset.pattern.permute.xlu0 0
        %2666 = vperm.xlu0 %2665, %v2543
        %v2667 = vpop.permute.xlu0 %2666
        %2670 = vset.pattern.permute.xlu0 0
        %2671 = vperm.xlu0 %2670, %v2544
        %v2672 = vpop.permute.xlu0 %2671
        %2675 = vset.pattern.permute.xlu0 0
        %2676 = vperm.xlu0 %2675, %v2545
        %v2677 = vpop.permute.xlu0 %2676
        %2680 = vset.pattern.permute.xlu0 0
        %2681 = vperm.xlu0 %2680, %v2546
        %v2682 = vpop.permute.xlu0 %2681
        %2685 = vset.pattern.permute.xlu0 0
        %2686 = vperm.xlu0 %2685, %v2547
        %v2687 = vpop.permute.xlu0 %2686
        %2690 = vset.pattern.permute.xlu0 0
        %2691 = vperm.xlu0 %2690, %v2548
        %v2692 = vpop.permute.xlu0 %2691
        %2695 = vset.pattern.permute.xlu0 0
        %2696 = vperm.xlu0 %2695, %v2549
        %v2697 = vpop.permute.xlu0 %2696
        %2700 = vset.pattern.permute.xlu0 0
        %2701 = vperm.xlu0 %2700, %v2550
        %v2702 = vpop.permute.xlu0 %2701
        %2705 = vset.pattern.permute.xlu0 0
        %2706 = vperm.xlu0 %2705, %v2551
        %v2707 = vpop.permute.xlu0 %2706
        %2710 = vset.pattern.permute.xlu0 0
        %2711 = vperm.xlu0 %2710, %v2552
        %v2712 = vpop.permute.xlu0 %2711
        %v2714 = vlaneseq
        %v2715 = vshrl.u32 %v2714, 7
        %v2716 = vsub.s32 0, %v2715
        %v2717 = vrot.slane %v2553, %v2716
        %v2718 = vmul.f32 %v2557, %v2717
        %v2719 = vmul.f32 %v2562, %v2717
        %v2720 = vmul.f32 %v2567, %v2717
        %v2721 = vmul.f32 %v2572, %v2717
        %v2722 = vmul.f32 %v2577, %v2717
        %v2723 = vmul.f32 %v2582, %v2717
        %v2724 = vmul.f32 %v2587, %v2717
        %v2725 = vmul.f32 %v2592, %v2717
        %v2726 = vmul.f32 %v2597, %v2717
        %v2727 = vmul.f32 %v2602, %v2717
        %v2728 = vmul.f32 %v2607, %v2717
        %v2729 = vmul.f32 %v2612, %v2717
        %v2730 = vmul.f32 %v2617, %v2717
        %v2731 = vmul.f32 %v2622, %v2717
        %v2732 = vmul.f32 %v2627, %v2717
        %v2733 = vmul.f32 %v2632, %v2717
        %v2734 = vmul.f32 %v2637, %v2717
        %v2735 = vmul.f32 %v2642, %v2717
        %v2736 = vmul.f32 %v2647, %v2717
        %v2737 = vmul.f32 %v2652, %v2717
        %v2738 = vmul.f32 %v2657, %v2717
        %v2739 = vmul.f32 %v2662, %v2717
        %v2740 = vmul.f32 %v2667, %v2717
        %v2741 = vmul.f32 %v2672, %v2717
        %v2742 = vmul.f32 %v2677, %v2717
        %v2743 = vmul.f32 %v2682, %v2717
        %v2744 = vmul.f32 %v2687, %v2717
        %v2745 = vmul.f32 %v2692, %v2717
        %v2746 = vmul.f32 %v2697, %v2717
        %v2747 = vmul.f32 %v2702, %v2717
        %v2748 = vmul.f32 %v2707, %v2717
        %v2749 = vmul.f32 %v2712, %v2717
        %v2750 = vadd.f32 %v2457, %v2718
        %v2751 = vadd.f32 %v2458, %v2719
        %v2752 = vadd.f32 %v2459, %v2720
        %v2753 = vadd.f32 %v2460, %v2721
        %v2754 = vadd.f32 %v2461, %v2722
        %v2755 = vadd.f32 %v2462, %v2723
        %v2756 = vadd.f32 %v2463, %v2724
        %v2757 = vadd.f32 %v2464, %v2725
        %v2758 = vadd.f32 %v2465, %v2726
        %v2759 = vadd.f32 %v2466, %v2727
        %v2760 = vadd.f32 %v2467, %v2728
        %v2761 = vadd.f32 %v2468, %v2729
        %v2762 = vadd.f32 %v2469, %v2730
        %v2763 = vadd.f32 %v2470, %v2731
        %v2764 = vadd.f32 %v2471, %v2732
        %v2765 = vadd.f32 %v2472, %v2733
        %v2766 = vadd.f32 %v2473, %v2734
        %v2767 = vadd.f32 %v2474, %v2735
        %v2768 = vadd.f32 %v2475, %v2736
        %v2769 = vadd.f32 %v2476, %v2737
        %v2770 = vadd.f32 %v2477, %v2738
        %v2771 = vadd.f32 %v2478, %v2739
        %v2772 = vadd.f32 %v2479, %v2740
        %v2773 = vadd.f32 %v2480, %v2741
        %v2774 = vadd.f32 %v2481, %v2742
        %v2775 = vadd.f32 %v2482, %v2743
        %v2776 = vadd.f32 %v2483, %v2744
        %v2777 = vadd.f32 %v2484, %v2745
        %v2778 = vadd.f32 %v2485, %v2746
        %v2779 = vadd.f32 %v2486, %v2747
        %v2780 = vadd.f32 %v2487, %v2748
        %v2781 = vadd.f32 %v2488, %v2749
        %v2782 = vld [vmem:[#allocation2 + $0x21] sm:$0xff]
        %v2783 = vld [vmem:[#allocation2 + $0x29] sm:$0xff]
        %v2784 = vld [vmem:[#allocation2 + $0x31] sm:$0xff]
        %v2785 = vld [vmem:[#allocation2 + $0x39] sm:$0xff]
        %v2786 = vld [vmem:[#allocation2 + $0x41] sm:$0xff]
        %v2787 = vld [vmem:[#allocation2 + $0x49] sm:$0xff]
        %v2788 = vld [vmem:[#allocation2 + $0x51] sm:$0xff]
        %v2789 = vld [vmem:[#allocation2 + $0x59] sm:$0xff]
        %v2790 = vld [vmem:[#allocation2 + $0x61] sm:$0xff]
        %v2791 = vld [vmem:[#allocation2 + $0x69] sm:$0xff]
        %v2792 = vld [vmem:[#allocation2 + $0x71] sm:$0xff]
        %v2793 = vld [vmem:[#allocation2 + $0x79] sm:$0xff]
        %v2794 = vld [vmem:[#allocation2 + $0x81] sm:$0xff]
        %v2795 = vld [vmem:[#allocation2 + $0x89] sm:$0xff]
        %v2796 = vld [vmem:[#allocation2 + $0x91] sm:$0xff]
        %v2797 = vld [vmem:[#allocation2 + $0x99] sm:$0xff]
        %v2798 = vld [vmem:[#allocation2 + $0xa1] sm:$0xff]
        %v2799 = vld [vmem:[#allocation2 + $0xa9] sm:$0xff]
        %v2800 = vld [vmem:[#allocation2 + $0xb1] sm:$0xff]
        %v2801 = vld [vmem:[#allocation2 + $0xb9] sm:$0xff]
        %v2802 = vld [vmem:[#allocation2 + $0xc1] sm:$0xff]
        %v2803 = vld [vmem:[#allocation2 + $0xc9] sm:$0xff]
        %v2804 = vld [vmem:[#allocation2 + $0xd1] sm:$0xff]
        %v2805 = vld [vmem:[#allocation2 + $0xd9] sm:$0xff]
        %v2806 = vld [vmem:[#allocation2 + $0xe1] sm:$0xff]
        %v2807 = vld [vmem:[#allocation2 + $0xe9] sm:$0xff]
        %v2808 = vld [vmem:[#allocation2 + $0xf1] sm:$0xff]
        %v2809 = vld [vmem:[#allocation2 + $0xf9] sm:$0xff]
        %v2810 = vld [vmem:[#allocation2 + $0x101] sm:$0xff]
        %v2811 = vld [vmem:[#allocation2 + $0x109] sm:$0xff]
        %v2812 = vld [vmem:[#allocation2 + $0x111] sm:$0xff]
        %v2813 = vld [vmem:[#allocation2 + $0x119] sm:$0xff]
        %v2814 = vld [vmem:[%s1 + $0x7] sm:$0x1]
        %2816 = vset.pattern.permute.xlu0 0
        %2817 = vperm.xlu0 %2816, %v2782
        %v2818 = vpop.permute.xlu0 %2817
        %2821 = vset.pattern.permute.xlu0 0
        %2822 = vperm.xlu0 %2821, %v2783
        %v2823 = vpop.permute.xlu0 %2822
        %2826 = vset.pattern.permute.xlu0 0
        %2827 = vperm.xlu0 %2826, %v2784
        %v2828 = vpop.permute.xlu0 %2827
        %2831 = vset.pattern.permute.xlu0 0
        %2832 = vperm.xlu0 %2831, %v2785
        %v2833 = vpop.permute.xlu0 %2832
        %2836 = vset.pattern.permute.xlu0 0
        %2837 = vperm.xlu0 %2836, %v2786
        %v2838 = vpop.permute.xlu0 %2837
        %2841 = vset.pattern.permute.xlu0 0
        %2842 = vperm.xlu0 %2841, %v2787
        %v2843 = vpop.permute.xlu0 %2842
        %2846 = vset.pattern.permute.xlu0 0
        %2847 = vperm.xlu0 %2846, %v2788
        %v2848 = vpop.permute.xlu0 %2847
        %2851 = vset.pattern.permute.xlu0 0
        %2852 = vperm.xlu0 %2851, %v2789
        %v2853 = vpop.permute.xlu0 %2852
        %2856 = vset.pattern.permute.xlu0 0
        %2857 = vperm.xlu0 %2856, %v2790
        %v2858 = vpop.permute.xlu0 %2857
        %2861 = vset.pattern.permute.xlu0 0
        %2862 = vperm.xlu0 %2861, %v2791
        %v2863 = vpop.permute.xlu0 %2862
        %2866 = vset.pattern.permute.xlu0 0
        %2867 = vperm.xlu0 %2866, %v2792
        %v2868 = vpop.permute.xlu0 %2867
        %2871 = vset.pattern.permute.xlu0 0
        %2872 = vperm.xlu0 %2871, %v2793
        %v2873 = vpop.permute.xlu0 %2872
        %2876 = vset.pattern.permute.xlu0 0
        %2877 = vperm.xlu0 %2876, %v2794
        %v2878 = vpop.permute.xlu0 %2877
        %2881 = vset.pattern.permute.xlu0 0
        %2882 = vperm.xlu0 %2881, %v2795
        %v2883 = vpop.permute.xlu0 %2882
        %2886 = vset.pattern.permute.xlu0 0
        %2887 = vperm.xlu0 %2886, %v2796
        %v2888 = vpop.permute.xlu0 %2887
        %2891 = vset.pattern.permute.xlu0 0
        %2892 = vperm.xlu0 %2891, %v2797
        %v2893 = vpop.permute.xlu0 %2892
        %2896 = vset.pattern.permute.xlu0 0
        %2897 = vperm.xlu0 %2896, %v2798
        %v2898 = vpop.permute.xlu0 %2897
        %2901 = vset.pattern.permute.xlu0 0
        %2902 = vperm.xlu0 %2901, %v2799
        %v2903 = vpop.permute.xlu0 %2902
        %2906 = vset.pattern.permute.xlu0 0
        %2907 = vperm.xlu0 %2906, %v2800
        %v2908 = vpop.permute.xlu0 %2907
        %2911 = vset.pattern.permute.xlu0 0
        %2912 = vperm.xlu0 %2911, %v2801
        %v2913 = vpop.permute.xlu0 %2912
        %2916 = vset.pattern.permute.xlu0 0
        %2917 = vperm.xlu0 %2916, %v2802
        %v2918 = vpop.permute.xlu0 %2917
        %2921 = vset.pattern.permute.xlu0 0
        %2922 = vperm.xlu0 %2921, %v2803
        %v2923 = vpop.permute.xlu0 %2922
        %2926 = vset.pattern.permute.xlu0 0
        %2927 = vperm.xlu0 %2926, %v2804
        %v2928 = vpop.permute.xlu0 %2927
        %2931 = vset.pattern.permute.xlu0 0
        %2932 = vperm.xlu0 %2931, %v2805
        %v2933 = vpop.permute.xlu0 %2932
        %2936 = vset.pattern.permute.xlu0 0
        %2937 = vperm.xlu0 %2936, %v2806
        %v2938 = vpop.permute.xlu0 %2937
        %2941 = vset.pattern.permute.xlu0 0
        %2942 = vperm.xlu0 %2941, %v2807
        %v2943 = vpop.permute.xlu0 %2942
        %2946 = vset.pattern.permute.xlu0 0
        %2947 = vperm.xlu0 %2946, %v2808
        %v2948 = vpop.permute.xlu0 %2947
        %2951 = vset.pattern.permute.xlu0 0
        %2952 = vperm.xlu0 %2951, %v2809
        %v2953 = vpop.permute.xlu0 %2952
        %2956 = vset.pattern.permute.xlu0 0
        %2957 = vperm.xlu0 %2956, %v2810
        %v2958 = vpop.permute.xlu0 %2957
        %2961 = vset.pattern.permute.xlu0 0
        %2962 = vperm.xlu0 %2961, %v2811
        %v2963 = vpop.permute.xlu0 %2962
        %2966 = vset.pattern.permute.xlu0 0
        %2967 = vperm.xlu0 %2966, %v2812
        %v2968 = vpop.permute.xlu0 %2967
        %2971 = vset.pattern.permute.xlu0 0
        %2972 = vperm.xlu0 %2971, %v2813
        %v2973 = vpop.permute.xlu0 %2972
        %v2975 = vlaneseq
        %v2976 = vshrl.u32 %v2975, 7
        %v2977 = vsub.s32 0, %v2976
        %v2978 = vrot.slane %v2814, %v2977
        %v2979 = vmul.f32 %v2818, %v2978
        %v2980 = vmul.f32 %v2823, %v2978
        %v2981 = vmul.f32 %v2828, %v2978
        %v2982 = vmul.f32 %v2833, %v2978
        %v2983 = vmul.f32 %v2838, %v2978
        %v2984 = vmul.f32 %v2843, %v2978
        %v2985 = vmul.f32 %v2848, %v2978
        %v2986 = vmul.f32 %v2853, %v2978
        %v2987 = vmul.f32 %v2858, %v2978
        %v2988 = vmul.f32 %v2863, %v2978
        %v2989 = vmul.f32 %v2868, %v2978
        %v2990 = vmul.f32 %v2873, %v2978
        %v2991 = vmul.f32 %v2878, %v2978
        %v2992 = vmul.f32 %v2883, %v2978
        %v2993 = vmul.f32 %v2888, %v2978
        %v2994 = vmul.f32 %v2893, %v2978
        %v2995 = vmul.f32 %v2898, %v2978
        %v2996 = vmul.f32 %v2903, %v2978
        %v2997 = vmul.f32 %v2908, %v2978
        %v2998 = vmul.f32 %v2913, %v2978
        %v2999 = vmul.f32 %v2918, %v2978
        %v3000 = vmul.f32 %v2923, %v2978
        %v3001 = vmul.f32 %v2928, %v2978
        %v3002 = vmul.f32 %v2933, %v2978
        %v3003 = vmul.f32 %v2938, %v2978
        %v3004 = vmul.f32 %v2943, %v2978
        %v3005 = vmul.f32 %v2948, %v2978
        %v3006 = vmul.f32 %v2953, %v2978
        %v3007 = vmul.f32 %v2958, %v2978
        %v3008 = vmul.f32 %v2963, %v2978
        %v3009 = vmul.f32 %v2968, %v2978
        %v3010 = vmul.f32 %v2973, %v2978
        %v3011 = vadd.f32 %v2750, %v2979
        %v3012 = vadd.f32 %v2751, %v2980
        %v3013 = vadd.f32 %v2752, %v2981
        %v3014 = vadd.f32 %v2753, %v2982
        %v3015 = vadd.f32 %v2754, %v2983
        %v3016 = vadd.f32 %v2755, %v2984
        %v3017 = vadd.f32 %v2756, %v2985
        %v3018 = vadd.f32 %v2757, %v2986
        %v3019 = vadd.f32 %v2758, %v2987
        %v3020 = vadd.f32 %v2759, %v2988
        %v3021 = vadd.f32 %v2760, %v2989
        %v3022 = vadd.f32 %v2761, %v2990
        %v3023 = vadd.f32 %v2762, %v2991
        %v3024 = vadd.f32 %v2763, %v2992
        %v3025 = vadd.f32 %v2764, %v2993
        %v3026 = vadd.f32 %v2765, %v2994
        %v3027 = vadd.f32 %v2766, %v2995
        %v3028 = vadd.f32 %v2767, %v2996
        %v3029 = vadd.f32 %v2768, %v2997
        %v3030 = vadd.f32 %v2769, %v2998
        %v3031 = vadd.f32 %v2770, %v2999
        %v3032 = vadd.f32 %v2771, %v3000
        %v3033 = vadd.f32 %v2772, %v3001
        %v3034 = vadd.f32 %v2773, %v3002
        %v3035 = vadd.f32 %v2774, %v3003
        %v3036 = vadd.f32 %v2775, %v3004
        %v3037 = vadd.f32 %v2776, %v3005
        %v3038 = vadd.f32 %v2777, %v3006
        %v3039 = vadd.f32 %v2778, %v3007
        %v3040 = vadd.f32 %v2779, %v3008
        %v3041 = vadd.f32 %v2780, %v3009
        %v3042 = vadd.f32 %v2781, %v3010
        %v3043 = vld [vmem:[#allocation2 + $0x22] sm:$0xff]
        %v3044 = vld [vmem:[#allocation2 + $0x2a] sm:$0xff]
        %v3045 = vld [vmem:[#allocation2 + $0x32] sm:$0xff]
        %v3046 = vld [vmem:[#allocation2 + $0x3a] sm:$0xff]
        %v3047 = vld [vmem:[#allocation2 + $0x42] sm:$0xff]
        %v3048 = vld [vmem:[#allocation2 + $0x4a] sm:$0xff]
        %v3049 = vld [vmem:[#allocation2 + $0x52] sm:$0xff]
        %v3050 = vld [vmem:[#allocation2 + $0x5a] sm:$0xff]
        %v3051 = vld [vmem:[#allocation2 + $0x62] sm:$0xff]
        %v3052 = vld [vmem:[#allocation2 + $0x6a] sm:$0xff]
        %v3053 = vld [vmem:[#allocation2 + $0x72] sm:$0xff]
        %v3054 = vld [vmem:[#allocation2 + $0x7a] sm:$0xff]
        %v3055 = vld [vmem:[#allocation2 + $0x82] sm:$0xff]
        %v3056 = vld [vmem:[#allocation2 + $0x8a] sm:$0xff]
        %v3057 = vld [vmem:[#allocation2 + $0x92] sm:$0xff]
        %v3058 = vld [vmem:[#allocation2 + $0x9a] sm:$0xff]
        %v3059 = vld [vmem:[#allocation2 + $0xa2] sm:$0xff]
        %v3060 = vld [vmem:[#allocation2 + $0xaa] sm:$0xff]
        %v3061 = vld [vmem:[#allocation2 + $0xb2] sm:$0xff]
        %v3062 = vld [vmem:[#allocation2 + $0xba] sm:$0xff]
        %v3063 = vld [vmem:[#allocation2 + $0xc2] sm:$0xff]
        %v3064 = vld [vmem:[#allocation2 + $0xca] sm:$0xff]
        %v3065 = vld [vmem:[#allocation2 + $0xd2] sm:$0xff]
        %v3066 = vld [vmem:[#allocation2 + $0xda] sm:$0xff]
        %v3067 = vld [vmem:[#allocation2 + $0xe2] sm:$0xff]
        %v3068 = vld [vmem:[#allocation2 + $0xea] sm:$0xff]
        %v3069 = vld [vmem:[#allocation2 + $0xf2] sm:$0xff]
        %v3070 = vld [vmem:[#allocation2 + $0xfa] sm:$0xff]
        %v3071 = vld [vmem:[#allocation2 + $0x102] sm:$0xff]
        %v3072 = vld [vmem:[#allocation2 + $0x10a] sm:$0xff]
        %v3073 = vld [vmem:[#allocation2 + $0x112] sm:$0xff]
        %v3074 = vld [vmem:[#allocation2 + $0x11a] sm:$0xff]
        %v3075 = vmul.f32 %v3043, %v763
        %v3076 = vmul.f32 %v3044, %v764
        %v3077 = vmul.f32 %v3045, %v765
        %v3078 = vmul.f32 %v3046, %v766
        %v3079 = vmul.f32 %v3047, %v767
        %v3080 = vmul.f32 %v3048, %v768
        %v3081 = vmul.f32 %v3049, %v769
        %v3082 = vmul.f32 %v3050, %v770
        %v3083 = vmul.f32 %v3051, %v771
        %v3084 = vmul.f32 %v3052, %v772
        %v3085 = vmul.f32 %v3053, %v773
        %v3086 = vmul.f32 %v3054, %v774
        %v3087 = vmul.f32 %v3055, %v775
        %v3088 = vmul.f32 %v3056, %v776
        %v3089 = vmul.f32 %v3057, %v777
        %v3090 = vmul.f32 %v3058, %v778
        %v3091 = vmul.f32 %v3059, %v779
        %v3092 = vmul.f32 %v3060, %v780
        %v3093 = vmul.f32 %v3061, %v781
        %v3094 = vmul.f32 %v3062, %v782
        %v3095 = vmul.f32 %v3063, %v783
        %v3096 = vmul.f32 %v3064, %v784
        %v3097 = vmul.f32 %v3065, %v785
        %v3098 = vmul.f32 %v3066, %v786
        %v3099 = vmul.f32 %v3067, %v787
        %v3100 = vmul.f32 %v3068, %v788
        %v3101 = vmul.f32 %v3069, %v789
        %v3102 = vmul.f32 %v3070, %v790
        %v3103 = vmul.f32 %v3071, %v791
        %v3104 = vmul.f32 %v3072, %v792
        %v3105 = vmul.f32 %v3073, %v793
        %v3106 = vmul.f32 %v3074, %v794
        %v3107 = vld [vmem:[%s1 + $0x8] sm:$0x1]
        %3109 = vset.pattern.permute.xlu0 0
        %3110 = vperm.xlu0 %3109, %v3075
        %v3111 = vpop.permute.xlu0 %3110
        %3114 = vset.pattern.permute.xlu0 0
        %3115 = vperm.xlu0 %3114, %v3076
        %v3116 = vpop.permute.xlu0 %3115
        %3119 = vset.pattern.permute.xlu0 0
        %3120 = vperm.xlu0 %3119, %v3077
        %v3121 = vpop.permute.xlu0 %3120
        %3124 = vset.pattern.permute.xlu0 0
        %3125 = vperm.xlu0 %3124, %v3078
        %v3126 = vpop.permute.xlu0 %3125
        %3129 = vset.pattern.permute.xlu0 0
        %3130 = vperm.xlu0 %3129, %v3079
        %v3131 = vpop.permute.xlu0 %3130
        %3134 = vset.pattern.permute.xlu0 0
        %3135 = vperm.xlu0 %3134, %v3080
        %v3136 = vpop.permute.xlu0 %3135
        %3139 = vset.pattern.permute.xlu0 0
        %3140 = vperm.xlu0 %3139, %v3081
        %v3141 = vpop.permute.xlu0 %3140
        %3144 = vset.pattern.permute.xlu0 0
        %3145 = vperm.xlu0 %3144, %v3082
        %v3146 = vpop.permute.xlu0 %3145
        %3149 = vset.pattern.permute.xlu0 0
        %3150 = vperm.xlu0 %3149, %v3083
        %v3151 = vpop.permute.xlu0 %3150
        %3154 = vset.pattern.permute.xlu0 0
        %3155 = vperm.xlu0 %3154, %v3084
        %v3156 = vpop.permute.xlu0 %3155
        %3159 = vset.pattern.permute.xlu0 0
        %3160 = vperm.xlu0 %3159, %v3085
        %v3161 = vpop.permute.xlu0 %3160
        %3164 = vset.pattern.permute.xlu0 0
        %3165 = vperm.xlu0 %3164, %v3086
        %v3166 = vpop.permute.xlu0 %3165
        %3169 = vset.pattern.permute.xlu0 0
        %3170 = vperm.xlu0 %3169, %v3087
        %v3171 = vpop.permute.xlu0 %3170
        %3174 = vset.pattern.permute.xlu0 0
        %3175 = vperm.xlu0 %3174, %v3088
        %v3176 = vpop.permute.xlu0 %3175
        %3179 = vset.pattern.permute.xlu0 0
        %3180 = vperm.xlu0 %3179, %v3089
        %v3181 = vpop.permute.xlu0 %3180
        %3184 = vset.pattern.permute.xlu0 0
        %3185 = vperm.xlu0 %3184, %v3090
        %v3186 = vpop.permute.xlu0 %3185
        %3189 = vset.pattern.permute.xlu0 0
        %3190 = vperm.xlu0 %3189, %v3091
        %v3191 = vpop.permute.xlu0 %3190
        %3194 = vset.pattern.permute.xlu0 0
        %3195 = vperm.xlu0 %3194, %v3092
        %v3196 = vpop.permute.xlu0 %3195
        %3199 = vset.pattern.permute.xlu0 0
        %3200 = vperm.xlu0 %3199, %v3093
        %v3201 = vpop.permute.xlu0 %3200
        %3204 = vset.pattern.permute.xlu0 0
        %3205 = vperm.xlu0 %3204, %v3094
        %v3206 = vpop.permute.xlu0 %3205
        %3209 = vset.pattern.permute.xlu0 0
        %3210 = vperm.xlu0 %3209, %v3095
        %v3211 = vpop.permute.xlu0 %3210
        %3214 = vset.pattern.permute.xlu0 0
        %3215 = vperm.xlu0 %3214, %v3096
        %v3216 = vpop.permute.xlu0 %3215
        %3219 = vset.pattern.permute.xlu0 0
        %3220 = vperm.xlu0 %3219, %v3097
        %v3221 = vpop.permute.xlu0 %3220
        %3224 = vset.pattern.permute.xlu0 0
        %3225 = vperm.xlu0 %3224, %v3098
        %v3226 = vpop.permute.xlu0 %3225
        %3229 = vset.pattern.permute.xlu0 0
        %3230 = vperm.xlu0 %3229, %v3099
        %v3231 = vpop.permute.xlu0 %3230
        %3234 = vset.pattern.permute.xlu0 0
        %3235 = vperm.xlu0 %3234, %v3100
        %v3236 = vpop.permute.xlu0 %3235
        %3239 = vset.pattern.permute.xlu0 0
        %3240 = vperm.xlu0 %3239, %v3101
        %v3241 = vpop.permute.xlu0 %3240
        %3244 = vset.pattern.permute.xlu0 0
        %3245 = vperm.xlu0 %3244, %v3102
        %v3246 = vpop.permute.xlu0 %3245
        %3249 = vset.pattern.permute.xlu0 0
        %3250 = vperm.xlu0 %3249, %v3103
        %v3251 = vpop.permute.xlu0 %3250
        %3254 = vset.pattern.permute.xlu0 0
        %3255 = vperm.xlu0 %3254, %v3104
        %v3256 = vpop.permute.xlu0 %3255
        %3259 = vset.pattern.permute.xlu0 0
        %3260 = vperm.xlu0 %3259, %v3105
        %v3261 = vpop.permute.xlu0 %3260
        %3264 = vset.pattern.permute.xlu0 0
        %3265 = vperm.xlu0 %3264, %v3106
        %v3266 = vpop.permute.xlu0 %3265
        %v3268 = vlaneseq
        %v3269 = vshrl.u32 %v3268, 7
        %v3270 = vsub.s32 0, %v3269
        %v3271 = vrot.slane %v3107, %v3270
        %v3272 = vmul.f32 %v3111, %v3271
        %v3273 = vmul.f32 %v3116, %v3271
        %v3274 = vmul.f32 %v3121, %v3271
        %v3275 = vmul.f32 %v3126, %v3271
        %v3276 = vmul.f32 %v3131, %v3271
        %v3277 = vmul.f32 %v3136, %v3271
        %v3278 = vmul.f32 %v3141, %v3271
        %v3279 = vmul.f32 %v3146, %v3271
        %v3280 = vmul.f32 %v3151, %v3271
        %v3281 = vmul.f32 %v3156, %v3271
        %v3282 = vmul.f32 %v3161, %v3271
        %v3283 = vmul.f32 %v3166, %v3271
        %v3284 = vmul.f32 %v3171, %v3271
        %v3285 = vmul.f32 %v3176, %v3271
        %v3286 = vmul.f32 %v3181, %v3271
        %v3287 = vmul.f32 %v3186, %v3271
        %v3288 = vmul.f32 %v3191, %v3271
        %v3289 = vmul.f32 %v3196, %v3271
        %v3290 = vmul.f32 %v3201, %v3271
        %v3291 = vmul.f32 %v3206, %v3271
        %v3292 = vmul.f32 %v3211, %v3271
        %v3293 = vmul.f32 %v3216, %v3271
        %v3294 = vmul.f32 %v3221, %v3271
        %v3295 = vmul.f32 %v3226, %v3271
        %v3296 = vmul.f32 %v3231, %v3271
        %v3297 = vmul.f32 %v3236, %v3271
        %v3298 = vmul.f32 %v3241, %v3271
        %v3299 = vmul.f32 %v3246, %v3271
        %v3300 = vmul.f32 %v3251, %v3271
        %v3301 = vmul.f32 %v3256, %v3271
        %v3302 = vmul.f32 %v3261, %v3271
        %v3303 = vmul.f32 %v3266, %v3271
        %v3304 = vadd.f32 %v3011, %v3272
        %v3305 = vadd.f32 %v3012, %v3273
        %v3306 = vadd.f32 %v3013, %v3274
        %v3307 = vadd.f32 %v3014, %v3275
        %v3308 = vadd.f32 %v3015, %v3276
        %v3309 = vadd.f32 %v3016, %v3277
        %v3310 = vadd.f32 %v3017, %v3278
        %v3311 = vadd.f32 %v3018, %v3279
        %v3312 = vadd.f32 %v3019, %v3280
        %v3313 = vadd.f32 %v3020, %v3281
        %v3314 = vadd.f32 %v3021, %v3282
        %v3315 = vadd.f32 %v3022, %v3283
        %v3316 = vadd.f32 %v3023, %v3284
        %v3317 = vadd.f32 %v3024, %v3285
        %v3318 = vadd.f32 %v3025, %v3286
        %v3319 = vadd.f32 %v3026, %v3287
        %v3320 = vadd.f32 %v3027, %v3288
        %v3321 = vadd.f32 %v3028, %v3289
        %v3322 = vadd.f32 %v3029, %v3290
        %v3323 = vadd.f32 %v3030, %v3291
        %v3324 = vadd.f32 %v3031, %v3292
        %v3325 = vadd.f32 %v3032, %v3293
        %v3326 = vadd.f32 %v3033, %v3294
        %v3327 = vadd.f32 %v3034, %v3295
        %v3328 = vadd.f32 %v3035, %v3296
        %v3329 = vadd.f32 %v3036, %v3297
        %v3330 = vadd.f32 %v3037, %v3298
        %v3331 = vadd.f32 %v3038, %v3299
        %v3332 = vadd.f32 %v3039, %v3300
        %v3333 = vadd.f32 %v3040, %v3301
        %v3334 = vadd.f32 %v3041, %v3302
        %v3335 = vadd.f32 %v3042, %v3303
        %v3336 = vld [vmem:[%s2] sm:$0x1]
        %v3338 = vlaneseq
        %v3339 = vshrl.u32 %v3338, 7
        %v3340 = vsub.s32 0, %v3339
        %v3341 = vrot.slane %v3336, %v3340
        %v3343 = vadd.f32 %v3304, %v3341
        %v3344 = vadd.f32 %v3305, %v3341
        %v3345 = vadd.f32 %v3306, %v3341
        %v3346 = vadd.f32 %v3307, %v3341
        %v3347 = vadd.f32 %v3308, %v3341
        %v3348 = vadd.f32 %v3309, %v3341
        %v3349 = vadd.f32 %v3310, %v3341
        %v3350 = vadd.f32 %v3311, %v3341
        %v3351 = vadd.f32 %v3312, %v3341
        %v3352 = vadd.f32 %v3313, %v3341
        %v3353 = vadd.f32 %v3314, %v3341
        %v3354 = vadd.f32 %v3315, %v3341
        %v3355 = vadd.f32 %v3316, %v3341
        %v3356 = vadd.f32 %v3317, %v3341
        %v3357 = vadd.f32 %v3318, %v3341
        %v3358 = vadd.f32 %v3319, %v3341
        %v3359 = vadd.f32 %v3320, %v3341
        %v3360 = vadd.f32 %v3321, %v3341
        %v3361 = vadd.f32 %v3322, %v3341
        %v3362 = vadd.f32 %v3323, %v3341
        %v3363 = vadd.f32 %v3324, %v3341
        %v3364 = vadd.f32 %v3325, %v3341
        %v3365 = vadd.f32 %v3326, %v3341
        %v3366 = vadd.f32 %v3327, %v3341
        %v3367 = vadd.f32 %v3328, %v3341
        %v3368 = vadd.f32 %v3329, %v3341
        %v3369 = vadd.f32 %v3330, %v3341
        %v3370 = vadd.f32 %v3331, %v3341
        %v3371 = vadd.f32 %v3332, %v3341
        %v3372 = vadd.f32 %v3333, %v3341
        %v3373 = vadd.f32 %v3334, %v3341
        %v3374 = vadd.f32 %v3335, %v3341
        %v3375 = vmax.f32 %v3343, 0.0
        %v3376 = vmax.f32 %v3344, 0.0
        %v3377 = vmax.f32 %v3345, 0.0
        %v3378 = vmax.f32 %v3346, 0.0
        %v3379 = vmax.f32 %v3347, 0.0
        %v3380 = vmax.f32 %v3348, 0.0
        %v3381 = vmax.f32 %v3349, 0.0
        %v3382 = vmax.f32 %v3350, 0.0
        %v3383 = vmax.f32 %v3351, 0.0
        %v3384 = vmax.f32 %v3352, 0.0
        %v3385 = vmax.f32 %v3353, 0.0
        %v3386 = vmax.f32 %v3354, 0.0
        %v3387 = vmax.f32 %v3355, 0.0
        %v3388 = vmax.f32 %v3356, 0.0
        %v3389 = vmax.f32 %v3357, 0.0
        %v3390 = vmax.f32 %v3358, 0.0
        %v3391 = vmax.f32 %v3359, 0.0
        %v3392 = vmax.f32 %v3360, 0.0
        %v3393 = vmax.f32 %v3361, 0.0
        %v3394 = vmax.f32 %v3362, 0.0
        %v3395 = vmax.f32 %v3363, 0.0
        %v3396 = vmax.f32 %v3364, 0.0
        %v3397 = vmax.f32 %v3365, 0.0
        %v3398 = vmax.f32 %v3366, 0.0
        %v3399 = vmax.f32 %v3367, 0.0
        %v3400 = vmax.f32 %v3368, 0.0
        %v3401 = vmax.f32 %v3369, 0.0
        %v3402 = vmax.f32 %v3370, 0.0
        %v3403 = vmax.f32 %v3371, 0.0
        %v3404 = vmax.f32 %v3372, 0.0
        %v3405 = vmax.f32 %v3373, 0.0
        %v3406 = vmax.f32 %v3374, 0.0
        %v3407 = vld [vmem:[%s13] sm:$0xff]
        %v3408 = vld [vmem:[%s13 + $0x8] sm:$0xff]
        %v3409 = vld [vmem:[%s13 + $0x10] sm:$0xff]
        %v3410 = vld [vmem:[%s13 + $0x18] sm:$0xff]
        %v3411 = vld [vmem:[%s13 + $0x20] sm:$0xff]
        %v3412 = vld [vmem:[%s13 + $0x28] sm:$0xff]
        %v3413 = vld [vmem:[%s13 + $0x30] sm:$0xff]
        %v3414 = vld [vmem:[%s13 + $0x38] sm:$0xff]
        %v3415 = vld [vmem:[%s13 + $0x40] sm:$0xff]
        %v3416 = vld [vmem:[%s13 + $0x48] sm:$0xff]
        %v3417 = vld [vmem:[%s13 + $0x50] sm:$0xff]
        %v3418 = vld [vmem:[%s13 + $0x58] sm:$0xff]
        %v3419 = vld [vmem:[%s13 + $0x60] sm:$0xff]
        %v3420 = vld [vmem:[%s13 + $0x68] sm:$0xff]
        %v3421 = vld [vmem:[%s13 + $0x70] sm:$0xff]
        %v3422 = vld [vmem:[%s13 + $0x78] sm:$0xff]
        %3423 = vmatprep.subr.mxu0 0.0
        %3424 = vmatpush1.msra.mxu0 %v3375
        %3425 = vmatprep.subr.mxu0 0.0
        %3426 = vmatpush1.msra.mxu0 %v3376
        %3427 = vmatprep.subr.mxu0 0.0
        %3428 = vmatpush1.msra.mxu0 %v3377
        %3429 = vmatprep.subr.mxu0 0.0
        %3430 = vmatpush1.msra.mxu0 %v3378
        %3431 = vmatprep.subr.mxu0 0.0
        %3432 = vmatpush1.msra.mxu0 %v3379
        %3433 = vmatprep.subr.mxu0 0.0
        %3434 = vmatpush1.msra.mxu0 %v3380
        %3435 = vmatprep.subr.mxu0 0.0
        %3436 = vmatpush1.msra.mxu0 %v3381
        %3437 = vmatprep.subr.mxu0 0.0
        %3438 = vmatpush1.msra.mxu0 %v3382
        %3439 = vmatprep.subr.mxu0 0.0
        %3440 = vmatpush1.msra.mxu0 %v3383
        %3441 = vmatprep.subr.mxu0 0.0
        %3442 = vmatpush1.msra.mxu0 %v3384
        %3443 = vmatprep.subr.mxu0 0.0
        %3444 = vmatpush1.msra.mxu0 %v3385
        %3445 = vmatprep.subr.mxu0 0.0
        %3446 = vmatpush1.msra.mxu0 %v3386
        %3447 = vmatprep.subr.mxu0 0.0
        %3448 = vmatpush1.msra.mxu0 %v3387
        %3449 = vmatprep.subr.mxu0 0.0
        %3450 = vmatpush1.msra.mxu0 %v3388
        %3451 = vmatprep.subr.mxu0 0.0
        %3452 = vmatpush1.msra.mxu0 %v3389
        %3453 = vmatprep.subr.mxu0 0.0
        %3454 = vmatpush1.msra.mxu0 %v3390
        %3455 = vmatprep.subr.mxu0 0.0
        %3456 = vmatpush1.msra.mxu0 %v3391
        %3457 = vmatprep.subr.mxu0 0.0
        %3458 = vmatpush1.msra.mxu0 %v3392
        %3459 = vmatprep.subr.mxu0 0.0
        %3460 = vmatpush1.msra.mxu0 %v3393
        %3461 = vmatprep.subr.mxu0 0.0
        %3462 = vmatpush1.msra.mxu0 %v3394
        %3463 = vmatprep.subr.mxu0 0.0
        %3464 = vmatpush1.msra.mxu0 %v3395
        %3465 = vmatprep.subr.mxu0 0.0
        %3466 = vmatpush1.msra.mxu0 %v3396
        %3467 = vmatprep.subr.mxu0 0.0
        %3468 = vmatpush1.msra.mxu0 %v3397
        %3469 = vmatprep.subr.mxu0 0.0
        %3470 = vmatpush1.msra.mxu0 %v3398
        %3471 = vmatprep.subr.mxu0 0.0
        %3472 = vmatpush1.msra.mxu0 %v3399
        %3473 = vmatprep.subr.mxu0 0.0
        %3474 = vmatpush1.msra.mxu0 %v3400
        %3475 = vmatprep.subr.mxu0 0.0
        %3476 = vmatpush1.msra.mxu0 %v3401
        %3477 = vmatprep.subr.mxu0 0.0
        %3478 = vmatpush1.msra.mxu0 %v3402
        %3479 = vmatprep.subr.mxu0 0.0
        %3480 = vmatpush1.msra.mxu0 %v3403
        %3481 = vmatprep.subr.mxu0 0.0
        %3482 = vmatpush1.msra.mxu0 %v3404
        %3483 = vmatprep.subr.mxu0 0.0
        %3484 = vmatpush1.msra.mxu0 %v3405
        %3485 = vmatprep.subr.mxu0 0.0
        %3486 = vmatpush1.msra.mxu0 %v3406
        %3487 = vmatprep.mubr.f32.mxu0 %v3408
        %3488 = vmatmul.mubr.f32.gmra.mrb[0].mxu0 %v3407
        %v3489 = vpop.f32.mrb[0].mxu0
        %v3490 = vadd.f32 0.0, %v3489
        %v3491 = vpop.f32.mrb[0].mxu0
        %3492 = vmatprep.mubr.f32.mxu0 %v3410
        %3493 = vmatmul.mubr.f32.gmra.mrb[0].mxu0 %v3409
        %v3494 = vpop.f32.mrb[0].mxu0
        %v3495 = vadd.f32 0.0, %v3494
        %v3496 = vpop.f32.mrb[0].mxu0
        %3497 = vmatprep.mubr.f32.mxu0 %v3412
        %3498 = vmatmul.mubr.f32.gmra.mrb[0].mxu0 %v3411
        %v3499 = vpop.f32.mrb[0].mxu0
        %v3500 = vadd.f32 0.0, %v3499
        %v3501 = vpop.f32.mrb[0].mxu0
        %3502 = vmatprep.mubr.f32.mxu0 %v3414
        %3503 = vmatmul.mubr.f32.gmra.mrb[0].mxu0 %v3413
        %v3504 = vpop.f32.mrb[0].mxu0
        %v3505 = vadd.f32 0.0, %v3504
        %v3506 = vpop.f32.mrb[0].mxu0
        %3507 = vmatprep.mubr.f32.mxu0 %v3416
        %3508 = vmatmul.mubr.f32.gmra.mrb[0].mxu0 %v3415
        %v3509 = vpop.f32.mrb[0].mxu0
        %v3510 = vadd.f32 0.0, %v3509
        %v3511 = vpop.f32.mrb[0].mxu0
        %3512 = vmatprep.mubr.f32.mxu0 %v3418
        %3513 = vmatmul.mubr.f32.gmra.mrb[0].mxu0 %v3417
        %v3514 = vpop.f32.mrb[0].mxu0
        %v3515 = vadd.f32 0.0, %v3514
        %v3516 = vpop.f32.mrb[0].mxu0
        %3517 = vmatprep.mubr.f32.mxu0 %v3420
        %3518 = vmatmul.mubr.f32.gmra.mrb[0].mxu0 %v3419
        %v3519 = vpop.f32.mrb[0].mxu0
        %v3520 = vadd.f32 0.0, %v3519
        %v3521 = vpop.f32.mrb[0].mxu0
        %3522 = vmatprep.mubr.f32.mxu0 %v3422
        %3523 = vmatmul.mubr.f32.gmra.mrb[0].mxu0 %v3421
        %v3524 = vpop.f32.mrb[0].mxu0
        %v3525 = vadd.f32 0.0, %v3524
        %v3526 = vpop.f32.mrb[0].mxu0
        %3527 = vdwg.mxu0
        %s3528 = scalar_lea.vmem %s13, 128
        %v3529 = vld [vmem:[%s3528] sm:$0xff]
        %v3530 = vld [vmem:[%s3528 + $0x8] sm:$0xff]
        %v3531 = vld [vmem:[%s3528 + $0x10] sm:$0xff]
        %v3532 = vld [vmem:[%s3528 + $0x18] sm:$0xff]
        %v3533 = vld [vmem:[%s3528 + $0x20] sm:$0xff]
        %v3534 = vld [vmem:[%s3528 + $0x28] sm:$0xff]
        %v3535 = vld [vmem:[%s3528 + $0x30] sm:$0xff]
        %v3536 = vld [vmem:[%s3528 + $0x38] sm:$0xff]
        %v3537 = vld [vmem:[%s3528 + $0x40] sm:$0xff]
        %v3538 = vld [vmem:[%s3528 + $0x48] sm:$0xff]
        %v3539 = vld [vmem:[%s3528 + $0x50] sm:$0xff]
        %v3540 = vld [vmem:[%s3528 + $0x58] sm:$0xff]
        %v3541 = vld [vmem:[%s3528 + $0x60] sm:$0xff]
        %v3542 = vld [vmem:[%s3528 + $0x68] sm:$0xff]
        %v3543 = vld [vmem:[%s3528 + $0x70] sm:$0xff]
        %v3544 = vld [vmem:[%s3528 + $0x78] sm:$0xff]
        %3545 = vmatprep.subr.mxu0 0.0
        %3546 = vmatpush1.msra.mxu0 %v3375
        %3547 = vmatprep.subr.mxu0 0.0
        %3548 = vmatpush1.msra.mxu0 %v3376
        %3549 = vmatprep.subr.mxu0 0.0
        %3550 = vmatpush1.msra.mxu0 %v3377
        %3551 = vmatprep.subr.mxu0 0.0
        %3552 = vmatpush1.msra.mxu0 %v3378
        %3553 = vmatprep.subr.mxu0 0.0
        %3554 = vmatpush1.msra.mxu0 %v3379
        %3555 = vmatprep.subr.mxu0 0.0
        %3556 = vmatpush1.msra.mxu0 %v3380
        %3557 = vmatprep.subr.mxu0 0.0
        %3558 = vmatpush1.msra.mxu0 %v3381
        %3559 = vmatprep.subr.mxu0 0.0
        %3560 = vmatpush1.msra.mxu0 %v3382
        %3561 = vmatprep.subr.mxu0 0.0
        %3562 = vmatpush1.msra.mxu0 %v3383
        %3563 = vmatprep.subr.mxu0 0.0
        %3564 = vmatpush1.msra.mxu0 %v3384
        %3565 = vmatprep.subr.mxu0 0.0
        %3566 = vmatpush1.msra.mxu0 %v3385
        %3567 = vmatprep.subr.mxu0 0.0
        %3568 = vmatpush1.msra.mxu0 %v3386
        %3569 = vmatprep.subr.mxu0 0.0
        %3570 = vmatpush1.msra.mxu0 %v3387
        %3571 = vmatprep.subr.mxu0 0.0
        %3572 = vmatpush1.msra.mxu0 %v3388
        %3573 = vmatprep.subr.mxu0 0.0
        %3574 = vmatpush1.msra.mxu0 %v3389
        %3575 = vmatprep.subr.mxu0 0.0
        %3576 = vmatpush1.msra.mxu0 %v3390
        %3577 = vmatprep.subr.mxu0 0.0
        %3578 = vmatpush1.msra.mxu0 %v3391
        %3579 = vmatprep.subr.mxu0 0.0
        %3580 = vmatpush1.msra.mxu0 %v3392
        %3581 = vmatprep.subr.mxu0 0.0
        %3582 = vmatpush1.msra.mxu0 %v3393
        %3583 = vmatprep.subr.mxu0 0.0
        %3584 = vmatpush1.msra.mxu0 %v3394
        %3585 = vmatprep.subr.mxu0 0.0
        %3586 = vmatpush1.msra.mxu0 %v3395
        %3587 = vmatprep.subr.mxu0 0.0
        %3588 = vmatpush1.msra.mxu0 %v3396
        %3589 = vmatprep.subr.mxu0 0.0
        %3590 = vmatpush1.msra.mxu0 %v3397
        %3591 = vmatprep.subr.mxu0 0.0
        %3592 = vmatpush1.msra.mxu0 %v3398
        %3593 = vmatprep.subr.mxu0 0.0
        %3594 = vmatpush1.msra.mxu0 %v3399
        %3595 = vmatprep.subr.mxu0 0.0
        %3596 = vmatpush1.msra.mxu0 %v3400
        %3597 = vmatprep.subr.mxu0 0.0
        %3598 = vmatpush1.msra.mxu0 %v3401
        %3599 = vmatprep.subr.mxu0 0.0
        %3600 = vmatpush1.msra.mxu0 %v3402
        %3601 = vmatprep.subr.mxu0 0.0
        %3602 = vmatpush1.msra.mxu0 %v3403
        %3603 = vmatprep.subr.mxu0 0.0
        %3604 = vmatpush1.msra.mxu0 %v3404
        %3605 = vmatprep.subr.mxu0 0.0
        %3606 = vmatpush1.msra.mxu0 %v3405
        %3607 = vmatprep.subr.mxu0 0.0
        %3608 = vmatpush1.msra.mxu0 %v3406
        %3609 = vmatprep.mubr.f32.mxu0 %v3530
        %3610 = vmatmul.mubr.f32.gmra.mrb[0].mxu0 %v3529
        %v3611 = vpop.f32.mrb[0].mxu0
        %v3612 = vadd.f32 0.0, %v3611
        %v3613 = vpop.f32.mrb[0].mxu0
        %3614 = vmatprep.mubr.f32.mxu0 %v3532
        %3615 = vmatmul.mubr.f32.gmra.mrb[0].mxu0 %v3531
        %v3616 = vpop.f32.mrb[0].mxu0
        %v3617 = vadd.f32 0.0, %v3616
        %v3618 = vpop.f32.mrb[0].mxu0
        %3619 = vmatprep.mubr.f32.mxu0 %v3534
        %3620 = vmatmul.mubr.f32.gmra.mrb[0].mxu0 %v3533
        %v3621 = vpop.f32.mrb[0].mxu0
        %v3622 = vadd.f32 0.0, %v3621
        %v3623 = vpop.f32.mrb[0].mxu0
        %3624 = vmatprep.mubr.f32.mxu0 %v3536
        %3625 = vmatmul.mubr.f32.gmra.mrb[0].mxu0 %v3535
        %v3626 = vpop.f32.mrb[0].mxu0
        %v3627 = vadd.f32 0.0, %v3626
        %v3628 = vpop.f32.mrb[0].mxu0
        %3629 = vmatprep.mubr.f32.mxu0 %v3538
        %3630 = vmatmul.mubr.f32.gmra.mrb[0].mxu0 %v3537
        %v3631 = vpop.f32.mrb[0].mxu0
        %v3632 = vadd.f32 0.0, %v3631
        %v3633 = vpop.f32.mrb[0].mxu0
        %3634 = vmatprep.mubr.f32.mxu0 %v3540
        %3635 = vmatmul.mubr.f32.gmra.mrb[0].mxu0 %v3539
        %v3636 = vpop.f32.mrb[0].mxu0
        %v3637 = vadd.f32 0.0, %v3636
        %v3638 = vpop.f32.mrb[0].mxu0
        %3639 = vmatprep.mubr.f32.mxu0 %v3542
        %3640 = vmatmul.mubr.f32.gmra.mrb[0].mxu0 %v3541
        %v3641 = vpop.f32.mrb[0].mxu0
        %v3642 = vadd.f32 0.0, %v3641
        %v3643 = vpop.f32.mrb[0].mxu0
        %3644 = vmatprep.mubr.f32.mxu0 %v3544
        %3645 = vmatmul.mubr.f32.gmra.mrb[0].mxu0 %v3543
        %v3646 = vpop.f32.mrb[0].mxu0
        %v3647 = vadd.f32 0.0, %v3646
        %v3648 = vpop.f32.mrb[0].mxu0
        %3649 = vdwg.mxu0
        %v3650 = vmax.f32 %v3490, %v3612
        %v3651 = vmax.f32 %v3495, %v3617
        %v3652 = vmax.f32 %v3500, %v3622
        %v3653 = vmax.f32 %v3505, %v3627
        %v3654 = vmax.f32 %v3510, %v3632
        %v3655 = vmax.f32 %v3515, %v3637
        %v3656 = vmax.f32 %v3520, %v3642
        %v3657 = vmax.f32 %v3525, %v3647
        %s3658 = scalar_lea.vmem %s13, 256
        %v3659 = vld [vmem:[%s3658] sm:$0xff]
        %v3660 = vld [vmem:[%s3658 + $0x8] sm:$0xff]
        %v3661 = vld [vmem:[%s3658 + $0x10] sm:$0xff]
        %v3662 = vld [vmem:[%s3658 + $0x18] sm:$0xff]
        %v3663 = vld [vmem:[%s3658 + $0x20] sm:$0xff]
        %v3664 = vld [vmem:[%s3658 + $0x28] sm:$0xff]
        %v3665 = vld [vmem:[%s3658 + $0x30] sm:$0xff]
        %v3666 = vld [vmem:[%s3658 + $0x38] sm:$0xff]
        %v3667 = vld [vmem:[%s3658 + $0x40] sm:$0xff]
        %v3668 = vld [vmem:[%s3658 + $0x48] sm:$0xff]
        %v3669 = vld [vmem:[%s3658 + $0x50] sm:$0xff]
        %v3670 = vld [vmem:[%s3658 + $0x58] sm:$0xff]
        %v3671 = vld [vmem:[%s3658 + $0x60] sm:$0xff]
        %v3672 = vld [vmem:[%s3658 + $0x68] sm:$0xff]
        %v3673 = vld [vmem:[%s3658 + $0x70] sm:$0xff]
        %v3674 = vld [vmem:[%s3658 + $0x78] sm:$0xff]
        %3675 = vmatprep.subr.mxu0 0.0
        %3676 = vmatpush1.msra.mxu0 %v3375
        %3677 = vmatprep.subr.mxu0 0.0
        %3678 = vmatpush1.msra.mxu0 %v3376
        %3679 = vmatprep.subr.mxu0 0.0
        %3680 = vmatpush1.msra.mxu0 %v3377
        %3681 = vmatprep.subr.mxu0 0.0
        %3682 = vmatpush1.msra.mxu0 %v3378
        %3683 = vmatprep.subr.mxu0 0.0
        %3684 = vmatpush1.msra.mxu0 %v3379
        %3685 = vmatprep.subr.mxu0 0.0
        %3686 = vmatpush1.msra.mxu0 %v3380
        %3687 = vmatprep.subr.mxu0 0.0
        %3688 = vmatpush1.msra.mxu0 %v3381
        %3689 = vmatprep.subr.mxu0 0.0
        %3690 = vmatpush1.msra.mxu0 %v3382
        %3691 = vmatprep.subr.mxu0 0.0
        %3692 = vmatpush1.msra.mxu0 %v3383
        %3693 = vmatprep.subr.mxu0 0.0
        %3694 = vmatpush1.msra.mxu0 %v3384
        %3695 = vmatprep.subr.mxu0 0.0
        %3696 = vmatpush1.msra.mxu0 %v3385
        %3697 = vmatprep.subr.mxu0 0.0
        %3698 = vmatpush1.msra.mxu0 %v3386
        %3699 = vmatprep.subr.mxu0 0.0
        %3700 = vmatpush1.msra.mxu0 %v3387
        %3701 = vmatprep.subr.mxu0 0.0
        %3702 = vmatpush1.msra.mxu0 %v3388
        %3703 = vmatprep.subr.mxu0 0.0
        %3704 = vmatpush1.msra.mxu0 %v3389
        %3705 = vmatprep.subr.mxu0 0.0
        %3706 = vmatpush1.msra.mxu0 %v3390
        %3707 = vmatprep.subr.mxu0 0.0
        %3708 = vmatpush1.msra.mxu0 %v3391
        %3709 = vmatprep.subr.mxu0 0.0
        %3710 = vmatpush1.msra.mxu0 %v3392
        %3711 = vmatprep.subr.mxu0 0.0
        %3712 = vmatpush1.msra.mxu0 %v3393
        %3713 = vmatprep.subr.mxu0 0.0
        %3714 = vmatpush1.msra.mxu0 %v3394
        %3715 = vmatprep.subr.mxu0 0.0
        %3716 = vmatpush1.msra.mxu0 %v3395
        %3717 = vmatprep.subr.mxu0 0.0
        %3718 = vmatpush1.msra.mxu0 %v3396
        %3719 = vmatprep.subr.mxu0 0.0
        %3720 = vmatpush1.msra.mxu0 %v3397
        %3721 = vmatprep.subr.mxu0 0.0
        %3722 = vmatpush1.msra.mxu0 %v3398
        %3723 = vmatprep.subr.mxu0 0.0
        %3724 = vmatpush1.msra.mxu0 %v3399
        %3725 = vmatprep.subr.mxu0 0.0
        %3726 = vmatpush1.msra.mxu0 %v3400
        %3727 = vmatprep.subr.mxu0 0.0
        %3728 = vmatpush1.msra.mxu0 %v3401
        %3729 = vmatprep.subr.mxu0 0.0
        %3730 = vmatpush1.msra.mxu0 %v3402
        %3731 = vmatprep.subr.mxu0 0.0
        %3732 = vmatpush1.msra.mxu0 %v3403
        %3733 = vmatprep.subr.mxu0 0.0
        %3734 = vmatpush1.msra.mxu0 %v3404
        %3735 = vmatprep.subr.mxu0 0.0
        %3736 = vmatpush1.msra.mxu0 %v3405
        %3737 = vmatprep.subr.mxu0 0.0
        %3738 = vmatpush1.msra.mxu0 %v3406
        %3739 = vmatprep.mubr.f32.mxu0 %v3660
        %3740 = vmatmul.mubr.f32.gmra.mrb[0].mxu0 %v3659
        %v3741 = vpop.f32.mrb[0].mxu0
        %v3742 = vadd.f32 0.0, %v3741
        %v3743 = vpop.f32.mrb[0].mxu0
        %3744 = vmatprep.mubr.f32.mxu0 %v3662
        %3745 = vmatmul.mubr.f32.gmra.mrb[0].mxu0 %v3661
        %v3746 = vpop.f32.mrb[0].mxu0
        %v3747 = vadd.f32 0.0, %v3746
        %v3748 = vpop.f32.mrb[0].mxu0
        %3749 = vmatprep.mubr.f32.mxu0 %v3664
        %3750 = vmatmul.mubr.f32.gmra.mrb[0].mxu0 %v3663
        %v3751 = vpop.f32.mrb[0].mxu0
        %v3752 = vadd.f32 0.0, %v3751
        %v3753 = vpop.f32.mrb[0].mxu0
        %3754 = vmatprep.mubr.f32.mxu0 %v3666
        %3755 = vmatmul.mubr.f32.gmra.mrb[0].mxu0 %v3665
        %v3756 = vpop.f32.mrb[0].mxu0
        %v3757 = vadd.f32 0.0, %v3756
        %v3758 = vpop.f32.mrb[0].mxu0
        %3759 = vmatprep.mubr.f32.mxu0 %v3668
        %3760 = vmatmul.mubr.f32.gmra.mrb[0].mxu0 %v3667
        %v3761 = vpop.f32.mrb[0].mxu0
        %v3762 = vadd.f32 0.0, %v3761
        %v3763 = vpop.f32.mrb[0].mxu0
        %3764 = vmatprep.mubr.f32.mxu0 %v3670
        %3765 = vmatmul.mubr.f32.gmra.mrb[0].mxu0 %v3669
        %v3766 = vpop.f32.mrb[0].mxu0
        %v3767 = vadd.f32 0.0, %v3766
        %v3768 = vpop.f32.mrb[0].mxu0
        %3769 = vmatprep.mubr.f32.mxu0 %v3672
        %3770 = vmatmul.mubr.f32.gmra.mrb[0].mxu0 %v3671
        %v3771 = vpop.f32.mrb[0].mxu0
        %v3772 = vadd.f32 0.0, %v3771
        %v3773 = vpop.f32.mrb[0].mxu0
        %3774 = vmatprep.mubr.f32.mxu0 %v3674
        %3775 = vmatmul.mubr.f32.gmra.mrb[0].mxu0 %v3673
        %v3776 = vpop.f32.mrb[0].mxu0
        %v3777 = vadd.f32 0.0, %v3776
        %v3778 = vpop.f32.mrb[0].mxu0
        %3779 = vdwg.mxu0
        %v3780 = vmax.f32 %v3650, %v3742
        %v3781 = vmax.f32 %v3651, %v3747
        %v3782 = vmax.f32 %v3652, %v3752
        %v3783 = vmax.f32 %v3653, %v3757
        %v3784 = vmax.f32 %v3654, %v3762
        %v3785 = vmax.f32 %v3655, %v3767
        %v3786 = vmax.f32 %v3656, %v3772
        %v3787 = vmax.f32 %v3657, %v3777
        %s3788 = scalar_lea.vmem %s13, 384
        %v3789 = vld [vmem:[%s3788] sm:$0xff]
        %v3790 = vld [vmem:[%s3788 + $0x8] sm:$0xff]
        %v3791 = vld [vmem:[%s3788 + $0x10] sm:$0xff]
        %v3792 = vld [vmem:[%s3788 + $0x18] sm:$0xff]
        %v3793 = vld [vmem:[%s3788 + $0x20] sm:$0xff]
        %v3794 = vld [vmem:[%s3788 + $0x28] sm:$0xff]
        %v3795 = vld [vmem:[%s3788 + $0x30] sm:$0xff]
        %v3796 = vld [vmem:[%s3788 + $0x38] sm:$0xff]
        %v3797 = vld [vmem:[%s3788 + $0x40] sm:$0xff]
        %v3798 = vld [vmem:[%s3788 + $0x48] sm:$0xff]
        %v3799 = vld [vmem:[%s3788 + $0x50] sm:$0xff]
        %v3800 = vld [vmem:[%s3788 + $0x58] sm:$0xff]
        %v3801 = vld [vmem:[%s3788 + $0x60] sm:$0xff]
        %v3802 = vld [vmem:[%s3788 + $0x68] sm:$0xff]
        %v3803 = vld [vmem:[%s3788 + $0x70] sm:$0xff]
        %v3804 = vld [vmem:[%s3788 + $0x78] sm:$0xff]
        %3805 = vmatprep.subr.mxu0 0.0
        %3806 = vmatpush1.msra.mxu0 %v3375
        %3807 = vmatprep.subr.mxu0 0.0
        %3808 = vmatpush1.msra.mxu0 %v3376
        %3809 = vmatprep.subr.mxu0 0.0
        %3810 = vmatpush1.msra.mxu0 %v3377
        %3811 = vmatprep.subr.mxu0 0.0
        %3812 = vmatpush1.msra.mxu0 %v3378
        %3813 = vmatprep.subr.mxu0 0.0
        %3814 = vmatpush1.msra.mxu0 %v3379
        %3815 = vmatprep.subr.mxu0 0.0
        %3816 = vmatpush1.msra.mxu0 %v3380
        %3817 = vmatprep.subr.mxu0 0.0
        %3818 = vmatpush1.msra.mxu0 %v3381
        %3819 = vmatprep.subr.mxu0 0.0
        %3820 = vmatpush1.msra.mxu0 %v3382
        %3821 = vmatprep.subr.mxu0 0.0
        %3822 = vmatpush1.msra.mxu0 %v3383
        %3823 = vmatprep.subr.mxu0 0.0
        %3824 = vmatpush1.msra.mxu0 %v3384
        %3825 = vmatprep.subr.mxu0 0.0
        %3826 = vmatpush1.msra.mxu0 %v3385
        %3827 = vmatprep.subr.mxu0 0.0
        %3828 = vmatpush1.msra.mxu0 %v3386
        %3829 = vmatprep.subr.mxu0 0.0
        %3830 = vmatpush1.msra.mxu0 %v3387
        %3831 = vmatprep.subr.mxu0 0.0
        %3832 = vmatpush1.msra.mxu0 %v3388
        %3833 = vmatprep.subr.mxu0 0.0
        %3834 = vmatpush1.msra.mxu0 %v3389
        %3835 = vmatprep.subr.mxu0 0.0
        %3836 = vmatpush1.msra.mxu0 %v3390
        %3837 = vmatprep.subr.mxu0 0.0
        %3838 = vmatpush1.msra.mxu0 %v3391
        %3839 = vmatprep.subr.mxu0 0.0
        %3840 = vmatpush1.msra.mxu0 %v3392
        %3841 = vmatprep.subr.mxu0 0.0
        %3842 = vmatpush1.msra.mxu0 %v3393
        %3843 = vmatprep.subr.mxu0 0.0
        %3844 = vmatpush1.msra.mxu0 %v3394
        %3845 = vmatprep.subr.mxu0 0.0
        %3846 = vmatpush1.msra.mxu0 %v3395
        %3847 = vmatprep.subr.mxu0 0.0
        %3848 = vmatpush1.msra.mxu0 %v3396
        %3849 = vmatprep.subr.mxu0 0.0
        %3850 = vmatpush1.msra.mxu0 %v3397
        %3851 = vmatprep.subr.mxu0 0.0
        %3852 = vmatpush1.msra.mxu0 %v3398
        %3853 = vmatprep.subr.mxu0 0.0
        %3854 = vmatpush1.msra.mxu0 %v3399
        %3855 = vmatprep.subr.mxu0 0.0
        %3856 = vmatpush1.msra.mxu0 %v3400
        %3857 = vmatprep.subr.mxu0 0.0
        %3858 = vmatpush1.msra.mxu0 %v3401
        %3859 = vmatprep.subr.mxu0 0.0
        %3860 = vmatpush1.msra.mxu0 %v3402
        %3861 = vmatprep.subr.mxu0 0.0
        %3862 = vmatpush1.msra.mxu0 %v3403
        %3863 = vmatprep.subr.mxu0 0.0
        %3864 = vmatpush1.msra.mxu0 %v3404
        %3865 = vmatprep.subr.mxu0 0.0
        %3866 = vmatpush1.msra.mxu0 %v3405
        %3867 = vmatprep.subr.mxu0 0.0
        %3868 = vmatpush1.msra.mxu0 %v3406
        %3869 = vmatprep.mubr.f32.mxu0 %v3790
        %3870 = vmatmul.mubr.f32.gmra.mrb[0].mxu0 %v3789
        %v3871 = vpop.f32.mrb[0].mxu0
        %v3872 = vadd.f32 0.0, %v3871
        %v3873 = vpop.f32.mrb[0].mxu0
        %3874 = vmatprep.mubr.f32.mxu0 %v3792
        %3875 = vmatmul.mubr.f32.gmra.mrb[0].mxu0 %v3791
        %v3876 = vpop.f32.mrb[0].mxu0
        %v3877 = vadd.f32 0.0, %v3876
        %v3878 = vpop.f32.mrb[0].mxu0
        %3879 = vmatprep.mubr.f32.mxu0 %v3794
        %3880 = vmatmul.mubr.f32.gmra.mrb[0].mxu0 %v3793
        %v3881 = vpop.f32.mrb[0].mxu0
        %v3882 = vadd.f32 0.0, %v3881
        %v3883 = vpop.f32.mrb[0].mxu0
        %3884 = vmatprep.mubr.f32.mxu0 %v3796
        %3885 = vmatmul.mubr.f32.gmra.mrb[0].mxu0 %v3795
        %v3886 = vpop.f32.mrb[0].mxu0
        %v3887 = vadd.f32 0.0, %v3886
        %v3888 = vpop.f32.mrb[0].mxu0
        %3889 = vmatprep.mubr.f32.mxu0 %v3798
        %3890 = vmatmul.mubr.f32.gmra.mrb[0].mxu0 %v3797
        %v3891 = vpop.f32.mrb[0].mxu0
        %v3892 = vadd.f32 0.0, %v3891
        %v3893 = vpop.f32.mrb[0].mxu0
        %3894 = vmatprep.mubr.f32.mxu0 %v3800
        %3895 = vmatmul.mubr.f32.gmra.mrb[0].mxu0 %v3799
        %v3896 = vpop.f32.mrb[0].mxu0
        %v3897 = vadd.f32 0.0, %v3896
        %v3898 = vpop.f32.mrb[0].mxu0
        %3899 = vmatprep.mubr.f32.mxu0 %v3802
        %3900 = vmatmul.mubr.f32.gmra.mrb[0].mxu0 %v3801
        %v3901 = vpop.f32.mrb[0].mxu0
        %v3902 = vadd.f32 0.0, %v3901
        %v3903 = vpop.f32.mrb[0].mxu0
        %3904 = vmatprep.mubr.f32.mxu0 %v3804
        %3905 = vmatmul.mubr.f32.gmra.mrb[0].mxu0 %v3803
        %v3906 = vpop.f32.mrb[0].mxu0
        %v3907 = vadd.f32 0.0, %v3906
        %v3908 = vpop.f32.mrb[0].mxu0
        %3909 = vdwg.mxu0
        %v3910 = vmax.f32 %v3780, %v3872
        %v3911 = vmax.f32 %v3781, %v3877
        %v3912 = vmax.f32 %v3782, %v3882
        %v3913 = vmax.f32 %v3783, %v3887
        %v3914 = vmax.f32 %v3784, %v3892
        %v3915 = vmax.f32 %v3785, %v3897
        %v3916 = vmax.f32 %v3786, %v3902
        %v3917 = vmax.f32 %v3787, %v3907
        %vm3918 = vcmask 261120
        %3919 = vst.msk [vmem:[#allocation3] sm:$0xff] %vm3918, 0.0
        %3920 = vst.msk [vmem:[#allocation3 + $0x8] sm:$0xff] %vm3918, 0.0
        %3921 = vst.msk [vmem:[#allocation3 + $0x10] sm:$0xff] %vm3918, 0.0
        %3922 = vst.msk [vmem:[#allocation3 + $0x18] sm:$0xff] %vm3918, 0.0
        %3923 = vst.msk [vmem:[#allocation3 + $0x20] sm:$0xff] %vm3918, 0.0
        %3924 = vst.msk [vmem:[#allocation3 + $0x28] sm:$0xff] %vm3918, 0.0
        %3925 = vst.msk [vmem:[#allocation3 + $0x30] sm:$0xff] %vm3918, 0.0
        %3926 = vst.msk [vmem:[#allocation3 + $0x38] sm:$0xff] %vm3918, 0.0
        %3927 = vst.msk [vmem:[#allocation3 + $0x40] sm:$0xff] %vm3918, 0.0
        %3928 = vst.msk [vmem:[#allocation3 + $0x48] sm:$0xff] %vm3918, 0.0
        %vm3929 = vcmask 254976
        %3930 = vst.msk [vmem:[#allocation3 + $0x50] sm:$0x3] %vm3929, 0.0
        %3931 = vst.msk [vmem:[#allocation3 + $0x9] sm:$0xff] %vm3918, %v3910
        %3932 = vst.msk [vmem:[#allocation3 + $0x11] sm:$0xff] %vm3918, %v3911
        %3933 = vst.msk [vmem:[#allocation3 + $0x19] sm:$0xff] %vm3918, %v3912
        %3934 = vst.msk [vmem:[#allocation3 + $0x21] sm:$0xff] %vm3918, %v3913
        %3935 = vst.msk [vmem:[#allocation3 + $0x29] sm:$0xff] %vm3918, %v3914
        %3936 = vst.msk [vmem:[#allocation3 + $0x31] sm:$0xff] %vm3918, %v3915
        %3937 = vst.msk [vmem:[#allocation3 + $0x39] sm:$0xff] %vm3918, %v3916
        %3938 = vst.msk [vmem:[#allocation3 + $0x41] sm:$0xff] %vm3918, %v3917
        %v3939 = vld [vmem:[%s6] sm:$0xff]
        %v3940 = vld [vmem:[%s6 + $0x8] sm:$0xff]
        %v3941 = vld [vmem:[%s6 + $0x10] sm:$0xff]
        %v3942 = vld [vmem:[%s6 + $0x18] sm:$0xff]
        %v3943 = vld [vmem:[%s6 + $0x20] sm:$0xff]
        %v3944 = vld [vmem:[%s6 + $0x28] sm:$0xff]
        %v3945 = vld [vmem:[%s6 + $0x30] sm:$0xff]
        %v3946 = vld [vmem:[%s6 + $0x38] sm:$0xff]
        %s3947 = scalar_lea.vmem %s6, 64
        %v3948 = vld [vmem:[%s3947] sm:$0xff]
        %v3949 = vld [vmem:[%s3947 + $0x8] sm:$0xff]
        %v3950 = vld [vmem:[%s3947 + $0x10] sm:$0xff]
        %v3951 = vld [vmem:[%s3947 + $0x18] sm:$0xff]
        %v3952 = vld [vmem:[%s3947 + $0x20] sm:$0xff]
        %v3953 = vld [vmem:[%s3947 + $0x28] sm:$0xff]
        %v3954 = vld [vmem:[%s3947 + $0x30] sm:$0xff]
        %v3955 = vld [vmem:[%s3947 + $0x38] sm:$0xff]
        %v3956 = vld [vmem:[#allocation3] sm:$0xff]
        %v3957 = vld [vmem:[#allocation3 + $0x8] sm:$0xff]
        %v3958 = vld [vmem:[#allocation3 + $0x10] sm:$0xff]
        %v3959 = vld [vmem:[#allocation3 + $0x18] sm:$0xff]
        %v3960 = vld [vmem:[#allocation3 + $0x20] sm:$0xff]
        %v3961 = vld [vmem:[#allocation3 + $0x28] sm:$0xff]
        %v3962 = vld [vmem:[#allocation3 + $0x30] sm:$0xff]
        %v3963 = vld [vmem:[#allocation3 + $0x38] sm:$0xff]
        %3965 = vset.pattern.permute.xlu0 0
        %3966 = vperm.xlu0 %3965, %v3939
        %v3967 = vpop.permute.xlu0 %3966
        %3970 = vset.pattern.permute.xlu0 0
        %3971 = vperm.xlu0 %3970, %v3940
        %v3972 = vpop.permute.xlu0 %3971
        %3975 = vset.pattern.permute.xlu0 0
        %3976 = vperm.xlu0 %3975, %v3941
        %v3977 = vpop.permute.xlu0 %3976
        %3980 = vset.pattern.permute.xlu0 0
        %3981 = vperm.xlu0 %3980, %v3942
        %v3982 = vpop.permute.xlu0 %3981
        %3985 = vset.pattern.permute.xlu0 0
        %3986 = vperm.xlu0 %3985, %v3943
        %v3987 = vpop.permute.xlu0 %3986
        %3990 = vset.pattern.permute.xlu0 0
        %3991 = vperm.xlu0 %3990, %v3944
        %v3992 = vpop.permute.xlu0 %3991
        %3995 = vset.pattern.permute.xlu0 0
        %3996 = vperm.xlu0 %3995, %v3945
        %v3997 = vpop.permute.xlu0 %3996
        %4000 = vset.pattern.permute.xlu0 0
        %4001 = vperm.xlu0 %4000, %v3946
        %v4002 = vpop.permute.xlu0 %4001
        %v4004 = vmul.f32 %v3956, %v3967
        %v4005 = vmul.f32 %v3957, %v3972
        %v4006 = vmul.f32 %v3958, %v3977
        %v4007 = vmul.f32 %v3959, %v3982
        %v4008 = vmul.f32 %v3960, %v3987
        %v4009 = vmul.f32 %v3961, %v3992
        %v4010 = vmul.f32 %v3962, %v3997
        %v4011 = vmul.f32 %v3963, %v4002
        %v4012 = vld [vmem:[%s4] sm:$0xff]
        %v4013 = vld [vmem:[%s4 + $0x8] sm:$0xff]
        %v4014 = vld [vmem:[%s4 + $0x10] sm:$0xff]
        %v4015 = vld [vmem:[%s4 + $0x18] sm:$0xff]
        %v4016 = vld [vmem:[#allocation3 + $0x1] sm:$0xff]
        %v4017 = vld [vmem:[#allocation3 + $0x9] sm:$0xff]
        %v4018 = vld [vmem:[#allocation3 + $0x11] sm:$0xff]
        %v4019 = vld [vmem:[#allocation3 + $0x19] sm:$0xff]
        %v4020 = vld [vmem:[#allocation3 + $0x21] sm:$0xff]
        %v4021 = vld [vmem:[#allocation3 + $0x29] sm:$0xff]
        %v4022 = vld [vmem:[#allocation3 + $0x31] sm:$0xff]
        %v4023 = vld [vmem:[#allocation3 + $0x39] sm:$0xff]
        %v4024 = vld [vmem:[%s4 + $0x20] sm:$0xff]
        %v4025 = vld [vmem:[%s4 + $0x28] sm:$0xff]
        %v4026 = vld [vmem:[%s4 + $0x30] sm:$0xff]
        %v4027 = vld [vmem:[%s4 + $0x38] sm:$0xff]
        %v4029 = vsel %vm3918, %v4016, 0
        %v4032 = vsel %vm3918, %v4017, 0
        %v4035 = vsel %vm3918, %v4018, 0
        %v4038 = vsel %vm3918, %v4019, 0
        %v4041 = vsel %vm3918, %v4020, 0
        %v4044 = vsel %vm3918, %v4021, 0
        %v4047 = vsel %vm3918, %v4022, 0
        %v4050 = vsel %vm3918, %v4023, 0
        %4052 = vmatprep.subr.mxu0 0.0
        %4053 = vmatpush1.msra.mxu0 %v4024
        %4054 = vmatprep.subr.mxu0 0.0
        %4055 = vmatpush1.msra.mxu0 %v4025
        %4056 = vmatprep.subr.mxu0 0.0
        %4057 = vmatpush1.msra.mxu0 %v4026
        %4058 = vmatprep.subr.mxu0 0.0
        %4059 = vmatpush1.msra.mxu0 %v4027
        %4060 = vmatprep.subr.mxu0 0.0
        %4061 = vmatpush1.msra.mxu0 0.0
        %4062 = vmatprep.subr.mxu0 0.0
        %4063 = vmatpush1.msra.mxu0 0.0
        %4064 = vmatprep.subr.mxu0 0.0
        %4065 = vmatpush1.msra.mxu0 0.0
        %4066 = vmatprep.subr.mxu0 0.0
        %4067 = vmatpush1.msra.mxu0 0.0
        %4068 = vmatprep.subr.mxu0 0.0
        %4069 = vmatpush1.msra.mxu0 0.0
        %4070 = vmatprep.subr.mxu0 0.0
        %4071 = vmatpush1.msra.mxu0 0.0
        %4072 = vmatprep.subr.mxu0 0.0
        %4073 = vmatpush1.msra.mxu0 0.0
        %4074 = vmatprep.subr.mxu0 0.0
        %4075 = vmatpush1.msra.mxu0 0.0
        %4076 = vmatprep.subr.mxu0 0.0
        %4077 = vmatpush1.msra.mxu0 0.0
        %4078 = vmatprep.subr.mxu0 0.0
        %4079 = vmatpush1.msra.mxu0 0.0
        %4080 = vmatprep.subr.mxu0 0.0
        %4081 = vmatpush1.msra.mxu0 0.0
        %4082 = vmatprep.subr.mxu0 0.0
        %4083 = vmatpush1.msra.mxu0 0.0
        %4084 = vmatprep.subr.mxu0 0.0
        %4085 = vmatpush1.msra.mxu0 0.0
        %4086 = vmatprep.subr.mxu0 0.0
        %4087 = vmatpush1.msra.mxu0 0.0
        %4088 = vmatprep.subr.mxu0 0.0
        %4089 = vmatpush1.msra.mxu0 0.0
        %4090 = vmatprep.subr.mxu0 0.0
        %4091 = vmatpush1.msra.mxu0 0.0
        %4092 = vmatprep.subr.mxu0 0.0
        %4093 = vmatpush1.msra.mxu0 0.0
        %4094 = vmatprep.subr.mxu0 0.0
        %4095 = vmatpush1.msra.mxu0 0.0
        %4096 = vmatprep.subr.mxu0 0.0
        %4097 = vmatpush1.msra.mxu0 0.0
        %4098 = vmatprep.subr.mxu0 0.0
        %4099 = vmatpush1.msra.mxu0 0.0
        %4100 = vmatprep.subr.mxu0 0.0
        %4101 = vmatpush1.msra.mxu0 0.0
        %4102 = vmatprep.subr.mxu0 0.0
        %4103 = vmatpush1.msra.mxu0 0.0
        %4104 = vmatprep.subr.mxu0 0.0
        %4105 = vmatpush1.msra.mxu0 0.0
        %4106 = vmatprep.subr.mxu0 0.0
        %4107 = vmatpush1.msra.mxu0 0.0
        %4108 = vmatprep.subr.mxu0 0.0
        %4109 = vmatpush1.msra.mxu0 0.0
        %4110 = vmatprep.subr.mxu0 0.0
        %4111 = vmatpush1.msra.mxu0 0.0
        %4112 = vmatprep.subr.mxu0 0.0
        %4113 = vmatpush1.msra.mxu0 0.0
        %4114 = vmatprep.subr.mxu0 0.0
        %4115 = vmatpush1.msra.mxu0 0.0
        %4116 = vmatprep.mubr.f32.mxu0 0.0
        %4117 = vmatmul.mubr.f32.gmra.mrb[0].mxu0 %v4029
        %v4118 = vpop.f32.mrb[0].mxu0
        %v4119 = vadd.f32 0.0, %v4118
        %v4120 = vpop.f32.mrb[0].mxu0
        %4121 = vmatprep.mubr.f32.mxu0 0.0
        %4122 = vmatmul.mubr.f32.gmra.mrb[0].mxu0 %v4032
        %v4123 = vpop.f32.mrb[0].mxu0
        %v4124 = vadd.f32 0.0, %v4123
        %v4125 = vpop.f32.mrb[0].mxu0
        %4126 = vmatprep.mubr.f32.mxu0 0.0
        %4127 = vmatmul.mubr.f32.gmra.mrb[0].mxu0 %v4035
        %v4128 = vpop.f32.mrb[0].mxu0
        %v4129 = vadd.f32 0.0, %v4128
        %v4130 = vpop.f32.mrb[0].mxu0
        %4131 = vmatprep.mubr.f32.mxu0 0.0
        %4132 = vmatmul.mubr.f32.gmra.mrb[0].mxu0 %v4038
        %v4133 = vpop.f32.mrb[0].mxu0
        %v4134 = vadd.f32 0.0, %v4133
        %v4135 = vpop.f32.mrb[0].mxu0
        %4136 = vmatprep.mubr.f32.mxu0 0.0
        %4137 = vmatmul.mubr.f32.gmra.mrb[0].mxu0 %v4041
        %v4138 = vpop.f32.mrb[0].mxu0
        %v4139 = vadd.f32 0.0, %v4138
        %v4140 = vpop.f32.mrb[0].mxu0
        %4141 = vmatprep.mubr.f32.mxu0 0.0
        %4142 = vmatmul.mubr.f32.gmra.mrb[0].mxu0 %v4044
        %v4143 = vpop.f32.mrb[0].mxu0
        %v4144 = vadd.f32 0.0, %v4143
        %v4145 = vpop.f32.mrb[0].mxu0
        %4146 = vmatprep.mubr.f32.mxu0 0.0
        %4147 = vmatmul.mubr.f32.gmra.mrb[0].mxu0 %v4047
        %v4148 = vpop.f32.mrb[0].mxu0
        %v4149 = vadd.f32 0.0, %v4148
        %v4150 = vpop.f32.mrb[0].mxu0
        %4151 = vmatprep.mubr.f32.mxu0 0.0
        %4152 = vmatmul.mubr.f32.gmra.mrb[0].mxu0 %v4050
        %v4153 = vpop.f32.mrb[0].mxu0
        %v4154 = vadd.f32 0.0, %v4153
        %v4155 = vpop.f32.mrb[0].mxu0
        %4156 = vdwg.mxu0
        %v4158 = vsel %vm3918, %v4004, 0
        %v4161 = vsel %vm3918, %v4005, 0
        %v4164 = vsel %vm3918, %v4006, 0
        %v4167 = vsel %vm3918, %v4007, 0
        %v4170 = vsel %vm3918, %v4008, 0
        %v4173 = vsel %vm3918, %v4009, 0
        %v4176 = vsel %vm3918, %v4010, 0
        %v4179 = vsel %vm3918, %v4011, 0
        %4181 = vmatprep.subr.mxu0 0.0
        %4182 = vmatpush1.msra.mxu0 %v4012
        %4183 = vmatprep.subr.mxu0 0.0
        %4184 = vmatpush1.msra.mxu0 %v4013
        %4185 = vmatprep.subr.mxu0 0.0
        %4186 = vmatpush1.msra.mxu0 %v4014
        %4187 = vmatprep.subr.mxu0 0.0
        %4188 = vmatpush1.msra.mxu0 %v4015
        %4189 = vmatprep.subr.mxu0 0.0
        %4190 = vmatpush1.msra.mxu0 0.0
        %4191 = vmatprep.subr.mxu0 0.0
        %4192 = vmatpush1.msra.mxu0 0.0
        %4193 = vmatprep.subr.mxu0 0.0
        %4194 = vmatpush1.msra.mxu0 0.0
        %4195 = vmatprep.subr.mxu0 0.0
        %4196 = vmatpush1.msra.mxu0 0.0
        %4197 = vmatprep.subr.mxu0 0.0
        %4198 = vmatpush1.msra.mxu0 0.0
        %4199 = vmatprep.subr.mxu0 0.0
        %4200 = vmatpush1.msra.mxu0 0.0
        %4201 = vmatprep.subr.mxu0 0.0
        %4202 = vmatpush1.msra.mxu0 0.0
        %4203 = vmatprep.subr.mxu0 0.0
        %4204 = vmatpush1.msra.mxu0 0.0
        %4205 = vmatprep.subr.mxu0 0.0
        %4206 = vmatpush1.msra.mxu0 0.0
        %4207 = vmatprep.subr.mxu0 0.0
        %4208 = vmatpush1.msra.mxu0 0.0
        %4209 = vmatprep.subr.mxu0 0.0
        %4210 = vmatpush1.msra.mxu0 0.0
        %4211 = vmatprep.subr.mxu0 0.0
        %4212 = vmatpush1.msra.mxu0 0.0
        %4213 = vmatprep.subr.mxu0 0.0
        %4214 = vmatpush1.msra.mxu0 0.0
        %4215 = vmatprep.subr.mxu0 0.0
        %4216 = vmatpush1.msra.mxu0 0.0
        %4217 = vmatprep.subr.mxu0 0.0
        %4218 = vmatpush1.msra.mxu0 0.0
        %4219 = vmatprep.subr.mxu0 0.0
        %4220 = vmatpush1.msra.mxu0 0.0
        %4221 = vmatprep.subr.mxu0 0.0
        %4222 = vmatpush1.msra.mxu0 0.0
        %4223 = vmatprep.subr.mxu0 0.0
        %4224 = vmatpush1.msra.mxu0 0.0
        %4225 = vmatprep.subr.mxu0 0.0
        %4226 = vmatpush1.msra.mxu0 0.0
        %4227 = vmatprep.subr.mxu0 0.0
        %4228 = vmatpush1.msra.mxu0 0.0
        %4229 = vmatprep.subr.mxu0 0.0
        %4230 = vmatpush1.msra.mxu0 0.0
        %4231 = vmatprep.subr.mxu0 0.0
        %4232 = vmatpush1.msra.mxu0 0.0
        %4233 = vmatprep.subr.mxu0 0.0
        %4234 = vmatpush1.msra.mxu0 0.0
        %4235 = vmatprep.subr.mxu0 0.0
        %4236 = vmatpush1.msra.mxu0 0.0
        %4237 = vmatprep.subr.mxu0 0.0
        %4238 = vmatpush1.msra.mxu0 0.0
        %4239 = vmatprep.subr.mxu0 0.0
        %4240 = vmatpush1.msra.mxu0 0.0
        %4241 = vmatprep.subr.mxu0 0.0
        %4242 = vmatpush1.msra.mxu0 0.0
        %4243 = vmatprep.subr.mxu0 0.0
        %4244 = vmatpush1.msra.mxu0 0.0
        %4245 = vmatprep.mubr.f32.mxu0 0.0
        %4246 = vmatmul.mubr.f32.gmra.mrb[0].mxu0 %v4158
        %v4247 = vpop.f32.mrb[0].mxu0
        %v4248 = vadd.f32 %v4119, %v4247
        %v4249 = vpop.f32.mrb[0].mxu0
        %4250 = vmatprep.mubr.f32.mxu0 0.0
        %4251 = vmatmul.mubr.f32.gmra.mrb[0].mxu0 %v4161
        %v4252 = vpop.f32.mrb[0].mxu0
        %v4253 = vadd.f32 %v4124, %v4252
        %v4254 = vpop.f32.mrb[0].mxu0
        %4255 = vmatprep.mubr.f32.mxu0 0.0
        %4256 = vmatmul.mubr.f32.gmra.mrb[0].mxu0 %v4164
        %v4257 = vpop.f32.mrb[0].mxu0
        %v4258 = vadd.f32 %v4129, %v4257
        %v4259 = vpop.f32.mrb[0].mxu0
        %4260 = vmatprep.mubr.f32.mxu0 0.0
        %4261 = vmatmul.mubr.f32.gmra.mrb[0].mxu0 %v4167
        %v4262 = vpop.f32.mrb[0].mxu0
        %v4263 = vadd.f32 %v4134, %v4262
        %v4264 = vpop.f32.mrb[0].mxu0
        %4265 = vmatprep.mubr.f32.mxu0 0.0
        %4266 = vmatmul.mubr.f32.gmra.mrb[0].mxu0 %v4170
        %v4267 = vpop.f32.mrb[0].mxu0
        %v4268 = vadd.f32 %v4139, %v4267
        %v4269 = vpop.f32.mrb[0].mxu0
        %4270 = vmatprep.mubr.f32.mxu0 0.0
        %4271 = vmatmul.mubr.f32.gmra.mrb[0].mxu0 %v4173
        %v4272 = vpop.f32.mrb[0].mxu0
        %v4273 = vadd.f32 %v4144, %v4272
        %v4274 = vpop.f32.mrb[0].mxu0
        %4275 = vmatprep.mubr.f32.mxu0 0.0
        %4276 = vmatmul.mubr.f32.gmra.mrb[0].mxu0 %v4176
        %v4277 = vpop.f32.mrb[0].mxu0
        %v4278 = vadd.f32 %v4149, %v4277
        %v4279 = vpop.f32.mrb[0].mxu0
        %4280 = vmatprep.mubr.f32.mxu0 0.0
        %4281 = vmatmul.mubr.f32.gmra.mrb[0].mxu0 %v4179
        %v4282 = vpop.f32.mrb[0].mxu0
        %v4283 = vadd.f32 %v4154, %v4282
        %v4284 = vpop.f32.mrb[0].mxu0
        %4285 = vdwg.mxu0
        %v4286 = vld [vmem:[#allocation3 + $0x2] sm:$0xff]
        %v4287 = vld [vmem:[#allocation3 + $0xa] sm:$0xff]
        %v4288 = vld [vmem:[#allocation3 + $0x12] sm:$0xff]
        %v4289 = vld [vmem:[#allocation3 + $0x1a] sm:$0xff]
        %v4290 = vld [vmem:[#allocation3 + $0x22] sm:$0xff]
        %v4291 = vld [vmem:[#allocation3 + $0x2a] sm:$0xff]
        %v4292 = vld [vmem:[#allocation3 + $0x32] sm:$0xff]
        %v4293 = vld [vmem:[#allocation3 + $0x3a] sm:$0xff]
        %4295 = vset.pattern.permute.xlu0 0
        %4296 = vperm.xlu0 %4295, %v3948
        %v4297 = vpop.permute.xlu0 %4296
        %4300 = vset.pattern.permute.xlu0 0
        %4301 = vperm.xlu0 %4300, %v3949
        %v4302 = vpop.permute.xlu0 %4301
        %4305 = vset.pattern.permute.xlu0 0
        %4306 = vperm.xlu0 %4305, %v3950
        %v4307 = vpop.permute.xlu0 %4306
        %4310 = vset.pattern.permute.xlu0 0
        %4311 = vperm.xlu0 %4310, %v3951
        %v4312 = vpop.permute.xlu0 %4311
        %4315 = vset.pattern.permute.xlu0 0
        %4316 = vperm.xlu0 %4315, %v3952
        %v4317 = vpop.permute.xlu0 %4316
        %4320 = vset.pattern.permute.xlu0 0
        %4321 = vperm.xlu0 %4320, %v3953
        %v4322 = vpop.permute.xlu0 %4321
        %4325 = vset.pattern.permute.xlu0 0
        %4326 = vperm.xlu0 %4325, %v3954
        %v4327 = vpop.permute.xlu0 %4326
        %4330 = vset.pattern.permute.xlu0 0
        %4331 = vperm.xlu0 %4330, %v3955
        %v4332 = vpop.permute.xlu0 %4331
        %v4334 = vmul.f32 %v4286, %v4297
        %v4335 = vmul.f32 %v4287, %v4302
        %v4336 = vmul.f32 %v4288, %v4307
        %v4337 = vmul.f32 %v4289, %v4312
        %v4338 = vmul.f32 %v4290, %v4317
        %v4339 = vmul.f32 %v4291, %v4322
        %v4340 = vmul.f32 %v4292, %v4327
        %v4341 = vmul.f32 %v4293, %v4332
        %v4342 = vld [vmem:[%s4 + $0x40] sm:$0xff]
        %v4343 = vld [vmem:[%s4 + $0x48] sm:$0xff]
        %v4344 = vld [vmem:[%s4 + $0x50] sm:$0xff]
        %v4345 = vld [vmem:[%s4 + $0x58] sm:$0xff]
        %v4347 = vsel %vm3918, %v4334, 0
        %v4350 = vsel %vm3918, %v4335, 0
        %v4353 = vsel %vm3918, %v4336, 0
        %v4356 = vsel %vm3918, %v4337, 0
        %v4359 = vsel %vm3918, %v4338, 0
        %v4362 = vsel %vm3918, %v4339, 0
        %v4365 = vsel %vm3918, %v4340, 0
        %v4368 = vsel %vm3918, %v4341, 0
        %4370 = vmatprep.subr.mxu0 0.0
        %4371 = vmatpush1.msra.mxu0 %v4342
        %4372 = vmatprep.subr.mxu0 0.0
        %4373 = vmatpush1.msra.mxu0 %v4343
        %4374 = vmatprep.subr.mxu0 0.0
        %4375 = vmatpush1.msra.mxu0 %v4344
        %4376 = vmatprep.subr.mxu0 0.0
        %4377 = vmatpush1.msra.mxu0 %v4345
        %4378 = vmatprep.subr.mxu0 0.0
        %4379 = vmatpush1.msra.mxu0 0.0
        %4380 = vmatprep.subr.mxu0 0.0
        %4381 = vmatpush1.msra.mxu0 0.0
        %4382 = vmatprep.subr.mxu0 0.0
        %4383 = vmatpush1.msra.mxu0 0.0
        %4384 = vmatprep.subr.mxu0 0.0
        %4385 = vmatpush1.msra.mxu0 0.0
        %4386 = vmatprep.subr.mxu0 0.0
        %4387 = vmatpush1.msra.mxu0 0.0
        %4388 = vmatprep.subr.mxu0 0.0
        %4389 = vmatpush1.msra.mxu0 0.0
        %4390 = vmatprep.subr.mxu0 0.0
        %4391 = vmatpush1.msra.mxu0 0.0
        %4392 = vmatprep.subr.mxu0 0.0
        %4393 = vmatpush1.msra.mxu0 0.0
        %4394 = vmatprep.subr.mxu0 0.0
        %4395 = vmatpush1.msra.mxu0 0.0
        %4396 = vmatprep.subr.mxu0 0.0
        %4397 = vmatpush1.msra.mxu0 0.0
        %4398 = vmatprep.subr.mxu0 0.0
        %4399 = vmatpush1.msra.mxu0 0.0
        %4400 = vmatprep.subr.mxu0 0.0
        %4401 = vmatpush1.msra.mxu0 0.0
        %4402 = vmatprep.subr.mxu0 0.0
        %4403 = vmatpush1.msra.mxu0 0.0
        %4404 = vmatprep.subr.mxu0 0.0
        %4405 = vmatpush1.msra.mxu0 0.0
        %4406 = vmatprep.subr.mxu0 0.0
        %4407 = vmatpush1.msra.mxu0 0.0
        %4408 = vmatprep.subr.mxu0 0.0
        %4409 = vmatpush1.msra.mxu0 0.0
        %4410 = vmatprep.subr.mxu0 0.0
        %4411 = vmatpush1.msra.mxu0 0.0
        %4412 = vmatprep.subr.mxu0 0.0
        %4413 = vmatpush1.msra.mxu0 0.0
        %4414 = vmatprep.subr.mxu0 0.0
        %4415 = vmatpush1.msra.mxu0 0.0
        %4416 = vmatprep.subr.mxu0 0.0
        %4417 = vmatpush1.msra.mxu0 0.0
        %4418 = vmatprep.subr.mxu0 0.0
        %4419 = vmatpush1.msra.mxu0 0.0
        %4420 = vmatprep.subr.mxu0 0.0
        %4421 = vmatpush1.msra.mxu0 0.0
        %4422 = vmatprep.subr.mxu0 0.0
        %4423 = vmatpush1.msra.mxu0 0.0
        %4424 = vmatprep.subr.mxu0 0.0
        %4425 = vmatpush1.msra.mxu0 0.0
        %4426 = vmatprep.subr.mxu0 0.0
        %4427 = vmatpush1.msra.mxu0 0.0
        %4428 = vmatprep.subr.mxu0 0.0
        %4429 = vmatpush1.msra.mxu0 0.0
        %4430 = vmatprep.subr.mxu0 0.0
        %4431 = vmatpush1.msra.mxu0 0.0
        %4432 = vmatprep.subr.mxu0 0.0
        %4433 = vmatpush1.msra.mxu0 0.0
        %4434 = vmatprep.mubr.f32.mxu0 0.0
        %4435 = vmatmul.mubr.f32.gmra.mrb[0].mxu0 %v4347
        %v4436 = vpop.f32.mrb[0].mxu0
        %v4437 = vadd.f32 0.0, %v4436
        %v4438 = vpop.f32.mrb[0].mxu0
        %4439 = vmatprep.mubr.f32.mxu0 0.0
        %4440 = vmatmul.mubr.f32.gmra.mrb[0].mxu0 %v4350
        %v4441 = vpop.f32.mrb[0].mxu0
        %v4442 = vadd.f32 0.0, %v4441
        %v4443 = vpop.f32.mrb[0].mxu0
        %4444 = vmatprep.mubr.f32.mxu0 0.0
        %4445 = vmatmul.mubr.f32.gmra.mrb[0].mxu0 %v4353
        %v4446 = vpop.f32.mrb[0].mxu0
        %v4447 = vadd.f32 0.0, %v4446
        %v4448 = vpop.f32.mrb[0].mxu0
        %4449 = vmatprep.mubr.f32.mxu0 0.0
        %4450 = vmatmul.mubr.f32.gmra.mrb[0].mxu0 %v4356
        %v4451 = vpop.f32.mrb[0].mxu0
        %v4452 = vadd.f32 0.0, %v4451
        %v4453 = vpop.f32.mrb[0].mxu0
        %4454 = vmatprep.mubr.f32.mxu0 0.0
        %4455 = vmatmul.mubr.f32.gmra.mrb[0].mxu0 %v4359
        %v4456 = vpop.f32.mrb[0].mxu0
        %v4457 = vadd.f32 0.0, %v4456
        %v4458 = vpop.f32.mrb[0].mxu0
        %4459 = vmatprep.mubr.f32.mxu0 0.0
        %4460 = vmatmul.mubr.f32.gmra.mrb[0].mxu0 %v4362
        %v4461 = vpop.f32.mrb[0].mxu0
        %v4462 = vadd.f32 0.0, %v4461
        %v4463 = vpop.f32.mrb[0].mxu0
        %4464 = vmatprep.mubr.f32.mxu0 0.0
        %4465 = vmatmul.mubr.f32.gmra.mrb[0].mxu0 %v4365
        %v4466 = vpop.f32.mrb[0].mxu0
        %v4467 = vadd.f32 0.0, %v4466
        %v4468 = vpop.f32.mrb[0].mxu0
        %4469 = vmatprep.mubr.f32.mxu0 0.0
        %4470 = vmatmul.mubr.f32.gmra.mrb[0].mxu0 %v4368
        %v4471 = vpop.f32.mrb[0].mxu0
        %v4472 = vadd.f32 0.0, %v4471
        %v4473 = vpop.f32.mrb[0].mxu0
        %4474 = vdwg.mxu0
        %v4475 = vadd.f32 %v4248, %v4437
        %v4476 = vadd.f32 %v4253, %v4442
        %v4477 = vadd.f32 %v4258, %v4447
        %v4478 = vadd.f32 %v4263, %v4452
        %v4479 = vadd.f32 %v4268, %v4457
        %v4480 = vadd.f32 %v4273, %v4462
        %v4481 = vadd.f32 %v4278, %v4467
        %v4482 = vadd.f32 %v4283, %v4472
        %v4483 = vld [vmem:[#allocation3 + $0x8] sm:$0xff]
        %v4484 = vld [vmem:[#allocation3 + $0x10] sm:$0xff]
        %v4485 = vld [vmem:[#allocation3 + $0x18] sm:$0xff]
        %v4486 = vld [vmem:[#allocation3 + $0x20] sm:$0xff]
        %v4487 = vld [vmem:[#allocation3 + $0x28] sm:$0xff]
        %v4488 = vld [vmem:[#allocation3 + $0x30] sm:$0xff]
        %v4489 = vld [vmem:[#allocation3 + $0x38] sm:$0xff]
        %v4490 = vld [vmem:[#allocation3 + $0x40] sm:$0xff]
        %v4491 = vmul.f32 %v4483, %v3967
        %v4492 = vmul.f32 %v4484, %v3972
        %v4493 = vmul.f32 %v4485, %v3977
        %v4494 = vmul.f32 %v4486, %v3982
        %v4495 = vmul.f32 %v4487, %v3987
        %v4496 = vmul.f32 %v4488, %v3992
        %v4497 = vmul.f32 %v4489, %v3997
        %v4498 = vmul.f32 %v4490, %v4002
        %v4499 = vld [vmem:[%s4 + $0x60] sm:$0xff]
        %v4500 = vld [vmem:[%s4 + $0x68] sm:$0xff]
        %v4501 = vld [vmem:[%s4 + $0x70] sm:$0xff]
        %v4502 = vld [vmem:[%s4 + $0x78] sm:$0xff]
        %v4504 = vsel %vm3918, %v4491, 0
        %v4507 = vsel %vm3918, %v4492, 0
        %v4510 = vsel %vm3918, %v4493, 0
        %v4513 = vsel %vm3918, %v4494, 0
        %v4516 = vsel %vm3918, %v4495, 0
        %v4519 = vsel %vm3918, %v4496, 0
        %v4522 = vsel %vm3918, %v4497, 0
        %v4525 = vsel %vm3918, %v4498, 0
        %4527 = vmatprep.subr.mxu0 0.0
        %4528 = vmatpush1.msra.mxu0 %v4499
        %4529 = vmatprep.subr.mxu0 0.0
        %4530 = vmatpush1.msra.mxu0 %v4500
        %4531 = vmatprep.subr.mxu0 0.0
        %4532 = vmatpush1.msra.mxu0 %v4501
        %4533 = vmatprep.subr.mxu0 0.0
        %4534 = vmatpush1.msra.mxu0 %v4502
        %4535 = vmatprep.subr.mxu0 0.0
        %4536 = vmatpush1.msra.mxu0 0.0
        %4537 = vmatprep.subr.mxu0 0.0
        %4538 = vmatpush1.msra.mxu0 0.0
        %4539 = vmatprep.subr.mxu0 0.0
        %4540 = vmatpush1.msra.mxu0 0.0
        %4541 = vmatprep.subr.mxu0 0.0
        %4542 = vmatpush1.msra.mxu0 0.0
        %4543 = vmatprep.subr.mxu0 0.0
        %4544 = vmatpush1.msra.mxu0 0.0
        %4545 = vmatprep.subr.mxu0 0.0
        %4546 = vmatpush1.msra.mxu0 0.0
        %4547 = vmatprep.subr.mxu0 0.0
        %4548 = vmatpush1.msra.mxu0 0.0
        %4549 = vmatprep.subr.mxu0 0.0
        %4550 = vmatpush1.msra.mxu0 0.0
        %4551 = vmatprep.subr.mxu0 0.0
        %4552 = vmatpush1.msra.mxu0 0.0
        %4553 = vmatprep.subr.mxu0 0.0
        %4554 = vmatpush1.msra.mxu0 0.0
        %4555 = vmatprep.subr.mxu0 0.0
        %4556 = vmatpush1.msra.mxu0 0.0
        %4557 = vmatprep.subr.mxu0 0.0
        %4558 = vmatpush1.msra.mxu0 0.0
        %4559 = vmatprep.subr.mxu0 0.0
        %4560 = vmatpush1.msra.mxu0 0.0
        %4561 = vmatprep.subr.mxu0 0.0
        %4562 = vmatpush1.msra.mxu0 0.0
        %4563 = vmatprep.subr.mxu0 0.0
        %4564 = vmatpush1.msra.mxu0 0.0
        %4565 = vmatprep.subr.mxu0 0.0
        %4566 = vmatpush1.msra.mxu0 0.0
        %4567 = vmatprep.subr.mxu0 0.0
        %4568 = vmatpush1.msra.mxu0 0.0
        %4569 = vmatprep.subr.mxu0 0.0
        %4570 = vmatpush1.msra.mxu0 0.0
        %4571 = vmatprep.subr.mxu0 0.0
        %4572 = vmatpush1.msra.mxu0 0.0
        %4573 = vmatprep.subr.mxu0 0.0
        %4574 = vmatpush1.msra.mxu0 0.0
        %4575 = vmatprep.subr.mxu0 0.0
        %4576 = vmatpush1.msra.mxu0 0.0
        %4577 = vmatprep.subr.mxu0 0.0
        %4578 = vmatpush1.msra.mxu0 0.0
        %4579 = vmatprep.subr.mxu0 0.0
        %4580 = vmatpush1.msra.mxu0 0.0
        %4581 = vmatprep.subr.mxu0 0.0
        %4582 = vmatpush1.msra.mxu0 0.0
        %4583 = vmatprep.subr.mxu0 0.0
        %4584 = vmatpush1.msra.mxu0 0.0
        %4585 = vmatprep.subr.mxu0 0.0
        %4586 = vmatpush1.msra.mxu0 0.0
        %4587 = vmatprep.subr.mxu0 0.0
        %4588 = vmatpush1.msra.mxu0 0.0
        %4589 = vmatprep.subr.mxu0 0.0
        %4590 = vmatpush1.msra.mxu0 0.0
        %4591 = vmatprep.mubr.f32.mxu0 0.0
        %4592 = vmatmul.mubr.f32.gmra.mrb[0].mxu0 %v4504
        %v4593 = vpop.f32.mrb[0].mxu0
        %v4594 = vadd.f32 0.0, %v4593
        %v4595 = vpop.f32.mrb[0].mxu0
        %4596 = vmatprep.mubr.f32.mxu0 0.0
        %4597 = vmatmul.mubr.f32.gmra.mrb[0].mxu0 %v4507
        %v4598 = vpop.f32.mrb[0].mxu0
        %v4599 = vadd.f32 0.0, %v4598
        %v4600 = vpop.f32.mrb[0].mxu0
        %4601 = vmatprep.mubr.f32.mxu0 0.0
        %4602 = vmatmul.mubr.f32.gmra.mrb[0].mxu0 %v4510
        %v4603 = vpop.f32.mrb[0].mxu0
        %v4604 = vadd.f32 0.0, %v4603
        %v4605 = vpop.f32.mrb[0].mxu0
        %4606 = vmatprep.mubr.f32.mxu0 0.0
        %4607 = vmatmul.mubr.f32.gmra.mrb[0].mxu0 %v4513
        %v4608 = vpop.f32.mrb[0].mxu0
        %v4609 = vadd.f32 0.0, %v4608
        %v4610 = vpop.f32.mrb[0].mxu0
        %4611 = vmatprep.mubr.f32.mxu0 0.0
        %4612 = vmatmul.mubr.f32.gmra.mrb[0].mxu0 %v4516
        %v4613 = vpop.f32.mrb[0].mxu0
        %v4614 = vadd.f32 0.0, %v4613
        %v4615 = vpop.f32.mrb[0].mxu0
        %4616 = vmatprep.mubr.f32.mxu0 0.0
        %4617 = vmatmul.mubr.f32.gmra.mrb[0].mxu0 %v4519
        %v4618 = vpop.f32.mrb[0].mxu0
        %v4619 = vadd.f32 0.0, %v4618
        %v4620 = vpop.f32.mrb[0].mxu0
        %4621 = vmatprep.mubr.f32.mxu0 0.0
        %4622 = vmatmul.mubr.f32.gmra.mrb[0].mxu0 %v4522
        %v4623 = vpop.f32.mrb[0].mxu0
        %v4624 = vadd.f32 0.0, %v4623
        %v4625 = vpop.f32.mrb[0].mxu0
        %4626 = vmatprep.mubr.f32.mxu0 0.0
        %4627 = vmatmul.mubr.f32.gmra.mrb[0].mxu0 %v4525
        %v4628 = vpop.f32.mrb[0].mxu0
        %v4629 = vadd.f32 0.0, %v4628
        %v4630 = vpop.f32.mrb[0].mxu0
        %4631 = vdwg.mxu0
        %v4632 = vadd.f32 %v4475, %v4594
        %v4633 = vadd.f32 %v4476, %v4599
        %v4634 = vadd.f32 %v4477, %v4604
        %v4635 = vadd.f32 %v4478, %v4609
        %v4636 = vadd.f32 %v4479, %v4614
        %v4637 = vadd.f32 %v4480, %v4619
        %v4638 = vadd.f32 %v4481, %v4624
        %v4639 = vadd.f32 %v4482, %v4629
        %v4640 = vld [vmem:[#allocation3 + $0x9] sm:$0xff]
        %v4641 = vld [vmem:[#allocation3 + $0x11] sm:$0xff]
        %v4642 = vld [vmem:[#allocation3 + $0x19] sm:$0xff]
        %v4643 = vld [vmem:[#allocation3 + $0x21] sm:$0xff]
        %v4644 = vld [vmem:[#allocation3 + $0x29] sm:$0xff]
        %v4645 = vld [vmem:[#allocation3 + $0x31] sm:$0xff]
        %v4646 = vld [vmem:[#allocation3 + $0x39] sm:$0xff]
        %v4647 = vld [vmem:[#allocation3 + $0x41] sm:$0xff]
        %v4648 = vld [vmem:[%s4 + $0x80] sm:$0xff]
        %v4649 = vld [vmem:[%s4 + $0x88] sm:$0xff]
        %v4650 = vld [vmem:[%s4 + $0x90] sm:$0xff]
        %v4651 = vld [vmem:[%s4 + $0x98] sm:$0xff]
        %v4653 = vsel %vm3918, %v4640, 0
        %v4656 = vsel %vm3918, %v4641, 0
        %v4659 = vsel %vm3918, %v4642, 0
        %v4662 = vsel %vm3918, %v4643, 0
        %v4665 = vsel %vm3918, %v4644, 0
        %v4668 = vsel %vm3918, %v4645, 0
        %v4671 = vsel %vm3918, %v4646, 0
        %v4674 = vsel %vm3918, %v4647, 0
        %4676 = vmatprep.subr.mxu0 0.0
        %4677 = vmatpush1.msra.mxu0 %v4648
        %4678 = vmatprep.subr.mxu0 0.0
        %4679 = vmatpush1.msra.mxu0 %v4649
        %4680 = vmatprep.subr.mxu0 0.0
        %4681 = vmatpush1.msra.mxu0 %v4650
        %4682 = vmatprep.subr.mxu0 0.0
        %4683 = vmatpush1.msra.mxu0 %v4651
        %4684 = vmatprep.subr.mxu0 0.0
        %4685 = vmatpush1.msra.mxu0 0.0
        %4686 = vmatprep.subr.mxu0 0.0
        %4687 = vmatpush1.msra.mxu0 0.0
        %4688 = vmatprep.subr.mxu0 0.0
        %4689 = vmatpush1.msra.mxu0 0.0
        %4690 = vmatprep.subr.mxu0 0.0
        %4691 = vmatpush1.msra.mxu0 0.0
        %4692 = vmatprep.subr.mxu0 0.0
        %4693 = vmatpush1.msra.mxu0 0.0
        %4694 = vmatprep.subr.mxu0 0.0
        %4695 = vmatpush1.msra.mxu0 0.0
        %4696 = vmatprep.subr.mxu0 0.0
        %4697 = vmatpush1.msra.mxu0 0.0
        %4698 = vmatprep.subr.mxu0 0.0
        %4699 = vmatpush1.msra.mxu0 0.0
        %4700 = vmatprep.subr.mxu0 0.0
        %4701 = vmatpush1.msra.mxu0 0.0
        %4702 = vmatprep.subr.mxu0 0.0
        %4703 = vmatpush1.msra.mxu0 0.0
        %4704 = vmatprep.subr.mxu0 0.0
        %4705 = vmatpush1.msra.mxu0 0.0
        %4706 = vmatprep.subr.mxu0 0.0
        %4707 = vmatpush1.msra.mxu0 0.0
        %4708 = vmatprep.subr.mxu0 0.0
        %4709 = vmatpush1.msra.mxu0 0.0
        %4710 = vmatprep.subr.mxu0 0.0
        %4711 = vmatpush1.msra.mxu0 0.0
        %4712 = vmatprep.subr.mxu0 0.0
        %4713 = vmatpush1.msra.mxu0 0.0
        %4714 = vmatprep.subr.mxu0 0.0
        %4715 = vmatpush1.msra.mxu0 0.0
        %4716 = vmatprep.subr.mxu0 0.0
        %4717 = vmatpush1.msra.mxu0 0.0
        %4718 = vmatprep.subr.mxu0 0.0
        %4719 = vmatpush1.msra.mxu0 0.0
        %4720 = vmatprep.subr.mxu0 0.0
        %4721 = vmatpush1.msra.mxu0 0.0
        %4722 = vmatprep.subr.mxu0 0.0
        %4723 = vmatpush1.msra.mxu0 0.0
        %4724 = vmatprep.subr.mxu0 0.0
        %4725 = vmatpush1.msra.mxu0 0.0
        %4726 = vmatprep.subr.mxu0 0.0
        %4727 = vmatpush1.msra.mxu0 0.0
        %4728 = vmatprep.subr.mxu0 0.0
        %4729 = vmatpush1.msra.mxu0 0.0
        %4730 = vmatprep.subr.mxu0 0.0
        %4731 = vmatpush1.msra.mxu0 0.0
        %4732 = vmatprep.subr.mxu0 0.0
        %4733 = vmatpush1.msra.mxu0 0.0
        %4734 = vmatprep.subr.mxu0 0.0
        %4735 = vmatpush1.msra.mxu0 0.0
        %4736 = vmatprep.subr.mxu0 0.0
        %4737 = vmatpush1.msra.mxu0 0.0
        %4738 = vmatprep.subr.mxu0 0.0
        %4739 = vmatpush1.msra.mxu0 0.0
        %4740 = vmatprep.mubr.f32.mxu0 0.0
        %4741 = vmatmul.mubr.f32.gmra.mrb[0].mxu0 %v4653
        %v4742 = vpop.f32.mrb[0].mxu0
        %v4743 = vadd.f32 0.0, %v4742
        %v4744 = vpop.f32.mrb[0].mxu0
        %4745 = vmatprep.mubr.f32.mxu0 0.0
        %4746 = vmatmul.mubr.f32.gmra.mrb[0].mxu0 %v4656
        %v4747 = vpop.f32.mrb[0].mxu0
        %v4748 = vadd.f32 0.0, %v4747
        %v4749 = vpop.f32.mrb[0].mxu0
        %4750 = vmatprep.mubr.f32.mxu0 0.0
        %4751 = vmatmul.mubr.f32.gmra.mrb[0].mxu0 %v4659
        %v4752 = vpop.f32.mrb[0].mxu0
        %v4753 = vadd.f32 0.0, %v4752
        %v4754 = vpop.f32.mrb[0].mxu0
        %4755 = vmatprep.mubr.f32.mxu0 0.0
        %4756 = vmatmul.mubr.f32.gmra.mrb[0].mxu0 %v4662
        %v4757 = vpop.f32.mrb[0].mxu0
        %v4758 = vadd.f32 0.0, %v4757
        %v4759 = vpop.f32.mrb[0].mxu0
        %4760 = vmatprep.mubr.f32.mxu0 0.0
        %4761 = vmatmul.mubr.f32.gmra.mrb[0].mxu0 %v4665
        %v4762 = vpop.f32.mrb[0].mxu0
        %v4763 = vadd.f32 0.0, %v4762
        %v4764 = vpop.f32.mrb[0].mxu0
        %4765 = vmatprep.mubr.f32.mxu0 0.0
        %4766 = vmatmul.mubr.f32.gmra.mrb[0].mxu0 %v4668
        %v4767 = vpop.f32.mrb[0].mxu0
        %v4768 = vadd.f32 0.0, %v4767
        %v4769 = vpop.f32.mrb[0].mxu0
        %4770 = vmatprep.mubr.f32.mxu0 0.0
        %4771 = vmatmul.mubr.f32.gmra.mrb[0].mxu0 %v4671
        %v4772 = vpop.f32.mrb[0].mxu0
        %v4773 = vadd.f32 0.0, %v4772
        %v4774 = vpop.f32.mrb[0].mxu0
        %4775 = vmatprep.mubr.f32.mxu0 0.0
        %4776 = vmatmul.mubr.f32.gmra.mrb[0].mxu0 %v4674
        %v4777 = vpop.f32.mrb[0].mxu0
        %v4778 = vadd.f32 0.0, %v4777
        %v4779 = vpop.f32.mrb[0].mxu0
        %4780 = vdwg.mxu0
        %v4781 = vadd.f32 %v4632, %v4743
        %v4782 = vadd.f32 %v4633, %v4748
        %v4783 = vadd.f32 %v4634, %v4753
        %v4784 = vadd.f32 %v4635, %v4758
        %v4785 = vadd.f32 %v4636, %v4763
        %v4786 = vadd.f32 %v4637, %v4768
        %v4787 = vadd.f32 %v4638, %v4773
        %v4788 = vadd.f32 %v4639, %v4778
        %v4789 = vld [vmem:[#allocation3 + $0xa] sm:$0xff]
        %v4790 = vld [vmem:[#allocation3 + $0x12] sm:$0xff]
        %v4791 = vld [vmem:[#allocation3 + $0x1a] sm:$0xff]
        %v4792 = vld [vmem:[#allocation3 + $0x22] sm:$0xff]
        %v4793 = vld [vmem:[#allocation3 + $0x2a] sm:$0xff]
        %v4794 = vld [vmem:[#allocation3 + $0x32] sm:$0xff]
        %v4795 = vld [vmem:[#allocation3 + $0x3a] sm:$0xff]
        %v4796 = vld [vmem:[#allocation3 + $0x42] sm:$0xff]
        %v4797 = vmul.f32 %v4789, %v4297
        %v4798 = vmul.f32 %v4790, %v4302
        %v4799 = vmul.f32 %v4791, %v4307
        %v4800 = vmul.f32 %v4792, %v4312
        %v4801 = vmul.f32 %v4793, %v4317
        %v4802 = vmul.f32 %v4794, %v4322
        %v4803 = vmul.f32 %v4795, %v4327
        %v4804 = vmul.f32 %v4796, %v4332
        %v4805 = vld [vmem:[%s4 + $0xa0] sm:$0xff]
        %v4806 = vld [vmem:[%s4 + $0xa8] sm:$0xff]
        %v4807 = vld [vmem:[%s4 + $0xb0] sm:$0xff]
        %v4808 = vld [vmem:[%s4 + $0xb8] sm:$0xff]
        %v4810 = vsel %vm3918, %v4797, 0
        %v4813 = vsel %vm3918, %v4798, 0
        %v4816 = vsel %vm3918, %v4799, 0
        %v4819 = vsel %vm3918, %v4800, 0
        %v4822 = vsel %vm3918, %v4801, 0
        %v4825 = vsel %vm3918, %v4802, 0
        %v4828 = vsel %vm3918, %v4803, 0
        %v4831 = vsel %vm3918, %v4804, 0
        %4833 = vmatprep.subr.mxu0 0.0
        %4834 = vmatpush1.msra.mxu0 %v4805
        %4835 = vmatprep.subr.mxu0 0.0
        %4836 = vmatpush1.msra.mxu0 %v4806
        %4837 = vmatprep.subr.mxu0 0.0
        %4838 = vmatpush1.msra.mxu0 %v4807
        %4839 = vmatprep.subr.mxu0 0.0
        %4840 = vmatpush1.msra.mxu0 %v4808
        %4841 = vmatprep.subr.mxu0 0.0
        %4842 = vmatpush1.msra.mxu0 0.0
        %4843 = vmatprep.subr.mxu0 0.0
        %4844 = vmatpush1.msra.mxu0 0.0
        %4845 = vmatprep.subr.mxu0 0.0
        %4846 = vmatpush1.msra.mxu0 0.0
        %4847 = vmatprep.subr.mxu0 0.0
        %4848 = vmatpush1.msra.mxu0 0.0
        %4849 = vmatprep.subr.mxu0 0.0
        %4850 = vmatpush1.msra.mxu0 0.0
        %4851 = vmatprep.subr.mxu0 0.0
        %4852 = vmatpush1.msra.mxu0 0.0
        %4853 = vmatprep.subr.mxu0 0.0
        %4854 = vmatpush1.msra.mxu0 0.0
        %4855 = vmatprep.subr.mxu0 0.0
        %4856 = vmatpush1.msra.mxu0 0.0
        %4857 = vmatprep.subr.mxu0 0.0
        %4858 = vmatpush1.msra.mxu0 0.0
        %4859 = vmatprep.subr.mxu0 0.0
        %4860 = vmatpush1.msra.mxu0 0.0
        %4861 = vmatprep.subr.mxu0 0.0
        %4862 = vmatpush1.msra.mxu0 0.0
        %4863 = vmatprep.subr.mxu0 0.0
        %4864 = vmatpush1.msra.mxu0 0.0
        %4865 = vmatprep.subr.mxu0 0.0
        %4866 = vmatpush1.msra.mxu0 0.0
        %4867 = vmatprep.subr.mxu0 0.0
        %4868 = vmatpush1.msra.mxu0 0.0
        %4869 = vmatprep.subr.mxu0 0.0
        %4870 = vmatpush1.msra.mxu0 0.0
        %4871 = vmatprep.subr.mxu0 0.0
        %4872 = vmatpush1.msra.mxu0 0.0
        %4873 = vmatprep.subr.mxu0 0.0
        %4874 = vmatpush1.msra.mxu0 0.0
        %4875 = vmatprep.subr.mxu0 0.0
        %4876 = vmatpush1.msra.mxu0 0.0
        %4877 = vmatprep.subr.mxu0 0.0
        %4878 = vmatpush1.msra.mxu0 0.0
        %4879 = vmatprep.subr.mxu0 0.0
        %4880 = vmatpush1.msra.mxu0 0.0
        %4881 = vmatprep.subr.mxu0 0.0
        %4882 = vmatpush1.msra.mxu0 0.0
        %4883 = vmatprep.subr.mxu0 0.0
        %4884 = vmatpush1.msra.mxu0 0.0
        %4885 = vmatprep.subr.mxu0 0.0
        %4886 = vmatpush1.msra.mxu0 0.0
        %4887 = vmatprep.subr.mxu0 0.0
        %4888 = vmatpush1.msra.mxu0 0.0
        %4889 = vmatprep.subr.mxu0 0.0
        %4890 = vmatpush1.msra.mxu0 0.0
        %4891 = vmatprep.subr.mxu0 0.0
        %4892 = vmatpush1.msra.mxu0 0.0
        %4893 = vmatprep.subr.mxu0 0.0
        %4894 = vmatpush1.msra.mxu0 0.0
        %4895 = vmatprep.subr.mxu0 0.0
        %4896 = vmatpush1.msra.mxu0 0.0
        %4897 = vmatprep.mubr.f32.mxu0 0.0
        %4898 = vmatmul.mubr.f32.gmra.mrb[0].mxu0 %v4810
        %v4899 = vpop.f32.mrb[0].mxu0
        %v4900 = vadd.f32 0.0, %v4899
        %v4901 = vpop.f32.mrb[0].mxu0
        %4902 = vmatprep.mubr.f32.mxu0 0.0
        %4903 = vmatmul.mubr.f32.gmra.mrb[0].mxu0 %v4813
        %v4904 = vpop.f32.mrb[0].mxu0
        %v4905 = vadd.f32 0.0, %v4904
        %v4906 = vpop.f32.mrb[0].mxu0
        %4907 = vmatprep.mubr.f32.mxu0 0.0
        %4908 = vmatmul.mubr.f32.gmra.mrb[0].mxu0 %v4816
        %v4909 = vpop.f32.mrb[0].mxu0
        %v4910 = vadd.f32 0.0, %v4909
        %v4911 = vpop.f32.mrb[0].mxu0
        %4912 = vmatprep.mubr.f32.mxu0 0.0
        %4913 = vmatmul.mubr.f32.gmra.mrb[0].mxu0 %v4819
        %v4914 = vpop.f32.mrb[0].mxu0
        %v4915 = vadd.f32 0.0, %v4914
        %v4916 = vpop.f32.mrb[0].mxu0
        %4917 = vmatprep.mubr.f32.mxu0 0.0
        %4918 = vmatmul.mubr.f32.gmra.mrb[0].mxu0 %v4822
        %v4919 = vpop.f32.mrb[0].mxu0
        %v4920 = vadd.f32 0.0, %v4919
        %v4921 = vpop.f32.mrb[0].mxu0
        %4922 = vmatprep.mubr.f32.mxu0 0.0
        %4923 = vmatmul.mubr.f32.gmra.mrb[0].mxu0 %v4825
        %v4924 = vpop.f32.mrb[0].mxu0
        %v4925 = vadd.f32 0.0, %v4924
        %v4926 = vpop.f32.mrb[0].mxu0
        %4927 = vmatprep.mubr.f32.mxu0 0.0
        %4928 = vmatmul.mubr.f32.gmra.mrb[0].mxu0 %v4828
        %v4929 = vpop.f32.mrb[0].mxu0
        %v4930 = vadd.f32 0.0, %v4929
        %v4931 = vpop.f32.mrb[0].mxu0
        %4932 = vmatprep.mubr.f32.mxu0 0.0
        %4933 = vmatmul.mubr.f32.gmra.mrb[0].mxu0 %v4831
        %v4934 = vpop.f32.mrb[0].mxu0
        %v4935 = vadd.f32 0.0, %v4934
        %v4936 = vpop.f32.mrb[0].mxu0
        %4937 = vdwg.mxu0
        %v4938 = vadd.f32 %v4781, %v4900
        %v4939 = vadd.f32 %v4782, %v4905
        %v4940 = vadd.f32 %v4783, %v4910
        %v4941 = vadd.f32 %v4784, %v4915
        %v4942 = vadd.f32 %v4785, %v4920
        %v4943 = vadd.f32 %v4786, %v4925
        %v4944 = vadd.f32 %v4787, %v4930
        %v4945 = vadd.f32 %v4788, %v4935
        %v4946 = vld [vmem:[#allocation3 + $0x10] sm:$0xff]
        %v4947 = vld [vmem:[#allocation3 + $0x18] sm:$0xff]
        %v4948 = vld [vmem:[#allocation3 + $0x20] sm:$0xff]
        %v4949 = vld [vmem:[#allocation3 + $0x28] sm:$0xff]
        %v4950 = vld [vmem:[#allocation3 + $0x30] sm:$0xff]
        %v4951 = vld [vmem:[#allocation3 + $0x38] sm:$0xff]
        %v4952 = vld [vmem:[#allocation3 + $0x40] sm:$0xff]
        %v4953 = vld [vmem:[#allocation3 + $0x48] sm:$0xff]
        %v4954 = vmul.f32 %v4946, %v3967
        %v4955 = vmul.f32 %v4947, %v3972
        %v4956 = vmul.f32 %v4948, %v3977
        %v4957 = vmul.f32 %v4949, %v3982
        %v4958 = vmul.f32 %v4950, %v3987
        %v4959 = vmul.f32 %v4951, %v3992
        %v4960 = vmul.f32 %v4952, %v3997
        %v4961 = vmul.f32 %v4953, %v4002
        %v4962 = vld [vmem:[%s4 + $0xc0] sm:$0xff]
        %v4963 = vld [vmem:[%s4 + $0xc8] sm:$0xff]
        %v4964 = vld [vmem:[%s4 + $0xd0] sm:$0xff]
        %v4965 = vld [vmem:[%s4 + $0xd8] sm:$0xff]
        %v4967 = vsel %vm3918, %v4954, 0
        %v4970 = vsel %vm3918, %v4955, 0
        %v4973 = vsel %vm3918, %v4956, 0
        %v4976 = vsel %vm3918, %v4957, 0
        %v4979 = vsel %vm3918, %v4958, 0
        %v4982 = vsel %vm3918, %v4959, 0
        %v4985 = vsel %vm3918, %v4960, 0
        %v4988 = vsel %vm3918, %v4961, 0
        %4990 = vmatprep.subr.mxu0 0.0
        %4991 = vmatpush1.msra.mxu0 %v4962
        %4992 = vmatprep.subr.mxu0 0.0
        %4993 = vmatpush1.msra.mxu0 %v4963
        %4994 = vmatprep.subr.mxu0 0.0
        %4995 = vmatpush1.msra.mxu0 %v4964
        %4996 = vmatprep.subr.mxu0 0.0
        %4997 = vmatpush1.msra.mxu0 %v4965
        %4998 = vmatprep.subr.mxu0 0.0
        %4999 = vmatpush1.msra.mxu0 0.0
        %5000 = vmatprep.subr.mxu0 0.0
        %5001 = vmatpush1.msra.mxu0 0.0
        %5002 = vmatprep.subr.mxu0 0.0
        %5003 = vmatpush1.msra.mxu0 0.0
        %5004 = vmatprep.subr.mxu0 0.0
        %5005 = vmatpush1.msra.mxu0 0.0
        %5006 = vmatprep.subr.mxu0 0.0
        %5007 = vmatpush1.msra.mxu0 0.0
        %5008 = vmatprep.subr.mxu0 0.0
        %5009 = vmatpush1.msra.mxu0 0.0
        %5010 = vmatprep.subr.mxu0 0.0
        %5011 = vmatpush1.msra.mxu0 0.0
        %5012 = vmatprep.subr.mxu0 0.0
        %5013 = vmatpush1.msra.mxu0 0.0
        %5014 = vmatprep.subr.mxu0 0.0
        %5015 = vmatpush1.msra.mxu0 0.0
        %5016 = vmatprep.subr.mxu0 0.0
        %5017 = vmatpush1.msra.mxu0 0.0
        %5018 = vmatprep.subr.mxu0 0.0
        %5019 = vmatpush1.msra.mxu0 0.0
        %5020 = vmatprep.subr.mxu0 0.0
        %5021 = vmatpush1.msra.mxu0 0.0
        %5022 = vmatprep.subr.mxu0 0.0
        %5023 = vmatpush1.msra.mxu0 0.0
        %5024 = vmatprep.subr.mxu0 0.0
        %5025 = vmatpush1.msra.mxu0 0.0
        %5026 = vmatprep.subr.mxu0 0.0
        %5027 = vmatpush1.msra.mxu0 0.0
        %5028 = vmatprep.subr.mxu0 0.0
        %5029 = vmatpush1.msra.mxu0 0.0
        %5030 = vmatprep.subr.mxu0 0.0
        %5031 = vmatpush1.msra.mxu0 0.0
        %5032 = vmatprep.subr.mxu0 0.0
        %5033 = vmatpush1.msra.mxu0 0.0
        %5034 = vmatprep.subr.mxu0 0.0
        %5035 = vmatpush1.msra.mxu0 0.0
        %5036 = vmatprep.subr.mxu0 0.0
        %5037 = vmatpush1.msra.mxu0 0.0
        %5038 = vmatprep.subr.mxu0 0.0
        %5039 = vmatpush1.msra.mxu0 0.0
        %5040 = vmatprep.subr.mxu0 0.0
        %5041 = vmatpush1.msra.mxu0 0.0
        %5042 = vmatprep.subr.mxu0 0.0
        %5043 = vmatpush1.msra.mxu0 0.0
        %5044 = vmatprep.subr.mxu0 0.0
        %5045 = vmatpush1.msra.mxu0 0.0
        %5046 = vmatprep.subr.mxu0 0.0
        %5047 = vmatpush1.msra.mxu0 0.0
        %5048 = vmatprep.subr.mxu0 0.0
        %5049 = vmatpush1.msra.mxu0 0.0
        %5050 = vmatprep.subr.mxu0 0.0
        %5051 = vmatpush1.msra.mxu0 0.0
        %5052 = vmatprep.subr.mxu0 0.0
        %5053 = vmatpush1.msra.mxu0 0.0
        %5054 = vmatprep.mubr.f32.mxu0 0.0
        %5055 = vmatmul.mubr.f32.gmra.mrb[0].mxu0 %v4967
        %v5056 = vpop.f32.mrb[0].mxu0
        %v5057 = vadd.f32 0.0, %v5056
        %v5058 = vpop.f32.mrb[0].mxu0
        %5059 = vmatprep.mubr.f32.mxu0 0.0
        %5060 = vmatmul.mubr.f32.gmra.mrb[0].mxu0 %v4970
        %v5061 = vpop.f32.mrb[0].mxu0
        %v5062 = vadd.f32 0.0, %v5061
        %v5063 = vpop.f32.mrb[0].mxu0
        %5064 = vmatprep.mubr.f32.mxu0 0.0
        %5065 = vmatmul.mubr.f32.gmra.mrb[0].mxu0 %v4973
        %v5066 = vpop.f32.mrb[0].mxu0
        %v5067 = vadd.f32 0.0, %v5066
        %v5068 = vpop.f32.mrb[0].mxu0
        %5069 = vmatprep.mubr.f32.mxu0 0.0
        %5070 = vmatmul.mubr.f32.gmra.mrb[0].mxu0 %v4976
        %v5071 = vpop.f32.mrb[0].mxu0
        %v5072 = vadd.f32 0.0, %v5071
        %v5073 = vpop.f32.mrb[0].mxu0
        %5074 = vmatprep.mubr.f32.mxu0 0.0
        %5075 = vmatmul.mubr.f32.gmra.mrb[0].mxu0 %v4979
        %v5076 = vpop.f32.mrb[0].mxu0
        %v5077 = vadd.f32 0.0, %v5076
        %v5078 = vpop.f32.mrb[0].mxu0
        %5079 = vmatprep.mubr.f32.mxu0 0.0
        %5080 = vmatmul.mubr.f32.gmra.mrb[0].mxu0 %v4982
        %v5081 = vpop.f32.mrb[0].mxu0
        %v5082 = vadd.f32 0.0, %v5081
        %v5083 = vpop.f32.mrb[0].mxu0
        %5084 = vmatprep.mubr.f32.mxu0 0.0
        %5085 = vmatmul.mubr.f32.gmra.mrb[0].mxu0 %v4985
        %v5086 = vpop.f32.mrb[0].mxu0
        %v5087 = vadd.f32 0.0, %v5086
        %v5088 = vpop.f32.mrb[0].mxu0
        %5089 = vmatprep.mubr.f32.mxu0 0.0
        %5090 = vmatmul.mubr.f32.gmra.mrb[0].mxu0 %v4988
        %v5091 = vpop.f32.mrb[0].mxu0
        %v5092 = vadd.f32 0.0, %v5091
        %v5093 = vpop.f32.mrb[0].mxu0
        %5094 = vdwg.mxu0
        %v5095 = vadd.f32 %v4938, %v5057
        %v5096 = vadd.f32 %v4939, %v5062
        %v5097 = vadd.f32 %v4940, %v5067
        %v5098 = vadd.f32 %v4941, %v5072
        %v5099 = vadd.f32 %v4942, %v5077
        %v5100 = vadd.f32 %v4943, %v5082
        %v5101 = vadd.f32 %v4944, %v5087
        %v5102 = vadd.f32 %v4945, %v5092
        %v5103 = vld [vmem:[#allocation3 + $0x11] sm:$0xff]
        %v5104 = vld [vmem:[#allocation3 + $0x19] sm:$0xff]
        %v5105 = vld [vmem:[#allocation3 + $0x21] sm:$0xff]
        %v5106 = vld [vmem:[#allocation3 + $0x29] sm:$0xff]
        %v5107 = vld [vmem:[#allocation3 + $0x31] sm:$0xff]
        %v5108 = vld [vmem:[#allocation3 + $0x39] sm:$0xff]
        %v5109 = vld [vmem:[#allocation3 + $0x41] sm:$0xff]
        %v5110 = vld [vmem:[#allocation3 + $0x49] sm:$0xff]
        %v5111 = vld [vmem:[%s4 + $0xe0] sm:$0xff]
        %v5112 = vld [vmem:[%s4 + $0xe8] sm:$0xff]
        %v5113 = vld [vmem:[%s4 + $0xf0] sm:$0xff]
        %v5114 = vld [vmem:[%s4 + $0xf8] sm:$0xff]
        %v5116 = vsel %vm3918, %v5103, 0
        %v5119 = vsel %vm3918, %v5104, 0
        %v5122 = vsel %vm3918, %v5105, 0
        %v5125 = vsel %vm3918, %v5106, 0
        %v5128 = vsel %vm3918, %v5107, 0
        %v5131 = vsel %vm3918, %v5108, 0
        %v5134 = vsel %vm3918, %v5109, 0
        %v5137 = vsel %vm3918, %v5110, 0
        %5139 = vmatprep.subr.mxu0 0.0
        %5140 = vmatpush1.msra.mxu0 %v5111
        %5141 = vmatprep.subr.mxu0 0.0
        %5142 = vmatpush1.msra.mxu0 %v5112
        %5143 = vmatprep.subr.mxu0 0.0
        %5144 = vmatpush1.msra.mxu0 %v5113
        %5145 = vmatprep.subr.mxu0 0.0
        %5146 = vmatpush1.msra.mxu0 %v5114
        %5147 = vmatprep.subr.mxu0 0.0
        %5148 = vmatpush1.msra.mxu0 0.0
        %5149 = vmatprep.subr.mxu0 0.0
        %5150 = vmatpush1.msra.mxu0 0.0
        %5151 = vmatprep.subr.mxu0 0.0
        %5152 = vmatpush1.msra.mxu0 0.0
        %5153 = vmatprep.subr.mxu0 0.0
        %5154 = vmatpush1.msra.mxu0 0.0
        %5155 = vmatprep.subr.mxu0 0.0
        %5156 = vmatpush1.msra.mxu0 0.0
        %5157 = vmatprep.subr.mxu0 0.0
        %5158 = vmatpush1.msra.mxu0 0.0
        %5159 = vmatprep.subr.mxu0 0.0
        %5160 = vmatpush1.msra.mxu0 0.0
        %5161 = vmatprep.subr.mxu0 0.0
        %5162 = vmatpush1.msra.mxu0 0.0
        %5163 = vmatprep.subr.mxu0 0.0
        %5164 = vmatpush1.msra.mxu0 0.0
        %5165 = vmatprep.subr.mxu0 0.0
        %5166 = vmatpush1.msra.mxu0 0.0
        %5167 = vmatprep.subr.mxu0 0.0
        %5168 = vmatpush1.msra.mxu0 0.0
        %5169 = vmatprep.subr.mxu0 0.0
        %5170 = vmatpush1.msra.mxu0 0.0
        %5171 = vmatprep.subr.mxu0 0.0
        %5172 = vmatpush1.msra.mxu0 0.0
        %5173 = vmatprep.subr.mxu0 0.0
        %5174 = vmatpush1.msra.mxu0 0.0
        %5175 = vmatprep.subr.mxu0 0.0
        %5176 = vmatpush1.msra.mxu0 0.0
        %5177 = vmatprep.subr.mxu0 0.0
        %5178 = vmatpush1.msra.mxu0 0.0
        %5179 = vmatprep.subr.mxu0 0.0
        %5180 = vmatpush1.msra.mxu0 0.0
        %5181 = vmatprep.subr.mxu0 0.0
        %5182 = vmatpush1.msra.mxu0 0.0
        %5183 = vmatprep.subr.mxu0 0.0
        %5184 = vmatpush1.msra.mxu0 0.0
        %5185 = vmatprep.subr.mxu0 0.0
        %5186 = vmatpush1.msra.mxu0 0.0
        %5187 = vmatprep.subr.mxu0 0.0
        %5188 = vmatpush1.msra.mxu0 0.0
        %5189 = vmatprep.subr.mxu0 0.0
        %5190 = vmatpush1.msra.mxu0 0.0
        %5191 = vmatprep.subr.mxu0 0.0
        %5192 = vmatpush1.msra.mxu0 0.0
        %5193 = vmatprep.subr.mxu0 0.0
        %5194 = vmatpush1.msra.mxu0 0.0
        %5195 = vmatprep.subr.mxu0 0.0
        %5196 = vmatpush1.msra.mxu0 0.0
        %5197 = vmatprep.subr.mxu0 0.0
        %5198 = vmatpush1.msra.mxu0 0.0
        %5199 = vmatprep.subr.mxu0 0.0
        %5200 = vmatpush1.msra.mxu0 0.0
        %5201 = vmatprep.subr.mxu0 0.0
        %5202 = vmatpush1.msra.mxu0 0.0
        %5203 = vmatprep.mubr.f32.mxu0 0.0
        %5204 = vmatmul.mubr.f32.gmra.mrb[0].mxu0 %v5116
        %v5205 = vpop.f32.mrb[0].mxu0
        %v5206 = vadd.f32 0.0, %v5205
        %v5207 = vpop.f32.mrb[0].mxu0
        %5208 = vmatprep.mubr.f32.mxu0 0.0
        %5209 = vmatmul.mubr.f32.gmra.mrb[0].mxu0 %v5119
        %v5210 = vpop.f32.mrb[0].mxu0
        %v5211 = vadd.f32 0.0, %v5210
        %v5212 = vpop.f32.mrb[0].mxu0
        %5213 = vmatprep.mubr.f32.mxu0 0.0
        %5214 = vmatmul.mubr.f32.gmra.mrb[0].mxu0 %v5122
        %v5215 = vpop.f32.mrb[0].mxu0
        %v5216 = vadd.f32 0.0, %v5215
        %v5217 = vpop.f32.mrb[0].mxu0
        %5218 = vmatprep.mubr.f32.mxu0 0.0
        %5219 = vmatmul.mubr.f32.gmra.mrb[0].mxu0 %v5125
        %v5220 = vpop.f32.mrb[0].mxu0
        %v5221 = vadd.f32 0.0, %v5220
        %v5222 = vpop.f32.mrb[0].mxu0
        %5223 = vmatprep.mubr.f32.mxu0 0.0
        %5224 = vmatmul.mubr.f32.gmra.mrb[0].mxu0 %v5128
        %v5225 = vpop.f32.mrb[0].mxu0
        %v5226 = vadd.f32 0.0, %v5225
        %v5227 = vpop.f32.mrb[0].mxu0
        %5228 = vmatprep.mubr.f32.mxu0 0.0
        %5229 = vmatmul.mubr.f32.gmra.mrb[0].mxu0 %v5131
        %v5230 = vpop.f32.mrb[0].mxu0
        %v5231 = vadd.f32 0.0, %v5230
        %v5232 = vpop.f32.mrb[0].mxu0
        %5233 = vmatprep.mubr.f32.mxu0 0.0
        %5234 = vmatmul.mubr.f32.gmra.mrb[0].mxu0 %v5134
        %v5235 = vpop.f32.mrb[0].mxu0
        %v5236 = vadd.f32 0.0, %v5235
        %v5237 = vpop.f32.mrb[0].mxu0
        %5238 = vmatprep.mubr.f32.mxu0 0.0
        %5239 = vmatmul.mubr.f32.gmra.mrb[0].mxu0 %v5137
        %v5240 = vpop.f32.mrb[0].mxu0
        %v5241 = vadd.f32 0.0, %v5240
        %v5242 = vpop.f32.mrb[0].mxu0
        %5243 = vdwg.mxu0
        %v5244 = vadd.f32 %v5095, %v5206
        %v5245 = vadd.f32 %v5096, %v5211
        %v5246 = vadd.f32 %v5097, %v5216
        %v5247 = vadd.f32 %v5098, %v5221
        %v5248 = vadd.f32 %v5099, %v5226
        %v5249 = vadd.f32 %v5100, %v5231
        %v5250 = vadd.f32 %v5101, %v5236
        %v5251 = vadd.f32 %v5102, %v5241
        %v5252 = vld [vmem:[#allocation3 + $0x12] sm:$0xff]
        %v5253 = vld [vmem:[#allocation3 + $0x1a] sm:$0xff]
        %v5254 = vld [vmem:[#allocation3 + $0x22] sm:$0xff]
        %v5255 = vld [vmem:[#allocation3 + $0x2a] sm:$0xff]
        %v5256 = vld [vmem:[#allocation3 + $0x32] sm:$0xff]
        %v5257 = vld [vmem:[#allocation3 + $0x3a] sm:$0xff]
        %v5258 = vld [vmem:[#allocation3 + $0x42] sm:$0xff]
        %v5259 = vld [vmem:[#allocation3 + $0x4a] sm:$0xff]
        %v5260 = vmul.f32 %v5252, %v4297
        %v5261 = vmul.f32 %v5253, %v4302
        %v5262 = vmul.f32 %v5254, %v4307
        %v5263 = vmul.f32 %v5255, %v4312
        %v5264 = vmul.f32 %v5256, %v4317
        %v5265 = vmul.f32 %v5257, %v4322
        %v5266 = vmul.f32 %v5258, %v4327
        %v5267 = vmul.f32 %v5259, %v4332
        %v5268 = vld [vmem:[%s4 + $0x100] sm:$0xff]
        %v5269 = vld [vmem:[%s4 + $0x108] sm:$0xff]
        %v5270 = vld [vmem:[%s4 + $0x110] sm:$0xff]
        %v5271 = vld [vmem:[%s4 + $0x118] sm:$0xff]
        %v5273 = vsel %vm3918, %v5260, 0
        %v5276 = vsel %vm3918, %v5261, 0
        %v5279 = vsel %vm3918, %v5262, 0
        %v5282 = vsel %vm3918, %v5263, 0
        %v5285 = vsel %vm3918, %v5264, 0
        %v5288 = vsel %vm3918, %v5265, 0
        %v5291 = vsel %vm3918, %v5266, 0
        %v5294 = vsel %vm3918, %v5267, 0
        %5296 = vmatprep.subr.mxu0 0.0
        %5297 = vmatpush1.msra.mxu0 %v5268
        %5298 = vmatprep.subr.mxu0 0.0
        %5299 = vmatpush1.msra.mxu0 %v5269
        %5300 = vmatprep.subr.mxu0 0.0
        %5301 = vmatpush1.msra.mxu0 %v5270
        %5302 = vmatprep.subr.mxu0 0.0
        %5303 = vmatpush1.msra.mxu0 %v5271
        %5304 = vmatprep.subr.mxu0 0.0
        %5305 = vmatpush1.msra.mxu0 0.0
        %5306 = vmatprep.subr.mxu0 0.0
        %5307 = vmatpush1.msra.mxu0 0.0
        %5308 = vmatprep.subr.mxu0 0.0
        %5309 = vmatpush1.msra.mxu0 0.0
        %5310 = vmatprep.subr.mxu0 0.0
        %5311 = vmatpush1.msra.mxu0 0.0
        %5312 = vmatprep.subr.mxu0 0.0
        %5313 = vmatpush1.msra.mxu0 0.0
        %5314 = vmatprep.subr.mxu0 0.0
        %5315 = vmatpush1.msra.mxu0 0.0
        %5316 = vmatprep.subr.mxu0 0.0
        %5317 = vmatpush1.msra.mxu0 0.0
        %5318 = vmatprep.subr.mxu0 0.0
        %5319 = vmatpush1.msra.mxu0 0.0
        %5320 = vmatprep.subr.mxu0 0.0
        %5321 = vmatpush1.msra.mxu0 0.0
        %5322 = vmatprep.subr.mxu0 0.0
        %5323 = vmatpush1.msra.mxu0 0.0
        %5324 = vmatprep.subr.mxu0 0.0
        %5325 = vmatpush1.msra.mxu0 0.0
        %5326 = vmatprep.subr.mxu0 0.0
        %5327 = vmatpush1.msra.mxu0 0.0
        %5328 = vmatprep.subr.mxu0 0.0
        %5329 = vmatpush1.msra.mxu0 0.0
        %5330 = vmatprep.subr.mxu0 0.0
        %5331 = vmatpush1.msra.mxu0 0.0
        %5332 = vmatprep.subr.mxu0 0.0
        %5333 = vmatpush1.msra.mxu0 0.0
        %5334 = vmatprep.subr.mxu0 0.0
        %5335 = vmatpush1.msra.mxu0 0.0
        %5336 = vmatprep.subr.mxu0 0.0
        %5337 = vmatpush1.msra.mxu0 0.0
        %5338 = vmatprep.subr.mxu0 0.0
        %5339 = vmatpush1.msra.mxu0 0.0
        %5340 = vmatprep.subr.mxu0 0.0
        %5341 = vmatpush1.msra.mxu0 0.0
        %5342 = vmatprep.subr.mxu0 0.0
        %5343 = vmatpush1.msra.mxu0 0.0
        %5344 = vmatprep.subr.mxu0 0.0
        %5345 = vmatpush1.msra.mxu0 0.0
        %5346 = vmatprep.subr.mxu0 0.0
        %5347 = vmatpush1.msra.mxu0 0.0
        %5348 = vmatprep.subr.mxu0 0.0
        %5349 = vmatpush1.msra.mxu0 0.0
        %5350 = vmatprep.subr.mxu0 0.0
        %5351 = vmatpush1.msra.mxu0 0.0
        %5352 = vmatprep.subr.mxu0 0.0
        %5353 = vmatpush1.msra.mxu0 0.0
        %5354 = vmatprep.subr.mxu0 0.0
        %5355 = vmatpush1.msra.mxu0 0.0
        %5356 = vmatprep.subr.mxu0 0.0
        %5357 = vmatpush1.msra.mxu0 0.0
        %5358 = vmatprep.subr.mxu0 0.0
        %5359 = vmatpush1.msra.mxu0 0.0
        %5360 = vmatprep.mubr.f32.mxu0 0.0
        %5361 = vmatmul.mubr.f32.gmra.mrb[0].mxu0 %v5273
        %v5362 = vpop.f32.mrb[0].mxu0
        %v5363 = vadd.f32 0.0, %v5362
        %v5364 = vpop.f32.mrb[0].mxu0
        %5365 = vmatprep.mubr.f32.mxu0 0.0
        %5366 = vmatmul.mubr.f32.gmra.mrb[0].mxu0 %v5276
        %v5367 = vpop.f32.mrb[0].mxu0
        %v5368 = vadd.f32 0.0, %v5367
        %v5369 = vpop.f32.mrb[0].mxu0
        %5370 = vmatprep.mubr.f32.mxu0 0.0
        %5371 = vmatmul.mubr.f32.gmra.mrb[0].mxu0 %v5279
        %v5372 = vpop.f32.mrb[0].mxu0
        %v5373 = vadd.f32 0.0, %v5372
        %v5374 = vpop.f32.mrb[0].mxu0
        %5375 = vmatprep.mubr.f32.mxu0 0.0
        %5376 = vmatmul.mubr.f32.gmra.mrb[0].mxu0 %v5282
        %v5377 = vpop.f32.mrb[0].mxu0
        %v5378 = vadd.f32 0.0, %v5377
        %v5379 = vpop.f32.mrb[0].mxu0
        %5380 = vmatprep.mubr.f32.mxu0 0.0
        %5381 = vmatmul.mubr.f32.gmra.mrb[0].mxu0 %v5285
        %v5382 = vpop.f32.mrb[0].mxu0
        %v5383 = vadd.f32 0.0, %v5382
        %v5384 = vpop.f32.mrb[0].mxu0
        %5385 = vmatprep.mubr.f32.mxu0 0.0
        %5386 = vmatmul.mubr.f32.gmra.mrb[0].mxu0 %v5288
        %v5387 = vpop.f32.mrb[0].mxu0
        %v5388 = vadd.f32 0.0, %v5387
        %v5389 = vpop.f32.mrb[0].mxu0
        %5390 = vmatprep.mubr.f32.mxu0 0.0
        %5391 = vmatmul.mubr.f32.gmra.mrb[0].mxu0 %v5291
        %v5392 = vpop.f32.mrb[0].mxu0
        %v5393 = vadd.f32 0.0, %v5392
        %v5394 = vpop.f32.mrb[0].mxu0
        %5395 = vmatprep.mubr.f32.mxu0 0.0
        %5396 = vmatmul.mubr.f32.gmra.mrb[0].mxu0 %v5294
        %v5397 = vpop.f32.mrb[0].mxu0
        %v5398 = vadd.f32 0.0, %v5397
        %v5399 = vpop.f32.mrb[0].mxu0
        %5400 = vdwg.mxu0
        %v5401 = vadd.f32 %v5244, %v5363
        %v5402 = vadd.f32 %v5245, %v5368
        %v5403 = vadd.f32 %v5246, %v5373
        %v5404 = vadd.f32 %v5247, %v5378
        %v5405 = vadd.f32 %v5248, %v5383
        %v5406 = vadd.f32 %v5249, %v5388
        %v5407 = vadd.f32 %v5250, %v5393
        %v5408 = vadd.f32 %v5251, %v5398
        %v5409 = vld [vmem:[%s5] sm:$0x1]
        %v5411 = vlaneseq
        %v5412 = vshrl.u32 %v5411, 7
        %v5413 = vsub.s32 0, %v5412
        %v5414 = vrot.slane %v5409, %v5413
        %v5416 = vadd.f32 %v5401, %v5414
        %v5417 = vadd.f32 %v5402, %v5414
        %v5418 = vadd.f32 %v5403, %v5414
        %v5419 = vadd.f32 %v5404, %v5414
        %v5420 = vadd.f32 %v5405, %v5414
        %v5421 = vadd.f32 %v5406, %v5414
        %v5422 = vadd.f32 %v5407, %v5414
        %v5423 = vadd.f32 %v5408, %v5414
        %v5424 = vmax.f32 %v5416, 0.0
        %v5425 = vmax.f32 %v5417, 0.0
        %v5426 = vmax.f32 %v5418, 0.0
        %v5427 = vmax.f32 %v5419, 0.0
        %v5428 = vmax.f32 %v5420, 0.0
        %v5429 = vmax.f32 %v5421, 0.0
        %v5430 = vmax.f32 %v5422, 0.0
        %v5431 = vmax.f32 %v5423, 0.0
        %v5432 = vld [vmem:[%s14] sm:$0xff]
        %v5433 = vld [vmem:[%s14 + $0x8] sm:$0xff]
        %vm5434 = vcmask 523264
        %v5436 = vsel %vm5434, %v5432, 0
        %v5439 = vsel %vm5434, %v5433, 0
        %5441 = vmatprep.subr.mxu0 0.0
        %5442 = vmatpush1.msra.mxu0 %v5424
        %5443 = vmatprep.subr.mxu0 0.0
        %5444 = vmatpush1.msra.mxu0 %v5425
        %5445 = vmatprep.subr.mxu0 0.0
        %5446 = vmatpush1.msra.mxu0 %v5426
        %5447 = vmatprep.subr.mxu0 0.0
        %5448 = vmatpush1.msra.mxu0 %v5427
        %5449 = vmatprep.subr.mxu0 0.0
        %5450 = vmatpush1.msra.mxu0 %v5428
        %5451 = vmatprep.subr.mxu0 0.0
        %5452 = vmatpush1.msra.mxu0 %v5429
        %5453 = vmatprep.subr.mxu0 0.0
        %5454 = vmatpush1.msra.mxu0 %v5430
        %5455 = vmatprep.subr.mxu0 0.0
        %5456 = vmatpush1.msra.mxu0 %v5431
        %5457 = vmatprep.subr.mxu0 0.0
        %5458 = vmatpush1.msra.mxu0 0.0
        %5459 = vmatprep.subr.mxu0 0.0
        %5460 = vmatpush1.msra.mxu0 0.0
        %5461 = vmatprep.subr.mxu0 0.0
        %5462 = vmatpush1.msra.mxu0 0.0
        %5463 = vmatprep.subr.mxu0 0.0
        %5464 = vmatpush1.msra.mxu0 0.0
        %5465 = vmatprep.subr.mxu0 0.0
        %5466 = vmatpush1.msra.mxu0 0.0
        %5467 = vmatprep.subr.mxu0 0.0
        %5468 = vmatpush1.msra.mxu0 0.0
        %5469 = vmatprep.subr.mxu0 0.0
        %5470 = vmatpush1.msra.mxu0 0.0
        %5471 = vmatprep.subr.mxu0 0.0
        %5472 = vmatpush1.msra.mxu0 0.0
        %5473 = vmatprep.subr.mxu0 0.0
        %5474 = vmatpush1.msra.mxu0 0.0
        %5475 = vmatprep.subr.mxu0 0.0
        %5476 = vmatpush1.msra.mxu0 0.0
        %5477 = vmatprep.subr.mxu0 0.0
        %5478 = vmatpush1.msra.mxu0 0.0
        %5479 = vmatprep.subr.mxu0 0.0
        %5480 = vmatpush1.msra.mxu0 0.0
        %5481 = vmatprep.subr.mxu0 0.0
        %5482 = vmatpush1.msra.mxu0 0.0
        %5483 = vmatprep.subr.mxu0 0.0
        %5484 = vmatpush1.msra.mxu0 0.0
        %5485 = vmatprep.subr.mxu0 0.0
        %5486 = vmatpush1.msra.mxu0 0.0
        %5487 = vmatprep.subr.mxu0 0.0
        %5488 = vmatpush1.msra.mxu0 0.0
        %5489 = vmatprep.subr.mxu0 0.0
        %5490 = vmatpush1.msra.mxu0 0.0
        %5491 = vmatprep.subr.mxu0 0.0
        %5492 = vmatpush1.msra.mxu0 0.0
        %5493 = vmatprep.subr.mxu0 0.0
        %5494 = vmatpush1.msra.mxu0 0.0
        %5495 = vmatprep.subr.mxu0 0.0
        %5496 = vmatpush1.msra.mxu0 0.0
        %5497 = vmatprep.subr.mxu0 0.0
        %5498 = vmatpush1.msra.mxu0 0.0
        %5499 = vmatprep.subr.mxu0 0.0
        %5500 = vmatpush1.msra.mxu0 0.0
        %5501 = vmatprep.subr.mxu0 0.0
        %5502 = vmatpush1.msra.mxu0 0.0
        %5503 = vmatprep.subr.mxu0 0.0
        %5504 = vmatpush1.msra.mxu0 0.0
        %5505 = vmatprep.mubr.f32.mxu0 0.0
        %5506 = vmatmul.mubr.f32.gmra.mrb[0].mxu0 %v5436
        %v5507 = vpop.f32.mrb[0].mxu0
        %v5508 = vadd.f32 0.0, %v5507
        %v5509 = vpop.f32.mrb[0].mxu0
        %5510 = vmatprep.mubr.f32.mxu0 0.0
        %5511 = vmatmul.mubr.f32.gmra.mrb[0].mxu0 %v5439
        %v5512 = vpop.f32.mrb[0].mxu0
        %v5513 = vadd.f32 0.0, %v5512
        %v5514 = vpop.f32.mrb[0].mxu0
        %5515 = vdwg.mxu0
        %s5516 = scalar_lea.vmem %s14, 16
        %v5517 = vld [vmem:[%s5516] sm:$0xff]
        %v5518 = vld [vmem:[%s5516 + $0x8] sm:$0xff]
        %v5520 = vsel %vm5434, %v5517, 0
        %v5523 = vsel %vm5434, %v5518, 0
        %5525 = vmatprep.subr.mxu0 0.0
        %5526 = vmatpush1.msra.mxu0 %v5424
        %5527 = vmatprep.subr.mxu0 0.0
        %5528 = vmatpush1.msra.mxu0 %v5425
        %5529 = vmatprep.subr.mxu0 0.0
        %5530 = vmatpush1.msra.mxu0 %v5426
        %5531 = vmatprep.subr.mxu0 0.0
        %5532 = vmatpush1.msra.mxu0 %v5427
        %5533 = vmatprep.subr.mxu0 0.0
        %5534 = vmatpush1.msra.mxu0 %v5428
        %5535 = vmatprep.subr.mxu0 0.0
        %5536 = vmatpush1.msra.mxu0 %v5429
        %5537 = vmatprep.subr.mxu0 0.0
        %5538 = vmatpush1.msra.mxu0 %v5430
        %5539 = vmatprep.subr.mxu0 0.0
        %5540 = vmatpush1.msra.mxu0 %v5431
        %5541 = vmatprep.subr.mxu0 0.0
        %5542 = vmatpush1.msra.mxu0 0.0
        %5543 = vmatprep.subr.mxu0 0.0
        %5544 = vmatpush1.msra.mxu0 0.0
        %5545 = vmatprep.subr.mxu0 0.0
        %5546 = vmatpush1.msra.mxu0 0.0
        %5547 = vmatprep.subr.mxu0 0.0
        %5548 = vmatpush1.msra.mxu0 0.0
        %5549 = vmatprep.subr.mxu0 0.0
        %5550 = vmatpush1.msra.mxu0 0.0
        %5551 = vmatprep.subr.mxu0 0.0
        %5552 = vmatpush1.msra.mxu0 0.0
        %5553 = vmatprep.subr.mxu0 0.0
        %5554 = vmatpush1.msra.mxu0 0.0
        %5555 = vmatprep.subr.mxu0 0.0
        %5556 = vmatpush1.msra.mxu0 0.0
        %5557 = vmatprep.subr.mxu0 0.0
        %5558 = vmatpush1.msra.mxu0 0.0
        %5559 = vmatprep.subr.mxu0 0.0
        %5560 = vmatpush1.msra.mxu0 0.0
        %5561 = vmatprep.subr.mxu0 0.0
        %5562 = vmatpush1.msra.mxu0 0.0
        %5563 = vmatprep.subr.mxu0 0.0
        %5564 = vmatpush1.msra.mxu0 0.0
        %5565 = vmatprep.subr.mxu0 0.0
        %5566 = vmatpush1.msra.mxu0 0.0
        %5567 = vmatprep.subr.mxu0 0.0
        %5568 = vmatpush1.msra.mxu0 0.0
        %5569 = vmatprep.subr.mxu0 0.0
        %5570 = vmatpush1.msra.mxu0 0.0
        %5571 = vmatprep.subr.mxu0 0.0
        %5572 = vmatpush1.msra.mxu0 0.0
        %5573 = vmatprep.subr.mxu0 0.0
        %5574 = vmatpush1.msra.mxu0 0.0
        %5575 = vmatprep.subr.mxu0 0.0
        %5576 = vmatpush1.msra.mxu0 0.0
        %5577 = vmatprep.subr.mxu0 0.0
        %5578 = vmatpush1.msra.mxu0 0.0
        %5579 = vmatprep.subr.mxu0 0.0
        %5580 = vmatpush1.msra.mxu0 0.0
        %5581 = vmatprep.subr.mxu0 0.0
        %5582 = vmatpush1.msra.mxu0 0.0
        %5583 = vmatprep.subr.mxu0 0.0
        %5584 = vmatpush1.msra.mxu0 0.0
        %5585 = vmatprep.subr.mxu0 0.0
        %5586 = vmatpush1.msra.mxu0 0.0
        %5587 = vmatprep.subr.mxu0 0.0
        %5588 = vmatpush1.msra.mxu0 0.0
        %5589 = vmatprep.mubr.f32.mxu0 0.0
        %5590 = vmatmul.mubr.f32.gmra.mrb[0].mxu0 %v5520
        %v5591 = vpop.f32.mrb[0].mxu0
        %v5592 = vadd.f32 0.0, %v5591
        %v5593 = vpop.f32.mrb[0].mxu0
        %5594 = vmatprep.mubr.f32.mxu0 0.0
        %5595 = vmatmul.mubr.f32.gmra.mrb[0].mxu0 %v5523
        %v5596 = vpop.f32.mrb[0].mxu0
        %v5597 = vadd.f32 0.0, %v5596
        %v5598 = vpop.f32.mrb[0].mxu0
        %5599 = vdwg.mxu0
        %v5600 = vmax.f32 %v5508, %v5592
        %v5601 = vmax.f32 %v5513, %v5597
        %s5602 = scalar_lea.vmem %s14, 32
        %v5603 = vld [vmem:[%s5602] sm:$0xff]
        %v5604 = vld [vmem:[%s5602 + $0x8] sm:$0xff]
        %v5606 = vsel %vm5434, %v5603, 0
        %v5609 = vsel %vm5434, %v5604, 0
        %5611 = vmatprep.subr.mxu0 0.0
        %5612 = vmatpush1.msra.mxu0 %v5424
        %5613 = vmatprep.subr.mxu0 0.0
        %5614 = vmatpush1.msra.mxu0 %v5425
        %5615 = vmatprep.subr.mxu0 0.0
        %5616 = vmatpush1.msra.mxu0 %v5426
        %5617 = vmatprep.subr.mxu0 0.0
        %5618 = vmatpush1.msra.mxu0 %v5427
        %5619 = vmatprep.subr.mxu0 0.0
        %5620 = vmatpush1.msra.mxu0 %v5428
        %5621 = vmatprep.subr.mxu0 0.0
        %5622 = vmatpush1.msra.mxu0 %v5429
        %5623 = vmatprep.subr.mxu0 0.0
        %5624 = vmatpush1.msra.mxu0 %v5430
        %5625 = vmatprep.subr.mxu0 0.0
        %5626 = vmatpush1.msra.mxu0 %v5431
        %5627 = vmatprep.subr.mxu0 0.0
        %5628 = vmatpush1.msra.mxu0 0.0
        %5629 = vmatprep.subr.mxu0 0.0
        %5630 = vmatpush1.msra.mxu0 0.0
        %5631 = vmatprep.subr.mxu0 0.0
        %5632 = vmatpush1.msra.mxu0 0.0
        %5633 = vmatprep.subr.mxu0 0.0
        %5634 = vmatpush1.msra.mxu0 0.0
        %5635 = vmatprep.subr.mxu0 0.0
        %5636 = vmatpush1.msra.mxu0 0.0
        %5637 = vmatprep.subr.mxu0 0.0
        %5638 = vmatpush1.msra.mxu0 0.0
        %5639 = vmatprep.subr.mxu0 0.0
        %5640 = vmatpush1.msra.mxu0 0.0
        %5641 = vmatprep.subr.mxu0 0.0
        %5642 = vmatpush1.msra.mxu0 0.0
        %5643 = vmatprep.subr.mxu0 0.0
        %5644 = vmatpush1.msra.mxu0 0.0
        %5645 = vmatprep.subr.mxu0 0.0
        %5646 = vmatpush1.msra.mxu0 0.0
        %5647 = vmatprep.subr.mxu0 0.0
        %5648 = vmatpush1.msra.mxu0 0.0
        %5649 = vmatprep.subr.mxu0 0.0
        %5650 = vmatpush1.msra.mxu0 0.0
        %5651 = vmatprep.subr.mxu0 0.0
        %5652 = vmatpush1.msra.mxu0 0.0
        %5653 = vmatprep.subr.mxu0 0.0
        %5654 = vmatpush1.msra.mxu0 0.0
        %5655 = vmatprep.subr.mxu0 0.0
        %5656 = vmatpush1.msra.mxu0 0.0
        %5657 = vmatprep.subr.mxu0 0.0
        %5658 = vmatpush1.msra.mxu0 0.0
        %5659 = vmatprep.subr.mxu0 0.0
        %5660 = vmatpush1.msra.mxu0 0.0
        %5661 = vmatprep.subr.mxu0 0.0
        %5662 = vmatpush1.msra.mxu0 0.0
        %5663 = vmatprep.subr.mxu0 0.0
        %5664 = vmatpush1.msra.mxu0 0.0
        %5665 = vmatprep.subr.mxu0 0.0
        %5666 = vmatpush1.msra.mxu0 0.0
        %5667 = vmatprep.subr.mxu0 0.0
        %5668 = vmatpush1.msra.mxu0 0.0
        %5669 = vmatprep.subr.mxu0 0.0
        %5670 = vmatpush1.msra.mxu0 0.0
        %5671 = vmatprep.subr.mxu0 0.0
        %5672 = vmatpush1.msra.mxu0 0.0
        %5673 = vmatprep.subr.mxu0 0.0
        %5674 = vmatpush1.msra.mxu0 0.0
        %5675 = vmatprep.mubr.f32.mxu0 0.0
        %5676 = vmatmul.mubr.f32.gmra.mrb[0].mxu0 %v5606
        %v5677 = vpop.f32.mrb[0].mxu0
        %v5678 = vadd.f32 0.0, %v5677
        %v5679 = vpop.f32.mrb[0].mxu0
        %5680 = vmatprep.mubr.f32.mxu0 0.0
        %5681 = vmatmul.mubr.f32.gmra.mrb[0].mxu0 %v5609
        %v5682 = vpop.f32.mrb[0].mxu0
        %v5683 = vadd.f32 0.0, %v5682
        %v5684 = vpop.f32.mrb[0].mxu0
        %5685 = vdwg.mxu0
        %v5686 = vmax.f32 %v5600, %v5678
        %v5687 = vmax.f32 %v5601, %v5683
        %s5688 = scalar_lea.vmem %s14, 48
        %v5689 = vld [vmem:[%s5688] sm:$0xff]
        %v5690 = vld [vmem:[%s5688 + $0x8] sm:$0xff]
        %v5692 = vsel %vm5434, %v5689, 0
        %v5695 = vsel %vm5434, %v5690, 0
        %5697 = vmatprep.subr.mxu0 0.0
        %5698 = vmatpush1.msra.mxu0 %v5424
        %5699 = vmatprep.subr.mxu0 0.0
        %5700 = vmatpush1.msra.mxu0 %v5425
        %5701 = vmatprep.subr.mxu0 0.0
        %5702 = vmatpush1.msra.mxu0 %v5426
        %5703 = vmatprep.subr.mxu0 0.0
        %5704 = vmatpush1.msra.mxu0 %v5427
        %5705 = vmatprep.subr.mxu0 0.0
        %5706 = vmatpush1.msra.mxu0 %v5428
        %5707 = vmatprep.subr.mxu0 0.0
        %5708 = vmatpush1.msra.mxu0 %v5429
        %5709 = vmatprep.subr.mxu0 0.0
        %5710 = vmatpush1.msra.mxu0 %v5430
        %5711 = vmatprep.subr.mxu0 0.0
        %5712 = vmatpush1.msra.mxu0 %v5431
        %5713 = vmatprep.subr.mxu0 0.0
        %5714 = vmatpush1.msra.mxu0 0.0
        %5715 = vmatprep.subr.mxu0 0.0
        %5716 = vmatpush1.msra.mxu0 0.0
        %5717 = vmatprep.subr.mxu0 0.0
        %5718 = vmatpush1.msra.mxu0 0.0
        %5719 = vmatprep.subr.mxu0 0.0
        %5720 = vmatpush1.msra.mxu0 0.0
        %5721 = vmatprep.subr.mxu0 0.0
        %5722 = vmatpush1.msra.mxu0 0.0
        %5723 = vmatprep.subr.mxu0 0.0
        %5724 = vmatpush1.msra.mxu0 0.0
        %5725 = vmatprep.subr.mxu0 0.0
        %5726 = vmatpush1.msra.mxu0 0.0
        %5727 = vmatprep.subr.mxu0 0.0
        %5728 = vmatpush1.msra.mxu0 0.0
        %5729 = vmatprep.subr.mxu0 0.0
        %5730 = vmatpush1.msra.mxu0 0.0
        %5731 = vmatprep.subr.mxu0 0.0
        %5732 = vmatpush1.msra.mxu0 0.0
        %5733 = vmatprep.subr.mxu0 0.0
        %5734 = vmatpush1.msra.mxu0 0.0
        %5735 = vmatprep.subr.mxu0 0.0
        %5736 = vmatpush1.msra.mxu0 0.0
        %5737 = vmatprep.subr.mxu0 0.0
        %5738 = vmatpush1.msra.mxu0 0.0
        %5739 = vmatprep.subr.mxu0 0.0
        %5740 = vmatpush1.msra.mxu0 0.0
        %5741 = vmatprep.subr.mxu0 0.0
        %5742 = vmatpush1.msra.mxu0 0.0
        %5743 = vmatprep.subr.mxu0 0.0
        %5744 = vmatpush1.msra.mxu0 0.0
        %5745 = vmatprep.subr.mxu0 0.0
        %5746 = vmatpush1.msra.mxu0 0.0
        %5747 = vmatprep.subr.mxu0 0.0
        %5748 = vmatpush1.msra.mxu0 0.0
        %5749 = vmatprep.subr.mxu0 0.0
        %5750 = vmatpush1.msra.mxu0 0.0
        %5751 = vmatprep.subr.mxu0 0.0
        %5752 = vmatpush1.msra.mxu0 0.0
        %5753 = vmatprep.subr.mxu0 0.0
        %5754 = vmatpush1.msra.mxu0 0.0
        %5755 = vmatprep.subr.mxu0 0.0
        %5756 = vmatpush1.msra.mxu0 0.0
        %5757 = vmatprep.subr.mxu0 0.0
        %5758 = vmatpush1.msra.mxu0 0.0
        %5759 = vmatprep.subr.mxu0 0.0
        %5760 = vmatpush1.msra.mxu0 0.0
        %5761 = vmatprep.mubr.f32.mxu0 0.0
        %5762 = vmatmul.mubr.f32.gmra.mrb[0].mxu0 %v5692
        %v5763 = vpop.f32.mrb[0].mxu0
        %v5764 = vadd.f32 0.0, %v5763
        %v5765 = vpop.f32.mrb[0].mxu0
        %5766 = vmatprep.mubr.f32.mxu0 0.0
        %5767 = vmatmul.mubr.f32.gmra.mrb[0].mxu0 %v5695
        %v5768 = vpop.f32.mrb[0].mxu0
        %v5769 = vadd.f32 0.0, %v5768
        %v5770 = vpop.f32.mrb[0].mxu0
        %5771 = vdwg.mxu0
        %v5772 = vmax.f32 %v5686, %v5764
        %v5773 = vmax.f32 %v5687, %v5769
        %5774 = vst.msk [vmem:[#allocation4] sm:$0xff] %vm5434, 0.0
        %5775 = vst.msk [vmem:[#allocation4 + $0x8] sm:$0xff] %vm5434, 0.0
        %5776 = vst.msk [vmem:[#allocation4 + $0x10] sm:$0xff] %vm5434, 0.0
        %vm5777 = vcmask 517120
        %5778 = vst.msk [vmem:[#allocation4 + $0x18] sm:$0x3] %vm5777, 0.0
        %5779 = vst.msk [vmem:[#allocation4 + $0x5] sm:$0xff] %vm5434, %v5772
        %5780 = vst.msk [vmem:[#allocation4 + $0xd] sm:$0xff] %vm5434, %v5773
        %v5781 = vld [vmem:[%s9] sm:$0xff]
        %v5782 = vld [vmem:[%s9 + $0x8] sm:$0xff]
        %s5783 = scalar_lea.vmem %s9, 16
        %v5784 = vld [vmem:[%s5783] sm:$0xff]
        %v5785 = vld [vmem:[%s5783 + $0x8] sm:$0xff]
        %v5786 = vld [vmem:[#allocation4] sm:$0xff]
        %v5787 = vld [vmem:[#allocation4 + $0x8] sm:$0xff]
        %5789 = vset.pattern.permute.xlu0 0
        %5790 = vperm.xlu0 %5789, %v5781
        %v5791 = vpop.permute.xlu0 %5790
        %5794 = vset.pattern.permute.xlu0 0
        %5795 = vperm.xlu0 %5794, %v5782
        %v5796 = vpop.permute.xlu0 %5795
        %v5798 = vmul.f32 %v5786, %v5791
        %v5799 = vmul.f32 %v5787, %v5796
        %v5800 = vld [vmem:[%s7] sm:$0xff]
        %v5801 = vld [vmem:[%s7 + $0x8] sm:$0xff]
        %v5802 = vld [vmem:[%s7 + $0x10] sm:$0xff]
        %v5803 = vld [vmem:[%s7 + $0x18] sm:$0xff]
        %v5804 = vld [vmem:[%s7 + $0x20] sm:$0xff]
        %v5805 = vld [vmem:[%s7 + $0x28] sm:$0xff]
        %v5806 = vld [vmem:[%s7 + $0x30] sm:$0xff]
        %v5807 = vld [vmem:[%s7 + $0x38] sm:$0xff]
        %v5808 = vld [vmem:[#allocation4 + $0x1] sm:$0xff]
        %v5809 = vld [vmem:[#allocation4 + $0x9] sm:$0xff]
        %v5810 = vld [vmem:[%s7 + $0x40] sm:$0xff]
        %v5811 = vld [vmem:[%s7 + $0x48] sm:$0xff]
        %v5812 = vld [vmem:[%s7 + $0x50] sm:$0xff]
        %v5813 = vld [vmem:[%s7 + $0x58] sm:$0xff]
        %v5814 = vld [vmem:[%s7 + $0x60] sm:$0xff]
        %v5815 = vld [vmem:[%s7 + $0x68] sm:$0xff]
        %v5816 = vld [vmem:[%s7 + $0x70] sm:$0xff]
        %v5817 = vld [vmem:[%s7 + $0x78] sm:$0xff]
        %v5819 = vsel %vm5434, %v5808, 0
        %v5822 = vsel %vm5434, %v5809, 0
        %5824 = vmatprep.subr.mxu0 0.0
        %5825 = vmatpush1.msra.mxu0 %v5810
        %5826 = vmatprep.subr.mxu0 0.0
        %5827 = vmatpush1.msra.mxu0 %v5811
        %5828 = vmatprep.subr.mxu0 0.0
        %5829 = vmatpush1.msra.mxu0 %v5812
        %5830 = vmatprep.subr.mxu0 0.0
        %5831 = vmatpush1.msra.mxu0 %v5813
        %5832 = vmatprep.subr.mxu0 0.0
        %5833 = vmatpush1.msra.mxu0 %v5814
        %5834 = vmatprep.subr.mxu0 0.0
        %5835 = vmatpush1.msra.mxu0 %v5815
        %5836 = vmatprep.subr.mxu0 0.0
        %5837 = vmatpush1.msra.mxu0 %v5816
        %5838 = vmatprep.subr.mxu0 0.0
        %5839 = vmatpush1.msra.mxu0 %v5817
        %5840 = vmatprep.subr.mxu0 0.0
        %5841 = vmatpush1.msra.mxu0 0.0
        %5842 = vmatprep.subr.mxu0 0.0
        %5843 = vmatpush1.msra.mxu0 0.0
        %5844 = vmatprep.subr.mxu0 0.0
        %5845 = vmatpush1.msra.mxu0 0.0
        %5846 = vmatprep.subr.mxu0 0.0
        %5847 = vmatpush1.msra.mxu0 0.0
        %5848 = vmatprep.subr.mxu0 0.0
        %5849 = vmatpush1.msra.mxu0 0.0
        %5850 = vmatprep.subr.mxu0 0.0
        %5851 = vmatpush1.msra.mxu0 0.0
        %5852 = vmatprep.subr.mxu0 0.0
        %5853 = vmatpush1.msra.mxu0 0.0
        %5854 = vmatprep.subr.mxu0 0.0
        %5855 = vmatpush1.msra.mxu0 0.0
        %5856 = vmatprep.subr.mxu0 0.0
        %5857 = vmatpush1.msra.mxu0 0.0
        %5858 = vmatprep.subr.mxu0 0.0
        %5859 = vmatpush1.msra.mxu0 0.0
        %5860 = vmatprep.subr.mxu0 0.0
        %5861 = vmatpush1.msra.mxu0 0.0
        %5862 = vmatprep.subr.mxu0 0.0
        %5863 = vmatpush1.msra.mxu0 0.0
        %5864 = vmatprep.subr.mxu0 0.0
        %5865 = vmatpush1.msra.mxu0 0.0
        %5866 = vmatprep.subr.mxu0 0.0
        %5867 = vmatpush1.msra.mxu0 0.0
        %5868 = vmatprep.subr.mxu0 0.0
        %5869 = vmatpush1.msra.mxu0 0.0
        %5870 = vmatprep.subr.mxu0 0.0
        %5871 = vmatpush1.msra.mxu0 0.0
        %5872 = vmatprep.subr.mxu0 0.0
        %5873 = vmatpush1.msra.mxu0 0.0
        %5874 = vmatprep.subr.mxu0 0.0
        %5875 = vmatpush1.msra.mxu0 0.0
        %5876 = vmatprep.subr.mxu0 0.0
        %5877 = vmatpush1.msra.mxu0 0.0
        %5878 = vmatprep.subr.mxu0 0.0
        %5879 = vmatpush1.msra.mxu0 0.0
        %5880 = vmatprep.subr.mxu0 0.0
        %5881 = vmatpush1.msra.mxu0 0.0
        %5882 = vmatprep.subr.mxu0 0.0
        %5883 = vmatpush1.msra.mxu0 0.0
        %5884 = vmatprep.subr.mxu0 0.0
        %5885 = vmatpush1.msra.mxu0 0.0
        %5886 = vmatprep.subr.mxu0 0.0
        %5887 = vmatpush1.msra.mxu0 0.0
        %5888 = vmatprep.mubr.f32.mxu0 0.0
        %5889 = vmatmul.mubr.f32.gmra.mrb[0].mxu0 %v5819
        %v5890 = vpop.f32.mrb[0].mxu0
        %v5891 = vadd.f32 0.0, %v5890
        %v5892 = vpop.f32.mrb[0].mxu0
        %5893 = vmatprep.mubr.f32.mxu0 0.0
        %5894 = vmatmul.mubr.f32.gmra.mrb[0].mxu0 %v5822
        %v5895 = vpop.f32.mrb[0].mxu0
        %v5896 = vadd.f32 0.0, %v5895
        %v5897 = vpop.f32.mrb[0].mxu0
        %5898 = vdwg.mxu0
        %v5900 = vsel %vm5434, %v5798, 0
        %v5903 = vsel %vm5434, %v5799, 0
        %5905 = vmatprep.subr.mxu0 0.0
        %5906 = vmatpush1.msra.mxu0 %v5800
        %5907 = vmatprep.subr.mxu0 0.0
        %5908 = vmatpush1.msra.mxu0 %v5801
        %5909 = vmatprep.subr.mxu0 0.0
        %5910 = vmatpush1.msra.mxu0 %v5802
        %5911 = vmatprep.subr.mxu0 0.0
        %5912 = vmatpush1.msra.mxu0 %v5803
        %5913 = vmatprep.subr.mxu0 0.0
        %5914 = vmatpush1.msra.mxu0 %v5804
        %5915 = vmatprep.subr.mxu0 0.0
        %5916 = vmatpush1.msra.mxu0 %v5805
        %5917 = vmatprep.subr.mxu0 0.0
        %5918 = vmatpush1.msra.mxu0 %v5806
        %5919 = vmatprep.subr.mxu0 0.0
        %5920 = vmatpush1.msra.mxu0 %v5807
        %5921 = vmatprep.subr.mxu0 0.0
        %5922 = vmatpush1.msra.mxu0 0.0
        %5923 = vmatprep.subr.mxu0 0.0
        %5924 = vmatpush1.msra.mxu0 0.0
        %5925 = vmatprep.subr.mxu0 0.0
        %5926 = vmatpush1.msra.mxu0 0.0
        %5927 = vmatprep.subr.mxu0 0.0
        %5928 = vmatpush1.msra.mxu0 0.0
        %5929 = vmatprep.subr.mxu0 0.0
        %5930 = vmatpush1.msra.mxu0 0.0
        %5931 = vmatprep.subr.mxu0 0.0
        %5932 = vmatpush1.msra.mxu0 0.0
        %5933 = vmatprep.subr.mxu0 0.0
        %5934 = vmatpush1.msra.mxu0 0.0
        %5935 = vmatprep.subr.mxu0 0.0
        %5936 = vmatpush1.msra.mxu0 0.0
        %5937 = vmatprep.subr.mxu0 0.0
        %5938 = vmatpush1.msra.mxu0 0.0
        %5939 = vmatprep.subr.mxu0 0.0
        %5940 = vmatpush1.msra.mxu0 0.0
        %5941 = vmatprep.subr.mxu0 0.0
        %5942 = vmatpush1.msra.mxu0 0.0
        %5943 = vmatprep.subr.mxu0 0.0
        %5944 = vmatpush1.msra.mxu0 0.0
        %5945 = vmatprep.subr.mxu0 0.0
        %5946 = vmatpush1.msra.mxu0 0.0
        %5947 = vmatprep.subr.mxu0 0.0
        %5948 = vmatpush1.msra.mxu0 0.0
        %5949 = vmatprep.subr.mxu0 0.0
        %5950 = vmatpush1.msra.mxu0 0.0
        %5951 = vmatprep.subr.mxu0 0.0
        %5952 = vmatpush1.msra.mxu0 0.0
        %5953 = vmatprep.subr.mxu0 0.0
        %5954 = vmatpush1.msra.mxu0 0.0
        %5955 = vmatprep.subr.mxu0 0.0
        %5956 = vmatpush1.msra.mxu0 0.0
        %5957 = vmatprep.subr.mxu0 0.0
        %5958 = vmatpush1.msra.mxu0 0.0
        %5959 = vmatprep.subr.mxu0 0.0
        %5960 = vmatpush1.msra.mxu0 0.0
        %5961 = vmatprep.subr.mxu0 0.0
        %5962 = vmatpush1.msra.mxu0 0.0
        %5963 = vmatprep.subr.mxu0 0.0
        %5964 = vmatpush1.msra.mxu0 0.0
        %5965 = vmatprep.subr.mxu0 0.0
        %5966 = vmatpush1.msra.mxu0 0.0
        %5967 = vmatprep.subr.mxu0 0.0
        %5968 = vmatpush1.msra.mxu0 0.0
        %5969 = vmatprep.mubr.f32.mxu0 0.0
        %5970 = vmatmul.mubr.f32.gmra.mrb[0].mxu0 %v5900
        %v5971 = vpop.f32.mrb[0].mxu0
        %v5972 = vadd.f32 %v5891, %v5971
        %v5973 = vpop.f32.mrb[0].mxu0
        %5974 = vmatprep.mubr.f32.mxu0 0.0
        %5975 = vmatmul.mubr.f32.gmra.mrb[0].mxu0 %v5903
        %v5976 = vpop.f32.mrb[0].mxu0
        %v5977 = vadd.f32 %v5896, %v5976
        %v5978 = vpop.f32.mrb[0].mxu0
        %5979 = vdwg.mxu0
        %v5980 = vld [vmem:[#allocation4 + $0x2] sm:$0xff]
        %v5981 = vld [vmem:[#allocation4 + $0xa] sm:$0xff]
        %5983 = vset.pattern.permute.xlu0 0
        %5984 = vperm.xlu0 %5983, %v5784
        %v5985 = vpop.permute.xlu0 %5984
        %5988 = vset.pattern.permute.xlu0 0
        %5989 = vperm.xlu0 %5988, %v5785
        %v5990 = vpop.permute.xlu0 %5989
        %v5992 = vmul.f32 %v5980, %v5985
        %v5993 = vmul.f32 %v5981, %v5990
        %v5994 = vld [vmem:[%s7 + $0x80] sm:$0xff]
        %v5995 = vld [vmem:[%s7 + $0x88] sm:$0xff]
        %v5996 = vld [vmem:[%s7 + $0x90] sm:$0xff]
        %v5997 = vld [vmem:[%s7 + $0x98] sm:$0xff]
        %v5998 = vld [vmem:[%s7 + $0xa0] sm:$0xff]
        %v5999 = vld [vmem:[%s7 + $0xa8] sm:$0xff]
        %v6000 = vld [vmem:[%s7 + $0xb0] sm:$0xff]
        %v6001 = vld [vmem:[%s7 + $0xb8] sm:$0xff]
        %v6003 = vsel %vm5434, %v5992, 0
        %v6006 = vsel %vm5434, %v5993, 0
        %6008 = vmatprep.subr.mxu0 0.0
        %6009 = vmatpush1.msra.mxu0 %v5994
        %6010 = vmatprep.subr.mxu0 0.0
        %6011 = vmatpush1.msra.mxu0 %v5995
        %6012 = vmatprep.subr.mxu0 0.0
        %6013 = vmatpush1.msra.mxu0 %v5996
        %6014 = vmatprep.subr.mxu0 0.0
        %6015 = vmatpush1.msra.mxu0 %v5997
        %6016 = vmatprep.subr.mxu0 0.0
        %6017 = vmatpush1.msra.mxu0 %v5998
        %6018 = vmatprep.subr.mxu0 0.0
        %6019 = vmatpush1.msra.mxu0 %v5999
        %6020 = vmatprep.subr.mxu0 0.0
        %6021 = vmatpush1.msra.mxu0 %v6000
        %6022 = vmatprep.subr.mxu0 0.0
        %6023 = vmatpush1.msra.mxu0 %v6001
        %6024 = vmatprep.subr.mxu0 0.0
        %6025 = vmatpush1.msra.mxu0 0.0
        %6026 = vmatprep.subr.mxu0 0.0
        %6027 = vmatpush1.msra.mxu0 0.0
        %6028 = vmatprep.subr.mxu0 0.0
        %6029 = vmatpush1.msra.mxu0 0.0
        %6030 = vmatprep.subr.mxu0 0.0
        %6031 = vmatpush1.msra.mxu0 0.0
        %6032 = vmatprep.subr.mxu0 0.0
        %6033 = vmatpush1.msra.mxu0 0.0
        %6034 = vmatprep.subr.mxu0 0.0
        %6035 = vmatpush1.msra.mxu0 0.0
        %6036 = vmatprep.subr.mxu0 0.0
        %6037 = vmatpush1.msra.mxu0 0.0
        %6038 = vmatprep.subr.mxu0 0.0
        %6039 = vmatpush1.msra.mxu0 0.0
        %6040 = vmatprep.subr.mxu0 0.0
        %6041 = vmatpush1.msra.mxu0 0.0
        %6042 = vmatprep.subr.mxu0 0.0
        %6043 = vmatpush1.msra.mxu0 0.0
        %6044 = vmatprep.subr.mxu0 0.0
        %6045 = vmatpush1.msra.mxu0 0.0
        %6046 = vmatprep.subr.mxu0 0.0
        %6047 = vmatpush1.msra.mxu0 0.0
        %6048 = vmatprep.subr.mxu0 0.0
        %6049 = vmatpush1.msra.mxu0 0.0
        %6050 = vmatprep.subr.mxu0 0.0
        %6051 = vmatpush1.msra.mxu0 0.0
        %6052 = vmatprep.subr.mxu0 0.0
        %6053 = vmatpush1.msra.mxu0 0.0
        %6054 = vmatprep.subr.mxu0 0.0
        %6055 = vmatpush1.msra.mxu0 0.0
        %6056 = vmatprep.subr.mxu0 0.0
        %6057 = vmatpush1.msra.mxu0 0.0
        %6058 = vmatprep.subr.mxu0 0.0
        %6059 = vmatpush1.msra.mxu0 0.0
        %6060 = vmatprep.subr.mxu0 0.0
        %6061 = vmatpush1.msra.mxu0 0.0
        %6062 = vmatprep.subr.mxu0 0.0
        %6063 = vmatpush1.msra.mxu0 0.0
        %6064 = vmatprep.subr.mxu0 0.0
        %6065 = vmatpush1.msra.mxu0 0.0
        %6066 = vmatprep.subr.mxu0 0.0
        %6067 = vmatpush1.msra.mxu0 0.0
        %6068 = vmatprep.subr.mxu0 0.0
        %6069 = vmatpush1.msra.mxu0 0.0
        %6070 = vmatprep.subr.mxu0 0.0
        %6071 = vmatpush1.msra.mxu0 0.0
        %6072 = vmatprep.mubr.f32.mxu0 0.0
        %6073 = vmatmul.mubr.f32.gmra.mrb[0].mxu0 %v6003
        %v6074 = vpop.f32.mrb[0].mxu0
        %v6075 = vadd.f32 0.0, %v6074
        %v6076 = vpop.f32.mrb[0].mxu0
        %6077 = vmatprep.mubr.f32.mxu0 0.0
        %6078 = vmatmul.mubr.f32.gmra.mrb[0].mxu0 %v6006
        %v6079 = vpop.f32.mrb[0].mxu0
        %v6080 = vadd.f32 0.0, %v6079
        %v6081 = vpop.f32.mrb[0].mxu0
        %6082 = vdwg.mxu0
        %v6083 = vadd.f32 %v5972, %v6075
        %v6084 = vadd.f32 %v5977, %v6080
        %v6085 = vld [vmem:[#allocation4 + $0x4] sm:$0xff]
        %v6086 = vld [vmem:[#allocation4 + $0xc] sm:$0xff]
        %v6087 = vmul.f32 %v6085, %v5791
        %v6088 = vmul.f32 %v6086, %v5796
        %v6089 = vld [vmem:[%s7 + $0xc0] sm:$0xff]
        %v6090 = vld [vmem:[%s7 + $0xc8] sm:$0xff]
        %v6091 = vld [vmem:[%s7 + $0xd0] sm:$0xff]
        %v6092 = vld [vmem:[%s7 + $0xd8] sm:$0xff]
        %v6093 = vld [vmem:[%s7 + $0xe0] sm:$0xff]
        %v6094 = vld [vmem:[%s7 + $0xe8] sm:$0xff]
        %v6095 = vld [vmem:[%s7 + $0xf0] sm:$0xff]
        %v6096 = vld [vmem:[%s7 + $0xf8] sm:$0xff]
        %v6098 = vsel %vm5434, %v6087, 0
        %v6101 = vsel %vm5434, %v6088, 0
        %6103 = vmatprep.subr.mxu0 0.0
        %6104 = vmatpush1.msra.mxu0 %v6089
        %6105 = vmatprep.subr.mxu0 0.0
        %6106 = vmatpush1.msra.mxu0 %v6090
        %6107 = vmatprep.subr.mxu0 0.0
        %6108 = vmatpush1.msra.mxu0 %v6091
        %6109 = vmatprep.subr.mxu0 0.0
        %6110 = vmatpush1.msra.mxu0 %v6092
        %6111 = vmatprep.subr.mxu0 0.0
        %6112 = vmatpush1.msra.mxu0 %v6093
        %6113 = vmatprep.subr.mxu0 0.0
        %6114 = vmatpush1.msra.mxu0 %v6094
        %6115 = vmatprep.subr.mxu0 0.0
        %6116 = vmatpush1.msra.mxu0 %v6095
        %6117 = vmatprep.subr.mxu0 0.0
        %6118 = vmatpush1.msra.mxu0 %v6096
        %6119 = vmatprep.subr.mxu0 0.0
        %6120 = vmatpush1.msra.mxu0 0.0
        %6121 = vmatprep.subr.mxu0 0.0
        %6122 = vmatpush1.msra.mxu0 0.0
        %6123 = vmatprep.subr.mxu0 0.0
        %6124 = vmatpush1.msra.mxu0 0.0
        %6125 = vmatprep.subr.mxu0 0.0
        %6126 = vmatpush1.msra.mxu0 0.0
        %6127 = vmatprep.subr.mxu0 0.0
        %6128 = vmatpush1.msra.mxu0 0.0
        %6129 = vmatprep.subr.mxu0 0.0
        %6130 = vmatpush1.msra.mxu0 0.0
        %6131 = vmatprep.subr.mxu0 0.0
        %6132 = vmatpush1.msra.mxu0 0.0
        %6133 = vmatprep.subr.mxu0 0.0
        %6134 = vmatpush1.msra.mxu0 0.0
        %6135 = vmatprep.subr.mxu0 0.0
        %6136 = vmatpush1.msra.mxu0 0.0
        %6137 = vmatprep.subr.mxu0 0.0
        %6138 = vmatpush1.msra.mxu0 0.0
        %6139 = vmatprep.subr.mxu0 0.0
        %6140 = vmatpush1.msra.mxu0 0.0
        %6141 = vmatprep.subr.mxu0 0.0
        %6142 = vmatpush1.msra.mxu0 0.0
        %6143 = vmatprep.subr.mxu0 0.0
        %6144 = vmatpush1.msra.mxu0 0.0
        %6145 = vmatprep.subr.mxu0 0.0
        %6146 = vmatpush1.msra.mxu0 0.0
        %6147 = vmatprep.subr.mxu0 0.0
        %6148 = vmatpush1.msra.mxu0 0.0
        %6149 = vmatprep.subr.mxu0 0.0
        %6150 = vmatpush1.msra.mxu0 0.0
        %6151 = vmatprep.subr.mxu0 0.0
        %6152 = vmatpush1.msra.mxu0 0.0
        %6153 = vmatprep.subr.mxu0 0.0
        %6154 = vmatpush1.msra.mxu0 0.0
        %6155 = vmatprep.subr.mxu0 0.0
        %6156 = vmatpush1.msra.mxu0 0.0
        %6157 = vmatprep.subr.mxu0 0.0
        %6158 = vmatpush1.msra.mxu0 0.0
        %6159 = vmatprep.subr.mxu0 0.0
        %6160 = vmatpush1.msra.mxu0 0.0
        %6161 = vmatprep.subr.mxu0 0.0
        %6162 = vmatpush1.msra.mxu0 0.0
        %6163 = vmatprep.subr.mxu0 0.0
        %6164 = vmatpush1.msra.mxu0 0.0
        %6165 = vmatprep.subr.mxu0 0.0
        %6166 = vmatpush1.msra.mxu0 0.0
        %6167 = vmatprep.mubr.f32.mxu0 0.0
        %6168 = vmatmul.mubr.f32.gmra.mrb[0].mxu0 %v6098
        %v6169 = vpop.f32.mrb[0].mxu0
        %v6170 = vadd.f32 0.0, %v6169
        %v6171 = vpop.f32.mrb[0].mxu0
        %6172 = vmatprep.mubr.f32.mxu0 0.0
        %6173 = vmatmul.mubr.f32.gmra.mrb[0].mxu0 %v6101
        %v6174 = vpop.f32.mrb[0].mxu0
        %v6175 = vadd.f32 0.0, %v6174
        %v6176 = vpop.f32.mrb[0].mxu0
        %6177 = vdwg.mxu0
        %v6178 = vadd.f32 %v6083, %v6170
        %v6179 = vadd.f32 %v6084, %v6175
        %v6180 = vld [vmem:[#allocation4 + $0x5] sm:$0xff]
        %v6181 = vld [vmem:[#allocation4 + $0xd] sm:$0xff]
        %v6182 = vld [vmem:[%s7 + $0x100] sm:$0xff]
        %v6183 = vld [vmem:[%s7 + $0x108] sm:$0xff]
        %v6184 = vld [vmem:[%s7 + $0x110] sm:$0xff]
        %v6185 = vld [vmem:[%s7 + $0x118] sm:$0xff]
        %v6186 = vld [vmem:[%s7 + $0x120] sm:$0xff]
        %v6187 = vld [vmem:[%s7 + $0x128] sm:$0xff]
        %v6188 = vld [vmem:[%s7 + $0x130] sm:$0xff]
        %v6189 = vld [vmem:[%s7 + $0x138] sm:$0xff]
        %v6191 = vsel %vm5434, %v6180, 0
        %v6194 = vsel %vm5434, %v6181, 0
        %6196 = vmatprep.subr.mxu0 0.0
        %6197 = vmatpush1.msra.mxu0 %v6182
        %6198 = vmatprep.subr.mxu0 0.0
        %6199 = vmatpush1.msra.mxu0 %v6183
        %6200 = vmatprep.subr.mxu0 0.0
        %6201 = vmatpush1.msra.mxu0 %v6184
        %6202 = vmatprep.subr.mxu0 0.0
        %6203 = vmatpush1.msra.mxu0 %v6185
        %6204 = vmatprep.subr.mxu0 0.0
        %6205 = vmatpush1.msra.mxu0 %v6186
        %6206 = vmatprep.subr.mxu0 0.0
        %6207 = vmatpush1.msra.mxu0 %v6187
        %6208 = vmatprep.subr.mxu0 0.0
        %6209 = vmatpush1.msra.mxu0 %v6188
        %6210 = vmatprep.subr.mxu0 0.0
        %6211 = vmatpush1.msra.mxu0 %v6189
        %6212 = vmatprep.subr.mxu0 0.0
        %6213 = vmatpush1.msra.mxu0 0.0
        %6214 = vmatprep.subr.mxu0 0.0
        %6215 = vmatpush1.msra.mxu0 0.0
        %6216 = vmatprep.subr.mxu0 0.0
        %6217 = vmatpush1.msra.mxu0 0.0
        %6218 = vmatprep.subr.mxu0 0.0
        %6219 = vmatpush1.msra.mxu0 0.0
        %6220 = vmatprep.subr.mxu0 0.0
        %6221 = vmatpush1.msra.mxu0 0.0
        %6222 = vmatprep.subr.mxu0 0.0
        %6223 = vmatpush1.msra.mxu0 0.0
        %6224 = vmatprep.subr.mxu0 0.0
        %6225 = vmatpush1.msra.mxu0 0.0
        %6226 = vmatprep.subr.mxu0 0.0
        %6227 = vmatpush1.msra.mxu0 0.0
        %6228 = vmatprep.subr.mxu0 0.0
        %6229 = vmatpush1.msra.mxu0 0.0
        %6230 = vmatprep.subr.mxu0 0.0
        %6231 = vmatpush1.msra.mxu0 0.0
        %6232 = vmatprep.subr.mxu0 0.0
        %6233 = vmatpush1.msra.mxu0 0.0
        %6234 = vmatprep.subr.mxu0 0.0
        %6235 = vmatpush1.msra.mxu0 0.0
        %6236 = vmatprep.subr.mxu0 0.0
        %6237 = vmatpush1.msra.mxu0 0.0
        %6238 = vmatprep.subr.mxu0 0.0
        %6239 = vmatpush1.msra.mxu0 0.0
        %6240 = vmatprep.subr.mxu0 0.0
        %6241 = vmatpush1.msra.mxu0 0.0
        %6242 = vmatprep.subr.mxu0 0.0
        %6243 = vmatpush1.msra.mxu0 0.0
        %6244 = vmatprep.subr.mxu0 0.0
        %6245 = vmatpush1.msra.mxu0 0.0
        %6246 = vmatprep.subr.mxu0 0.0
        %6247 = vmatpush1.msra.mxu0 0.0
        %6248 = vmatprep.subr.mxu0 0.0
        %6249 = vmatpush1.msra.mxu0 0.0
        %6250 = vmatprep.subr.mxu0 0.0
        %6251 = vmatpush1.msra.mxu0 0.0
        %6252 = vmatprep.subr.mxu0 0.0
        %6253 = vmatpush1.msra.mxu0 0.0
        %6254 = vmatprep.subr.mxu0 0.0
        %6255 = vmatpush1.msra.mxu0 0.0
        %6256 = vmatprep.subr.mxu0 0.0
        %6257 = vmatpush1.msra.mxu0 0.0
        %6258 = vmatprep.subr.mxu0 0.0
        %6259 = vmatpush1.msra.mxu0 0.0
        %6260 = vmatprep.mubr.f32.mxu0 0.0
        %6261 = vmatmul.mubr.f32.gmra.mrb[0].mxu0 %v6191
        %v6262 = vpop.f32.mrb[0].mxu0
        %v6263 = vadd.f32 0.0, %v6262
        %v6264 = vpop.f32.mrb[0].mxu0
        %6265 = vmatprep.mubr.f32.mxu0 0.0
        %6266 = vmatmul.mubr.f32.gmra.mrb[0].mxu0 %v6194
        %v6267 = vpop.f32.mrb[0].mxu0
        %v6268 = vadd.f32 0.0, %v6267
        %v6269 = vpop.f32.mrb[0].mxu0
        %6270 = vdwg.mxu0
        %v6271 = vadd.f32 %v6178, %v6263
        %v6272 = vadd.f32 %v6179, %v6268
        %v6273 = vld [vmem:[#allocation4 + $0x6] sm:$0xff]
        %v6274 = vld [vmem:[#allocation4 + $0xe] sm:$0xff]
        %v6275 = vmul.f32 %v6273, %v5985
        %v6276 = vmul.f32 %v6274, %v5990
        %v6277 = vld [vmem:[%s7 + $0x140] sm:$0xff]
        %v6278 = vld [vmem:[%s7 + $0x148] sm:$0xff]
        %v6279 = vld [vmem:[%s7 + $0x150] sm:$0xff]
        %v6280 = vld [vmem:[%s7 + $0x158] sm:$0xff]
        %v6281 = vld [vmem:[%s7 + $0x160] sm:$0xff]
        %v6282 = vld [vmem:[%s7 + $0x168] sm:$0xff]
        %v6283 = vld [vmem:[%s7 + $0x170] sm:$0xff]
        %v6284 = vld [vmem:[%s7 + $0x178] sm:$0xff]
        %v6286 = vsel %vm5434, %v6275, 0
        %v6289 = vsel %vm5434, %v6276, 0
        %6291 = vmatprep.subr.mxu0 0.0
        %6292 = vmatpush1.msra.mxu0 %v6277
        %6293 = vmatprep.subr.mxu0 0.0
        %6294 = vmatpush1.msra.mxu0 %v6278
        %6295 = vmatprep.subr.mxu0 0.0
        %6296 = vmatpush1.msra.mxu0 %v6279
        %6297 = vmatprep.subr.mxu0 0.0
        %6298 = vmatpush1.msra.mxu0 %v6280
        %6299 = vmatprep.subr.mxu0 0.0
        %6300 = vmatpush1.msra.mxu0 %v6281
        %6301 = vmatprep.subr.mxu0 0.0
        %6302 = vmatpush1.msra.mxu0 %v6282
        %6303 = vmatprep.subr.mxu0 0.0
        %6304 = vmatpush1.msra.mxu0 %v6283
        %6305 = vmatprep.subr.mxu0 0.0
        %6306 = vmatpush1.msra.mxu0 %v6284
        %6307 = vmatprep.subr.mxu0 0.0
        %6308 = vmatpush1.msra.mxu0 0.0
        %6309 = vmatprep.subr.mxu0 0.0
        %6310 = vmatpush1.msra.mxu0 0.0
        %6311 = vmatprep.subr.mxu0 0.0
        %6312 = vmatpush1.msra.mxu0 0.0
        %6313 = vmatprep.subr.mxu0 0.0
        %6314 = vmatpush1.msra.mxu0 0.0
        %6315 = vmatprep.subr.mxu0 0.0
        %6316 = vmatpush1.msra.mxu0 0.0
        %6317 = vmatprep.subr.mxu0 0.0
        %6318 = vmatpush1.msra.mxu0 0.0
        %6319 = vmatprep.subr.mxu0 0.0
        %6320 = vmatpush1.msra.mxu0 0.0
        %6321 = vmatprep.subr.mxu0 0.0
        %6322 = vmatpush1.msra.mxu0 0.0
        %6323 = vmatprep.subr.mxu0 0.0
        %6324 = vmatpush1.msra.mxu0 0.0
        %6325 = vmatprep.subr.mxu0 0.0
        %6326 = vmatpush1.msra.mxu0 0.0
        %6327 = vmatprep.subr.mxu0 0.0
        %6328 = vmatpush1.msra.mxu0 0.0
        %6329 = vmatprep.subr.mxu0 0.0
        %6330 = vmatpush1.msra.mxu0 0.0
        %6331 = vmatprep.subr.mxu0 0.0
        %6332 = vmatpush1.msra.mxu0 0.0
        %6333 = vmatprep.subr.mxu0 0.0
        %6334 = vmatpush1.msra.mxu0 0.0
        %6335 = vmatprep.subr.mxu0 0.0
        %6336 = vmatpush1.msra.mxu0 0.0
        %6337 = vmatprep.subr.mxu0 0.0
        %6338 = vmatpush1.msra.mxu0 0.0
        %6339 = vmatprep.subr.mxu0 0.0
        %6340 = vmatpush1.msra.mxu0 0.0
        %6341 = vmatprep.subr.mxu0 0.0
        %6342 = vmatpush1.msra.mxu0 0.0
        %6343 = vmatprep.subr.mxu0 0.0
        %6344 = vmatpush1.msra.mxu0 0.0
        %6345 = vmatprep.subr.mxu0 0.0
        %6346 = vmatpush1.msra.mxu0 0.0
        %6347 = vmatprep.subr.mxu0 0.0
        %6348 = vmatpush1.msra.mxu0 0.0
        %6349 = vmatprep.subr.mxu0 0.0
        %6350 = vmatpush1.msra.mxu0 0.0
        %6351 = vmatprep.subr.mxu0 0.0
        %6352 = vmatpush1.msra.mxu0 0.0
        %6353 = vmatprep.subr.mxu0 0.0
        %6354 = vmatpush1.msra.mxu0 0.0
        %6355 = vmatprep.mubr.f32.mxu0 0.0
        %6356 = vmatmul.mubr.f32.gmra.mrb[0].mxu0 %v6286
        %v6357 = vpop.f32.mrb[0].mxu0
        %v6358 = vadd.f32 0.0, %v6357
        %v6359 = vpop.f32.mrb[0].mxu0
        %6360 = vmatprep.mubr.f32.mxu0 0.0
        %6361 = vmatmul.mubr.f32.gmra.mrb[0].mxu0 %v6289
        %v6362 = vpop.f32.mrb[0].mxu0
        %v6363 = vadd.f32 0.0, %v6362
        %v6364 = vpop.f32.mrb[0].mxu0
        %6365 = vdwg.mxu0
        %v6366 = vadd.f32 %v6271, %v6358
        %v6367 = vadd.f32 %v6272, %v6363
        %v6368 = vld [vmem:[#allocation4 + $0x8] sm:$0xff]
        %v6369 = vld [vmem:[#allocation4 + $0x10] sm:$0xff]
        %v6370 = vmul.f32 %v6368, %v5791
        %v6371 = vmul.f32 %v6369, %v5796
        %v6372 = vld [vmem:[%s7 + $0x180] sm:$0xff]
        %v6373 = vld [vmem:[%s7 + $0x188] sm:$0xff]
        %v6374 = vld [vmem:[%s7 + $0x190] sm:$0xff]
        %v6375 = vld [vmem:[%s7 + $0x198] sm:$0xff]
        %v6376 = vld [vmem:[%s7 + $0x1a0] sm:$0xff]
        %v6377 = vld [vmem:[%s7 + $0x1a8] sm:$0xff]
        %v6378 = vld [vmem:[%s7 + $0x1b0] sm:$0xff]
        %v6379 = vld [vmem:[%s7 + $0x1b8] sm:$0xff]
        %v6381 = vsel %vm5434, %v6370, 0
        %v6384 = vsel %vm5434, %v6371, 0
        %6386 = vmatprep.subr.mxu0 0.0
        %6387 = vmatpush1.msra.mxu0 %v6372
        %6388 = vmatprep.subr.mxu0 0.0
        %6389 = vmatpush1.msra.mxu0 %v6373
        %6390 = vmatprep.subr.mxu0 0.0
        %6391 = vmatpush1.msra.mxu0 %v6374
        %6392 = vmatprep.subr.mxu0 0.0
        %6393 = vmatpush1.msra.mxu0 %v6375
        %6394 = vmatprep.subr.mxu0 0.0
        %6395 = vmatpush1.msra.mxu0 %v6376
        %6396 = vmatprep.subr.mxu0 0.0
        %6397 = vmatpush1.msra.mxu0 %v6377
        %6398 = vmatprep.subr.mxu0 0.0
        %6399 = vmatpush1.msra.mxu0 %v6378
        %6400 = vmatprep.subr.mxu0 0.0
        %6401 = vmatpush1.msra.mxu0 %v6379
        %6402 = vmatprep.subr.mxu0 0.0
        %6403 = vmatpush1.msra.mxu0 0.0
        %6404 = vmatprep.subr.mxu0 0.0
        %6405 = vmatpush1.msra.mxu0 0.0
        %6406 = vmatprep.subr.mxu0 0.0
        %6407 = vmatpush1.msra.mxu0 0.0
        %6408 = vmatprep.subr.mxu0 0.0
        %6409 = vmatpush1.msra.mxu0 0.0
        %6410 = vmatprep.subr.mxu0 0.0
        %6411 = vmatpush1.msra.mxu0 0.0
        %6412 = vmatprep.subr.mxu0 0.0
        %6413 = vmatpush1.msra.mxu0 0.0
        %6414 = vmatprep.subr.mxu0 0.0
        %6415 = vmatpush1.msra.mxu0 0.0
        %6416 = vmatprep.subr.mxu0 0.0
        %6417 = vmatpush1.msra.mxu0 0.0
        %6418 = vmatprep.subr.mxu0 0.0
        %6419 = vmatpush1.msra.mxu0 0.0
        %6420 = vmatprep.subr.mxu0 0.0
        %6421 = vmatpush1.msra.mxu0 0.0
        %6422 = vmatprep.subr.mxu0 0.0
        %6423 = vmatpush1.msra.mxu0 0.0
        %6424 = vmatprep.subr.mxu0 0.0
        %6425 = vmatpush1.msra.mxu0 0.0
        %6426 = vmatprep.subr.mxu0 0.0
        %6427 = vmatpush1.msra.mxu0 0.0
        %6428 = vmatprep.subr.mxu0 0.0
        %6429 = vmatpush1.msra.mxu0 0.0
        %6430 = vmatprep.subr.mxu0 0.0
        %6431 = vmatpush1.msra.mxu0 0.0
        %6432 = vmatprep.subr.mxu0 0.0
        %6433 = vmatpush1.msra.mxu0 0.0
        %6434 = vmatprep.subr.mxu0 0.0
        %6435 = vmatpush1.msra.mxu0 0.0
        %6436 = vmatprep.subr.mxu0 0.0
        %6437 = vmatpush1.msra.mxu0 0.0
        %6438 = vmatprep.subr.mxu0 0.0
        %6439 = vmatpush1.msra.mxu0 0.0
        %6440 = vmatprep.subr.mxu0 0.0
        %6441 = vmatpush1.msra.mxu0 0.0
        %6442 = vmatprep.subr.mxu0 0.0
        %6443 = vmatpush1.msra.mxu0 0.0
        %6444 = vmatprep.subr.mxu0 0.0
        %6445 = vmatpush1.msra.mxu0 0.0
        %6446 = vmatprep.subr.mxu0 0.0
        %6447 = vmatpush1.msra.mxu0 0.0
        %6448 = vmatprep.subr.mxu0 0.0
        %6449 = vmatpush1.msra.mxu0 0.0
        %6450 = vmatprep.mubr.f32.mxu0 0.0
        %6451 = vmatmul.mubr.f32.gmra.mrb[0].mxu0 %v6381
        %v6452 = vpop.f32.mrb[0].mxu0
        %v6453 = vadd.f32 0.0, %v6452
        %v6454 = vpop.f32.mrb[0].mxu0
        %6455 = vmatprep.mubr.f32.mxu0 0.0
        %6456 = vmatmul.mubr.f32.gmra.mrb[0].mxu0 %v6384
        %v6457 = vpop.f32.mrb[0].mxu0
        %v6458 = vadd.f32 0.0, %v6457
        %v6459 = vpop.f32.mrb[0].mxu0
        %6460 = vdwg.mxu0
        %v6461 = vadd.f32 %v6366, %v6453
        %v6462 = vadd.f32 %v6367, %v6458
        %v6463 = vld [vmem:[#allocation4 + $0x9] sm:$0xff]
        %v6464 = vld [vmem:[#allocation4 + $0x11] sm:$0xff]
        %v6465 = vld [vmem:[%s7 + $0x1c0] sm:$0xff]
        %v6466 = vld [vmem:[%s7 + $0x1c8] sm:$0xff]
        %v6467 = vld [vmem:[%s7 + $0x1d0] sm:$0xff]
        %v6468 = vld [vmem:[%s7 + $0x1d8] sm:$0xff]
        %v6469 = vld [vmem:[%s7 + $0x1e0] sm:$0xff]
        %v6470 = vld [vmem:[%s7 + $0x1e8] sm:$0xff]
        %v6471 = vld [vmem:[%s7 + $0x1f0] sm:$0xff]
        %v6472 = vld [vmem:[%s7 + $0x1f8] sm:$0xff]
        %v6474 = vsel %vm5434, %v6463, 0
        %v6477 = vsel %vm5434, %v6464, 0
        %6479 = vmatprep.subr.mxu0 0.0
        %6480 = vmatpush1.msra.mxu0 %v6465
        %6481 = vmatprep.subr.mxu0 0.0
        %6482 = vmatpush1.msra.mxu0 %v6466
        %6483 = vmatprep.subr.mxu0 0.0
        %6484 = vmatpush1.msra.mxu0 %v6467
        %6485 = vmatprep.subr.mxu0 0.0
        %6486 = vmatpush1.msra.mxu0 %v6468
        %6487 = vmatprep.subr.mxu0 0.0
        %6488 = vmatpush1.msra.mxu0 %v6469
        %6489 = vmatprep.subr.mxu0 0.0
        %6490 = vmatpush1.msra.mxu0 %v6470
        %6491 = vmatprep.subr.mxu0 0.0
        %6492 = vmatpush1.msra.mxu0 %v6471
        %6493 = vmatprep.subr.mxu0 0.0
        %6494 = vmatpush1.msra.mxu0 %v6472
        %6495 = vmatprep.subr.mxu0 0.0
        %6496 = vmatpush1.msra.mxu0 0.0
        %6497 = vmatprep.subr.mxu0 0.0
        %6498 = vmatpush1.msra.mxu0 0.0
        %6499 = vmatprep.subr.mxu0 0.0
        %6500 = vmatpush1.msra.mxu0 0.0
        %6501 = vmatprep.subr.mxu0 0.0
        %6502 = vmatpush1.msra.mxu0 0.0
        %6503 = vmatprep.subr.mxu0 0.0
        %6504 = vmatpush1.msra.mxu0 0.0
        %6505 = vmatprep.subr.mxu0 0.0
        %6506 = vmatpush1.msra.mxu0 0.0
        %6507 = vmatprep.subr.mxu0 0.0
        %6508 = vmatpush1.msra.mxu0 0.0
        %6509 = vmatprep.subr.mxu0 0.0
        %6510 = vmatpush1.msra.mxu0 0.0
        %6511 = vmatprep.subr.mxu0 0.0
        %6512 = vmatpush1.msra.mxu0 0.0
        %6513 = vmatprep.subr.mxu0 0.0
        %6514 = vmatpush1.msra.mxu0 0.0
        %6515 = vmatprep.subr.mxu0 0.0
        %6516 = vmatpush1.msra.mxu0 0.0
        %6517 = vmatprep.subr.mxu0 0.0
        %6518 = vmatpush1.msra.mxu0 0.0
        %6519 = vmatprep.subr.mxu0 0.0
        %6520 = vmatpush1.msra.mxu0 0.0
        %6521 = vmatprep.subr.mxu0 0.0
        %6522 = vmatpush1.msra.mxu0 0.0
        %6523 = vmatprep.subr.mxu0 0.0
        %6524 = vmatpush1.msra.mxu0 0.0
        %6525 = vmatprep.subr.mxu0 0.0
        %6526 = vmatpush1.msra.mxu0 0.0
        %6527 = vmatprep.subr.mxu0 0.0
        %6528 = vmatpush1.msra.mxu0 0.0
        %6529 = vmatprep.subr.mxu0 0.0
        %6530 = vmatpush1.msra.mxu0 0.0
        %6531 = vmatprep.subr.mxu0 0.0
        %6532 = vmatpush1.msra.mxu0 0.0
        %6533 = vmatprep.subr.mxu0 0.0
        %6534 = vmatpush1.msra.mxu0 0.0
        %6535 = vmatprep.subr.mxu0 0.0
        %6536 = vmatpush1.msra.mxu0 0.0
        %6537 = vmatprep.subr.mxu0 0.0
        %6538 = vmatpush1.msra.mxu0 0.0
        %6539 = vmatprep.subr.mxu0 0.0
        %6540 = vmatpush1.msra.mxu0 0.0
        %6541 = vmatprep.subr.mxu0 0.0
        %6542 = vmatpush1.msra.mxu0 0.0
        %6543 = vmatprep.mubr.f32.mxu0 0.0
        %6544 = vmatmul.mubr.f32.gmra.mrb[0].mxu0 %v6474
        %v6545 = vpop.f32.mrb[0].mxu0
        %v6546 = vadd.f32 0.0, %v6545
        %v6547 = vpop.f32.mrb[0].mxu0
        %6548 = vmatprep.mubr.f32.mxu0 0.0
        %6549 = vmatmul.mubr.f32.gmra.mrb[0].mxu0 %v6477
        %v6550 = vpop.f32.mrb[0].mxu0
        %v6551 = vadd.f32 0.0, %v6550
        %v6552 = vpop.f32.mrb[0].mxu0
        %6553 = vdwg.mxu0
        %v6554 = vadd.f32 %v6461, %v6546
        %v6555 = vadd.f32 %v6462, %v6551
        %v6556 = vld [vmem:[#allocation4 + $0xa] sm:$0xff]
        %v6557 = vld [vmem:[#allocation4 + $0x12] sm:$0xff]
        %v6558 = vmul.f32 %v6556, %v5985
        %v6559 = vmul.f32 %v6557, %v5990
        %v6560 = vld [vmem:[%s7 + $0x200] sm:$0xff]
        %v6561 = vld [vmem:[%s7 + $0x208] sm:$0xff]
        %v6562 = vld [vmem:[%s7 + $0x210] sm:$0xff]
        %v6563 = vld [vmem:[%s7 + $0x218] sm:$0xff]
        %v6564 = vld [vmem:[%s7 + $0x220] sm:$0xff]
        %v6565 = vld [vmem:[%s7 + $0x228] sm:$0xff]
        %v6566 = vld [vmem:[%s7 + $0x230] sm:$0xff]
        %v6567 = vld [vmem:[%s7 + $0x238] sm:$0xff]
        %v6569 = vsel %vm5434, %v6558, 0
        %v6572 = vsel %vm5434, %v6559, 0
        %6574 = vmatprep.subr.mxu0 0.0
        %6575 = vmatpush1.msra.mxu0 %v6560
        %6576 = vmatprep.subr.mxu0 0.0
        %6577 = vmatpush1.msra.mxu0 %v6561
        %6578 = vmatprep.subr.mxu0 0.0
        %6579 = vmatpush1.msra.mxu0 %v6562
        %6580 = vmatprep.subr.mxu0 0.0
        %6581 = vmatpush1.msra.mxu0 %v6563
        %6582 = vmatprep.subr.mxu0 0.0
        %6583 = vmatpush1.msra.mxu0 %v6564
        %6584 = vmatprep.subr.mxu0 0.0
        %6585 = vmatpush1.msra.mxu0 %v6565
        %6586 = vmatprep.subr.mxu0 0.0
        %6587 = vmatpush1.msra.mxu0 %v6566
        %6588 = vmatprep.subr.mxu0 0.0
        %6589 = vmatpush1.msra.mxu0 %v6567
        %6590 = vmatprep.subr.mxu0 0.0
        %6591 = vmatpush1.msra.mxu0 0.0
        %6592 = vmatprep.subr.mxu0 0.0
        %6593 = vmatpush1.msra.mxu0 0.0
        %6594 = vmatprep.subr.mxu0 0.0
        %6595 = vmatpush1.msra.mxu0 0.0
        %6596 = vmatprep.subr.mxu0 0.0
        %6597 = vmatpush1.msra.mxu0 0.0
        %6598 = vmatprep.subr.mxu0 0.0
        %6599 = vmatpush1.msra.mxu0 0.0
        %6600 = vmatprep.subr.mxu0 0.0
        %6601 = vmatpush1.msra.mxu0 0.0
        %6602 = vmatprep.subr.mxu0 0.0
        %6603 = vmatpush1.msra.mxu0 0.0
        %6604 = vmatprep.subr.mxu0 0.0
        %6605 = vmatpush1.msra.mxu0 0.0
        %6606 = vmatprep.subr.mxu0 0.0
        %6607 = vmatpush1.msra.mxu0 0.0
        %6608 = vmatprep.subr.mxu0 0.0
        %6609 = vmatpush1.msra.mxu0 0.0
        %6610 = vmatprep.subr.mxu0 0.0
        %6611 = vmatpush1.msra.mxu0 0.0
        %6612 = vmatprep.subr.mxu0 0.0
        %6613 = vmatpush1.msra.mxu0 0.0
        %6614 = vmatprep.subr.mxu0 0.0
        %6615 = vmatpush1.msra.mxu0 0.0
        %6616 = vmatprep.subr.mxu0 0.0
        %6617 = vmatpush1.msra.mxu0 0.0
        %6618 = vmatprep.subr.mxu0 0.0
        %6619 = vmatpush1.msra.mxu0 0.0
        %6620 = vmatprep.subr.mxu0 0.0
        %6621 = vmatpush1.msra.mxu0 0.0
        %6622 = vmatprep.subr.mxu0 0.0
        %6623 = vmatpush1.msra.mxu0 0.0
        %6624 = vmatprep.subr.mxu0 0.0
        %6625 = vmatpush1.msra.mxu0 0.0
        %6626 = vmatprep.subr.mxu0 0.0
        %6627 = vmatpush1.msra.mxu0 0.0
        %6628 = vmatprep.subr.mxu0 0.0
        %6629 = vmatpush1.msra.mxu0 0.0
        %6630 = vmatprep.subr.mxu0 0.0
        %6631 = vmatpush1.msra.mxu0 0.0
        %6632 = vmatprep.subr.mxu0 0.0
        %6633 = vmatpush1.msra.mxu0 0.0
        %6634 = vmatprep.subr.mxu0 0.0
        %6635 = vmatpush1.msra.mxu0 0.0
        %6636 = vmatprep.subr.mxu0 0.0
        %6637 = vmatpush1.msra.mxu0 0.0
        %6638 = vmatprep.mubr.f32.mxu0 0.0
        %6639 = vmatmul.mubr.f32.gmra.mrb[0].mxu0 %v6569
        %v6640 = vpop.f32.mrb[0].mxu0
        %v6641 = vadd.f32 0.0, %v6640
        %v6642 = vpop.f32.mrb[0].mxu0
        %6643 = vmatprep.mubr.f32.mxu0 0.0
        %6644 = vmatmul.mubr.f32.gmra.mrb[0].mxu0 %v6572
        %v6645 = vpop.f32.mrb[0].mxu0
        %v6646 = vadd.f32 0.0, %v6645
        %v6647 = vpop.f32.mrb[0].mxu0
        %6648 = vdwg.mxu0
        %v6649 = vadd.f32 %v6554, %v6641
        %v6650 = vadd.f32 %v6555, %v6646
        %v6651 = vld [vmem:[%s8] sm:$0x1]
        %v6653 = vlaneseq
        %v6654 = vshrl.u32 %v6653, 7
        %v6655 = vsub.s32 0, %v6654
        %v6656 = vrot.slane %v6651, %v6655
        %v6658 = vadd.f32 %v6649, %v6656
        %v6659 = vadd.f32 %v6650, %v6656
        %v6660 = vmax.f32 %v6658, 0.0
        %v6661 = vmax.f32 %v6659, 0.0
        %v6662 = vld [vmem:[%s15] sm:$0xf]
        %vm6663 = vcmask 130048
        %v6665 = vsel %vm6663, %v6662, 0
        %6667 = vmatprep.subr.mxu0 0.0
        %6668 = vmatpush1.msra.mxu0 %v6660
        %6669 = vmatprep.subr.mxu0 0.0
        %6670 = vmatpush1.msra.mxu0 %v6661
        %6671 = vmatprep.subr.mxu0 0.0
        %6672 = vmatpush1.msra.mxu0 0.0
        %6673 = vmatprep.subr.mxu0 0.0
        %6674 = vmatpush1.msra.mxu0 0.0
        %6675 = vmatprep.subr.mxu0 0.0
        %6676 = vmatpush1.msra.mxu0 0.0
        %6677 = vmatprep.subr.mxu0 0.0
        %6678 = vmatpush1.msra.mxu0 0.0
        %6679 = vmatprep.subr.mxu0 0.0
        %6680 = vmatpush1.msra.mxu0 0.0
        %6681 = vmatprep.subr.mxu0 0.0
        %6682 = vmatpush1.msra.mxu0 0.0
        %6683 = vmatprep.subr.mxu0 0.0
        %6684 = vmatpush1.msra.mxu0 0.0
        %6685 = vmatprep.subr.mxu0 0.0
        %6686 = vmatpush1.msra.mxu0 0.0
        %6687 = vmatprep.subr.mxu0 0.0
        %6688 = vmatpush1.msra.mxu0 0.0
        %6689 = vmatprep.subr.mxu0 0.0
        %6690 = vmatpush1.msra.mxu0 0.0
        %6691 = vmatprep.subr.mxu0 0.0
        %6692 = vmatpush1.msra.mxu0 0.0
        %6693 = vmatprep.subr.mxu0 0.0
        %6694 = vmatpush1.msra.mxu0 0.0
        %6695 = vmatprep.subr.mxu0 0.0
        %6696 = vmatpush1.msra.mxu0 0.0
        %6697 = vmatprep.subr.mxu0 0.0
        %6698 = vmatpush1.msra.mxu0 0.0
        %6699 = vmatprep.subr.mxu0 0.0
        %6700 = vmatpush1.msra.mxu0 0.0
        %6701 = vmatprep.subr.mxu0 0.0
        %6702 = vmatpush1.msra.mxu0 0.0
        %6703 = vmatprep.subr.mxu0 0.0
        %6704 = vmatpush1.msra.mxu0 0.0
        %6705 = vmatprep.subr.mxu0 0.0
        %6706 = vmatpush1.msra.mxu0 0.0
        %6707 = vmatprep.subr.mxu0 0.0
        %6708 = vmatpush1.msra.mxu0 0.0
        %6709 = vmatprep.subr.mxu0 0.0
        %6710 = vmatpush1.msra.mxu0 0.0
        %6711 = vmatprep.subr.mxu0 0.0
        %6712 = vmatpush1.msra.mxu0 0.0
        %6713 = vmatprep.subr.mxu0 0.0
        %6714 = vmatpush1.msra.mxu0 0.0
        %6715 = vmatprep.subr.mxu0 0.0
        %6716 = vmatpush1.msra.mxu0 0.0
        %6717 = vmatprep.subr.mxu0 0.0
        %6718 = vmatpush1.msra.mxu0 0.0
        %6719 = vmatprep.subr.mxu0 0.0
        %6720 = vmatpush1.msra.mxu0 0.0
        %6721 = vmatprep.subr.mxu0 0.0
        %6722 = vmatpush1.msra.mxu0 0.0
        %6723 = vmatprep.subr.mxu0 0.0
        %6724 = vmatpush1.msra.mxu0 0.0
        %6725 = vmatprep.subr.mxu0 0.0
        %6726 = vmatpush1.msra.mxu0 0.0
        %6727 = vmatprep.subr.mxu0 0.0
        %6728 = vmatpush1.msra.mxu0 0.0
        %6729 = vmatprep.subr.mxu0 0.0
        %6730 = vmatpush1.msra.mxu0 0.0
        %6731 = vmatprep.mubr.f32.mxu0 0.0
        %6732 = vmatmul.mubr.f32.gmra.mrb[0].mxu0 %v6665
        %v6733 = vpop.f32.mrb[0].mxu0
        %v6734 = vadd.f32 0.0, %v6733
        %v6735 = vpop.f32.mrb[0].mxu0
        %6736 = vdwg.mxu0
        %s6737 = scalar_lea.vmem %s15, 4
        %v6738 = vld [vmem:[%s6737] sm:$0xf]
        %v6740 = vsel %vm6663, %v6738, 0
        %6742 = vmatprep.subr.mxu0 0.0
        %6743 = vmatpush1.msra.mxu0 %v6660
        %6744 = vmatprep.subr.mxu0 0.0
        %6745 = vmatpush1.msra.mxu0 %v6661
        %6746 = vmatprep.subr.mxu0 0.0
        %6747 = vmatpush1.msra.mxu0 0.0
        %6748 = vmatprep.subr.mxu0 0.0
        %6749 = vmatpush1.msra.mxu0 0.0
        %6750 = vmatprep.subr.mxu0 0.0
        %6751 = vmatpush1.msra.mxu0 0.0
        %6752 = vmatprep.subr.mxu0 0.0
        %6753 = vmatpush1.msra.mxu0 0.0
        %6754 = vmatprep.subr.mxu0 0.0
        %6755 = vmatpush1.msra.mxu0 0.0
        %6756 = vmatprep.subr.mxu0 0.0
        %6757 = vmatpush1.msra.mxu0 0.0
        %6758 = vmatprep.subr.mxu0 0.0
        %6759 = vmatpush1.msra.mxu0 0.0
        %6760 = vmatprep.subr.mxu0 0.0
        %6761 = vmatpush1.msra.mxu0 0.0
        %6762 = vmatprep.subr.mxu0 0.0
        %6763 = vmatpush1.msra.mxu0 0.0
        %6764 = vmatprep.subr.mxu0 0.0
        %6765 = vmatpush1.msra.mxu0 0.0
        %6766 = vmatprep.subr.mxu0 0.0
        %6767 = vmatpush1.msra.mxu0 0.0
        %6768 = vmatprep.subr.mxu0 0.0
        %6769 = vmatpush1.msra.mxu0 0.0
        %6770 = vmatprep.subr.mxu0 0.0
        %6771 = vmatpush1.msra.mxu0 0.0
        %6772 = vmatprep.subr.mxu0 0.0
        %6773 = vmatpush1.msra.mxu0 0.0
        %6774 = vmatprep.subr.mxu0 0.0
        %6775 = vmatpush1.msra.mxu0 0.0
        %6776 = vmatprep.subr.mxu0 0.0
        %6777 = vmatpush1.msra.mxu0 0.0
        %6778 = vmatprep.subr.mxu0 0.0
        %6779 = vmatpush1.msra.mxu0 0.0
        %6780 = vmatprep.subr.mxu0 0.0
        %6781 = vmatpush1.msra.mxu0 0.0
        %6782 = vmatprep.subr.mxu0 0.0
        %6783 = vmatpush1.msra.mxu0 0.0
        %6784 = vmatprep.subr.mxu0 0.0
        %6785 = vmatpush1.msra.mxu0 0.0
        %6786 = vmatprep.subr.mxu0 0.0
        %6787 = vmatpush1.msra.mxu0 0.0
        %6788 = vmatprep.subr.mxu0 0.0
        %6789 = vmatpush1.msra.mxu0 0.0
        %6790 = vmatprep.subr.mxu0 0.0
        %6791 = vmatpush1.msra.mxu0 0.0
        %6792 = vmatprep.subr.mxu0 0.0
        %6793 = vmatpush1.msra.mxu0 0.0
        %6794 = vmatprep.subr.mxu0 0.0
        %6795 = vmatpush1.msra.mxu0 0.0
        %6796 = vmatprep.subr.mxu0 0.0
        %6797 = vmatpush1.msra.mxu0 0.0
        %6798 = vmatprep.subr.mxu0 0.0
        %6799 = vmatpush1.msra.mxu0 0.0
        %6800 = vmatprep.subr.mxu0 0.0
        %6801 = vmatpush1.msra.mxu0 0.0
        %6802 = vmatprep.subr.mxu0 0.0
        %6803 = vmatpush1.msra.mxu0 0.0
        %6804 = vmatprep.subr.mxu0 0.0
        %6805 = vmatpush1.msra.mxu0 0.0
        %6806 = vmatprep.mubr.f32.mxu0 0.0
        %6807 = vmatmul.mubr.f32.gmra.mrb[0].mxu0 %v6740
        %v6808 = vpop.f32.mrb[0].mxu0
        %v6809 = vadd.f32 0.0, %v6808
        %v6810 = vpop.f32.mrb[0].mxu0
        %6811 = vdwg.mxu0
        %v6812 = vmax.f32 %v6734, %v6809
        %s6813 = scalar_lea.vmem %s15, 8
        %v6814 = vld [vmem:[%s6813] sm:$0xf]
        %v6816 = vsel %vm6663, %v6814, 0
        %6818 = vmatprep.subr.mxu0 0.0
        %6819 = vmatpush1.msra.mxu0 %v6660
        %6820 = vmatprep.subr.mxu0 0.0
        %6821 = vmatpush1.msra.mxu0 %v6661
        %6822 = vmatprep.subr.mxu0 0.0
        %6823 = vmatpush1.msra.mxu0 0.0
        %6824 = vmatprep.subr.mxu0 0.0
        %6825 = vmatpush1.msra.mxu0 0.0
        %6826 = vmatprep.subr.mxu0 0.0
        %6827 = vmatpush1.msra.mxu0 0.0
        %6828 = vmatprep.subr.mxu0 0.0
        %6829 = vmatpush1.msra.mxu0 0.0
        %6830 = vmatprep.subr.mxu0 0.0
        %6831 = vmatpush1.msra.mxu0 0.0
        %6832 = vmatprep.subr.mxu0 0.0
        %6833 = vmatpush1.msra.mxu0 0.0
        %6834 = vmatprep.subr.mxu0 0.0
        %6835 = vmatpush1.msra.mxu0 0.0
        %6836 = vmatprep.subr.mxu0 0.0
        %6837 = vmatpush1.msra.mxu0 0.0
        %6838 = vmatprep.subr.mxu0 0.0
        %6839 = vmatpush1.msra.mxu0 0.0
        %6840 = vmatprep.subr.mxu0 0.0
        %6841 = vmatpush1.msra.mxu0 0.0
        %6842 = vmatprep.subr.mxu0 0.0
        %6843 = vmatpush1.msra.mxu0 0.0
        %6844 = vmatprep.subr.mxu0 0.0
        %6845 = vmatpush1.msra.mxu0 0.0
        %6846 = vmatprep.subr.mxu0 0.0
        %6847 = vmatpush1.msra.mxu0 0.0
        %6848 = vmatprep.subr.mxu0 0.0
        %6849 = vmatpush1.msra.mxu0 0.0
        %6850 = vmatprep.subr.mxu0 0.0
        %6851 = vmatpush1.msra.mxu0 0.0
        %6852 = vmatprep.subr.mxu0 0.0
        %6853 = vmatpush1.msra.mxu0 0.0
        %6854 = vmatprep.subr.mxu0 0.0
        %6855 = vmatpush1.msra.mxu0 0.0
        %6856 = vmatprep.subr.mxu0 0.0
        %6857 = vmatpush1.msra.mxu0 0.0
        %6858 = vmatprep.subr.mxu0 0.0
        %6859 = vmatpush1.msra.mxu0 0.0
        %6860 = vmatprep.subr.mxu0 0.0
        %6861 = vmatpush1.msra.mxu0 0.0
        %6862 = vmatprep.subr.mxu0 0.0
        %6863 = vmatpush1.msra.mxu0 0.0
        %6864 = vmatprep.subr.mxu0 0.0
        %6865 = vmatpush1.msra.mxu0 0.0
        %6866 = vmatprep.subr.mxu0 0.0
        %6867 = vmatpush1.msra.mxu0 0.0
        %6868 = vmatprep.subr.mxu0 0.0
        %6869 = vmatpush1.msra.mxu0 0.0
        %6870 = vmatprep.subr.mxu0 0.0
        %6871 = vmatpush1.msra.mxu0 0.0
        %6872 = vmatprep.subr.mxu0 0.0
        %6873 = vmatpush1.msra.mxu0 0.0
        %6874 = vmatprep.subr.mxu0 0.0
        %6875 = vmatpush1.msra.mxu0 0.0
        %6876 = vmatprep.subr.mxu0 0.0
        %6877 = vmatpush1.msra.mxu0 0.0
        %6878 = vmatprep.subr.mxu0 0.0
        %6879 = vmatpush1.msra.mxu0 0.0
        %6880 = vmatprep.subr.mxu0 0.0
        %6881 = vmatpush1.msra.mxu0 0.0
        %6882 = vmatprep.mubr.f32.mxu0 0.0
        %6883 = vmatmul.mubr.f32.gmra.mrb[0].mxu0 %v6816
        %v6884 = vpop.f32.mrb[0].mxu0
        %v6885 = vadd.f32 0.0, %v6884
        %v6886 = vpop.f32.mrb[0].mxu0
        %6887 = vdwg.mxu0
        %v6888 = vmax.f32 %v6812, %v6885
        %s6889 = scalar_lea.vmem %s15, 12
        %v6890 = vld [vmem:[%s6889] sm:$0xf]
        %v6892 = vsel %vm6663, %v6890, 0
        %6894 = vmatprep.subr.mxu0 0.0
        %6895 = vmatpush1.msra.mxu0 %v6660
        %6896 = vmatprep.subr.mxu0 0.0
        %6897 = vmatpush1.msra.mxu0 %v6661
        %6898 = vmatprep.subr.mxu0 0.0
        %6899 = vmatpush1.msra.mxu0 0.0
        %6900 = vmatprep.subr.mxu0 0.0
        %6901 = vmatpush1.msra.mxu0 0.0
        %6902 = vmatprep.subr.mxu0 0.0
        %6903 = vmatpush1.msra.mxu0 0.0
        %6904 = vmatprep.subr.mxu0 0.0
        %6905 = vmatpush1.msra.mxu0 0.0
        %6906 = vmatprep.subr.mxu0 0.0
        %6907 = vmatpush1.msra.mxu0 0.0
        %6908 = vmatprep.subr.mxu0 0.0
        %6909 = vmatpush1.msra.mxu0 0.0
        %6910 = vmatprep.subr.mxu0 0.0
        %6911 = vmatpush1.msra.mxu0 0.0
        %6912 = vmatprep.subr.mxu0 0.0
        %6913 = vmatpush1.msra.mxu0 0.0
        %6914 = vmatprep.subr.mxu0 0.0
        %6915 = vmatpush1.msra.mxu0 0.0
        %6916 = vmatprep.subr.mxu0 0.0
        %6917 = vmatpush1.msra.mxu0 0.0
        %6918 = vmatprep.subr.mxu0 0.0
        %6919 = vmatpush1.msra.mxu0 0.0
        %6920 = vmatprep.subr.mxu0 0.0
        %6921 = vmatpush1.msra.mxu0 0.0
        %6922 = vmatprep.subr.mxu0 0.0
        %6923 = vmatpush1.msra.mxu0 0.0
        %6924 = vmatprep.subr.mxu0 0.0
        %6925 = vmatpush1.msra.mxu0 0.0
        %6926 = vmatprep.subr.mxu0 0.0
        %6927 = vmatpush1.msra.mxu0 0.0
        %6928 = vmatprep.subr.mxu0 0.0
        %6929 = vmatpush1.msra.mxu0 0.0
        %6930 = vmatprep.subr.mxu0 0.0
        %6931 = vmatpush1.msra.mxu0 0.0
        %6932 = vmatprep.subr.mxu0 0.0
        %6933 = vmatpush1.msra.mxu0 0.0
        %6934 = vmatprep.subr.mxu0 0.0
        %6935 = vmatpush1.msra.mxu0 0.0
        %6936 = vmatprep.subr.mxu0 0.0
        %6937 = vmatpush1.msra.mxu0 0.0
        %6938 = vmatprep.subr.mxu0 0.0
        %6939 = vmatpush1.msra.mxu0 0.0
        %6940 = vmatprep.subr.mxu0 0.0
        %6941 = vmatpush1.msra.mxu0 0.0
        %6942 = vmatprep.subr.mxu0 0.0
        %6943 = vmatpush1.msra.mxu0 0.0
        %6944 = vmatprep.subr.mxu0 0.0
        %6945 = vmatpush1.msra.mxu0 0.0
        %6946 = vmatprep.subr.mxu0 0.0
        %6947 = vmatpush1.msra.mxu0 0.0
        %6948 = vmatprep.subr.mxu0 0.0
        %6949 = vmatpush1.msra.mxu0 0.0
        %6950 = vmatprep.subr.mxu0 0.0
        %6951 = vmatpush1.msra.mxu0 0.0
        %6952 = vmatprep.subr.mxu0 0.0
        %6953 = vmatpush1.msra.mxu0 0.0
        %6954 = vmatprep.subr.mxu0 0.0
        %6955 = vmatpush1.msra.mxu0 0.0
        %6956 = vmatprep.subr.mxu0 0.0
        %6957 = vmatpush1.msra.mxu0 0.0
        %6958 = vmatprep.mubr.f32.mxu0 0.0
        %6959 = vmatmul.mubr.f32.gmra.mrb[0].mxu0 %v6892
        %v6960 = vpop.f32.mrb[0].mxu0
        %v6961 = vadd.f32 0.0, %v6960
        %v6962 = vpop.f32.mrb[0].mxu0
        %6963 = vdwg.mxu0
        %v6964 = vmax.f32 %v6888, %v6961
        %6965 = vst [vmem:[#allocation5] sm:$0xff] 0.0
        %6966 = vst [vmem:[#allocation5 + $0x8] sm:$0x3] 0.0
        %6967 = vst [vmem:[#allocation5 + $0x3] sm:$0xf] %v6964
        %v6968 = vld [vmem:[%s12] sm:$0xf]
        %s6969 = scalar_lea.vmem %s12, 4
        %v6970 = vld [vmem:[%s6969] sm:$0xf]
        %v6971 = vld [vmem:[#allocation5] sm:$0xf]
        %6973 = vset.pattern.permute.xlu0 0
        %6974 = vperm.xlu0 %6973, %v6968
        %v6975 = vpop.permute.xlu0 %6974
        %v6977 = vmul.f32 %v6971, %v6975
        %v6978 = vld [vmem:[%s10] sm:$0xff]
        %v6979 = vld [vmem:[%s10 + $0x8] sm:$0xff]
        %v6980 = vld [vmem:[%s10 + $0x10] sm:$0xff]
        %v6981 = vld [vmem:[%s10 + $0x18] sm:$0xff]
        %v6982 = vld [vmem:[%s10 + $0x20] sm:$0xff]
        %v6983 = vld [vmem:[%s10 + $0x28] sm:$0xff]
        %v6984 = vld [vmem:[%s10 + $0x30] sm:$0xff]
        %v6985 = vld [vmem:[%s10 + $0x38] sm:$0xff]
        %v6986 = vld [vmem:[%s10 + $0x40] sm:$0xff]
        %v6987 = vld [vmem:[%s10 + $0x48] sm:$0xff]
        %v6988 = vld [vmem:[%s10 + $0x50] sm:$0xff]
        %v6989 = vld [vmem:[%s10 + $0x58] sm:$0xff]
        %v6990 = vld [vmem:[%s10 + $0x60] sm:$0xff]
        %v6991 = vld [vmem:[%s10 + $0x68] sm:$0xff]
        %v6992 = vld [vmem:[%s10 + $0x70] sm:$0xff]
        %v6993 = vld [vmem:[%s10 + $0x78] sm:$0xff]
        %v6994 = vld [vmem:[%s10 + $0x80] sm:$0xff]
        %v6995 = vld [vmem:[%s10 + $0x88] sm:$0xff]
        %v6996 = vld [vmem:[%s10 + $0x90] sm:$0xff]
        %v6997 = vld [vmem:[%s10 + $0x98] sm:$0xff]
        %v6998 = vld [vmem:[%s10 + $0xa0] sm:$0xff]
        %v6999 = vld [vmem:[%s10 + $0xa8] sm:$0xff]
        %v7000 = vld [vmem:[%s10 + $0xb0] sm:$0xff]
        %v7001 = vld [vmem:[%s10 + $0xb8] sm:$0xff]
        %v7002 = vld [vmem:[%s10 + $0xc0] sm:$0xff]
        %v7003 = vld [vmem:[%s10 + $0xc8] sm:$0xff]
        %v7004 = vld [vmem:[%s10 + $0xd0] sm:$0xff]
        %v7005 = vld [vmem:[%s10 + $0xd8] sm:$0xff]
        %v7006 = vld [vmem:[%s10 + $0xe0] sm:$0xff]
        %v7007 = vld [vmem:[%s10 + $0xe8] sm:$0xff]
        %v7008 = vld [vmem:[%s10 + $0xf0] sm:$0xff]
        %v7009 = vld [vmem:[%s10 + $0xf8] sm:$0xff]
        %v7010 = vld [vmem:[#allocation5 + $0x1] sm:$0xf]
        %v7011 = vld [vmem:[%s10 + $0x100] sm:$0xff]
        %v7012 = vld [vmem:[%s10 + $0x108] sm:$0xff]
        %v7013 = vld [vmem:[%s10 + $0x110] sm:$0xff]
        %v7014 = vld [vmem:[%s10 + $0x118] sm:$0xff]
        %v7015 = vld [vmem:[%s10 + $0x120] sm:$0xff]
        %v7016 = vld [vmem:[%s10 + $0x128] sm:$0xff]
        %v7017 = vld [vmem:[%s10 + $0x130] sm:$0xff]
        %v7018 = vld [vmem:[%s10 + $0x138] sm:$0xff]
        %v7019 = vld [vmem:[%s10 + $0x140] sm:$0xff]
        %v7020 = vld [vmem:[%s10 + $0x148] sm:$0xff]
        %v7021 = vld [vmem:[%s10 + $0x150] sm:$0xff]
        %v7022 = vld [vmem:[%s10 + $0x158] sm:$0xff]
        %v7023 = vld [vmem:[%s10 + $0x160] sm:$0xff]
        %v7024 = vld [vmem:[%s10 + $0x168] sm:$0xff]
        %v7025 = vld [vmem:[%s10 + $0x170] sm:$0xff]
        %v7026 = vld [vmem:[%s10 + $0x178] sm:$0xff]
        %v7027 = vld [vmem:[%s10 + $0x180] sm:$0xff]
        %v7028 = vld [vmem:[%s10 + $0x188] sm:$0xff]
        %v7029 = vld [vmem:[%s10 + $0x190] sm:$0xff]
        %v7030 = vld [vmem:[%s10 + $0x198] sm:$0xff]
        %v7031 = vld [vmem:[%s10 + $0x1a0] sm:$0xff]
        %v7032 = vld [vmem:[%s10 + $0x1a8] sm:$0xff]
        %v7033 = vld [vmem:[%s10 + $0x1b0] sm:$0xff]
        %v7034 = vld [vmem:[%s10 + $0x1b8] sm:$0xff]
        %v7035 = vld [vmem:[%s10 + $0x1c0] sm:$0xff]
        %v7036 = vld [vmem:[%s10 + $0x1c8] sm:$0xff]
        %v7037 = vld [vmem:[%s10 + $0x1d0] sm:$0xff]
        %v7038 = vld [vmem:[%s10 + $0x1d8] sm:$0xff]
        %v7039 = vld [vmem:[%s10 + $0x1e0] sm:$0xff]
        %v7040 = vld [vmem:[%s10 + $0x1e8] sm:$0xff]
        %v7041 = vld [vmem:[%s10 + $0x1f0] sm:$0xff]
        %v7042 = vld [vmem:[%s10 + $0x1f8] sm:$0xff]
        %7043 = vmatprep.subr.mxu0 %v7012
        %7044 = vmatpush1.msra.mxu0 %v7011
        %7045 = vmatprep.subr.mxu0 %v7014
        %7046 = vmatpush1.msra.mxu0 %v7013
        %7047 = vmatprep.subr.mxu0 %v7016
        %7048 = vmatpush1.msra.mxu0 %v7015
        %7049 = vmatprep.subr.mxu0 %v7018
        %7050 = vmatpush1.msra.mxu0 %v7017
        %7051 = vmatprep.subr.mxu0 %v7020
        %7052 = vmatpush1.msra.mxu0 %v7019
        %7053 = vmatprep.subr.mxu0 %v7022
        %7054 = vmatpush1.msra.mxu0 %v7021
        %7055 = vmatprep.subr.mxu0 %v7024
        %7056 = vmatpush1.msra.mxu0 %v7023
        %7057 = vmatprep.subr.mxu0 %v7026
        %7058 = vmatpush1.msra.mxu0 %v7025
        %7059 = vmatprep.subr.mxu0 %v7028
        %7060 = vmatpush1.msra.mxu0 %v7027
        %7061 = vmatprep.subr.mxu0 %v7030
        %7062 = vmatpush1.msra.mxu0 %v7029
        %7063 = vmatprep.subr.mxu0 %v7032
        %7064 = vmatpush1.msra.mxu0 %v7031
        %7065 = vmatprep.subr.mxu0 %v7034
        %7066 = vmatpush1.msra.mxu0 %v7033
        %7067 = vmatprep.subr.mxu0 %v7036
        %7068 = vmatpush1.msra.mxu0 %v7035
        %7069 = vmatprep.subr.mxu0 %v7038
        %7070 = vmatpush1.msra.mxu0 %v7037
        %7071 = vmatprep.subr.mxu0 %v7040
        %7072 = vmatpush1.msra.mxu0 %v7039
        %7073 = vmatprep.subr.mxu0 %v7042
        %7074 = vmatpush1.msra.mxu0 %v7041
        %7075 = vmatprep.subr.mxu0 0.0
        %7076 = vmatpush1.msra.mxu0 0.0
        %7077 = vmatprep.subr.mxu0 0.0
        %7078 = vmatpush1.msra.mxu0 0.0
        %7079 = vmatprep.subr.mxu0 0.0
        %7080 = vmatpush1.msra.mxu0 0.0
        %7081 = vmatprep.subr.mxu0 0.0
        %7082 = vmatpush1.msra.mxu0 0.0
        %7083 = vmatprep.subr.mxu0 0.0
        %7084 = vmatpush1.msra.mxu0 0.0
        %7085 = vmatprep.subr.mxu0 0.0
        %7086 = vmatpush1.msra.mxu0 0.0
        %7087 = vmatprep.subr.mxu0 0.0
        %7088 = vmatpush1.msra.mxu0 0.0
        %7089 = vmatprep.subr.mxu0 0.0
        %7090 = vmatpush1.msra.mxu0 0.0
        %7091 = vmatprep.subr.mxu0 0.0
        %7092 = vmatpush1.msra.mxu0 0.0
        %7093 = vmatprep.subr.mxu0 0.0
        %7094 = vmatpush1.msra.mxu0 0.0
        %7095 = vmatprep.subr.mxu0 0.0
        %7096 = vmatpush1.msra.mxu0 0.0
        %7097 = vmatprep.subr.mxu0 0.0
        %7098 = vmatpush1.msra.mxu0 0.0
        %7099 = vmatprep.subr.mxu0 0.0
        %7100 = vmatpush1.msra.mxu0 0.0
        %7101 = vmatprep.subr.mxu0 0.0
        %7102 = vmatpush1.msra.mxu0 0.0
        %7103 = vmatprep.subr.mxu0 0.0
        %7104 = vmatpush1.msra.mxu0 0.0
        %7105 = vmatprep.subr.mxu0 0.0
        %7106 = vmatpush1.msra.mxu0 0.0
        %7107 = vmatprep.mubr.f32.mxu0 0.0
        %7108 = vmatmul.mubr.f32.gmra.mrb[0].mxu0 %v7010
        %v7109 = vpop.f32.mrb[0].mxu0
        %v7110 = vadd.f32 0.0, %v7109
        %v7111 = vpop.f32.mrb[0].mxu0
        %v7112 = vadd.f32 0.0, %v7111
        %7113 = vdwg.mxu0
        %7114 = vmatprep.subr.mxu0 %v6979
        %7115 = vmatpush1.msra.mxu0 %v6978
        %7116 = vmatprep.subr.mxu0 %v6981
        %7117 = vmatpush1.msra.mxu0 %v6980
        %7118 = vmatprep.subr.mxu0 %v6983
        %7119 = vmatpush1.msra.mxu0 %v6982
        %7120 = vmatprep.subr.mxu0 %v6985
        %7121 = vmatpush1.msra.mxu0 %v6984
        %7122 = vmatprep.subr.mxu0 %v6987
        %7123 = vmatpush1.msra.mxu0 %v6986
        %7124 = vmatprep.subr.mxu0 %v6989
        %7125 = vmatpush1.msra.mxu0 %v6988
        %7126 = vmatprep.subr.mxu0 %v6991
        %7127 = vmatpush1.msra.mxu0 %v6990
        %7128 = vmatprep.subr.mxu0 %v6993
        %7129 = vmatpush1.msra.mxu0 %v6992
        %7130 = vmatprep.subr.mxu0 %v6995
        %7131 = vmatpush1.msra.mxu0 %v6994
        %7132 = vmatprep.subr.mxu0 %v6997
        %7133 = vmatpush1.msra.mxu0 %v6996
        %7134 = vmatprep.subr.mxu0 %v6999
        %7135 = vmatpush1.msra.mxu0 %v6998
        %7136 = vmatprep.subr.mxu0 %v7001
        %7137 = vmatpush1.msra.mxu0 %v7000
        %7138 = vmatprep.subr.mxu0 %v7003
        %7139 = vmatpush1.msra.mxu0 %v7002
        %7140 = vmatprep.subr.mxu0 %v7005
        %7141 = vmatpush1.msra.mxu0 %v7004
        %7142 = vmatprep.subr.mxu0 %v7007
        %7143 = vmatpush1.msra.mxu0 %v7006
        %7144 = vmatprep.subr.mxu0 %v7009
        %7145 = vmatpush1.msra.mxu0 %v7008
        %7146 = vmatprep.subr.mxu0 0.0
        %7147 = vmatpush1.msra.mxu0 0.0
        %7148 = vmatprep.subr.mxu0 0.0
        %7149 = vmatpush1.msra.mxu0 0.0
        %7150 = vmatprep.subr.mxu0 0.0
        %7151 = vmatpush1.msra.mxu0 0.0
        %7152 = vmatprep.subr.mxu0 0.0
        %7153 = vmatpush1.msra.mxu0 0.0
        %7154 = vmatprep.subr.mxu0 0.0
        %7155 = vmatpush1.msra.mxu0 0.0
        %7156 = vmatprep.subr.mxu0 0.0
        %7157 = vmatpush1.msra.mxu0 0.0
        %7158 = vmatprep.subr.mxu0 0.0
        %7159 = vmatpush1.msra.mxu0 0.0
        %7160 = vmatprep.subr.mxu0 0.0
        %7161 = vmatpush1.msra.mxu0 0.0
        %7162 = vmatprep.subr.mxu0 0.0
        %7163 = vmatpush1.msra.mxu0 0.0
        %7164 = vmatprep.subr.mxu0 0.0
        %7165 = vmatpush1.msra.mxu0 0.0
        %7166 = vmatprep.subr.mxu0 0.0
        %7167 = vmatpush1.msra.mxu0 0.0
        %7168 = vmatprep.subr.mxu0 0.0
        %7169 = vmatpush1.msra.mxu0 0.0
        %7170 = vmatprep.subr.mxu0 0.0
        %7171 = vmatpush1.msra.mxu0 0.0
        %7172 = vmatprep.subr.mxu0 0.0
        %7173 = vmatpush1.msra.mxu0 0.0
        %7174 = vmatprep.subr.mxu0 0.0
        %7175 = vmatpush1.msra.mxu0 0.0
        %7176 = vmatprep.subr.mxu0 0.0
        %7177 = vmatpush1.msra.mxu0 0.0
        %7178 = vmatprep.mubr.f32.mxu0 0.0
        %7179 = vmatmul.mubr.f32.gmra.mrb[0].mxu0 %v6977
        %v7180 = vpop.f32.mrb[0].mxu0
        %v7181 = vadd.f32 %v7110, %v7180
        %v7182 = vpop.f32.mrb[0].mxu0
        %v7183 = vadd.f32 %v7112, %v7182
        %7184 = vdwg.mxu0
        %v7185 = vld [vmem:[#allocation5 + $0x2] sm:$0xf]
        %7187 = vset.pattern.permute.xlu0 0
        %7188 = vperm.xlu0 %7187, %v6970
        %v7189 = vpop.permute.xlu0 %7188
        %v7191 = vmul.f32 %v7185, %v7189
        %v7192 = vld [vmem:[%s10 + $0x200] sm:$0xff]
        %v7193 = vld [vmem:[%s10 + $0x208] sm:$0xff]
        %v7194 = vld [vmem:[%s10 + $0x210] sm:$0xff]
        %v7195 = vld [vmem:[%s10 + $0x218] sm:$0xff]
        %v7196 = vld [vmem:[%s10 + $0x220] sm:$0xff]
        %v7197 = vld [vmem:[%s10 + $0x228] sm:$0xff]
        %v7198 = vld [vmem:[%s10 + $0x230] sm:$0xff]
        %v7199 = vld [vmem:[%s10 + $0x238] sm:$0xff]
        %v7200 = vld [vmem:[%s10 + $0x240] sm:$0xff]
        %v7201 = vld [vmem:[%s10 + $0x248] sm:$0xff]
        %v7202 = vld [vmem:[%s10 + $0x250] sm:$0xff]
        %v7203 = vld [vmem:[%s10 + $0x258] sm:$0xff]
        %v7204 = vld [vmem:[%s10 + $0x260] sm:$0xff]
        %v7205 = vld [vmem:[%s10 + $0x268] sm:$0xff]
        %v7206 = vld [vmem:[%s10 + $0x270] sm:$0xff]
        %v7207 = vld [vmem:[%s10 + $0x278] sm:$0xff]
        %v7208 = vld [vmem:[%s10 + $0x280] sm:$0xff]
        %v7209 = vld [vmem:[%s10 + $0x288] sm:$0xff]
        %v7210 = vld [vmem:[%s10 + $0x290] sm:$0xff]
        %v7211 = vld [vmem:[%s10 + $0x298] sm:$0xff]
        %v7212 = vld [vmem:[%s10 + $0x2a0] sm:$0xff]
        %v7213 = vld [vmem:[%s10 + $0x2a8] sm:$0xff]
        %v7214 = vld [vmem:[%s10 + $0x2b0] sm:$0xff]
        %v7215 = vld [vmem:[%s10 + $0x2b8] sm:$0xff]
        %v7216 = vld [vmem:[%s10 + $0x2c0] sm:$0xff]
        %v7217 = vld [vmem:[%s10 + $0x2c8] sm:$0xff]
        %v7218 = vld [vmem:[%s10 + $0x2d0] sm:$0xff]
        %v7219 = vld [vmem:[%s10 + $0x2d8] sm:$0xff]
        %v7220 = vld [vmem:[%s10 + $0x2e0] sm:$0xff]
        %v7221 = vld [vmem:[%s10 + $0x2e8] sm:$0xff]
        %v7222 = vld [vmem:[%s10 + $0x2f0] sm:$0xff]
        %v7223 = vld [vmem:[%s10 + $0x2f8] sm:$0xff]
        %7224 = vmatprep.subr.mxu0 %v7193
        %7225 = vmatpush1.msra.mxu0 %v7192
        %7226 = vmatprep.subr.mxu0 %v7195
        %7227 = vmatpush1.msra.mxu0 %v7194
        %7228 = vmatprep.subr.mxu0 %v7197
        %7229 = vmatpush1.msra.mxu0 %v7196
        %7230 = vmatprep.subr.mxu0 %v7199
        %7231 = vmatpush1.msra.mxu0 %v7198
        %7232 = vmatprep.subr.mxu0 %v7201
        %7233 = vmatpush1.msra.mxu0 %v7200
        %7234 = vmatprep.subr.mxu0 %v7203
        %7235 = vmatpush1.msra.mxu0 %v7202
        %7236 = vmatprep.subr.mxu0 %v7205
        %7237 = vmatpush1.msra.mxu0 %v7204
        %7238 = vmatprep.subr.mxu0 %v7207
        %7239 = vmatpush1.msra.mxu0 %v7206
        %7240 = vmatprep.subr.mxu0 %v7209
        %7241 = vmatpush1.msra.mxu0 %v7208
        %7242 = vmatprep.subr.mxu0 %v7211
        %7243 = vmatpush1.msra.mxu0 %v7210
        %7244 = vmatprep.subr.mxu0 %v7213
        %7245 = vmatpush1.msra.mxu0 %v7212
        %7246 = vmatprep.subr.mxu0 %v7215
        %7247 = vmatpush1.msra.mxu0 %v7214
        %7248 = vmatprep.subr.mxu0 %v7217
        %7249 = vmatpush1.msra.mxu0 %v7216
        %7250 = vmatprep.subr.mxu0 %v7219
        %7251 = vmatpush1.msra.mxu0 %v7218
        %7252 = vmatprep.subr.mxu0 %v7221
        %7253 = vmatpush1.msra.mxu0 %v7220
        %7254 = vmatprep.subr.mxu0 %v7223
        %7255 = vmatpush1.msra.mxu0 %v7222
        %7256 = vmatprep.subr.mxu0 0.0
        %7257 = vmatpush1.msra.mxu0 0.0
        %7258 = vmatprep.subr.mxu0 0.0
        %7259 = vmatpush1.msra.mxu0 0.0
        %7260 = vmatprep.subr.mxu0 0.0
        %7261 = vmatpush1.msra.mxu0 0.0
        %7262 = vmatprep.subr.mxu0 0.0
        %7263 = vmatpush1.msra.mxu0 0.0
        %7264 = vmatprep.subr.mxu0 0.0
        %7265 = vmatpush1.msra.mxu0 0.0
        %7266 = vmatprep.subr.mxu0 0.0
        %7267 = vmatpush1.msra.mxu0 0.0
        %7268 = vmatprep.subr.mxu0 0.0
        %7269 = vmatpush1.msra.mxu0 0.0
        %7270 = vmatprep.subr.mxu0 0.0
        %7271 = vmatpush1.msra.mxu0 0.0
        %7272 = vmatprep.subr.mxu0 0.0
        %7273 = vmatpush1.msra.mxu0 0.0
        %7274 = vmatprep.subr.mxu0 0.0
        %7275 = vmatpush1.msra.mxu0 0.0
        %7276 = vmatprep.subr.mxu0 0.0
        %7277 = vmatpush1.msra.mxu0 0.0
        %7278 = vmatprep.subr.mxu0 0.0
        %7279 = vmatpush1.msra.mxu0 0.0
        %7280 = vmatprep.subr.mxu0 0.0
        %7281 = vmatpush1.msra.mxu0 0.0
        %7282 = vmatprep.subr.mxu0 0.0
        %7283 = vmatpush1.msra.mxu0 0.0
        %7284 = vmatprep.subr.mxu0 0.0
        %7285 = vmatpush1.msra.mxu0 0.0
        %7286 = vmatprep.subr.mxu0 0.0
        %7287 = vmatpush1.msra.mxu0 0.0
        %7288 = vmatprep.mubr.f32.mxu0 0.0
        %7289 = vmatmul.mubr.f32.gmra.mrb[0].mxu0 %v7191
        %v7290 = vpop.f32.mrb[0].mxu0
        %v7291 = vadd.f32 0.0, %v7290
        %v7292 = vpop.f32.mrb[0].mxu0
        %v7293 = vadd.f32 0.0, %v7292
        %7294 = vdwg.mxu0
        %v7295 = vadd.f32 %v7181, %v7291
        %v7296 = vadd.f32 %v7183, %v7293
        %v7297 = vmul.f32 %v7185, %v6975
        %v7298 = vld [vmem:[%s10 + $0x300] sm:$0xff]
        %v7299 = vld [vmem:[%s10 + $0x308] sm:$0xff]
        %v7300 = vld [vmem:[%s10 + $0x310] sm:$0xff]
        %v7301 = vld [vmem:[%s10 + $0x318] sm:$0xff]
        %v7302 = vld [vmem:[%s10 + $0x320] sm:$0xff]
        %v7303 = vld [vmem:[%s10 + $0x328] sm:$0xff]
        %v7304 = vld [vmem:[%s10 + $0x330] sm:$0xff]
        %v7305 = vld [vmem:[%s10 + $0x338] sm:$0xff]
        %v7306 = vld [vmem:[%s10 + $0x340] sm:$0xff]
        %v7307 = vld [vmem:[%s10 + $0x348] sm:$0xff]
        %v7308 = vld [vmem:[%s10 + $0x350] sm:$0xff]
        %v7309 = vld [vmem:[%s10 + $0x358] sm:$0xff]
        %v7310 = vld [vmem:[%s10 + $0x360] sm:$0xff]
        %v7311 = vld [vmem:[%s10 + $0x368] sm:$0xff]
        %v7312 = vld [vmem:[%s10 + $0x370] sm:$0xff]
        %v7313 = vld [vmem:[%s10 + $0x378] sm:$0xff]
        %v7314 = vld [vmem:[%s10 + $0x380] sm:$0xff]
        %v7315 = vld [vmem:[%s10 + $0x388] sm:$0xff]
        %v7316 = vld [vmem:[%s10 + $0x390] sm:$0xff]
        %v7317 = vld [vmem:[%s10 + $0x398] sm:$0xff]
        %v7318 = vld [vmem:[%s10 + $0x3a0] sm:$0xff]
        %v7319 = vld [vmem:[%s10 + $0x3a8] sm:$0xff]
        %v7320 = vld [vmem:[%s10 + $0x3b0] sm:$0xff]
        %v7321 = vld [vmem:[%s10 + $0x3b8] sm:$0xff]
        %v7322 = vld [vmem:[%s10 + $0x3c0] sm:$0xff]
        %v7323 = vld [vmem:[%s10 + $0x3c8] sm:$0xff]
        %v7324 = vld [vmem:[%s10 + $0x3d0] sm:$0xff]
        %v7325 = vld [vmem:[%s10 + $0x3d8] sm:$0xff]
        %v7326 = vld [vmem:[%s10 + $0x3e0] sm:$0xff]
        %v7327 = vld [vmem:[%s10 + $0x3e8] sm:$0xff]
        %v7328 = vld [vmem:[%s10 + $0x3f0] sm:$0xff]
        %v7329 = vld [vmem:[%s10 + $0x3f8] sm:$0xff]
        %7330 = vmatprep.subr.mxu0 %v7299
        %7331 = vmatpush1.msra.mxu0 %v7298
        %7332 = vmatprep.subr.mxu0 %v7301
        %7333 = vmatpush1.msra.mxu0 %v7300
        %7334 = vmatprep.subr.mxu0 %v7303
        %7335 = vmatpush1.msra.mxu0 %v7302
        %7336 = vmatprep.subr.mxu0 %v7305
        %7337 = vmatpush1.msra.mxu0 %v7304
        %7338 = vmatprep.subr.mxu0 %v7307
        %7339 = vmatpush1.msra.mxu0 %v7306
        %7340 = vmatprep.subr.mxu0 %v7309
        %7341 = vmatpush1.msra.mxu0 %v7308
        %7342 = vmatprep.subr.mxu0 %v7311
        %7343 = vmatpush1.msra.mxu0 %v7310
        %7344 = vmatprep.subr.mxu0 %v7313
        %7345 = vmatpush1.msra.mxu0 %v7312
        %7346 = vmatprep.subr.mxu0 %v7315
        %7347 = vmatpush1.msra.mxu0 %v7314
        %7348 = vmatprep.subr.mxu0 %v7317
        %7349 = vmatpush1.msra.mxu0 %v7316
        %7350 = vmatprep.subr.mxu0 %v7319
        %7351 = vmatpush1.msra.mxu0 %v7318
        %7352 = vmatprep.subr.mxu0 %v7321
        %7353 = vmatpush1.msra.mxu0 %v7320
        %7354 = vmatprep.subr.mxu0 %v7323
        %7355 = vmatpush1.msra.mxu0 %v7322
        %7356 = vmatprep.subr.mxu0 %v7325
        %7357 = vmatpush1.msra.mxu0 %v7324
        %7358 = vmatprep.subr.mxu0 %v7327
        %7359 = vmatpush1.msra.mxu0 %v7326
        %7360 = vmatprep.subr.mxu0 %v7329
        %7361 = vmatpush1.msra.mxu0 %v7328
        %7362 = vmatprep.subr.mxu0 0.0
        %7363 = vmatpush1.msra.mxu0 0.0
        %7364 = vmatprep.subr.mxu0 0.0
        %7365 = vmatpush1.msra.mxu0 0.0
        %7366 = vmatprep.subr.mxu0 0.0
        %7367 = vmatpush1.msra.mxu0 0.0
        %7368 = vmatprep.subr.mxu0 0.0
        %7369 = vmatpush1.msra.mxu0 0.0
        %7370 = vmatprep.subr.mxu0 0.0
        %7371 = vmatpush1.msra.mxu0 0.0
        %7372 = vmatprep.subr.mxu0 0.0
        %7373 = vmatpush1.msra.mxu0 0.0
        %7374 = vmatprep.subr.mxu0 0.0
        %7375 = vmatpush1.msra.mxu0 0.0
        %7376 = vmatprep.subr.mxu0 0.0
        %7377 = vmatpush1.msra.mxu0 0.0
        %7378 = vmatprep.subr.mxu0 0.0
        %7379 = vmatpush1.msra.mxu0 0.0
        %7380 = vmatprep.subr.mxu0 0.0
        %7381 = vmatpush1.msra.mxu0 0.0
        %7382 = vmatprep.subr.mxu0 0.0
        %7383 = vmatpush1.msra.mxu0 0.0
        %7384 = vmatprep.subr.mxu0 0.0
        %7385 = vmatpush1.msra.mxu0 0.0
        %7386 = vmatprep.subr.mxu0 0.0
        %7387 = vmatpush1.msra.mxu0 0.0
        %7388 = vmatprep.subr.mxu0 0.0
        %7389 = vmatpush1.msra.mxu0 0.0
        %7390 = vmatprep.subr.mxu0 0.0
        %7391 = vmatpush1.msra.mxu0 0.0
        %7392 = vmatprep.subr.mxu0 0.0
        %7393 = vmatpush1.msra.mxu0 0.0
        %7394 = vmatprep.mubr.f32.mxu0 0.0
        %7395 = vmatmul.mubr.f32.gmra.mrb[0].mxu0 %v7297
        %v7396 = vpop.f32.mrb[0].mxu0
        %v7397 = vadd.f32 0.0, %v7396
        %v7398 = vpop.f32.mrb[0].mxu0
        %v7399 = vadd.f32 0.0, %v7398
        %7400 = vdwg.mxu0
        %v7401 = vadd.f32 %v7295, %v7397
        %v7402 = vadd.f32 %v7296, %v7399
        %v7403 = vld [vmem:[#allocation5 + $0x3] sm:$0xf]
        %v7404 = vld [vmem:[%s10 + $0x400] sm:$0xff]
        %v7405 = vld [vmem:[%s10 + $0x408] sm:$0xff]
        %v7406 = vld [vmem:[%s10 + $0x410] sm:$0xff]
        %v7407 = vld [vmem:[%s10 + $0x418] sm:$0xff]
        %v7408 = vld [vmem:[%s10 + $0x420] sm:$0xff]
        %v7409 = vld [vmem:[%s10 + $0x428] sm:$0xff]
        %v7410 = vld [vmem:[%s10 + $0x430] sm:$0xff]
        %v7411 = vld [vmem:[%s10 + $0x438] sm:$0xff]
        %v7412 = vld [vmem:[%s10 + $0x440] sm:$0xff]
        %v7413 = vld [vmem:[%s10 + $0x448] sm:$0xff]
        %v7414 = vld [vmem:[%s10 + $0x450] sm:$0xff]
        %v7415 = vld [vmem:[%s10 + $0x458] sm:$0xff]
        %v7416 = vld [vmem:[%s10 + $0x460] sm:$0xff]
        %v7417 = vld [vmem:[%s10 + $0x468] sm:$0xff]
        %v7418 = vld [vmem:[%s10 + $0x470] sm:$0xff]
        %v7419 = vld [vmem:[%s10 + $0x478] sm:$0xff]
        %v7420 = vld [vmem:[%s10 + $0x480] sm:$0xff]
        %v7421 = vld [vmem:[%s10 + $0x488] sm:$0xff]
        %v7422 = vld [vmem:[%s10 + $0x490] sm:$0xff]
        %v7423 = vld [vmem:[%s10 + $0x498] sm:$0xff]
        %v7424 = vld [vmem:[%s10 + $0x4a0] sm:$0xff]
        %v7425 = vld [vmem:[%s10 + $0x4a8] sm:$0xff]
        %v7426 = vld [vmem:[%s10 + $0x4b0] sm:$0xff]
        %v7427 = vld [vmem:[%s10 + $0x4b8] sm:$0xff]
        %v7428 = vld [vmem:[%s10 + $0x4c0] sm:$0xff]
        %v7429 = vld [vmem:[%s10 + $0x4c8] sm:$0xff]
        %v7430 = vld [vmem:[%s10 + $0x4d0] sm:$0xff]
        %v7431 = vld [vmem:[%s10 + $0x4d8] sm:$0xff]
        %v7432 = vld [vmem:[%s10 + $0x4e0] sm:$0xff]
        %v7433 = vld [vmem:[%s10 + $0x4e8] sm:$0xff]
        %v7434 = vld [vmem:[%s10 + $0x4f0] sm:$0xff]
        %v7435 = vld [vmem:[%s10 + $0x4f8] sm:$0xff]
        %7436 = vmatprep.subr.mxu0 %v7405
        %7437 = vmatpush1.msra.mxu0 %v7404
        %7438 = vmatprep.subr.mxu0 %v7407
        %7439 = vmatpush1.msra.mxu0 %v7406
        %7440 = vmatprep.subr.mxu0 %v7409
        %7441 = vmatpush1.msra.mxu0 %v7408
        %7442 = vmatprep.subr.mxu0 %v7411
        %7443 = vmatpush1.msra.mxu0 %v7410
        %7444 = vmatprep.subr.mxu0 %v7413
        %7445 = vmatpush1.msra.mxu0 %v7412
        %7446 = vmatprep.subr.mxu0 %v7415
        %7447 = vmatpush1.msra.mxu0 %v7414
        %7448 = vmatprep.subr.mxu0 %v7417
        %7449 = vmatpush1.msra.mxu0 %v7416
        %7450 = vmatprep.subr.mxu0 %v7419
        %7451 = vmatpush1.msra.mxu0 %v7418
        %7452 = vmatprep.subr.mxu0 %v7421
        %7453 = vmatpush1.msra.mxu0 %v7420
        %7454 = vmatprep.subr.mxu0 %v7423
        %7455 = vmatpush1.msra.mxu0 %v7422
        %7456 = vmatprep.subr.mxu0 %v7425
        %7457 = vmatpush1.msra.mxu0 %v7424
        %7458 = vmatprep.subr.mxu0 %v7427
        %7459 = vmatpush1.msra.mxu0 %v7426
        %7460 = vmatprep.subr.mxu0 %v7429
        %7461 = vmatpush1.msra.mxu0 %v7428
        %7462 = vmatprep.subr.mxu0 %v7431
        %7463 = vmatpush1.msra.mxu0 %v7430
        %7464 = vmatprep.subr.mxu0 %v7433
        %7465 = vmatpush1.msra.mxu0 %v7432
        %7466 = vmatprep.subr.mxu0 %v7435
        %7467 = vmatpush1.msra.mxu0 %v7434
        %7468 = vmatprep.subr.mxu0 0.0
        %7469 = vmatpush1.msra.mxu0 0.0
        %7470 = vmatprep.subr.mxu0 0.0
        %7471 = vmatpush1.msra.mxu0 0.0
        %7472 = vmatprep.subr.mxu0 0.0
        %7473 = vmatpush1.msra.mxu0 0.0
        %7474 = vmatprep.subr.mxu0 0.0
        %7475 = vmatpush1.msra.mxu0 0.0
        %7476 = vmatprep.subr.mxu0 0.0
        %7477 = vmatpush1.msra.mxu0 0.0
        %7478 = vmatprep.subr.mxu0 0.0
        %7479 = vmatpush1.msra.mxu0 0.0
        %7480 = vmatprep.subr.mxu0 0.0
        %7481 = vmatpush1.msra.mxu0 0.0
        %7482 = vmatprep.subr.mxu0 0.0
        %7483 = vmatpush1.msra.mxu0 0.0
        %7484 = vmatprep.subr.mxu0 0.0
        %7485 = vmatpush1.msra.mxu0 0.0
        %7486 = vmatprep.subr.mxu0 0.0
        %7487 = vmatpush1.msra.mxu0 0.0
        %7488 = vmatprep.subr.mxu0 0.0
        %7489 = vmatpush1.msra.mxu0 0.0
        %7490 = vmatprep.subr.mxu0 0.0
        %7491 = vmatpush1.msra.mxu0 0.0
        %7492 = vmatprep.subr.mxu0 0.0
        %7493 = vmatpush1.msra.mxu0 0.0
        %7494 = vmatprep.subr.mxu0 0.0
        %7495 = vmatpush1.msra.mxu0 0.0
        %7496 = vmatprep.subr.mxu0 0.0
        %7497 = vmatpush1.msra.mxu0 0.0
        %7498 = vmatprep.subr.mxu0 0.0
        %7499 = vmatpush1.msra.mxu0 0.0
        %7500 = vmatprep.mubr.f32.mxu0 0.0
        %7501 = vmatmul.mubr.f32.gmra.mrb[0].mxu0 %v7403
        %v7502 = vpop.f32.mrb[0].mxu0
        %v7503 = vadd.f32 0.0, %v7502
        %v7504 = vpop.f32.mrb[0].mxu0
        %v7505 = vadd.f32 0.0, %v7504
        %7506 = vdwg.mxu0
        %v7507 = vadd.f32 %v7401, %v7503
        %v7508 = vadd.f32 %v7402, %v7505
        %v7509 = vld [vmem:[#allocation5 + $0x4] sm:$0xf]
        %v7510 = vmul.f32 %v7509, %v7189
        %v7511 = vld [vmem:[%s10 + $0x500] sm:$0xff]
        %v7512 = vld [vmem:[%s10 + $0x508] sm:$0xff]
        %v7513 = vld [vmem:[%s10 + $0x510] sm:$0xff]
        %v7514 = vld [vmem:[%s10 + $0x518] sm:$0xff]
        %v7515 = vld [vmem:[%s10 + $0x520] sm:$0xff]
        %v7516 = vld [vmem:[%s10 + $0x528] sm:$0xff]
        %v7517 = vld [vmem:[%s10 + $0x530] sm:$0xff]
        %v7518 = vld [vmem:[%s10 + $0x538] sm:$0xff]
        %v7519 = vld [vmem:[%s10 + $0x540] sm:$0xff]
        %v7520 = vld [vmem:[%s10 + $0x548] sm:$0xff]
        %v7521 = vld [vmem:[%s10 + $0x550] sm:$0xff]
        %v7522 = vld [vmem:[%s10 + $0x558] sm:$0xff]
        %v7523 = vld [vmem:[%s10 + $0x560] sm:$0xff]
        %v7524 = vld [vmem:[%s10 + $0x568] sm:$0xff]
        %v7525 = vld [vmem:[%s10 + $0x570] sm:$0xff]
        %v7526 = vld [vmem:[%s10 + $0x578] sm:$0xff]
        %v7527 = vld [vmem:[%s10 + $0x580] sm:$0xff]
        %v7528 = vld [vmem:[%s10 + $0x588] sm:$0xff]
        %v7529 = vld [vmem:[%s10 + $0x590] sm:$0xff]
        %v7530 = vld [vmem:[%s10 + $0x598] sm:$0xff]
        %v7531 = vld [vmem:[%s10 + $0x5a0] sm:$0xff]
        %v7532 = vld [vmem:[%s10 + $0x5a8] sm:$0xff]
        %v7533 = vld [vmem:[%s10 + $0x5b0] sm:$0xff]
        %v7534 = vld [vmem:[%s10 + $0x5b8] sm:$0xff]
        %v7535 = vld [vmem:[%s10 + $0x5c0] sm:$0xff]
        %v7536 = vld [vmem:[%s10 + $0x5c8] sm:$0xff]
        %v7537 = vld [vmem:[%s10 + $0x5d0] sm:$0xff]
        %v7538 = vld [vmem:[%s10 + $0x5d8] sm:$0xff]
        %v7539 = vld [vmem:[%s10 + $0x5e0] sm:$0xff]
        %v7540 = vld [vmem:[%s10 + $0x5e8] sm:$0xff]
        %v7541 = vld [vmem:[%s10 + $0x5f0] sm:$0xff]
        %v7542 = vld [vmem:[%s10 + $0x5f8] sm:$0xff]
        %7543 = vmatprep.subr.mxu0 %v7512
        %7544 = vmatpush1.msra.mxu0 %v7511
        %7545 = vmatprep.subr.mxu0 %v7514
        %7546 = vmatpush1.msra.mxu0 %v7513
        %7547 = vmatprep.subr.mxu0 %v7516
        %7548 = vmatpush1.msra.mxu0 %v7515
        %7549 = vmatprep.subr.mxu0 %v7518
        %7550 = vmatpush1.msra.mxu0 %v7517
        %7551 = vmatprep.subr.mxu0 %v7520
        %7552 = vmatpush1.msra.mxu0 %v7519
        %7553 = vmatprep.subr.mxu0 %v7522
        %7554 = vmatpush1.msra.mxu0 %v7521
        %7555 = vmatprep.subr.mxu0 %v7524
        %7556 = vmatpush1.msra.mxu0 %v7523
        %7557 = vmatprep.subr.mxu0 %v7526
        %7558 = vmatpush1.msra.mxu0 %v7525
        %7559 = vmatprep.subr.mxu0 %v7528
        %7560 = vmatpush1.msra.mxu0 %v7527
        %7561 = vmatprep.subr.mxu0 %v7530
        %7562 = vmatpush1.msra.mxu0 %v7529
        %7563 = vmatprep.subr.mxu0 %v7532
        %7564 = vmatpush1.msra.mxu0 %v7531
        %7565 = vmatprep.subr.mxu0 %v7534
        %7566 = vmatpush1.msra.mxu0 %v7533
        %7567 = vmatprep.subr.mxu0 %v7536
        %7568 = vmatpush1.msra.mxu0 %v7535
        %7569 = vmatprep.subr.mxu0 %v7538
        %7570 = vmatpush1.msra.mxu0 %v7537
        %7571 = vmatprep.subr.mxu0 %v7540
        %7572 = vmatpush1.msra.mxu0 %v7539
        %7573 = vmatprep.subr.mxu0 %v7542
        %7574 = vmatpush1.msra.mxu0 %v7541
        %7575 = vmatprep.subr.mxu0 0.0
        %7576 = vmatpush1.msra.mxu0 0.0
        %7577 = vmatprep.subr.mxu0 0.0
        %7578 = vmatpush1.msra.mxu0 0.0
        %7579 = vmatprep.subr.mxu0 0.0
        %7580 = vmatpush1.msra.mxu0 0.0
        %7581 = vmatprep.subr.mxu0 0.0
        %7582 = vmatpush1.msra.mxu0 0.0
        %7583 = vmatprep.subr.mxu0 0.0
        %7584 = vmatpush1.msra.mxu0 0.0
        %7585 = vmatprep.subr.mxu0 0.0
        %7586 = vmatpush1.msra.mxu0 0.0
        %7587 = vmatprep.subr.mxu0 0.0
        %7588 = vmatpush1.msra.mxu0 0.0
        %7589 = vmatprep.subr.mxu0 0.0
        %7590 = vmatpush1.msra.mxu0 0.0
        %7591 = vmatprep.subr.mxu0 0.0
        %7592 = vmatpush1.msra.mxu0 0.0
        %7593 = vmatprep.subr.mxu0 0.0
        %7594 = vmatpush1.msra.mxu0 0.0
        %7595 = vmatprep.subr.mxu0 0.0
        %7596 = vmatpush1.msra.mxu0 0.0
        %7597 = vmatprep.subr.mxu0 0.0
        %7598 = vmatpush1.msra.mxu0 0.0
        %7599 = vmatprep.subr.mxu0 0.0
        %7600 = vmatpush1.msra.mxu0 0.0
        %7601 = vmatprep.subr.mxu0 0.0
        %7602 = vmatpush1.msra.mxu0 0.0
        %7603 = vmatprep.subr.mxu0 0.0
        %7604 = vmatpush1.msra.mxu0 0.0
        %7605 = vmatprep.subr.mxu0 0.0
        %7606 = vmatpush1.msra.mxu0 0.0
        %7607 = vmatprep.mubr.f32.mxu0 0.0
        %7608 = vmatmul.mubr.f32.gmra.mrb[0].mxu0 %v7510
        %v7609 = vpop.f32.mrb[0].mxu0
        %v7610 = vadd.f32 0.0, %v7609
        %v7611 = vpop.f32.mrb[0].mxu0
        %v7612 = vadd.f32 0.0, %v7611
        %7613 = vdwg.mxu0
        %v7614 = vadd.f32 %v7507, %v7610
        %v7615 = vadd.f32 %v7508, %v7612
        %v7616 = vmul.f32 %v7509, %v6975
        %v7617 = vld [vmem:[%s10 + $0x600] sm:$0xff]
        %v7618 = vld [vmem:[%s10 + $0x608] sm:$0xff]
        %v7619 = vld [vmem:[%s10 + $0x610] sm:$0xff]
        %v7620 = vld [vmem:[%s10 + $0x618] sm:$0xff]
        %v7621 = vld [vmem:[%s10 + $0x620] sm:$0xff]
        %v7622 = vld [vmem:[%s10 + $0x628] sm:$0xff]
        %v7623 = vld [vmem:[%s10 + $0x630] sm:$0xff]
        %v7624 = vld [vmem:[%s10 + $0x638] sm:$0xff]
        %v7625 = vld [vmem:[%s10 + $0x640] sm:$0xff]
        %v7626 = vld [vmem:[%s10 + $0x648] sm:$0xff]
        %v7627 = vld [vmem:[%s10 + $0x650] sm:$0xff]
        %v7628 = vld [vmem:[%s10 + $0x658] sm:$0xff]
        %v7629 = vld [vmem:[%s10 + $0x660] sm:$0xff]
        %v7630 = vld [vmem:[%s10 + $0x668] sm:$0xff]
        %v7631 = vld [vmem:[%s10 + $0x670] sm:$0xff]
        %v7632 = vld [vmem:[%s10 + $0x678] sm:$0xff]
        %v7633 = vld [vmem:[%s10 + $0x680] sm:$0xff]
        %v7634 = vld [vmem:[%s10 + $0x688] sm:$0xff]
        %v7635 = vld [vmem:[%s10 + $0x690] sm:$0xff]
        %v7636 = vld [vmem:[%s10 + $0x698] sm:$0xff]
        %v7637 = vld [vmem:[%s10 + $0x6a0] sm:$0xff]
        %v7638 = vld [vmem:[%s10 + $0x6a8] sm:$0xff]
        %v7639 = vld [vmem:[%s10 + $0x6b0] sm:$0xff]
        %v7640 = vld [vmem:[%s10 + $0x6b8] sm:$0xff]
        %v7641 = vld [vmem:[%s10 + $0x6c0] sm:$0xff]
        %v7642 = vld [vmem:[%s10 + $0x6c8] sm:$0xff]
        %v7643 = vld [vmem:[%s10 + $0x6d0] sm:$0xff]
        %v7644 = vld [vmem:[%s10 + $0x6d8] sm:$0xff]
        %v7645 = vld [vmem:[%s10 + $0x6e0] sm:$0xff]
        %v7646 = vld [vmem:[%s10 + $0x6e8] sm:$0xff]
        %v7647 = vld [vmem:[%s10 + $0x6f0] sm:$0xff]
        %v7648 = vld [vmem:[%s10 + $0x6f8] sm:$0xff]
        %7649 = vmatprep.subr.mxu0 %v7618
        %7650 = vmatpush1.msra.mxu0 %v7617
        %7651 = vmatprep.subr.mxu0 %v7620
        %7652 = vmatpush1.msra.mxu0 %v7619
        %7653 = vmatprep.subr.mxu0 %v7622
        %7654 = vmatpush1.msra.mxu0 %v7621
        %7655 = vmatprep.subr.mxu0 %v7624
        %7656 = vmatpush1.msra.mxu0 %v7623
        %7657 = vmatprep.subr.mxu0 %v7626
        %7658 = vmatpush1.msra.mxu0 %v7625
        %7659 = vmatprep.subr.mxu0 %v7628
        %7660 = vmatpush1.msra.mxu0 %v7627
        %7661 = vmatprep.subr.mxu0 %v7630
        %7662 = vmatpush1.msra.mxu0 %v7629
        %7663 = vmatprep.subr.mxu0 %v7632
        %7664 = vmatpush1.msra.mxu0 %v7631
        %7665 = vmatprep.subr.mxu0 %v7634
        %7666 = vmatpush1.msra.mxu0 %v7633
        %7667 = vmatprep.subr.mxu0 %v7636
        %7668 = vmatpush1.msra.mxu0 %v7635
        %7669 = vmatprep.subr.mxu0 %v7638
        %7670 = vmatpush1.msra.mxu0 %v7637
        %7671 = vmatprep.subr.mxu0 %v7640
        %7672 = vmatpush1.msra.mxu0 %v7639
        %7673 = vmatprep.subr.mxu0 %v7642
        %7674 = vmatpush1.msra.mxu0 %v7641
        %7675 = vmatprep.subr.mxu0 %v7644
        %7676 = vmatpush1.msra.mxu0 %v7643
        %7677 = vmatprep.subr.mxu0 %v7646
        %7678 = vmatpush1.msra.mxu0 %v7645
        %7679 = vmatprep.subr.mxu0 %v7648
        %7680 = vmatpush1.msra.mxu0 %v7647
        %7681 = vmatprep.subr.mxu0 0.0
        %7682 = vmatpush1.msra.mxu0 0.0
        %7683 = vmatprep.subr.mxu0 0.0
        %7684 = vmatpush1.msra.mxu0 0.0
        %7685 = vmatprep.subr.mxu0 0.0
        %7686 = vmatpush1.msra.mxu0 0.0
        %7687 = vmatprep.subr.mxu0 0.0
        %7688 = vmatpush1.msra.mxu0 0.0
        %7689 = vmatprep.subr.mxu0 0.0
        %7690 = vmatpush1.msra.mxu0 0.0
        %7691 = vmatprep.subr.mxu0 0.0
        %7692 = vmatpush1.msra.mxu0 0.0
        %7693 = vmatprep.subr.mxu0 0.0
        %7694 = vmatpush1.msra.mxu0 0.0
        %7695 = vmatprep.subr.mxu0 0.0
        %7696 = vmatpush1.msra.mxu0 0.0
        %7697 = vmatprep.subr.mxu0 0.0
        %7698 = vmatpush1.msra.mxu0 0.0
        %7699 = vmatprep.subr.mxu0 0.0
        %7700 = vmatpush1.msra.mxu0 0.0
        %7701 = vmatprep.subr.mxu0 0.0
        %7702 = vmatpush1.msra.mxu0 0.0
        %7703 = vmatprep.subr.mxu0 0.0
        %7704 = vmatpush1.msra.mxu0 0.0
        %7705 = vmatprep.subr.mxu0 0.0
        %7706 = vmatpush1.msra.mxu0 0.0
        %7707 = vmatprep.subr.mxu0 0.0
        %7708 = vmatpush1.msra.mxu0 0.0
        %7709 = vmatprep.subr.mxu0 0.0
        %7710 = vmatpush1.msra.mxu0 0.0
        %7711 = vmatprep.subr.mxu0 0.0
        %7712 = vmatpush1.msra.mxu0 0.0
        %7713 = vmatprep.mubr.f32.mxu0 0.0
        %7714 = vmatmul.mubr.f32.gmra.mrb[0].mxu0 %v7616
        %v7715 = vpop.f32.mrb[0].mxu0
        %v7716 = vadd.f32 0.0, %v7715
        %v7717 = vpop.f32.mrb[0].mxu0
        %v7718 = vadd.f32 0.0, %v7717
        %7719 = vdwg.mxu0
        %v7720 = vadd.f32 %v7614, %v7716
        %v7721 = vadd.f32 %v7615, %v7718
        %v7722 = vld [vmem:[#allocation5 + $0x5] sm:$0xf]
        %v7723 = vld [vmem:[%s10 + $0x700] sm:$0xff]
        %v7724 = vld [vmem:[%s10 + $0x708] sm:$0xff]
        %v7725 = vld [vmem:[%s10 + $0x710] sm:$0xff]
        %v7726 = vld [vmem:[%s10 + $0x718] sm:$0xff]
        %v7727 = vld [vmem:[%s10 + $0x720] sm:$0xff]
        %v7728 = vld [vmem:[%s10 + $0x728] sm:$0xff]
        %v7729 = vld [vmem:[%s10 + $0x730] sm:$0xff]
        %v7730 = vld [vmem:[%s10 + $0x738] sm:$0xff]
        %v7731 = vld [vmem:[%s10 + $0x740] sm:$0xff]
        %v7732 = vld [vmem:[%s10 + $0x748] sm:$0xff]
        %v7733 = vld [vmem:[%s10 + $0x750] sm:$0xff]
        %v7734 = vld [vmem:[%s10 + $0x758] sm:$0xff]
        %v7735 = vld [vmem:[%s10 + $0x760] sm:$0xff]
        %v7736 = vld [vmem:[%s10 + $0x768] sm:$0xff]
        %v7737 = vld [vmem:[%s10 + $0x770] sm:$0xff]
        %v7738 = vld [vmem:[%s10 + $0x778] sm:$0xff]
        %v7739 = vld [vmem:[%s10 + $0x780] sm:$0xff]
        %v7740 = vld [vmem:[%s10 + $0x788] sm:$0xff]
        %v7741 = vld [vmem:[%s10 + $0x790] sm:$0xff]
        %v7742 = vld [vmem:[%s10 + $0x798] sm:$0xff]
        %v7743 = vld [vmem:[%s10 + $0x7a0] sm:$0xff]
        %v7744 = vld [vmem:[%s10 + $0x7a8] sm:$0xff]
        %v7745 = vld [vmem:[%s10 + $0x7b0] sm:$0xff]
        %v7746 = vld [vmem:[%s10 + $0x7b8] sm:$0xff]
        %v7747 = vld [vmem:[%s10 + $0x7c0] sm:$0xff]
        %v7748 = vld [vmem:[%s10 + $0x7c8] sm:$0xff]
        %v7749 = vld [vmem:[%s10 + $0x7d0] sm:$0xff]
        %v7750 = vld [vmem:[%s10 + $0x7d8] sm:$0xff]
        %v7751 = vld [vmem:[%s10 + $0x7e0] sm:$0xff]
        %v7752 = vld [vmem:[%s10 + $0x7e8] sm:$0xff]
        %v7753 = vld [vmem:[%s10 + $0x7f0] sm:$0xff]
        %v7754 = vld [vmem:[%s10 + $0x7f8] sm:$0xff]
        %7755 = vmatprep.subr.mxu0 %v7724
        %7756 = vmatpush1.msra.mxu0 %v7723
        %7757 = vmatprep.subr.mxu0 %v7726
        %7758 = vmatpush1.msra.mxu0 %v7725
        %7759 = vmatprep.subr.mxu0 %v7728
        %7760 = vmatpush1.msra.mxu0 %v7727
        %7761 = vmatprep.subr.mxu0 %v7730
        %7762 = vmatpush1.msra.mxu0 %v7729
        %7763 = vmatprep.subr.mxu0 %v7732
        %7764 = vmatpush1.msra.mxu0 %v7731
        %7765 = vmatprep.subr.mxu0 %v7734
        %7766 = vmatpush1.msra.mxu0 %v7733
        %7767 = vmatprep.subr.mxu0 %v7736
        %7768 = vmatpush1.msra.mxu0 %v7735
        %7769 = vmatprep.subr.mxu0 %v7738
        %7770 = vmatpush1.msra.mxu0 %v7737
        %7771 = vmatprep.subr.mxu0 %v7740
        %7772 = vmatpush1.msra.mxu0 %v7739
        %7773 = vmatprep.subr.mxu0 %v7742
        %7774 = vmatpush1.msra.mxu0 %v7741
        %7775 = vmatprep.subr.mxu0 %v7744
        %7776 = vmatpush1.msra.mxu0 %v7743
        %7777 = vmatprep.subr.mxu0 %v7746
        %7778 = vmatpush1.msra.mxu0 %v7745
        %7779 = vmatprep.subr.mxu0 %v7748
        %7780 = vmatpush1.msra.mxu0 %v7747
        %7781 = vmatprep.subr.mxu0 %v7750
        %7782 = vmatpush1.msra.mxu0 %v7749
        %7783 = vmatprep.subr.mxu0 %v7752
        %7784 = vmatpush1.msra.mxu0 %v7751
        %7785 = vmatprep.subr.mxu0 %v7754
        %7786 = vmatpush1.msra.mxu0 %v7753
        %7787 = vmatprep.subr.mxu0 0.0
        %7788 = vmatpush1.msra.mxu0 0.0
        %7789 = vmatprep.subr.mxu0 0.0
        %7790 = vmatpush1.msra.mxu0 0.0
        %7791 = vmatprep.subr.mxu0 0.0
        %7792 = vmatpush1.msra.mxu0 0.0
        %7793 = vmatprep.subr.mxu0 0.0
        %7794 = vmatpush1.msra.mxu0 0.0
        %7795 = vmatprep.subr.mxu0 0.0
        %7796 = vmatpush1.msra.mxu0 0.0
        %7797 = vmatprep.subr.mxu0 0.0
        %7798 = vmatpush1.msra.mxu0 0.0
        %7799 = vmatprep.subr.mxu0 0.0
        %7800 = vmatpush1.msra.mxu0 0.0
        %7801 = vmatprep.subr.mxu0 0.0
        %7802 = vmatpush1.msra.mxu0 0.0
        %7803 = vmatprep.subr.mxu0 0.0
        %7804 = vmatpush1.msra.mxu0 0.0
        %7805 = vmatprep.subr.mxu0 0.0
        %7806 = vmatpush1.msra.mxu0 0.0
        %7807 = vmatprep.subr.mxu0 0.0
        %7808 = vmatpush1.msra.mxu0 0.0
        %7809 = vmatprep.subr.mxu0 0.0
        %7810 = vmatpush1.msra.mxu0 0.0
        %7811 = vmatprep.subr.mxu0 0.0
        %7812 = vmatpush1.msra.mxu0 0.0
        %7813 = vmatprep.subr.mxu0 0.0
        %7814 = vmatpush1.msra.mxu0 0.0
        %7815 = vmatprep.subr.mxu0 0.0
        %7816 = vmatpush1.msra.mxu0 0.0
        %7817 = vmatprep.subr.mxu0 0.0
        %7818 = vmatpush1.msra.mxu0 0.0
        %7819 = vmatprep.mubr.f32.mxu0 0.0
        %7820 = vmatmul.mubr.f32.gmra.mrb[0].mxu0 %v7722
        %v7821 = vpop.f32.mrb[0].mxu0
        %v7822 = vadd.f32 0.0, %v7821
        %v7823 = vpop.f32.mrb[0].mxu0
        %v7824 = vadd.f32 0.0, %v7823
        %7825 = vdwg.mxu0
        %v7826 = vadd.f32 %v7720, %v7822
        %v7827 = vadd.f32 %v7721, %v7824
        %v7828 = vld [vmem:[#allocation5 + $0x6] sm:$0xf]
        %v7829 = vmul.f32 %v7828, %v7189
        %v7830 = vld [vmem:[%s10 + $0x800] sm:$0xff]
        %v7831 = vld [vmem:[%s10 + $0x808] sm:$0xff]
        %v7832 = vld [vmem:[%s10 + $0x810] sm:$0xff]
        %v7833 = vld [vmem:[%s10 + $0x818] sm:$0xff]
        %v7834 = vld [vmem:[%s10 + $0x820] sm:$0xff]
        %v7835 = vld [vmem:[%s10 + $0x828] sm:$0xff]
        %v7836 = vld [vmem:[%s10 + $0x830] sm:$0xff]
        %v7837 = vld [vmem:[%s10 + $0x838] sm:$0xff]
        %v7838 = vld [vmem:[%s10 + $0x840] sm:$0xff]
        %v7839 = vld [vmem:[%s10 + $0x848] sm:$0xff]
        %v7840 = vld [vmem:[%s10 + $0x850] sm:$0xff]
        %v7841 = vld [vmem:[%s10 + $0x858] sm:$0xff]
        %v7842 = vld [vmem:[%s10 + $0x860] sm:$0xff]
        %v7843 = vld [vmem:[%s10 + $0x868] sm:$0xff]
        %v7844 = vld [vmem:[%s10 + $0x870] sm:$0xff]
        %v7845 = vld [vmem:[%s10 + $0x878] sm:$0xff]
        %v7846 = vld [vmem:[%s10 + $0x880] sm:$0xff]
        %v7847 = vld [vmem:[%s10 + $0x888] sm:$0xff]
        %v7848 = vld [vmem:[%s10 + $0x890] sm:$0xff]
        %v7849 = vld [vmem:[%s10 + $0x898] sm:$0xff]
        %v7850 = vld [vmem:[%s10 + $0x8a0] sm:$0xff]
        %v7851 = vld [vmem:[%s10 + $0x8a8] sm:$0xff]
        %v7852 = vld [vmem:[%s10 + $0x8b0] sm:$0xff]
        %v7853 = vld [vmem:[%s10 + $0x8b8] sm:$0xff]
        %v7854 = vld [vmem:[%s10 + $0x8c0] sm:$0xff]
        %v7855 = vld [vmem:[%s10 + $0x8c8] sm:$0xff]
        %v7856 = vld [vmem:[%s10 + $0x8d0] sm:$0xff]
        %v7857 = vld [vmem:[%s10 + $0x8d8] sm:$0xff]
        %v7858 = vld [vmem:[%s10 + $0x8e0] sm:$0xff]
        %v7859 = vld [vmem:[%s10 + $0x8e8] sm:$0xff]
        %v7860 = vld [vmem:[%s10 + $0x8f0] sm:$0xff]
        %v7861 = vld [vmem:[%s10 + $0x8f8] sm:$0xff]
        %7862 = vmatprep.subr.mxu0 %v7831
        %7863 = vmatpush1.msra.mxu0 %v7830
        %7864 = vmatprep.subr.mxu0 %v7833
        %7865 = vmatpush1.msra.mxu0 %v7832
        %7866 = vmatprep.subr.mxu0 %v7835
        %7867 = vmatpush1.msra.mxu0 %v7834
        %7868 = vmatprep.subr.mxu0 %v7837
        %7869 = vmatpush1.msra.mxu0 %v7836
        %7870 = vmatprep.subr.mxu0 %v7839
        %7871 = vmatpush1.msra.mxu0 %v7838
        %7872 = vmatprep.subr.mxu0 %v7841
        %7873 = vmatpush1.msra.mxu0 %v7840
        %7874 = vmatprep.subr.mxu0 %v7843
        %7875 = vmatpush1.msra.mxu0 %v7842
        %7876 = vmatprep.subr.mxu0 %v7845
        %7877 = vmatpush1.msra.mxu0 %v7844
        %7878 = vmatprep.subr.mxu0 %v7847
        %7879 = vmatpush1.msra.mxu0 %v7846
        %7880 = vmatprep.subr.mxu0 %v7849
        %7881 = vmatpush1.msra.mxu0 %v7848
        %7882 = vmatprep.subr.mxu0 %v7851
        %7883 = vmatpush1.msra.mxu0 %v7850
        %7884 = vmatprep.subr.mxu0 %v7853
        %7885 = vmatpush1.msra.mxu0 %v7852
        %7886 = vmatprep.subr.mxu0 %v7855
        %7887 = vmatpush1.msra.mxu0 %v7854
        %7888 = vmatprep.subr.mxu0 %v7857
        %7889 = vmatpush1.msra.mxu0 %v7856
        %7890 = vmatprep.subr.mxu0 %v7859
        %7891 = vmatpush1.msra.mxu0 %v7858
        %7892 = vmatprep.subr.mxu0 %v7861
        %7893 = vmatpush1.msra.mxu0 %v7860
        %7894 = vmatprep.subr.mxu0 0.0
        %7895 = vmatpush1.msra.mxu0 0.0
        %7896 = vmatprep.subr.mxu0 0.0
        %7897 = vmatpush1.msra.mxu0 0.0
        %7898 = vmatprep.subr.mxu0 0.0
        %7899 = vmatpush1.msra.mxu0 0.0
        %7900 = vmatprep.subr.mxu0 0.0
        %7901 = vmatpush1.msra.mxu0 0.0
        %7902 = vmatprep.subr.mxu0 0.0
        %7903 = vmatpush1.msra.mxu0 0.0
        %7904 = vmatprep.subr.mxu0 0.0
        %7905 = vmatpush1.msra.mxu0 0.0
        %7906 = vmatprep.subr.mxu0 0.0
        %7907 = vmatpush1.msra.mxu0 0.0
        %7908 = vmatprep.subr.mxu0 0.0
        %7909 = vmatpush1.msra.mxu0 0.0
        %7910 = vmatprep.subr.mxu0 0.0
        %7911 = vmatpush1.msra.mxu0 0.0
        %7912 = vmatprep.subr.mxu0 0.0
        %7913 = vmatpush1.msra.mxu0 0.0
        %7914 = vmatprep.subr.mxu0 0.0
        %7915 = vmatpush1.msra.mxu0 0.0
        %7916 = vmatprep.subr.mxu0 0.0
        %7917 = vmatpush1.msra.mxu0 0.0
        %7918 = vmatprep.subr.mxu0 0.0
        %7919 = vmatpush1.msra.mxu0 0.0
        %7920 = vmatprep.subr.mxu0 0.0
        %7921 = vmatpush1.msra.mxu0 0.0
        %7922 = vmatprep.subr.mxu0 0.0
        %7923 = vmatpush1.msra.mxu0 0.0
        %7924 = vmatprep.subr.mxu0 0.0
        %7925 = vmatpush1.msra.mxu0 0.0
        %7926 = vmatprep.mubr.f32.mxu0 0.0
        %7927 = vmatmul.mubr.f32.gmra.mrb[0].mxu0 %v7829
        %v7928 = vpop.f32.mrb[0].mxu0
        %v7929 = vadd.f32 0.0, %v7928
        %v7930 = vpop.f32.mrb[0].mxu0
        %v7931 = vadd.f32 0.0, %v7930
        %7932 = vdwg.mxu0
        %v7933 = vadd.f32 %v7826, %v7929
        %v7934 = vadd.f32 %v7827, %v7931
        %v7935 = vld [vmem:[%s11] sm:$0x3]
        %v7937 = vlaneseq
        %v7938 = vshrl.u32 %v7937, 7
        %v7939 = vsub.s32 0, %v7938
        %v7940 = vrot.slane %v7935, %v7939
        %v7941 = vlaneseq
        %v7942 = vshrl.u32 %v7941, 7
        %v7943 = vsub.s32 1, %v7942
        %v7944 = vrot.slane %v7935, %v7943
        %v7947 = vadd.f32 %v7933, %v7940
        %v7948 = vadd.f32 %v7934, %v7944
        %v7949 = vmax.f32 %v7947, 0.0
        %v7950 = vmax.f32 %v7948, 0.0
        %vm7951 = vcmask 1043456
        %v7952 = vsel %vm7951, %v7949, 0.0
        %v7953 = vrot.slane %v7952, 4
        %v7954 = vadd.f32 %v7952, %v7953
        %v7955 = vrot.slane %v7954, 2
        %v7956 = vadd.f32 %v7954, %v7955
        %v7957 = vrot.slane %v7956, 1
        %v7958 = vadd.f32 %v7956, %v7957
        %v7959 = vsel %vm7951, %v7950, 0.0
        %v7960 = vrot.slane %v7959, 4
        %v7961 = vadd.f32 %v7959, %v7960
        %v7962 = vrot.slane %v7961, 2
        %v7963 = vadd.f32 %v7961, %v7962
        %v7964 = vrot.slane %v7963, 1
        %v7965 = vadd.f32 %v7963, %v7964
        %v7966 = vrcp.pop 4.0
        %v7967 = vmul.f32 %v7958, %v7966
        %v7968 = vmul.f32 %v7965, %v7966
        %v7969 = vld [vmem:[%s16] sm:$0xff]
        %v7970 = vld [vmem:[%s16 + $0x8] sm:$0xff]
        %v7971 = vld [vmem:[%s16 + $0x10] sm:$0xff]
        %v7972 = vld [vmem:[%s16 + $0x18] sm:$0xff]
        %v7973 = vld [vmem:[%s16 + $0x20] sm:$0xff]
        %v7974 = vld [vmem:[%s16 + $0x28] sm:$0xff]
        %v7975 = vld [vmem:[%s16 + $0x30] sm:$0xff]
        %v7976 = vld [vmem:[%s16 + $0x38] sm:$0xff]
        %v7977 = vld [vmem:[%s16 + $0x40] sm:$0xff]
        %v7978 = vld [vmem:[%s16 + $0x48] sm:$0xff]
        %v7979 = vld [vmem:[%s16 + $0x50] sm:$0xff]
        %v7980 = vld [vmem:[%s16 + $0x58] sm:$0xff]
        %v7981 = vld [vmem:[%s16 + $0x60] sm:$0xff]
        %v7982 = vld [vmem:[%s16 + $0x68] sm:$0xff]
        %v7983 = vld [vmem:[%s16 + $0x70] sm:$0xff]
        %v7984 = vld [vmem:[%s16 + $0x78] sm:$0xff]
        %v7985 = vld [vmem:[%s16 + $0x80] sm:$0xff]
        %v7986 = vld [vmem:[%s16 + $0x88] sm:$0xff]
        %v7987 = vld [vmem:[%s16 + $0x90] sm:$0xff]
        %v7988 = vld [vmem:[%s16 + $0x98] sm:$0xff]
        %v7989 = vld [vmem:[%s16 + $0xa0] sm:$0xff]
        %v7990 = vld [vmem:[%s16 + $0xa8] sm:$0xff]
        %v7991 = vld [vmem:[%s16 + $0xb0] sm:$0xff]
        %v7992 = vld [vmem:[%s16 + $0xb8] sm:$0xff]
        %v7993 = vld [vmem:[%s16 + $0xc0] sm:$0xff]
        %v7994 = vld [vmem:[%s16 + $0xc8] sm:$0xff]
        %v7995 = vld [vmem:[%s16 + $0xd0] sm:$0xff]
        %v7996 = vld [vmem:[%s16 + $0xd8] sm:$0xff]
        %v7997 = vld [vmem:[%s16 + $0xe0] sm:$0xff]
        %v7998 = vld [vmem:[%s16 + $0xe8] sm:$0xff]
        %v7999 = vld [vmem:[%s16 + $0xf0] sm:$0xff]
        %v8000 = vld [vmem:[%s16 + $0xf8] sm:$0xff]
        %v8001 = vld [vmem:[%s17] sm:$0x1]
        %8002 = vmatprep.subr.mxu0 0.0
        %8003 = vmatpush1.msra.mxu0 %v7969
        %8004 = vmatprep.subr.mxu0 0.0
        %8005 = vmatpush1.msra.mxu0 %v7970
        %8006 = vmatprep.subr.mxu0 0.0
        %8007 = vmatpush1.msra.mxu0 %v7971
        %8008 = vmatprep.subr.mxu0 0.0
        %8009 = vmatpush1.msra.mxu0 %v7972
        %8010 = vmatprep.subr.mxu0 0.0
        %8011 = vmatpush1.msra.mxu0 %v7973
        %8012 = vmatprep.subr.mxu0 0.0
        %8013 = vmatpush1.msra.mxu0 %v7974
        %8014 = vmatprep.subr.mxu0 0.0
        %8015 = vmatpush1.msra.mxu0 %v7975
        %8016 = vmatprep.subr.mxu0 0.0
        %8017 = vmatpush1.msra.mxu0 %v7976
        %8018 = vmatprep.subr.mxu0 0.0
        %8019 = vmatpush1.msra.mxu0 %v7977
        %8020 = vmatprep.subr.mxu0 0.0
        %8021 = vmatpush1.msra.mxu0 %v7978
        %8022 = vmatprep.subr.mxu0 0.0
        %8023 = vmatpush1.msra.mxu0 %v7979
        %8024 = vmatprep.subr.mxu0 0.0
        %8025 = vmatpush1.msra.mxu0 %v7980
        %8026 = vmatprep.subr.mxu0 0.0
        %8027 = vmatpush1.msra.mxu0 %v7981
        %8028 = vmatprep.subr.mxu0 0.0
        %8029 = vmatpush1.msra.mxu0 %v7982
        %8030 = vmatprep.subr.mxu0 0.0
        %8031 = vmatpush1.msra.mxu0 %v7983
        %8032 = vmatprep.subr.mxu0 0.0
        %8033 = vmatpush1.msra.mxu0 %v7984
        %8034 = vmatprep.subr.mxu0 0.0
        %8035 = vmatpush1.msra.mxu0 %v7985
        %8036 = vmatprep.subr.mxu0 0.0
        %8037 = vmatpush1.msra.mxu0 %v7986
        %8038 = vmatprep.subr.mxu0 0.0
        %8039 = vmatpush1.msra.mxu0 %v7987
        %8040 = vmatprep.subr.mxu0 0.0
        %8041 = vmatpush1.msra.mxu0 %v7988
        %8042 = vmatprep.subr.mxu0 0.0
        %8043 = vmatpush1.msra.mxu0 %v7989
        %8044 = vmatprep.subr.mxu0 0.0
        %8045 = vmatpush1.msra.mxu0 %v7990
        %8046 = vmatprep.subr.mxu0 0.0
        %8047 = vmatpush1.msra.mxu0 %v7991
        %8048 = vmatprep.subr.mxu0 0.0
        %8049 = vmatpush1.msra.mxu0 %v7992
        %8050 = vmatprep.subr.mxu0 0.0
        %8051 = vmatpush1.msra.mxu0 %v7993
        %8052 = vmatprep.subr.mxu0 0.0
        %8053 = vmatpush1.msra.mxu0 %v7994
        %8054 = vmatprep.subr.mxu0 0.0
        %8055 = vmatpush1.msra.mxu0 %v7995
        %8056 = vmatprep.subr.mxu0 0.0
        %8057 = vmatpush1.msra.mxu0 %v7996
        %8058 = vmatprep.subr.mxu0 0.0
        %8059 = vmatpush1.msra.mxu0 %v7997
        %8060 = vmatprep.subr.mxu0 0.0
        %8061 = vmatpush1.msra.mxu0 %v7998
        %8062 = vmatprep.subr.mxu0 0.0
        %8063 = vmatpush1.msra.mxu0 %v7999
        %8064 = vmatprep.subr.mxu0 0.0
        %8065 = vmatpush1.msra.mxu0 %v8000
        %8066 = vmatprep.mubr.f32.mxu0 %v7968
        %8067 = vmatmul.mubr.f32.gmra.mrb[0].mxu0 %v7967
        %v8068 = vpop.f32.mrb[0].mxu0
        %v8069 = vadd.f32 %v8001, %v8068
        %v8070 = vpop.f32.mrb[0].mxu0
        %8071 = vdwg.mxu0
        %vm8072 = vcmask 1040384
        %v8073 = vsel %vm8072, %v8069, 0.0
        %8074 = vadd.xlane.f32.xlu0 %v8073
        %v8075 = vpop.xlane.xlu0 %8074
        %v8076 = vrcp.pop 128.0
        %v8077 = vmul.f32 %v8075, %v8076
        %v8078 = vsub.f32 %v8069, %v8077
        %v8079 = vmul.f32 %v8078, %v8078
        %v8080 = vsel %vm8072, %v8079, 0.0
        %8081 = vadd.xlane.f32.xlu0 %v8080
        %v8082 = vpop.xlane.xlu0 %8081
        %v8083 = vmul.f32 %v8082, %v8076
        %v8084 = vadd.f32 %v8083, 1e-05
        %v8085 = vrsqrt.pop %v8084
        %v8086 = vmul.f32 %v8078, %v8085
        %v8087 = vld [vmem:[%s18] sm:$0x1]
        %v8088 = vmul.f32 %v8086, %v8087
        %v8089 = vld [vmem:[%s19] sm:$0x1]
        %v8090 = vadd.f32 %v8088, %v8089
        %8091 = vst [vmem:[%s621] sm:$0x1] %v8090
        %s8092 = sand.u32 %s467, 1
        %s8093 = scalar_lea.sflag [#allocation7], %s8092
        %s8094 = sand.u32 %s467, 1
        %s8095 = scalar_lea.vmem [#allocation6], %s8094
        // Predicated region
        $region101: #{encoder_forward.1} parent=99 // pred_check
          %p8096 = pneg %p477
        $region102: #{encoder_forward.1} parent=99 // pred_check_branch
          %8098 = sbr.rel (%p8096) target = $region104
        $region103: #{encoder_forward.1} parent=99 // pred_region
          %s8100 = ssub.s32 16, 16
          %8101 = vsyncadd %s8093, %s8100
          %s8102 = smul.addr %s34, 16
          %s8103 = scalar_lea.hbm %s20, %s8102
          %s8105 = sshll.u32 %s8095, 4
          %s8106 = int_to_ptr.vmem [resolvable:$true] %s8105
          %8108 = dma.vmem_to_hbm [thread:$0]  %s8106, 16, %s8103, %s8093
        $region104: #{encoder_forward.1} parent=99 // pred_fallthru
          _
      $region100: #{encoder_forward.1} parent=5 // pred_fallthru
        _
      %p8109 = scmp.le.s32.totalorder 2, %s29
      // Predicated region
      $region105: #{encoder_forward.1} parent=5 // pred_check
        %p8110 = pneg %p8109
      $region106: #{encoder_forward.1} parent=5 // pred_check_branch
        %8112 = sbr.rel (%p8110) target = $region108
      $region107: #{encoder_forward.1} parent=5 // pred_region
        %s8113 = ssub.s32 %s29, 2
        // Predicated region
        $region109: #{encoder_forward.1} parent=107 // pred_check
          %p8114 = pneg %p483
        $region110: #{encoder_forward.1} parent=107 // pred_check_branch
          %8116 = sbr.rel (%p8114) target = $region112
        $region111: #{encoder_forward.1} parent=107 // pred_region
          %s8117 = sand.u32 %s468, 1
          %s8118 = scalar_lea.sflag [#allocation7], %s8117
          %s8119 = sand.u32 %s468, 1
          %s8120 = scalar_lea.vmem [#allocation6], %s8119
          %8121 = dma.done %s8118, 16
        $region112: #{encoder_forward.1} parent=107 // pred_fallthru
          _
      $region108: #{encoder_forward.1} parent=5 // pred_fallthru
        _
    $region6: #{encoder_forward.1} parent=1 // loop_footer
      %s33 = sadd.s32 1, %s29
    $region7: #{encoder_forward.1} parent=1 // loop_footer_branch
      %28 = sbr.rel target = $region3
    $region8: #{encoder_forward.1} parent=1 // loop_exit
      _
    %8122 = vsyncpa [#allocation7], 1
    %s8123 = scalar_lea.sflag [#allocation7], 1
    %8124 = vsyncpa %s8123, 1

</llo_original>
